<compile_context>
chip_gen: v6e
topology: v6e:2x2x1
jax: 0.10.0
libtpu: 0.0.40
codegen_flags: <defaults>
</compile_context>

<pallas_src>
import jax
import jax.numpy as jnp
from jax.experimental import pallas as pl
from jax.experimental.pallas import tpu as pltpu

# ---------------- model config (small synthetic shapes) ----------------
B = 2              # batch
C_IN = 3           # image channels
PATCH = 4          # patch size
SUB_HW = 8         # each subimage is 8x8 -> 2x2 = 4 patches
N_SUB = 2          # number of subimages
D = 32             # embed dim
HEADS = 4
DH = D // HEADS
DEPTH = 2
MLP = 4 * D
NUM_CLASSES = 3
NUM_DIM_FIX = 2
LSTM_H = 16
LSTM_LAYERS = 2
T_FIX = 5
T_IMG = N_SUB * (SUB_HW // PATCH) ** 2   # 8 image tokens
N_TOK = T_IMG + 1                        # + cls token = 9
BN = B * N_TOK                           # batch-folded token rows = 18
CPP = C_IN * PATCH * PATCH               # flattened patch = 48
LN_EPS = 1e-6
OUT_W = NUM_CLASSES + HEADS * (N_TOK - 1)   # fused lane-dense output width


def _full_spec(a):
    """BlockSpec covering the whole array, replicated across the (size-1) grid."""
    nd = a.ndim
    return pl.BlockSpec(a.shape, lambda *_: (0,) * nd)


# -------- in-kernel helpers (only ops with guaranteed Mosaic lowering) --------
def _layer_norm(x, g, b):
    mu = jnp.mean(x, axis=-1, keepdims=True)
    var = jnp.mean(jnp.square(x - mu), axis=-1, keepdims=True)
    return (x - mu) * jax.lax.rsqrt(var + LN_EPS) * g + b


def _erf(x):
    # Abramowitz & Stegun 7.1.26 (max abs err ~1.5e-7): exact-GELU semantics
    # without relying on an erf primitive lowering.
    a1, a2, a3, a4, a5 = 0.254829592, -0.284496736, 1.421413741, -1.453152027, 1.061405429
    p = 0.3275911
    sgn = jnp.where(x >= 0.0, 1.0, -1.0)
    ax = jnp.abs(x)
    t = 1.0 / (1.0 + p * ax)
    poly = ((((a5 * t + a4) * t + a3) * t + a2) * t + a1) * t
    return sgn * (1.0 - poly * jnp.exp(-ax * ax))


def _gelu_exact(x):
    return 0.5 * x * (1.0 + _erf(x * 0.7071067811865476))


def _sigmoid(x):
    return 1.0 / (1.0 + jnp.exp(-x))


# ---------------- the single fused forward kernel ----------------
def _fused_forward_kernel(patches_ref, bias_ref, poscls_ref, pw_ref,
                          ln1g_ref, ln1b_ref, qkvw_ref, qkvb_ref,
                          projw_ref, projb_ref, ln2g_ref, ln2b_ref,
                          fc1w_ref, fc1b_ref, fc2w_ref, fc2b_ref,
                          ng_ref, nb_ref,
                          seq_ref, w0_ref, b0_ref, w1_ref, b1_ref,
                          headw_ref, headb_ref,
                          out_ref):
    # ---- patch embed (conv-as-matmul) + cls + pos, batch folded to (BN, D) ----
    # patches row b*N is zeros (cls slot); poscls row b*N = cls + pos[0],
    # other rows = pos[i] + conv_bias.
    x = jnp.dot(patches_ref[...], pw_ref[...],
                preferred_element_type=jnp.float32) + poscls_ref[...]        # (BN, D)
    bias = bias_ref[...]                                                     # (BN, BN)
    scale = DH ** -0.5
    coll = None

    # TODO(synk): at production DEPTH stream layers via a grid axis instead of
    # this unrolled Python loop (keeps only one layer's weights in VMEM).
    for l in range(DEPTH):
        # ---------------- attention (all heads batched) ----------------
        h = _layer_norm(x, ln1g_ref[l], ln1b_ref[l])
        qkv = jnp.dot(h, qkvw_ref[l],
                      preferred_element_type=jnp.float32) + qkvb_ref[l]      # (BN, 3D)
        q3 = jnp.stack([qkv[:, i * DH:(i + 1) * DH] for i in range(HEADS)], axis=0)
        k3 = jnp.stack([qkv[:, D + i * DH:D + (i + 1) * DH] for i in range(HEADS)], axis=0)
        v3 = jnp.stack([qkv[:, 2 * D + i * DH:2 * D + (i + 1) * DH] for i in range(HEADS)], axis=0)
        s3 = jnp.einsum('hqd,hkd->hqk', q3, k3,
                        preferred_element_type=jnp.float32) * scale + bias[None]   # (H, BN, BN)
        m = jnp.max(s3, axis=-1, keepdims=True)
        e = jnp.exp(s3 - m)
        p3 = e * pl.reciprocal(jnp.sum(e, axis=-1, keepdims=True), approx=True)
        o3 = jnp.einsum('hqk,hkd->hqd', p3, v3,
                        preferred_element_type=jnp.float32)                  # (H, BN, DH)
        po3 = jnp.einsum('hnd,hdo->hno', o3, projw_ref[l],
                         preferred_element_type=jnp.float32)                 # (H, BN, D)
        x = x + jnp.sum(po3, axis=0) + projb_ref[l]                          # fused residual

        # collapse the LAST block's attention in place (probs never hit HBM)
        if l == DEPTH - 1:
            rows = []
            for b in range(B):
                lo = b * N_TOK + 1
                hi = (b + 1) * N_TOK
                a = p3[:, lo:hi, lo:hi]                                      # (H, N-1, N-1)
                a = a * pl.reciprocal(jnp.sum(a, axis=-1, keepdims=True), approx=True)
                s = jnp.sum(a, axis=1)                                       # (H, N-1)
                rows.append(jnp.concatenate(
                    [s[i:i + 1, :] for i in range(HEADS)], axis=1))          # (1, H*(N-1))
            coll = jnp.concatenate(rows, axis=0)                             # (B, H*(N-1))

        # ---------------- MLP ----------------
        h2 = _layer_norm(x, ln2g_ref[l], ln2b_ref[l])
        mid = jnp.dot(h2, fc1w_ref[l],
                      preferred_element_type=jnp.float32) + fc1b_ref[l]
        mid = _gelu_exact(mid)                                               # exact GELU
        mid = jnp.dot(mid, fc2w_ref[l],
                      preferred_element_type=jnp.float32) + fc2b_ref[l]
        x = x + mid                                                          # fused residual

    x = _layer_norm(x, ng_ref[...], nb_ref[...])
    # cls tokens of each sample -> (B, D) pre-logits feature
    feat = jnp.concatenate([x[b * N_TOK:b * N_TOK + 1, :] for b in range(B)], axis=0)

    # ---------------- fused 2-layer LSTM over fixations ----------------
    Hh = LSTM_H
    h0 = jnp.zeros((B, Hh), jnp.float32); c0 = jnp.zeros((B, Hh), jnp.float32)
    h1 = jnp.zeros((B, Hh), jnp.float32); c1 = jnp.zeros((B, Hh), jnp.float32)
    for t in range(T_FIX):                       # fully unrolled; h/c stay in vregs
        inp = seq_ref[t]                         # (B, NUM_DIM_FIX)
        # layer 0 — one fused [x, h] @ [Wih; Whh] matmul; PyTorch gate order i,f,g,o
        g = jnp.dot(jnp.concatenate([inp, h0], axis=1), w0_ref[...],
                    preferred_element_type=jnp.float32) + b0_ref[...]        # (B, 4H)
        sg = _sigmoid(g); th = jnp.tanh(g)       # whole-vreg activations
        c0 = sg[:, Hh:2 * Hh] * c0 + sg[:, :Hh] * th[:, 2 * Hh:3 * Hh]
        h0 = sg[:, 3 * Hh:] * jnp.tanh(c0)
        # layer 1 (stacked LSTM eats layer-0's h_t)
        g = jnp.dot(jnp.concatenate([h0, h1], axis=1), w1_ref[...],
                    preferred_element_type=jnp.float32) + b1_ref[...]
        sg = _sigmoid(g); th = jnp.tanh(g)
        c1 = sg[:, Hh:2 * Hh] * c1 + sg[:, :Hh] * th[:, 2 * Hh:3 * Hh]
        h1 = sg[:, 3 * Hh:] * jnp.tanh(c1)

    # -------- classification head + single lane-dense output store --------
    xcat = jnp.concatenate([feat, h0, h1], axis=1)                           # (B, D+2H)
    logits = jnp.dot(xcat, headw_ref[...],
                     preferred_element_type=jnp.float32) + headb_ref[...]    # (B, C)
    out_ref[...] = jnp.concatenate([logits, coll], axis=1)                   # (B, OUT_W)


# ---------------- glue ----------------
def extract_patches(img, P):
    # img: (B, C, H, W) NCHW -> (B, num_patches, C*P*P); flatten order (C, ph, pw)
    Bb, C, H, W = img.shape
    gh, gw = H // P, W // P
    x = img.reshape(Bb, C, gh, P, gw, P)
    x = x.transpose(0, 2, 4, 1, 3, 5)              # (B, gh, gw, C, P, P)
    return x.reshape(Bb, gh * gw, C * P * P)


def init_params(key):
    keys = iter(jax.random.split(key, 32))

    def w(shape, s=0.02):
        return jax.random.normal(next(keys), shape, jnp.float32) * s

    return {
        'patch_w': w((CPP, D)),                    # conv (D,C,P,P) stored as (C*P*P, D)
        'patch_b': w((D,)),
        'cls': w((1, 1, D)),
        'pos': w((1, N_TOK, D)),
        'norm_g': jnp.ones((1, D), jnp.float32),
        'norm_b': jnp.zeros((1, D), jnp.float32),
        'head_w': w((D + LSTM_LAYERS * LSTM_H, NUM_CLASSES)),
        'head_b': w((1, NUM_CLASSES)),
        'blocks': {                                # stacked along a leading DEPTH axis
            'ln1_g': jnp.ones((DEPTH, 1, D), jnp.float32),
            'ln1_b': jnp.zeros((DEPTH, 1, D), jnp.float32),
            'qkv_w': w((DEPTH, D, 3 * D)),
            'qkv_b': w((DEPTH, 1, 3 * D)),
            'proj_w': w((DEPTH, D, D)),
            'proj_b': w((DEPTH, 1, D)),
            'ln2_g': jnp.ones((DEPTH, 1, D), jnp.float32),
            'ln2_b': jnp.zeros((DEPTH, 1, D), jnp.float32),
            'fc1_w': w((DEPTH, D, MLP)),
            'fc1_b': w((DEPTH, 1, MLP)),
            'fc2_w': w((DEPTH, MLP, D)),
            'fc2_b': w((DEPTH, 1, D)),
        },
        'lstm': {
            'wih0': w((NUM_DIM_FIX, 4 * LSTM_H), 0.1),
            'whh0': w((LSTM_H, 4 * LSTM_H), 0.1),
            'b0': w((1, 4 * LSTM_H), 0.1),          # b_ih + b_hh combined
            'wih1': w((LSTM_H, 4 * LSTM_H), 0.1),
            'whh1': w((LSTM_H, 4 * LSTM_H), 0.1),
            'b1': w((1, 4 * LSTM_H), 0.1),
        },
    }


@jax.jit
def model_forward(params, subimages, masks, fixation_seq):
    Bb = subimages[0].shape[0]
    bp = params['blocks']
    lp = params['lstm']

    # ---- all subimages' patches in one slab; zero row per sample for the cls slot;
    #      batch folded to (B*N, CPP) ----
    patches = jnp.concatenate([extract_patches(img, PATCH) for img in subimages],
                              axis=1)                                    # (B, T_img, CPP)
    patches = jnp.concatenate(
        [jnp.zeros((Bb, 1, CPP), jnp.float32), patches], axis=1)         # (B, N, CPP)
    patches = patches.reshape(Bb * N_TOK, CPP)                           # (BN, CPP)

    # ---- cls token + pos embed + conv bias folded into one additive table ----
    poscls = params['pos'][0]
    poscls = poscls.at[0].add(params['cls'][0, 0])
    poscls = poscls.at[1:].add(params['patch_b'])
    poscls = jnp.tile(poscls, (Bb, 1))                                   # (BN, D)

    # ---- additive attention bias, block-diagonal over the folded batch ----
    # in-batch:    0 where mask_i*mask_j else -1e9  (same as the reference einsum mask)
    # cross-batch: -2e9 so even fully-masked query rows keep their softmax inside
    #              their own sample (the cross terms exp-underflow to exactly 0).
    m = jnp.concatenate([mm.reshape(Bb, -1) for mm in masks], axis=1)    # (B, T_img)
    pad = jnp.ones((Bb, N_TOK - m.shape[1]), dtype=bool)                 # cls always on
    m = jnp.concatenate([pad, m], axis=1).astype(jnp.float32)            # (B, N)
    m2 = jnp.einsum('bi,bj->bij', m, m)
    inblock = jnp.where(m2 > 0, 0.0, -1e9)                               # (B, N, N)
    eye = jnp.eye(Bb, dtype=bool)
    bias = jnp.where(eye[:, None, :, None], inblock[:, :, None, :], -2e9)
    bias = bias.reshape(Bb * N_TOK, Bb * N_TOK).astype(jnp.float32)      # (BN, BN)

    # ---- wrapper-side weight re-layouts (free) ----
    projw3 = bp['proj_w'].reshape(DEPTH, HEADS, DH, D)                   # per-head folded proj
    w0 = jnp.concatenate([lp['wih0'], lp['whh0']], axis=0)               # (in+H, 4H)
    w1 = jnp.concatenate([lp['wih1'], lp['whh1']], axis=0)               # (2H, 4H)
    seq = fixation_seq.transpose(1, 0, 2)                                # (T, B, 2)

    args = (patches, bias, poscls, params['patch_w'],
            bp['ln1_g'], bp['ln1_b'], bp['qkv_w'], bp['qkv_b'],
            projw3, bp['proj_b'], bp['ln2_g'], bp['ln2_b'],
            bp['fc1_w'], bp['fc1_b'], bp['fc2_w'], bp['fc2_b'],
            params['norm_g'], params['norm_b'],
            seq, w0, lp['b0'], w1, lp['b1'],
            params['head_w'], params['head_b'])

    out = pl.pallas_call(
        _fused_forward_kernel,
        out_shape=jax.ShapeDtypeStruct((Bb, OUT_W), jnp.float32),
        grid=(1,),
        in_specs=[_full_spec(a) for a in args],
        out_specs=pl.BlockSpec((Bb, OUT_W), lambda i: (0, 0)),
        compiler_params=pltpu.CompilerParams(dimension_semantics=("arbitrary",)),
    )(*args)

    logits = out[:, :NUM_CLASSES]
    collapsed = out[:, NUM_CLASSES:].reshape(Bb, HEADS, N_TOK - 1)
    return logits, collapsed


if __name__ == "__main__":
    key = jax.random.PRNGKey(0)
    k_par, k_img1, k_img2, k_fix = jax.random.split(key, 4)
    params = init_params(k_par)

    sub1 = jax.random.normal(k_img1, (B, C_IN, SUB_HW, SUB_HW), jnp.float32)
    sub2 = jax.random.normal(k_img2, (B, C_IN, SUB_HW, SUB_HW), jnp.float32)
    g = SUB_HW // PATCH
    mask1 = jnp.ones((B, g, g), dtype=bool)
    mask2 = jnp.ones((B, g, g), dtype=bool).at[:, 1, 1].set(False)
    fixation = jax.random.normal(k_fix, (B, T_FIX, NUM_DIM_FIX), jnp.float32)

    logits, attn = model_forward(params, [sub1, sub2], [mask1, mask2], fixation)
    jax.block_until_ready((logits, attn))
    assert logits.shape == (B, NUM_CLASSES)
    assert attn.shape == (B, HEADS, N_TOK - 1)
    assert bool(jnp.all(jnp.isfinite(logits))) and bool(jnp.all(jnp.isfinite(attn)))
    print("KERNEL_OK")
</pallas_src>

<mosaic_0001>
module attributes {stable_mosaic.version = 11 : i64} {
  func.func @_fused_forward_kernel(%arg0: i32, %arg1: memref<18x48xf32, #tpu.memory_space<vmem>>, %arg2: memref<18x18xf32, #tpu.memory_space<vmem>>, %arg3: memref<18x32xf32, #tpu.memory_space<vmem>>, %arg4: memref<48x32xf32, #tpu.memory_space<vmem>>, %arg5: memref<2x1x32xf32, #tpu.memory_space<vmem>>, %arg6: memref<2x1x32xf32, #tpu.memory_space<vmem>>, %arg7: memref<2x32x96xf32, #tpu.memory_space<vmem>>, %arg8: memref<2x1x96xf32, #tpu.memory_space<vmem>>, %arg9: memref<2x4x8x32xf32, #tpu.memory_space<vmem>>, %arg10: memref<2x1x32xf32, #tpu.memory_space<vmem>>, %arg11: memref<2x1x32xf32, #tpu.memory_space<vmem>>, %arg12: memref<2x1x32xf32, #tpu.memory_space<vmem>>, %arg13: memref<2x32x128xf32, #tpu.memory_space<vmem>>, %arg14: memref<2x1x128xf32, #tpu.memory_space<vmem>>, %arg15: memref<2x128x32xf32, #tpu.memory_space<vmem>>, %arg16: memref<2x1x32xf32, #tpu.memory_space<vmem>>, %arg17: memref<1x32xf32, #tpu.memory_space<vmem>>, %arg18: memref<1x32xf32, #tpu.memory_space<vmem>>, %arg19: memref<5x2x2xf32, #tpu.memory_space<vmem>>, %arg20: memref<18x64xf32, #tpu.memory_space<vmem>>, %arg21: memref<1x64xf32, #tpu.memory_space<vmem>>, %arg22: memref<32x64xf32, #tpu.memory_space<vmem>>, %arg23: memref<1x64xf32, #tpu.memory_space<vmem>>, %arg24: memref<64x3xf32, #tpu.memory_space<vmem>>, %arg25: memref<1x3xf32, #tpu.memory_space<vmem>>, %arg26: memref<2x35xf32, #tpu.memory_space<vmem>>) attributes {dimension_semantics = [#tpu.dimension_semantics<arbitrary>], iteration_bounds = array<i64: 1>, scalar_prefetch = 0 : i64, scratch_operands = 0 : i64, tpu.core_type = #tpu.core_type<tc>, window_params = [{pipeline_mode = #tpu.pipeline_mode<synchronous>, transform_indices = @transform_0, window_bounds = array<i64: 18, 48>}, {pipeline_mode = #tpu.pipeline_mode<synchronous>, transform_indices = @transform_1, window_bounds = array<i64: 18, 18>}, {pipeline_mode = #tpu.pipeline_mode<synchronous>, transform_indices = @transform_2, window_bounds = array<i64: 18, 32>}, {pipeline_mode = #tpu.pipeline_mode<synchronous>, transform_indices = @transform_3, window_bounds = array<i64: 48, 32>}, {pipeline_mode = #tpu.pipeline_mode<synchronous>, transform_indices = @transform_4, window_bounds = array<i64: 2, 1, 32>}, {pipeline_mode = #tpu.pipeline_mode<synchronous>, transform_indices = @transform_5, window_bounds = array<i64: 2, 1, 32>}, {pipeline_mode = #tpu.pipeline_mode<synchronous>, transform_indices = @transform_6, window_bounds = array<i64: 2, 32, 96>}, {pipeline_mode = #tpu.pipeline_mode<synchronous>, transform_indices = @transform_7, window_bounds = array<i64: 2, 1, 96>}, {pipeline_mode = #tpu.pipeline_mode<synchronous>, transform_indices = @transform_8, window_bounds = array<i64: 2, 4, 8, 32>}, {pipeline_mode = #tpu.pipeline_mode<synchronous>, transform_indices = @transform_9, window_bounds = array<i64: 2, 1, 32>}, {pipeline_mode = #tpu.pipeline_mode<synchronous>, transform_indices = @transform_10, window_bounds = array<i64: 2, 1, 32>}, {pipeline_mode = #tpu.pipeline_mode<synchronous>, transform_indices = @transform_11, window_bounds = array<i64: 2, 1, 32>}, {pipeline_mode = #tpu.pipeline_mode<synchronous>, transform_indices = @transform_12, window_bounds = array<i64: 2, 32, 128>}, {pipeline_mode = #tpu.pipeline_mode<synchronous>, transform_indices = @transform_13, window_bounds = array<i64: 2, 1, 128>}, {pipeline_mode = #tpu.pipeline_mode<synchronous>, transform_indices = @transform_14, window_bounds = array<i64: 2, 128, 32>}, {pipeline_mode = #tpu.pipeline_mode<synchronous>, transform_indices = @transform_15, window_bounds = array<i64: 2, 1, 32>}, {pipeline_mode = #tpu.pipeline_mode<synchronous>, transform_indices = @transform_16, window_bounds = array<i64: 1, 32>}, {pipeline_mode = #tpu.pipeline_mode<synchronous>, transform_indices = @transform_17, window_bounds = array<i64: 1, 32>}, {pipeline_mode = #tpu.pipeline_mode<synchronous>, transform_indices = @transform_18, window_bounds = array<i64: 5, 2, 2>}, {pipeline_mode = #tpu.pipeline_mode<synchronous>, transform_indices = @transform_19, window_bounds = array<i64: 18, 64>}, {pipeline_mode = #tpu.pipeline_mode<synchronous>, transform_indices = @transform_20, window_bounds = array<i64: 1, 64>}, {pipeline_mode = #tpu.pipeline_mode<synchronous>, transform_indices = @transform_21, window_bounds = array<i64: 32, 64>}, {pipeline_mode = #tpu.pipeline_mode<synchronous>, transform_indices = @transform_22, window_bounds = array<i64: 1, 64>}, {pipeline_mode = #tpu.pipeline_mode<synchronous>, transform_indices = @transform_23, window_bounds = array<i64: 64, 3>}, {pipeline_mode = #tpu.pipeline_mode<synchronous>, transform_indices = @transform_24, window_bounds = array<i64: 1, 3>}, {pipeline_mode = #tpu.pipeline_mode<synchronous>, transform_indices = @transform_25, window_bounds = array<i64: 2, 35>}]} {
    %c0 = arith.constant 0 : index
    %c0_0 = arith.constant 0 : index
    %0 = vector.load %arg1[%c0, %c0_0] : memref<18x48xf32, #tpu.memory_space<vmem>>, vector<18x48xf32>
    %c0_1 = arith.constant 0 : index
    %c0_2 = arith.constant 0 : index
    %1 = vector.load %arg4[%c0_1, %c0_2] : memref<48x32xf32, #tpu.memory_space<vmem>>, vector<48x32xf32>
    %cst = arith.constant dense<0.000000e+00> : vector<18x32xf32>
    %2 = tpu.matmul %0, %1, %cst {dimension_numbers = #tpu.dot_dimension_numbers<[1], [0], [0], [1], [0, 0, 1, 1], [], []>} : vector<18x48xf32>, vector<48x32xf32>, vector<18x32xf32> -> vector<18x32xf32>
    %c0_3 = arith.constant 0 : index
    %c0_4 = arith.constant 0 : index
    %3 = vector.load %arg3[%c0_3, %c0_4] : memref<18x32xf32, #tpu.memory_space<vmem>>, vector<18x32xf32>
    %4 = arith.addf %2, %3 : vector<18x32xf32>
    %c0_5 = arith.constant 0 : index
    %c0_6 = arith.constant 0 : index
    %5 = vector.load %arg2[%c0_5, %c0_6] : memref<18x18xf32, #tpu.memory_space<vmem>>, vector<18x18xf32>
    %c0_7 = arith.constant 0 : index
    %c0_8 = arith.constant 0 : index
    %c0_9 = arith.constant 0 : index
    %6 = vector.load %arg5[%c0_7, %c0_8, %c0_9] : memref<2x1x32xf32, #tpu.memory_space<vmem>>, vector<1x1x32xf32>
    %7 = vector.shape_cast %6 : vector<1x1x32xf32> to vector<1x32xf32>
    %c0_10 = arith.constant 0 : index
    %c0_11 = arith.constant 0 : index
    %c0_12 = arith.constant 0 : index
    %8 = vector.load %arg6[%c0_10, %c0_11, %c0_12] : memref<2x1x32xf32, #tpu.memory_space<vmem>>, vector<1x1x32xf32>
    %9 = vector.shape_cast %8 : vector<1x1x32xf32> to vector<1x32xf32>
    %cst_13 = arith.constant dense<0.000000e+00> : vector<18xf32>
    %10 = vector.multi_reduction <add>, %4, %cst_13 [1] : vector<18x32xf32> to vector<18xf32>
    %11 = vector.shape_cast %10 : vector<18xf32> to vector<18x1xf32>
    %cst_14 = arith.constant 3.200000e+01 : f32
    %12 = vector.broadcast %cst_14 : f32 to vector<18x1xf32>
    %13 = arith.divf %11, %12 : vector<18x1xf32>
    %14 = vector.broadcast %13 : vector<18x1xf32> to vector<18x32xf32>
    %15 = arith.subf %4, %14 : vector<18x32xf32>
    %16 = arith.mulf %15, %15 : vector<18x32xf32>
    %cst_15 = arith.constant dense<0.000000e+00> : vector<18xf32>
    %17 = vector.multi_reduction <add>, %16, %cst_15 [1] : vector<18x32xf32> to vector<18xf32>
    %18 = vector.shape_cast %17 : vector<18xf32> to vector<18x1xf32>
    %cst_16 = arith.constant 3.200000e+01 : f32
    %19 = vector.broadcast %cst_16 : f32 to vector<18x1xf32>
    %20 = arith.divf %18, %19 : vector<18x1xf32>
    %21 = vector.broadcast %13 : vector<18x1xf32> to vector<18x32xf32>
    %22 = arith.subf %4, %21 : vector<18x32xf32>
    %cst_17 = arith.constant 9.99999997E-7 : f32
    %23 = vector.broadcast %cst_17 : f32 to vector<18x1xf32>
    %24 = arith.addf %20, %23 : vector<18x1xf32>
    %25 = math.rsqrt %24 : vector<18x1xf32>
    %26 = vector.broadcast %25 : vector<18x1xf32> to vector<18x32xf32>
    %27 = arith.mulf %22, %26 : vector<18x32xf32>
    %28 = vector.broadcast %7 : vector<1x32xf32> to vector<18x32xf32>
    %29 = arith.mulf %27, %28 : vector<18x32xf32>
    %30 = vector.broadcast %9 : vector<1x32xf32> to vector<18x32xf32>
    %31 = arith.addf %29, %30 : vector<18x32xf32>
    %c0_18 = arith.constant 0 : index
    %c0_19 = arith.constant 0 : index
    %c0_20 = arith.constant 0 : index
    %32 = vector.load %arg7[%c0_18, %c0_19, %c0_20] : memref<2x32x96xf32, #tpu.memory_space<vmem>>, vector<1x32x96xf32>
    %33 = vector.shape_cast %32 : vector<1x32x96xf32> to vector<32x96xf32>
    %cst_21 = arith.constant dense<0.000000e+00> : vector<18x96xf32>
    %34 = tpu.matmul %31, %33, %cst_21 {dimension_numbers = #tpu.dot_dimension_numbers<[1], [0], [0], [1], [0, 0, 1, 1], [], []>} : vector<18x32xf32>, vector<32x96xf32>, vector<18x96xf32> -> vector<18x96xf32>
    %c0_22 = arith.constant 0 : index
    %c0_23 = arith.constant 0 : index
    %c0_24 = arith.constant 0 : index
    %35 = vector.load %arg8[%c0_22, %c0_23, %c0_24] : memref<2x1x96xf32, #tpu.memory_space<vmem>>, vector<1x1x96xf32>
    %36 = vector.shape_cast %35 : vector<1x1x96xf32> to vector<1x96xf32>
    %37 = vector.broadcast %36 : vector<1x96xf32> to vector<18x96xf32>
    %38 = arith.addf %34, %37 : vector<18x96xf32>
    %39 = vector.extract_strided_slice %38 {offsets = [0, 0], sizes = [18, 8], strides = [1, 1]} : vector<18x96xf32> to vector<18x8xf32>
    %40 = vector.extract_strided_slice %38 {offsets = [0, 8], sizes = [18, 8], strides = [1, 1]} : vector<18x96xf32> to vector<18x8xf32>
    %41 = vector.extract_strided_slice %38 {offsets = [0, 16], sizes = [18, 8], strides = [1, 1]} : vector<18x96xf32> to vector<18x8xf32>
    %42 = vector.extract_strided_slice %38 {offsets = [0, 24], sizes = [18, 8], strides = [1, 1]} : vector<18x96xf32> to vector<18x8xf32>
    %43 = vector.shape_cast %39 : vector<18x8xf32> to vector<1x18x8xf32>
    %44 = vector.shape_cast %40 : vector<18x8xf32> to vector<1x18x8xf32>
    %45 = vector.shape_cast %41 : vector<18x8xf32> to vector<1x18x8xf32>
    %46 = vector.shape_cast %42 : vector<18x8xf32> to vector<1x18x8xf32>
    %47 = tpu.concatenate %43, %44, %45, %46 in 0 : vector<1x18x8xf32>, vector<1x18x8xf32>, vector<1x18x8xf32>, vector<1x18x8xf32> -> vector<4x18x8xf32>
    %48 = vector.extract_strided_slice %38 {offsets = [0, 32], sizes = [18, 8], strides = [1, 1]} : vector<18x96xf32> to vector<18x8xf32>
    %49 = vector.extract_strided_slice %38 {offsets = [0, 40], sizes = [18, 8], strides = [1, 1]} : vector<18x96xf32> to vector<18x8xf32>
    %50 = vector.extract_strided_slice %38 {offsets = [0, 48], sizes = [18, 8], strides = [1, 1]} : vector<18x96xf32> to vector<18x8xf32>
    %51 = vector.extract_strided_slice %38 {offsets = [0, 56], sizes = [18, 8], strides = [1, 1]} : vector<18x96xf32> to vector<18x8xf32>
    %52 = vector.shape_cast %48 : vector<18x8xf32> to vector<1x18x8xf32>
    %53 = vector.shape_cast %49 : vector<18x8xf32> to vector<1x18x8xf32>
    %54 = vector.shape_cast %50 : vector<18x8xf32> to vector<1x18x8xf32>
    %55 = vector.shape_cast %51 : vector<18x8xf32> to vector<1x18x8xf32>
    %56 = tpu.concatenate %52, %53, %54, %55 in 0 : vector<1x18x8xf32>, vector<1x18x8xf32>, vector<1x18x8xf32>, vector<1x18x8xf32> -> vector<4x18x8xf32>
    %57 = vector.extract_strided_slice %38 {offsets = [0, 64], sizes = [18, 8], strides = [1, 1]} : vector<18x96xf32> to vector<18x8xf32>
    %58 = vector.extract_strided_slice %38 {offsets = [0, 72], sizes = [18, 8], strides = [1, 1]} : vector<18x96xf32> to vector<18x8xf32>
    %59 = vector.extract_strided_slice %38 {offsets = [0, 80], sizes = [18, 8], strides = [1, 1]} : vector<18x96xf32> to vector<18x8xf32>
    %60 = vector.extract_strided_slice %38 {offsets = [0, 88], sizes = [18, 8], strides = [1, 1]} : vector<18x96xf32> to vector<18x8xf32>
    %61 = vector.shape_cast %57 : vector<18x8xf32> to vector<1x18x8xf32>
    %62 = vector.shape_cast %58 : vector<18x8xf32> to vector<1x18x8xf32>
    %63 = vector.shape_cast %59 : vector<18x8xf32> to vector<1x18x8xf32>
    %64 = vector.shape_cast %60 : vector<18x8xf32> to vector<1x18x8xf32>
    %65 = tpu.concatenate %61, %62, %63, %64 in 0 : vector<1x18x8xf32>, vector<1x18x8xf32>, vector<1x18x8xf32>, vector<1x18x8xf32> -> vector<4x18x8xf32>
    "tpu.trace_start"() <{level = 10 : i32, message = "hqd,hkd->hqk"}> : () -> ()
    %cst_25 = arith.constant dense<0.000000e+00> : vector<4x18x18xf32>
    %66 = tpu.matmul %47, %56, %cst_25 {dimension_numbers = #tpu.dot_dimension_numbers<[2], [2], [1], [1], [0, 0, 0, 1, 1, 1], [0], [0]>} : vector<4x18x8xf32>, vector<4x18x8xf32>, vector<4x18x18xf32> -> vector<4x18x18xf32>
    "tpu.trace_stop"() : () -> ()
    %cst_26 = arith.constant 0.353553385 : f32
    %67 = vector.broadcast %cst_26 : f32 to vector<4x18x18xf32>
    %68 = arith.mulf %66, %67 : vector<4x18x18xf32>
    %69 = vector.shape_cast %5 : vector<18x18xf32> to vector<1x18x18xf32>
    %70 = vector.broadcast %69 : vector<1x18x18xf32> to vector<4x18x18xf32>
    %71 = arith.addf %68, %70 : vector<4x18x18xf32>
    %cst_27 = arith.constant dense<0xFF800000> : vector<4x18xf32>
    %72 = vector.multi_reduction <maximumf>, %71, %cst_27 [2] : vector<4x18x18xf32> to vector<4x18xf32>
    %73 = vector.shape_cast %72 : vector<4x18xf32> to vector<4x18x1xf32>
    %74 = vector.broadcast %73 : vector<4x18x1xf32> to vector<4x18x18xf32>
    %75 = arith.subf %71, %74 : vector<4x18x18xf32>
    %76 = math.exp %75 : vector<4x18x18xf32>
    %cst_28 = arith.constant dense<0.000000e+00> : vector<4x18xf32>
    %77 = vector.multi_reduction <add>, %76, %cst_28 [2] : vector<4x18x18xf32> to vector<4x18xf32>
    %78 = vector.shape_cast %77 : vector<4x18xf32> to vector<4x18x1xf32>
    %79 = tpu.reciprocal %78 {approx = true} : vector<4x18x1xf32> -> vector<4x18x1xf32>
    %80 = vector.broadcast %79 : vector<4x18x1xf32> to vector<4x18x18xf32>
    %81 = arith.mulf %76, %80 : vector<4x18x18xf32>
    "tpu.trace_start"() <{level = 10 : i32, message = "hqk,hkd->hqd"}> : () -> ()
    %cst_29 = arith.constant dense<0.000000e+00> : vector<4x18x8xf32>
    %82 = tpu.matmul %81, %65, %cst_29 {dimension_numbers = #tpu.dot_dimension_numbers<[2], [1], [1], [2], [0, 0, 0, 1, 1, 2], [0], [0]>} : vector<4x18x18xf32>, vector<4x18x8xf32>, vector<4x18x8xf32> -> vector<4x18x8xf32>
    "tpu.trace_stop"() : () -> ()
    %c0_30 = arith.constant 0 : index
    %c0_31 = arith.constant 0 : index
    %c0_32 = arith.constant 0 : index
    %c0_33 = arith.constant 0 : index
    %83 = vector.load %arg9[%c0_30, %c0_31, %c0_32, %c0_33] : memref<2x4x8x32xf32, #tpu.memory_space<vmem>>, vector<1x4x8x32xf32>
    %84 = vector.shape_cast %83 : vector<1x4x8x32xf32> to vector<4x8x32xf32>
    "tpu.trace_start"() <{level = 10 : i32, message = "hnd,hdo->hno"}> : () -> ()
    %cst_34 = arith.constant dense<0.000000e+00> : vector<4x18x32xf32>
    %85 = tpu.matmul %82, %84, %cst_34 {dimension_numbers = #tpu.dot_dimension_numbers<[2], [1], [1], [2], [0, 0, 0, 1, 1, 2], [0], [0]>} : vector<4x18x8xf32>, vector<4x8x32xf32>, vector<4x18x32xf32> -> vector<4x18x32xf32>
    "tpu.trace_stop"() : () -> ()
    %cst_35 = arith.constant dense<0.000000e+00> : vector<18x32xf32>
    %86 = vector.multi_reduction <add>, %85, %cst_35 [0] : vector<4x18x32xf32> to vector<18x32xf32>
    %87 = arith.addf %4, %86 : vector<18x32xf32>
    %c0_36 = arith.constant 0 : index
    %c0_37 = arith.constant 0 : index
    %c0_38 = arith.constant 0 : index
    %88 = vector.load %arg10[%c0_36, %c0_37, %c0_38] : memref<2x1x32xf32, #tpu.memory_space<vmem>>, vector<1x1x32xf32>
    %89 = vector.shape_cast %88 : vector<1x1x32xf32> to vector<1x32xf32>
    %90 = vector.broadcast %89 : vector<1x32xf32> to vector<18x32xf32>
    %91 = arith.addf %87, %90 : vector<18x32xf32>
    %c0_39 = arith.constant 0 : index
    %c0_40 = arith.constant 0 : index
    %c0_41 = arith.constant 0 : index
    %92 = vector.load %arg11[%c0_39, %c0_40, %c0_41] : memref<2x1x32xf32, #tpu.memory_space<vmem>>, vector<1x1x32xf32>
    %93 = vector.shape_cast %92 : vector<1x1x32xf32> to vector<1x32xf32>
    %c0_42 = arith.constant 0 : index
    %c0_43 = arith.constant 0 : index
    %c0_44 = arith.constant 0 : index
    %94 = vector.load %arg12[%c0_42, %c0_43, %c0_44] : memref<2x1x32xf32, #tpu.memory_space<vmem>>, vector<1x1x32xf32>
    %95 = vector.shape_cast %94 : vector<1x1x32xf32> to vector<1x32xf32>
    %cst_45 = arith.constant dense<0.000000e+00> : vector<18xf32>
    %96 = vector.multi_reduction <add>, %91, %cst_45 [1] : vector<18x32xf32> to vector<18xf32>
    %97 = vector.shape_cast %96 : vector<18xf32> to vector<18x1xf32>
    %cst_46 = arith.constant 3.200000e+01 : f32
    %98 = vector.broadcast %cst_46 : f32 to vector<18x1xf32>
    %99 = arith.divf %97, %98 : vector<18x1xf32>
    %100 = vector.broadcast %99 : vector<18x1xf32> to vector<18x32xf32>
    %101 = arith.subf %91, %100 : vector<18x32xf32>
    %102 = arith.mulf %101, %101 : vector<18x32xf32>
    %cst_47 = arith.constant dense<0.000000e+00> : vector<18xf32>
    %103 = vector.multi_reduction <add>, %102, %cst_47 [1] : vector<18x32xf32> to vector<18xf32>
    %104 = vector.shape_cast %103 : vector<18xf32> to vector<18x1xf32>
    %cst_48 = arith.constant 3.200000e+01 : f32
    %105 = vector.broadcast %cst_48 : f32 to vector<18x1xf32>
    %106 = arith.divf %104, %105 : vector<18x1xf32>
    %107 = vector.broadcast %99 : vector<18x1xf32> to vector<18x32xf32>
    %108 = arith.subf %91, %107 : vector<18x32xf32>
    %cst_49 = arith.constant 9.99999997E-7 : f32
    %109 = vector.broadcast %cst_49 : f32 to vector<18x1xf32>
    %110 = arith.addf %106, %109 : vector<18x1xf32>
    %111 = math.rsqrt %110 : vector<18x1xf32>
    %112 = vector.broadcast %111 : vector<18x1xf32> to vector<18x32xf32>
    %113 = arith.mulf %108, %112 : vector<18x32xf32>
    %114 = vector.broadcast %93 : vector<1x32xf32> to vector<18x32xf32>
    %115 = arith.mulf %113, %114 : vector<18x32xf32>
    %116 = vector.broadcast %95 : vector<1x32xf32> to vector<18x32xf32>
    %117 = arith.addf %115, %116 : vector<18x32xf32>
    %c0_50 = arith.constant 0 : index
    %c0_51 = arith.constant 0 : index
    %c0_52 = arith.constant 0 : index
    %118 = vector.load %arg13[%c0_50, %c0_51, %c0_52] : memref<2x32x128xf32, #tpu.memory_space<vmem>>, vector<1x32x128xf32>
    %119 = vector.shape_cast %118 : vector<1x32x128xf32> to vector<32x128xf32>
    %cst_53 = arith.constant dense<0.000000e+00> : vector<18x128xf32>
    %120 = tpu.matmul %117, %119, %cst_53 {dimension_numbers = #tpu.dot_dimension_numbers<[1], [0], [0], [1], [0, 0, 1, 1], [], []>} : vector<18x32xf32>, vector<32x128xf32>, vector<18x128xf32> -> vector<18x128xf32>
    %c0_54 = arith.constant 0 : index
    %c0_55 = arith.constant 0 : index
    %c0_56 = arith.constant 0 : index
    %121 = vector.load %arg14[%c0_54, %c0_55, %c0_56] : memref<2x1x128xf32, #tpu.memory_space<vmem>>, vector<1x1x128xf32>
    %122 = vector.shape_cast %121 : vector<1x1x128xf32> to vector<1x128xf32>
    %123 = vector.broadcast %122 : vector<1x128xf32> to vector<18x128xf32>
    %124 = arith.addf %120, %123 : vector<18x128xf32>
    %cst_57 = arith.constant 5.000000e-01 : f32
    %125 = vector.broadcast %cst_57 : f32 to vector<18x128xf32>
    %126 = arith.mulf %125, %124 : vector<18x128xf32>
    %cst_58 = arith.constant 0.707106769 : f32
    %127 = vector.broadcast %cst_58 : f32 to vector<18x128xf32>
    %128 = arith.mulf %124, %127 : vector<18x128xf32>
    %cst_59 = arith.constant 0.000000e+00 : f32
    %129 = vector.broadcast %cst_59 : f32 to vector<18x128xf32>
    %130 = arith.cmpf oge, %128, %129 : vector<18x128xf32>
    %cst_60 = arith.constant 1.000000e+00 : f32
    %cst_61 = arith.constant -1.000000e+00 : f32
    %131 = vector.broadcast %cst_60 : f32 to vector<18x128xf32>
    %132 = vector.broadcast %cst_61 : f32 to vector<18x128xf32>
    %133 = arith.select %130, %131, %132 : vector<18x128xi1>, vector<18x128xf32>
    %134 = math.absf %128 : vector<18x128xf32>
    %cst_62 = arith.constant 0.327591091 : f32
    %135 = vector.broadcast %cst_62 : f32 to vector<18x128xf32>
    %136 = arith.mulf %135, %134 : vector<18x128xf32>
    %cst_63 = arith.constant 1.000000e+00 : f32
    %137 = vector.broadcast %cst_63 : f32 to vector<18x128xf32>
    %138 = arith.addf %137, %136 : vector<18x128xf32>
    %cst_64 = arith.constant 1.000000e+00 : f32
    %139 = vector.broadcast %cst_64 : f32 to vector<18x128xf32>
    %140 = arith.divf %139, %138 : vector<18x128xf32>
    %cst_65 = arith.constant 1.06140542 : f32
    %141 = vector.broadcast %cst_65 : f32 to vector<18x128xf32>
    %142 = arith.mulf %141, %140 : vector<18x128xf32>
    %cst_66 = arith.constant -1.45315206 : f32
    %143 = vector.broadcast %cst_66 : f32 to vector<18x128xf32>
    %144 = arith.addf %142, %143 : vector<18x128xf32>
    %145 = arith.mulf %144, %140 : vector<18x128xf32>
    %cst_67 = arith.constant 1.42141378 : f32
    %146 = vector.broadcast %cst_67 : f32 to vector<18x128xf32>
    %147 = arith.addf %145, %146 : vector<18x128xf32>
    %148 = arith.mulf %147, %140 : vector<18x128xf32>
    %cst_68 = arith.constant -0.284496725 : f32
    %149 = vector.broadcast %cst_68 : f32 to vector<18x128xf32>
    %150 = arith.addf %148, %149 : vector<18x128xf32>
    %151 = arith.mulf %150, %140 : vector<18x128xf32>
    %cst_69 = arith.constant 0.254829586 : f32
    %152 = vector.broadcast %cst_69 : f32 to vector<18x128xf32>
    %153 = arith.addf %151, %152 : vector<18x128xf32>
    %154 = arith.mulf %153, %140 : vector<18x128xf32>
    %cst_70 = arith.constant 0.000000e+00 : f32
    %155 = vector.broadcast %cst_70 : f32 to vector<18x128xf32>
    %156 = arith.subf %155, %134 : vector<18x128xf32>
    %157 = arith.mulf %156, %134 : vector<18x128xf32>
    %158 = math.exp %157 : vector<18x128xf32>
    %159 = arith.mulf %154, %158 : vector<18x128xf32>
    %cst_71 = arith.constant 1.000000e+00 : f32
    %160 = vector.broadcast %cst_71 : f32 to vector<18x128xf32>
    %161 = arith.subf %160, %159 : vector<18x128xf32>
    %162 = arith.mulf %133, %161 : vector<18x128xf32>
    %cst_72 = arith.constant 1.000000e+00 : f32
    %163 = vector.broadcast %cst_72 : f32 to vector<18x128xf32>
    %164 = arith.addf %163, %162 : vector<18x128xf32>
    %165 = arith.mulf %126, %164 : vector<18x128xf32>
    %c0_73 = arith.constant 0 : index
    %c0_74 = arith.constant 0 : index
    %c0_75 = arith.constant 0 : index
    %166 = vector.load %arg15[%c0_73, %c0_74, %c0_75] : memref<2x128x32xf32, #tpu.memory_space<vmem>>, vector<1x128x32xf32>
    %167 = vector.shape_cast %166 : vector<1x128x32xf32> to vector<128x32xf32>
    %cst_76 = arith.constant dense<0.000000e+00> : vector<18x32xf32>
    %168 = tpu.matmul %165, %167, %cst_76 {dimension_numbers = #tpu.dot_dimension_numbers<[1], [0], [0], [1], [0, 0, 1, 1], [], []>} : vector<18x128xf32>, vector<128x32xf32>, vector<18x32xf32> -> vector<18x32xf32>
    %c0_77 = arith.constant 0 : index
    %c0_78 = arith.constant 0 : index
    %c0_79 = arith.constant 0 : index
    %169 = vector.load %arg16[%c0_77, %c0_78, %c0_79] : memref<2x1x32xf32, #tpu.memory_space<vmem>>, vector<1x1x32xf32>
    %170 = vector.shape_cast %169 : vector<1x1x32xf32> to vector<1x32xf32>
    %171 = vector.broadcast %170 : vector<1x32xf32> to vector<18x32xf32>
    %172 = arith.addf %168, %171 : vector<18x32xf32>
    %173 = arith.addf %91, %172 : vector<18x32xf32>
    %c1 = arith.constant 1 : index
    %c0_80 = arith.constant 0 : index
    %c0_81 = arith.constant 0 : index
    %174 = vector.load %arg5[%c1, %c0_80, %c0_81] : memref<2x1x32xf32, #tpu.memory_space<vmem>>, vector<1x1x32xf32>
    %175 = vector.shape_cast %174 : vector<1x1x32xf32> to vector<1x32xf32>
    %c1_82 = arith.constant 1 : index
    %c0_83 = arith.constant 0 : index
    %c0_84 = arith.constant 0 : index
    %176 = vector.load %arg6[%c1_82, %c0_83, %c0_84] : memref<2x1x32xf32, #tpu.memory_space<vmem>>, vector<1x1x32xf32>
    %177 = vector.shape_cast %176 : vector<1x1x32xf32> to vector<1x32xf32>
    %cst_85 = arith.constant dense<0.000000e+00> : vector<18xf32>
    %178 = vector.multi_reduction <add>, %173, %cst_85 [1] : vector<18x32xf32> to vector<18xf32>
    %179 = vector.shape_cast %178 : vector<18xf32> to vector<18x1xf32>
    %cst_86 = arith.constant 3.200000e+01 : f32
    %180 = vector.broadcast %cst_86 : f32 to vector<18x1xf32>
    %181 = arith.divf %179, %180 : vector<18x1xf32>
    %182 = vector.broadcast %181 : vector<18x1xf32> to vector<18x32xf32>
    %183 = arith.subf %173, %182 : vector<18x32xf32>
    %184 = arith.mulf %183, %183 : vector<18x32xf32>
    %cst_87 = arith.constant dense<0.000000e+00> : vector<18xf32>
    %185 = vector.multi_reduction <add>, %184, %cst_87 [1] : vector<18x32xf32> to vector<18xf32>
    %186 = vector.shape_cast %185 : vector<18xf32> to vector<18x1xf32>
    %cst_88 = arith.constant 3.200000e+01 : f32
    %187 = vector.broadcast %cst_88 : f32 to vector<18x1xf32>
    %188 = arith.divf %186, %187 : vector<18x1xf32>
    %189 = vector.broadcast %181 : vector<18x1xf32> to vector<18x32xf32>
    %190 = arith.subf %173, %189 : vector<18x32xf32>
    %cst_89 = arith.constant 9.99999997E-7 : f32
    %191 = vector.broadcast %cst_89 : f32 to vector<18x1xf32>
    %192 = arith.addf %188, %191 : vector<18x1xf32>
    %193 = math.rsqrt %192 : vector<18x1xf32>
    %194 = vector.broadcast %193 : vector<18x1xf32> to vector<18x32xf32>
    %195 = arith.mulf %190, %194 : vector<18x32xf32>
    %196 = vector.broadcast %175 : vector<1x32xf32> to vector<18x32xf32>
    %197 = arith.mulf %195, %196 : vector<18x32xf32>
    %198 = vector.broadcast %177 : vector<1x32xf32> to vector<18x32xf32>
    %199 = arith.addf %197, %198 : vector<18x32xf32>
    %c1_90 = arith.constant 1 : index
    %c0_91 = arith.constant 0 : index
    %c0_92 = arith.constant 0 : index
    %200 = vector.load %arg7[%c1_90, %c0_91, %c0_92] : memref<2x32x96xf32, #tpu.memory_space<vmem>>, vector<1x32x96xf32>
    %201 = vector.shape_cast %200 : vector<1x32x96xf32> to vector<32x96xf32>
    %cst_93 = arith.constant dense<0.000000e+00> : vector<18x96xf32>
    %202 = tpu.matmul %199, %201, %cst_93 {dimension_numbers = #tpu.dot_dimension_numbers<[1], [0], [0], [1], [0, 0, 1, 1], [], []>} : vector<18x32xf32>, vector<32x96xf32>, vector<18x96xf32> -> vector<18x96xf32>
    %c1_94 = arith.constant 1 : index
    %c0_95 = arith.constant 0 : index
    %c0_96 = arith.constant 0 : index
    %203 = vector.load %arg8[%c1_94, %c0_95, %c0_96] : memref<2x1x96xf32, #tpu.memory_space<vmem>>, vector<1x1x96xf32>
    %204 = vector.shape_cast %203 : vector<1x1x96xf32> to vector<1x96xf32>
    %205 = vector.broadcast %204 : vector<1x96xf32> to vector<18x96xf32>
    %206 = arith.addf %202, %205 : vector<18x96xf32>
    %207 = vector.extract_strided_slice %206 {offsets = [0, 0], sizes = [18, 8], strides = [1, 1]} : vector<18x96xf32> to vector<18x8xf32>
    %208 = vector.extract_strided_slice %206 {offsets = [0, 8], sizes = [18, 8], strides = [1, 1]} : vector<18x96xf32> to vector<18x8xf32>
    %209 = vector.extract_strided_slice %206 {offsets = [0, 16], sizes = [18, 8], strides = [1, 1]} : vector<18x96xf32> to vector<18x8xf32>
    %210 = vector.extract_strided_slice %206 {offsets = [0, 24], sizes = [18, 8], strides = [1, 1]} : vector<18x96xf32> to vector<18x8xf32>
    %211 = vector.shape_cast %207 : vector<18x8xf32> to vector<1x18x8xf32>
    %212 = vector.shape_cast %208 : vector<18x8xf32> to vector<1x18x8xf32>
    %213 = vector.shape_cast %209 : vector<18x8xf32> to vector<1x18x8xf32>
    %214 = vector.shape_cast %210 : vector<18x8xf32> to vector<1x18x8xf32>
    %215 = tpu.concatenate %211, %212, %213, %214 in 0 : vector<1x18x8xf32>, vector<1x18x8xf32>, vector<1x18x8xf32>, vector<1x18x8xf32> -> vector<4x18x8xf32>
    %216 = vector.extract_strided_slice %206 {offsets = [0, 32], sizes = [18, 8], strides = [1, 1]} : vector<18x96xf32> to vector<18x8xf32>
    %217 = vector.extract_strided_slice %206 {offsets = [0, 40], sizes = [18, 8], strides = [1, 1]} : vector<18x96xf32> to vector<18x8xf32>
    %218 = vector.extract_strided_slice %206 {offsets = [0, 48], sizes = [18, 8], strides = [1, 1]} : vector<18x96xf32> to vector<18x8xf32>
    %219 = vector.extract_strided_slice %206 {offsets = [0, 56], sizes = [18, 8], strides = [1, 1]} : vector<18x96xf32> to vector<18x8xf32>
    %220 = vector.shape_cast %216 : vector<18x8xf32> to vector<1x18x8xf32>
    %221 = vector.shape_cast %217 : vector<18x8xf32> to vector<1x18x8xf32>
    %222 = vector.shape_cast %218 : vector<18x8xf32> to vector<1x18x8xf32>
    %223 = vector.shape_cast %219 : vector<18x8xf32> to vector<1x18x8xf32>
    %224 = tpu.concatenate %220, %221, %222, %223 in 0 : vector<1x18x8xf32>, vector<1x18x8xf32>, vector<1x18x8xf32>, vector<1x18x8xf32> -> vector<4x18x8xf32>
    %225 = vector.extract_strided_slice %206 {offsets = [0, 64], sizes = [18, 8], strides = [1, 1]} : vector<18x96xf32> to vector<18x8xf32>
    %226 = vector.extract_strided_slice %206 {offsets = [0, 72], sizes = [18, 8], strides = [1, 1]} : vector<18x96xf32> to vector<18x8xf32>
    %227 = vector.extract_strided_slice %206 {offsets = [0, 80], sizes = [18, 8], strides = [1, 1]} : vector<18x96xf32> to vector<18x8xf32>
    %228 = vector.extract_strided_slice %206 {offsets = [0, 88], sizes = [18, 8], strides = [1, 1]} : vector<18x96xf32> to vector<18x8xf32>
    %229 = vector.shape_cast %225 : vector<18x8xf32> to vector<1x18x8xf32>
    %230 = vector.shape_cast %226 : vector<18x8xf32> to vector<1x18x8xf32>
    %231 = vector.shape_cast %227 : vector<18x8xf32> to vector<1x18x8xf32>
    %232 = vector.shape_cast %228 : vector<18x8xf32> to vector<1x18x8xf32>
    %233 = tpu.concatenate %229, %230, %231, %232 in 0 : vector<1x18x8xf32>, vector<1x18x8xf32>, vector<1x18x8xf32>, vector<1x18x8xf32> -> vector<4x18x8xf32>
    "tpu.trace_start"() <{level = 10 : i32, message = "hqd,hkd->hqk"}> : () -> ()
    %cst_97 = arith.constant dense<0.000000e+00> : vector<4x18x18xf32>
    %234 = tpu.matmul %215, %224, %cst_97 {dimension_numbers = #tpu.dot_dimension_numbers<[2], [2], [1], [1], [0, 0, 0, 1, 1, 1], [0], [0]>} : vector<4x18x8xf32>, vector<4x18x8xf32>, vector<4x18x18xf32> -> vector<4x18x18xf32>
    "tpu.trace_stop"() : () -> ()
    %cst_98 = arith.constant 0.353553385 : f32
    %235 = vector.broadcast %cst_98 : f32 to vector<4x18x18xf32>
    %236 = arith.mulf %234, %235 : vector<4x18x18xf32>
    %237 = vector.shape_cast %5 : vector<18x18xf32> to vector<1x18x18xf32>
    %238 = vector.broadcast %237 : vector<1x18x18xf32> to vector<4x18x18xf32>
    %239 = arith.addf %236, %238 : vector<4x18x18xf32>
    %cst_99 = arith.constant dense<0xFF800000> : vector<4x18xf32>
    %240 = vector.multi_reduction <maximumf>, %239, %cst_99 [2] : vector<4x18x18xf32> to vector<4x18xf32>
    %241 = vector.shape_cast %240 : vector<4x18xf32> to vector<4x18x1xf32>
    %242 = vector.broadcast %241 : vector<4x18x1xf32> to vector<4x18x18xf32>
    %243 = arith.subf %239, %242 : vector<4x18x18xf32>
    %244 = math.exp %243 : vector<4x18x18xf32>
    %cst_100 = arith.constant dense<0.000000e+00> : vector<4x18xf32>
    %245 = vector.multi_reduction <add>, %244, %cst_100 [2] : vector<4x18x18xf32> to vector<4x18xf32>
    %246 = vector.shape_cast %245 : vector<4x18xf32> to vector<4x18x1xf32>
    %247 = tpu.reciprocal %246 {approx = true} : vector<4x18x1xf32> -> vector<4x18x1xf32>
    %248 = vector.broadcast %247 : vector<4x18x1xf32> to vector<4x18x18xf32>
    %249 = arith.mulf %244, %248 : vector<4x18x18xf32>
    "tpu.trace_start"() <{level = 10 : i32, message = "hqk,hkd->hqd"}> : () -> ()
    %cst_101 = arith.constant dense<0.000000e+00> : vector<4x18x8xf32>
    %250 = tpu.matmul %249, %233, %cst_101 {dimension_numbers = #tpu.dot_dimension_numbers<[2], [1], [1], [2], [0, 0, 0, 1, 1, 2], [0], [0]>} : vector<4x18x18xf32>, vector<4x18x8xf32>, vector<4x18x8xf32> -> vector<4x18x8xf32>
    "tpu.trace_stop"() : () -> ()
    %c1_102 = arith.constant 1 : index
    %c0_103 = arith.constant 0 : index
    %c0_104 = arith.constant 0 : index
    %c0_105 = arith.constant 0 : index
    %251 = vector.load %arg9[%c1_102, %c0_103, %c0_104, %c0_105] : memref<2x4x8x32xf32, #tpu.memory_space<vmem>>, vector<1x4x8x32xf32>
    %252 = vector.shape_cast %251 : vector<1x4x8x32xf32> to vector<4x8x32xf32>
    "tpu.trace_start"() <{level = 10 : i32, message = "hnd,hdo->hno"}> : () -> ()
    %cst_106 = arith.constant dense<0.000000e+00> : vector<4x18x32xf32>
    %253 = tpu.matmul %250, %252, %cst_106 {dimension_numbers = #tpu.dot_dimension_numbers<[2], [1], [1], [2], [0, 0, 0, 1, 1, 2], [0], [0]>} : vector<4x18x8xf32>, vector<4x8x32xf32>, vector<4x18x32xf32> -> vector<4x18x32xf32>
    "tpu.trace_stop"() : () -> ()
    %cst_107 = arith.constant dense<0.000000e+00> : vector<18x32xf32>
    %254 = vector.multi_reduction <add>, %253, %cst_107 [0] : vector<4x18x32xf32> to vector<18x32xf32>
    %255 = arith.addf %173, %254 : vector<18x32xf32>
    %c1_108 = arith.constant 1 : index
    %c0_109 = arith.constant 0 : index
    %c0_110 = arith.constant 0 : index
    %256 = vector.load %arg10[%c1_108, %c0_109, %c0_110] : memref<2x1x32xf32, #tpu.memory_space<vmem>>, vector<1x1x32xf32>
    %257 = vector.shape_cast %256 : vector<1x1x32xf32> to vector<1x32xf32>
    %258 = vector.broadcast %257 : vector<1x32xf32> to vector<18x32xf32>
    %259 = arith.addf %255, %258 : vector<18x32xf32>
    %260 = vector.extract_strided_slice %249 {offsets = [0, 1, 1], sizes = [4, 8, 8], strides = [1, 1, 1]} : vector<4x18x18xf32> to vector<4x8x8xf32>
    %cst_111 = arith.constant dense<0.000000e+00> : vector<4x8xf32>
    %261 = vector.multi_reduction <add>, %260, %cst_111 [2] : vector<4x8x8xf32> to vector<4x8xf32>
    %262 = vector.shape_cast %261 : vector<4x8xf32> to vector<4x8x1xf32>
    %263 = tpu.reciprocal %262 {approx = true} : vector<4x8x1xf32> -> vector<4x8x1xf32>
    %264 = vector.broadcast %263 : vector<4x8x1xf32> to vector<4x8x8xf32>
    %265 = arith.mulf %260, %264 : vector<4x8x8xf32>
    %cst_112 = arith.constant dense<0.000000e+00> : vector<4x8xf32>
    %266 = vector.multi_reduction <add>, %265, %cst_112 [1] : vector<4x8x8xf32> to vector<4x8xf32>
    %267 = vector.extract_strided_slice %266 {offsets = [0, 0], sizes = [1, 8], strides = [1, 1]} : vector<4x8xf32> to vector<1x8xf32>
    %268 = vector.extract_strided_slice %266 {offsets = [1, 0], sizes = [1, 8], strides = [1, 1]} : vector<4x8xf32> to vector<1x8xf32>
    %269 = vector.extract_strided_slice %266 {offsets = [2, 0], sizes = [1, 8], strides = [1, 1]} : vector<4x8xf32> to vector<1x8xf32>
    %270 = vector.extract_strided_slice %266 {offsets = [3, 0], sizes = [1, 8], strides = [1, 1]} : vector<4x8xf32> to vector<1x8xf32>
    %271 = tpu.concatenate %267, %268, %269, %270 in 1 : vector<1x8xf32>, vector<1x8xf32>, vector<1x8xf32>, vector<1x8xf32> -> vector<1x32xf32>
    %272 = vector.extract_strided_slice %249 {offsets = [0, 10, 10], sizes = [4, 8, 8], strides = [1, 1, 1]} : vector<4x18x18xf32> to vector<4x8x8xf32>
    %cst_113 = arith.constant dense<0.000000e+00> : vector<4x8xf32>
    %273 = vector.multi_reduction <add>, %272, %cst_113 [2] : vector<4x8x8xf32> to vector<4x8xf32>
    %274 = vector.shape_cast %273 : vector<4x8xf32> to vector<4x8x1xf32>
    %275 = tpu.reciprocal %274 {approx = true} : vector<4x8x1xf32> -> vector<4x8x1xf32>
    %276 = vector.broadcast %275 : vector<4x8x1xf32> to vector<4x8x8xf32>
    %277 = arith.mulf %272, %276 : vector<4x8x8xf32>
    %cst_114 = arith.constant dense<0.000000e+00> : vector<4x8xf32>
    %278 = vector.multi_reduction <add>, %277, %cst_114 [1] : vector<4x8x8xf32> to vector<4x8xf32>
    %279 = vector.extract_strided_slice %278 {offsets = [0, 0], sizes = [1, 8], strides = [1, 1]} : vector<4x8xf32> to vector<1x8xf32>
    %280 = vector.extract_strided_slice %278 {offsets = [1, 0], sizes = [1, 8], strides = [1, 1]} : vector<4x8xf32> to vector<1x8xf32>
    %281 = vector.extract_strided_slice %278 {offsets = [2, 0], sizes = [1, 8], strides = [1, 1]} : vector<4x8xf32> to vector<1x8xf32>
    %282 = vector.extract_strided_slice %278 {offsets = [3, 0], sizes = [1, 8], strides = [1, 1]} : vector<4x8xf32> to vector<1x8xf32>
    %283 = tpu.concatenate %279, %280, %281, %282 in 1 : vector<1x8xf32>, vector<1x8xf32>, vector<1x8xf32>, vector<1x8xf32> -> vector<1x32xf32>
    %284 = tpu.concatenate %271, %283 in 0 : vector<1x32xf32>, vector<1x32xf32> -> vector<2x32xf32>
    %c1_115 = arith.constant 1 : index
    %c0_116 = arith.constant 0 : index
    %c0_117 = arith.constant 0 : index
    %285 = vector.load %arg11[%c1_115, %c0_116, %c0_117] : memref<2x1x32xf32, #tpu.memory_space<vmem>>, vector<1x1x32xf32>
    %286 = vector.shape_cast %285 : vector<1x1x32xf32> to vector<1x32xf32>
    %c1_118 = arith.constant 1 : index
    %c0_119 = arith.constant 0 : index
    %c0_120 = arith.constant 0 : index
    %287 = vector.load %arg12[%c1_118, %c0_119, %c0_120] : memref<2x1x32xf32, #tpu.memory_space<vmem>>, vector<1x1x32xf32>
    %288 = vector.shape_cast %287 : vector<1x1x32xf32> to vector<1x32xf32>
    %cst_121 = arith.constant dense<0.000000e+00> : vector<18xf32>
    %289 = vector.multi_reduction <add>, %259, %cst_121 [1] : vector<18x32xf32> to vector<18xf32>
    %290 = vector.shape_cast %289 : vector<18xf32> to vector<18x1xf32>
    %cst_122 = arith.constant 3.200000e+01 : f32
    %291 = vector.broadcast %cst_122 : f32 to vector<18x1xf32>
    %292 = arith.divf %290, %291 : vector<18x1xf32>
    %293 = vector.broadcast %292 : vector<18x1xf32> to vector<18x32xf32>
    %294 = arith.subf %259, %293 : vector<18x32xf32>
    %295 = arith.mulf %294, %294 : vector<18x32xf32>
    %cst_123 = arith.constant dense<0.000000e+00> : vector<18xf32>
    %296 = vector.multi_reduction <add>, %295, %cst_123 [1] : vector<18x32xf32> to vector<18xf32>
    %297 = vector.shape_cast %296 : vector<18xf32> to vector<18x1xf32>
    %cst_124 = arith.constant 3.200000e+01 : f32
    %298 = vector.broadcast %cst_124 : f32 to vector<18x1xf32>
    %299 = arith.divf %297, %298 : vector<18x1xf32>
    %300 = vector.broadcast %292 : vector<18x1xf32> to vector<18x32xf32>
    %301 = arith.subf %259, %300 : vector<18x32xf32>
    %cst_125 = arith.constant 9.99999997E-7 : f32
    %302 = vector.broadcast %cst_125 : f32 to vector<18x1xf32>
    %303 = arith.addf %299, %302 : vector<18x1xf32>
    %304 = math.rsqrt %303 : vector<18x1xf32>
    %305 = vector.broadcast %304 : vector<18x1xf32> to vector<18x32xf32>
    %306 = arith.mulf %301, %305 : vector<18x32xf32>
    %307 = vector.broadcast %286 : vector<1x32xf32> to vector<18x32xf32>
    %308 = arith.mulf %306, %307 : vector<18x32xf32>
    %309 = vector.broadcast %288 : vector<1x32xf32> to vector<18x32xf32>
    %310 = arith.addf %308, %309 : vector<18x32xf32>
    %c1_126 = arith.constant 1 : index
    %c0_127 = arith.constant 0 : index
    %c0_128 = arith.constant 0 : index
    %311 = vector.load %arg13[%c1_126, %c0_127, %c0_128] : memref<2x32x128xf32, #tpu.memory_space<vmem>>, vector<1x32x128xf32>
    %312 = vector.shape_cast %311 : vector<1x32x128xf32> to vector<32x128xf32>
    %cst_129 = arith.constant dense<0.000000e+00> : vector<18x128xf32>
    %313 = tpu.matmul %310, %312, %cst_129 {dimension_numbers = #tpu.dot_dimension_numbers<[1], [0], [0], [1], [0, 0, 1, 1], [], []>} : vector<18x32xf32>, vector<32x128xf32>, vector<18x128xf32> -> vector<18x128xf32>
    %c1_130 = arith.constant 1 : index
    %c0_131 = arith.constant 0 : index
    %c0_132 = arith.constant 0 : index
    %314 = vector.load %arg14[%c1_130, %c0_131, %c0_132] : memref<2x1x128xf32, #tpu.memory_space<vmem>>, vector<1x1x128xf32>
    %315 = vector.shape_cast %314 : vector<1x1x128xf32> to vector<1x128xf32>
    %316 = vector.broadcast %315 : vector<1x128xf32> to vector<18x128xf32>
    %317 = arith.addf %313, %316 : vector<18x128xf32>
    %cst_133 = arith.constant 5.000000e-01 : f32
    %318 = vector.broadcast %cst_133 : f32 to vector<18x128xf32>
    %319 = arith.mulf %318, %317 : vector<18x128xf32>
    %cst_134 = arith.constant 0.707106769 : f32
    %320 = vector.broadcast %cst_134 : f32 to vector<18x128xf32>
    %321 = arith.mulf %317, %320 : vector<18x128xf32>
    %cst_135 = arith.constant 0.000000e+00 : f32
    %322 = vector.broadcast %cst_135 : f32 to vector<18x128xf32>
    %323 = arith.cmpf oge, %321, %322 : vector<18x128xf32>
    %cst_136 = arith.constant 1.000000e+00 : f32
    %cst_137 = arith.constant -1.000000e+00 : f32
    %324 = vector.broadcast %cst_136 : f32 to vector<18x128xf32>
    %325 = vector.broadcast %cst_137 : f32 to vector<18x128xf32>
    %326 = arith.select %323, %324, %325 : vector<18x128xi1>, vector<18x128xf32>
    %327 = math.absf %321 : vector<18x128xf32>
    %cst_138 = arith.constant 0.327591091 : f32
    %328 = vector.broadcast %cst_138 : f32 to vector<18x128xf32>
    %329 = arith.mulf %328, %327 : vector<18x128xf32>
    %cst_139 = arith.constant 1.000000e+00 : f32
    %330 = vector.broadcast %cst_139 : f32 to vector<18x128xf32>
    %331 = arith.addf %330, %329 : vector<18x128xf32>
    %cst_140 = arith.constant 1.000000e+00 : f32
    %332 = vector.broadcast %cst_140 : f32 to vector<18x128xf32>
    %333 = arith.divf %332, %331 : vector<18x128xf32>
    %cst_141 = arith.constant 1.06140542 : f32
    %334 = vector.broadcast %cst_141 : f32 to vector<18x128xf32>
    %335 = arith.mulf %334, %333 : vector<18x128xf32>
    %cst_142 = arith.constant -1.45315206 : f32
    %336 = vector.broadcast %cst_142 : f32 to vector<18x128xf32>
    %337 = arith.addf %335, %336 : vector<18x128xf32>
    %338 = arith.mulf %337, %333 : vector<18x128xf32>
    %cst_143 = arith.constant 1.42141378 : f32
    %339 = vector.broadcast %cst_143 : f32 to vector<18x128xf32>
    %340 = arith.addf %338, %339 : vector<18x128xf32>
    %341 = arith.mulf %340, %333 : vector<18x128xf32>
    %cst_144 = arith.constant -0.284496725 : f32
    %342 = vector.broadcast %cst_144 : f32 to vector<18x128xf32>
    %343 = arith.addf %341, %342 : vector<18x128xf32>
    %344 = arith.mulf %343, %333 : vector<18x128xf32>
    %cst_145 = arith.constant 0.254829586 : f32
    %345 = vector.broadcast %cst_145 : f32 to vector<18x128xf32>
    %346 = arith.addf %344, %345 : vector<18x128xf32>
    %347 = arith.mulf %346, %333 : vector<18x128xf32>
    %cst_146 = arith.constant 0.000000e+00 : f32
    %348 = vector.broadcast %cst_146 : f32 to vector<18x128xf32>
    %349 = arith.subf %348, %327 : vector<18x128xf32>
    %350 = arith.mulf %349, %327 : vector<18x128xf32>
    %351 = math.exp %350 : vector<18x128xf32>
    %352 = arith.mulf %347, %351 : vector<18x128xf32>
    %cst_147 = arith.constant 1.000000e+00 : f32
    %353 = vector.broadcast %cst_147 : f32 to vector<18x128xf32>
    %354 = arith.subf %353, %352 : vector<18x128xf32>
    %355 = arith.mulf %326, %354 : vector<18x128xf32>
    %cst_148 = arith.constant 1.000000e+00 : f32
    %356 = vector.broadcast %cst_148 : f32 to vector<18x128xf32>
    %357 = arith.addf %356, %355 : vector<18x128xf32>
    %358 = arith.mulf %319, %357 : vector<18x128xf32>
    %c1_149 = arith.constant 1 : index
    %c0_150 = arith.constant 0 : index
    %c0_151 = arith.constant 0 : index
    %359 = vector.load %arg15[%c1_149, %c0_150, %c0_151] : memref<2x128x32xf32, #tpu.memory_space<vmem>>, vector<1x128x32xf32>
    %360 = vector.shape_cast %359 : vector<1x128x32xf32> to vector<128x32xf32>
    %cst_152 = arith.constant dense<0.000000e+00> : vector<18x32xf32>
    %361 = tpu.matmul %358, %360, %cst_152 {dimension_numbers = #tpu.dot_dimension_numbers<[1], [0], [0], [1], [0, 0, 1, 1], [], []>} : vector<18x128xf32>, vector<128x32xf32>, vector<18x32xf32> -> vector<18x32xf32>
    %c1_153 = arith.constant 1 : index
    %c0_154 = arith.constant 0 : index
    %c0_155 = arith.constant 0 : index
    %362 = vector.load %arg16[%c1_153, %c0_154, %c0_155] : memref<2x1x32xf32, #tpu.memory_space<vmem>>, vector<1x1x32xf32>
    %363 = vector.shape_cast %362 : vector<1x1x32xf32> to vector<1x32xf32>
    %364 = vector.broadcast %363 : vector<1x32xf32> to vector<18x32xf32>
    %365 = arith.addf %361, %364 : vector<18x32xf32>
    %366 = arith.addf %259, %365 : vector<18x32xf32>
    %c0_156 = arith.constant 0 : index
    %c0_157 = arith.constant 0 : index
    %367 = vector.load %arg17[%c0_156, %c0_157] : memref<1x32xf32, #tpu.memory_space<vmem>>, vector<1x32xf32>
    %c0_158 = arith.constant 0 : index
    %c0_159 = arith.constant 0 : index
    %368 = vector.load %arg18[%c0_158, %c0_159] : memref<1x32xf32, #tpu.memory_space<vmem>>, vector<1x32xf32>
    %cst_160 = arith.constant dense<0.000000e+00> : vector<18xf32>
    %369 = vector.multi_reduction <add>, %366, %cst_160 [1] : vector<18x32xf32> to vector<18xf32>
    %370 = vector.shape_cast %369 : vector<18xf32> to vector<18x1xf32>
    %cst_161 = arith.constant 3.200000e+01 : f32
    %371 = vector.broadcast %cst_161 : f32 to vector<18x1xf32>
    %372 = arith.divf %370, %371 : vector<18x1xf32>
    %373 = vector.broadcast %372 : vector<18x1xf32> to vector<18x32xf32>
    %374 = arith.subf %366, %373 : vector<18x32xf32>
    %375 = arith.mulf %374, %374 : vector<18x32xf32>
    %cst_162 = arith.constant dense<0.000000e+00> : vector<18xf32>
    %376 = vector.multi_reduction <add>, %375, %cst_162 [1] : vector<18x32xf32> to vector<18xf32>
    %377 = vector.shape_cast %376 : vector<18xf32> to vector<18x1xf32>
    %cst_163 = arith.constant 3.200000e+01 : f32
    %378 = vector.broadcast %cst_163 : f32 to vector<18x1xf32>
    %379 = arith.divf %377, %378 : vector<18x1xf32>
    %380 = vector.broadcast %372 : vector<18x1xf32> to vector<18x32xf32>
    %381 = arith.subf %366, %380 : vector<18x32xf32>
    %cst_164 = arith.constant 9.99999997E-7 : f32
    %382 = vector.broadcast %cst_164 : f32 to vector<18x1xf32>
    %383 = arith.addf %379, %382 : vector<18x1xf32>
    %384 = math.rsqrt %383 : vector<18x1xf32>
    %385 = vector.broadcast %384 : vector<18x1xf32> to vector<18x32xf32>
    %386 = arith.mulf %381, %385 : vector<18x32xf32>
    %387 = vector.broadcast %367 : vector<1x32xf32> to vector<18x32xf32>
    %388 = arith.mulf %386, %387 : vector<18x32xf32>
    %389 = vector.broadcast %368 : vector<1x32xf32> to vector<18x32xf32>
    %390 = arith.addf %388, %389 : vector<18x32xf32>
    %391 = vector.extract_strided_slice %390 {offsets = [0, 0], sizes = [1, 32], strides = [1, 1]} : vector<18x32xf32> to vector<1x32xf32>
    %392 = vector.extract_strided_slice %390 {offsets = [9, 0], sizes = [1, 32], strides = [1, 1]} : vector<18x32xf32> to vector<1x32xf32>
    %393 = tpu.concatenate %391, %392 in 0 : vector<1x32xf32>, vector<1x32xf32> -> vector<2x32xf32>
    %cst_165 = arith.constant 0.000000e+00 : f32
    %394 = vector.broadcast %cst_165 : f32 to vector<2x16xf32>
    %cst_166 = arith.constant 0.000000e+00 : f32
    %395 = vector.broadcast %cst_166 : f32 to vector<2x16xf32>
    %cst_167 = arith.constant 0.000000e+00 : f32
    %396 = vector.broadcast %cst_167 : f32 to vector<2x16xf32>
    %cst_168 = arith.constant 0.000000e+00 : f32
    %397 = vector.broadcast %cst_168 : f32 to vector<2x16xf32>
    %c0_169 = arith.constant 0 : index
    %c0_170 = arith.constant 0 : index
    %c0_171 = arith.constant 0 : index
    %398 = vector.load %arg19[%c0_169, %c0_170, %c0_171] : memref<5x2x2xf32, #tpu.memory_space<vmem>>, vector<1x2x2xf32>
    %399 = vector.shape_cast %398 : vector<1x2x2xf32> to vector<2x2xf32>
    %400 = tpu.concatenate %399, %394 in 1 : vector<2x2xf32>, vector<2x16xf32> -> vector<2x18xf32>
    %c0_172 = arith.constant 0 : index
    %c0_173 = arith.constant 0 : index
    %401 = vector.load %arg20[%c0_172, %c0_173] : memref<18x64xf32, #tpu.memory_space<vmem>>, vector<18x64xf32>
    %cst_174 = arith.constant dense<0.000000e+00> : vector<2x64xf32>
    %402 = tpu.matmul %400, %401, %cst_174 {dimension_numbers = #tpu.dot_dimension_numbers<[1], [0], [0], [1], [0, 0, 1, 1], [], []>} : vector<2x18xf32>, vector<18x64xf32>, vector<2x64xf32> -> vector<2x64xf32>
    %c0_175 = arith.constant 0 : index
    %c0_176 = arith.constant 0 : index
    %403 = vector.load %arg21[%c0_175, %c0_176] : memref<1x64xf32, #tpu.memory_space<vmem>>, vector<1x64xf32>
    %404 = vector.broadcast %403 : vector<1x64xf32> to vector<2x64xf32>
    %405 = arith.addf %402, %404 : vector<2x64xf32>
    %cst_177 = arith.constant 0.000000e+00 : f32
    %406 = vector.broadcast %cst_177 : f32 to vector<2x64xf32>
    %407 = arith.subf %406, %405 : vector<2x64xf32>
    %408 = math.exp %407 : vector<2x64xf32>
    %cst_178 = arith.constant 1.000000e+00 : f32
    %409 = vector.broadcast %cst_178 : f32 to vector<2x64xf32>
    %410 = arith.addf %409, %408 : vector<2x64xf32>
    %cst_179 = arith.constant 1.000000e+00 : f32
    %411 = vector.broadcast %cst_179 : f32 to vector<2x64xf32>
    %412 = arith.divf %411, %410 : vector<2x64xf32>
    %413 = math.tanh %405 : vector<2x64xf32>
    %414 = vector.extract_strided_slice %412 {offsets = [0, 16], sizes = [2, 16], strides = [1, 1]} : vector<2x64xf32> to vector<2x16xf32>
    %415 = arith.mulf %414, %395 : vector<2x16xf32>
    %416 = vector.extract_strided_slice %412 {offsets = [0, 0], sizes = [2, 16], strides = [1, 1]} : vector<2x64xf32> to vector<2x16xf32>
    %417 = vector.extract_strided_slice %413 {offsets = [0, 32], sizes = [2, 16], strides = [1, 1]} : vector<2x64xf32> to vector<2x16xf32>
    %418 = arith.mulf %416, %417 : vector<2x16xf32>
    %419 = arith.addf %415, %418 : vector<2x16xf32>
    %420 = vector.extract_strided_slice %412 {offsets = [0, 48], sizes = [2, 16], strides = [1, 1]} : vector<2x64xf32> to vector<2x16xf32>
    %421 = math.tanh %419 : vector<2x16xf32>
    %422 = arith.mulf %420, %421 : vector<2x16xf32>
    %423 = tpu.concatenate %422, %396 in 1 : vector<2x16xf32>, vector<2x16xf32> -> vector<2x32xf32>
    %c0_180 = arith.constant 0 : index
    %c0_181 = arith.constant 0 : index
    %424 = vector.load %arg22[%c0_180, %c0_181] : memref<32x64xf32, #tpu.memory_space<vmem>>, vector<32x64xf32>
    %cst_182 = arith.constant dense<0.000000e+00> : vector<2x64xf32>
    %425 = tpu.matmul %423, %424, %cst_182 {dimension_numbers = #tpu.dot_dimension_numbers<[1], [0], [0], [1], [0, 0, 1, 1], [], []>} : vector<2x32xf32>, vector<32x64xf32>, vector<2x64xf32> -> vector<2x64xf32>
    %c0_183 = arith.constant 0 : index
    %c0_184 = arith.constant 0 : index
    %426 = vector.load %arg23[%c0_183, %c0_184] : memref<1x64xf32, #tpu.memory_space<vmem>>, vector<1x64xf32>
    %427 = vector.broadcast %426 : vector<1x64xf32> to vector<2x64xf32>
    %428 = arith.addf %425, %427 : vector<2x64xf32>
    %cst_185 = arith.constant 0.000000e+00 : f32
    %429 = vector.broadcast %cst_185 : f32 to vector<2x64xf32>
    %430 = arith.subf %429, %428 : vector<2x64xf32>
    %431 = math.exp %430 : vector<2x64xf32>
    %cst_186 = arith.constant 1.000000e+00 : f32
    %432 = vector.broadcast %cst_186 : f32 to vector<2x64xf32>
    %433 = arith.addf %432, %431 : vector<2x64xf32>
    %cst_187 = arith.constant 1.000000e+00 : f32
    %434 = vector.broadcast %cst_187 : f32 to vector<2x64xf32>
    %435 = arith.divf %434, %433 : vector<2x64xf32>
    %436 = math.tanh %428 : vector<2x64xf32>
    %437 = vector.extract_strided_slice %435 {offsets = [0, 16], sizes = [2, 16], strides = [1, 1]} : vector<2x64xf32> to vector<2x16xf32>
    %438 = arith.mulf %437, %397 : vector<2x16xf32>
    %439 = vector.extract_strided_slice %435 {offsets = [0, 0], sizes = [2, 16], strides = [1, 1]} : vector<2x64xf32> to vector<2x16xf32>
    %440 = vector.extract_strided_slice %436 {offsets = [0, 32], sizes = [2, 16], strides = [1, 1]} : vector<2x64xf32> to vector<2x16xf32>
    %441 = arith.mulf %439, %440 : vector<2x16xf32>
    %442 = arith.addf %438, %441 : vector<2x16xf32>
    %443 = vector.extract_strided_slice %435 {offsets = [0, 48], sizes = [2, 16], strides = [1, 1]} : vector<2x64xf32> to vector<2x16xf32>
    %444 = math.tanh %442 : vector<2x16xf32>
    %445 = arith.mulf %443, %444 : vector<2x16xf32>
    %c1_188 = arith.constant 1 : index
    %c0_189 = arith.constant 0 : index
    %c0_190 = arith.constant 0 : index
    %446 = vector.load %arg19[%c1_188, %c0_189, %c0_190] : memref<5x2x2xf32, #tpu.memory_space<vmem>>, vector<1x2x2xf32>
    %447 = vector.shape_cast %446 : vector<1x2x2xf32> to vector<2x2xf32>
    %448 = tpu.concatenate %447, %422 in 1 : vector<2x2xf32>, vector<2x16xf32> -> vector<2x18xf32>
    %c0_191 = arith.constant 0 : index
    %c0_192 = arith.constant 0 : index
    %449 = vector.load %arg20[%c0_191, %c0_192] : memref<18x64xf32, #tpu.memory_space<vmem>>, vector<18x64xf32>
    %cst_193 = arith.constant dense<0.000000e+00> : vector<2x64xf32>
    %450 = tpu.matmul %448, %449, %cst_193 {dimension_numbers = #tpu.dot_dimension_numbers<[1], [0], [0], [1], [0, 0, 1, 1], [], []>} : vector<2x18xf32>, vector<18x64xf32>, vector<2x64xf32> -> vector<2x64xf32>
    %c0_194 = arith.constant 0 : index
    %c0_195 = arith.constant 0 : index
    %451 = vector.load %arg21[%c0_194, %c0_195] : memref<1x64xf32, #tpu.memory_space<vmem>>, vector<1x64xf32>
    %452 = vector.broadcast %451 : vector<1x64xf32> to vector<2x64xf32>
    %453 = arith.addf %450, %452 : vector<2x64xf32>
    %cst_196 = arith.constant 0.000000e+00 : f32
    %454 = vector.broadcast %cst_196 : f32 to vector<2x64xf32>
    %455 = arith.subf %454, %453 : vector<2x64xf32>
    %456 = math.exp %455 : vector<2x64xf32>
    %cst_197 = arith.constant 1.000000e+00 : f32
    %457 = vector.broadcast %cst_197 : f32 to vector<2x64xf32>
    %458 = arith.addf %457, %456 : vector<2x64xf32>
    %cst_198 = arith.constant 1.000000e+00 : f32
    %459 = vector.broadcast %cst_198 : f32 to vector<2x64xf32>
    %460 = arith.divf %459, %458 : vector<2x64xf32>
    %461 = math.tanh %453 : vector<2x64xf32>
    %462 = vector.extract_strided_slice %460 {offsets = [0, 16], sizes = [2, 16], strides = [1, 1]} : vector<2x64xf32> to vector<2x16xf32>
    %463 = arith.mulf %462, %419 : vector<2x16xf32>
    %464 = vector.extract_strided_slice %460 {offsets = [0, 0], sizes = [2, 16], strides = [1, 1]} : vector<2x64xf32> to vector<2x16xf32>
    %465 = vector.extract_strided_slice %461 {offsets = [0, 32], sizes = [2, 16], strides = [1, 1]} : vector<2x64xf32> to vector<2x16xf32>
    %466 = arith.mulf %464, %465 : vector<2x16xf32>
    %467 = arith.addf %463, %466 : vector<2x16xf32>
    %468 = vector.extract_strided_slice %460 {offsets = [0, 48], sizes = [2, 16], strides = [1, 1]} : vector<2x64xf32> to vector<2x16xf32>
    %469 = math.tanh %467 : vector<2x16xf32>
    %470 = arith.mulf %468, %469 : vector<2x16xf32>
    %471 = tpu.concatenate %470, %445 in 1 : vector<2x16xf32>, vector<2x16xf32> -> vector<2x32xf32>
    %c0_199 = arith.constant 0 : index
    %c0_200 = arith.constant 0 : index
    %472 = vector.load %arg22[%c0_199, %c0_200] : memref<32x64xf32, #tpu.memory_space<vmem>>, vector<32x64xf32>
    %cst_201 = arith.constant dense<0.000000e+00> : vector<2x64xf32>
    %473 = tpu.matmul %471, %472, %cst_201 {dimension_numbers = #tpu.dot_dimension_numbers<[1], [0], [0], [1], [0, 0, 1, 1], [], []>} : vector<2x32xf32>, vector<32x64xf32>, vector<2x64xf32> -> vector<2x64xf32>
    %c0_202 = arith.constant 0 : index
    %c0_203 = arith.constant 0 : index
    %474 = vector.load %arg23[%c0_202, %c0_203] : memref<1x64xf32, #tpu.memory_space<vmem>>, vector<1x64xf32>
    %475 = vector.broadcast %474 : vector<1x64xf32> to vector<2x64xf32>
    %476 = arith.addf %473, %475 : vector<2x64xf32>
    %cst_204 = arith.constant 0.000000e+00 : f32
    %477 = vector.broadcast %cst_204 : f32 to vector<2x64xf32>
    %478 = arith.subf %477, %476 : vector<2x64xf32>
    %479 = math.exp %478 : vector<2x64xf32>
    %cst_205 = arith.constant 1.000000e+00 : f32
    %480 = vector.broadcast %cst_205 : f32 to vector<2x64xf32>
    %481 = arith.addf %480, %479 : vector<2x64xf32>
    %cst_206 = arith.constant 1.000000e+00 : f32
    %482 = vector.broadcast %cst_206 : f32 to vector<2x64xf32>
    %483 = arith.divf %482, %481 : vector<2x64xf32>
    %484 = math.tanh %476 : vector<2x64xf32>
    %485 = vector.extract_strided_slice %483 {offsets = [0, 16], sizes = [2, 16], strides = [1, 1]} : vector<2x64xf32> to vector<2x16xf32>
    %486 = arith.mulf %485, %442 : vector<2x16xf32>
    %487 = vector.extract_strided_slice %483 {offsets = [0, 0], sizes = [2, 16], strides = [1, 1]} : vector<2x64xf32> to vector<2x16xf32>
    %488 = vector.extract_strided_slice %484 {offsets = [0, 32], sizes = [2, 16], strides = [1, 1]} : vector<2x64xf32> to vector<2x16xf32>
    %489 = arith.mulf %487, %488 : vector<2x16xf32>
    %490 = arith.addf %486, %489 : vector<2x16xf32>
    %491 = vector.extract_strided_slice %483 {offsets = [0, 48], sizes = [2, 16], strides = [1, 1]} : vector<2x64xf32> to vector<2x16xf32>
    %492 = math.tanh %490 : vector<2x16xf32>
    %493 = arith.mulf %491, %492 : vector<2x16xf32>
    %c2 = arith.constant 2 : index
    %c0_207 = arith.constant 0 : index
    %c0_208 = arith.constant 0 : index
    %494 = vector.load %arg19[%c2, %c0_207, %c0_208] : memref<5x2x2xf32, #tpu.memory_space<vmem>>, vector<1x2x2xf32>
    %495 = vector.shape_cast %494 : vector<1x2x2xf32> to vector<2x2xf32>
    %496 = tpu.concatenate %495, %470 in 1 : vector<2x2xf32>, vector<2x16xf32> -> vector<2x18xf32>
    %c0_209 = arith.constant 0 : index
    %c0_210 = arith.constant 0 : index
    %497 = vector.load %arg20[%c0_209, %c0_210] : memref<18x64xf32, #tpu.memory_space<vmem>>, vector<18x64xf32>
    %cst_211 = arith.constant dense<0.000000e+00> : vector<2x64xf32>
    %498 = tpu.matmul %496, %497, %cst_211 {dimension_numbers = #tpu.dot_dimension_numbers<[1], [0], [0], [1], [0, 0, 1, 1], [], []>} : vector<2x18xf32>, vector<18x64xf32>, vector<2x64xf32> -> vector<2x64xf32>
    %c0_212 = arith.constant 0 : index
    %c0_213 = arith.constant 0 : index
    %499 = vector.load %arg21[%c0_212, %c0_213] : memref<1x64xf32, #tpu.memory_space<vmem>>, vector<1x64xf32>
    %500 = vector.broadcast %499 : vector<1x64xf32> to vector<2x64xf32>
    %501 = arith.addf %498, %500 : vector<2x64xf32>
    %cst_214 = arith.constant 0.000000e+00 : f32
    %502 = vector.broadcast %cst_214 : f32 to vector<2x64xf32>
    %503 = arith.subf %502, %501 : vector<2x64xf32>
    %504 = math.exp %503 : vector<2x64xf32>
    %cst_215 = arith.constant 1.000000e+00 : f32
    %505 = vector.broadcast %cst_215 : f32 to vector<2x64xf32>
    %506 = arith.addf %505, %504 : vector<2x64xf32>
    %cst_216 = arith.constant 1.000000e+00 : f32
    %507 = vector.broadcast %cst_216 : f32 to vector<2x64xf32>
    %508 = arith.divf %507, %506 : vector<2x64xf32>
    %509 = math.tanh %501 : vector<2x64xf32>
    %510 = vector.extract_strided_slice %508 {offsets = [0, 16], sizes = [2, 16], strides = [1, 1]} : vector<2x64xf32> to vector<2x16xf32>
    %511 = arith.mulf %510, %467 : vector<2x16xf32>
    %512 = vector.extract_strided_slice %508 {offsets = [0, 0], sizes = [2, 16], strides = [1, 1]} : vector<2x64xf32> to vector<2x16xf32>
    %513 = vector.extract_strided_slice %509 {offsets = [0, 32], sizes = [2, 16], strides = [1, 1]} : vector<2x64xf32> to vector<2x16xf32>
    %514 = arith.mulf %512, %513 : vector<2x16xf32>
    %515 = arith.addf %511, %514 : vector<2x16xf32>
    %516 = vector.extract_strided_slice %508 {offsets = [0, 48], sizes = [2, 16], strides = [1, 1]} : vector<2x64xf32> to vector<2x16xf32>
    %517 = math.tanh %515 : vector<2x16xf32>
    %518 = arith.mulf %516, %517 : vector<2x16xf32>
    %519 = tpu.concatenate %518, %493 in 1 : vector<2x16xf32>, vector<2x16xf32> -> vector<2x32xf32>
    %c0_217 = arith.constant 0 : index
    %c0_218 = arith.constant 0 : index
    %520 = vector.load %arg22[%c0_217, %c0_218] : memref<32x64xf32, #tpu.memory_space<vmem>>, vector<32x64xf32>
    %cst_219 = arith.constant dense<0.000000e+00> : vector<2x64xf32>
    %521 = tpu.matmul %519, %520, %cst_219 {dimension_numbers = #tpu.dot_dimension_numbers<[1], [0], [0], [1], [0, 0, 1, 1], [], []>} : vector<2x32xf32>, vector<32x64xf32>, vector<2x64xf32> -> vector<2x64xf32>
    %c0_220 = arith.constant 0 : index
    %c0_221 = arith.constant 0 : index
    %522 = vector.load %arg23[%c0_220, %c0_221] : memref<1x64xf32, #tpu.memory_space<vmem>>, vector<1x64xf32>
    %523 = vector.broadcast %522 : vector<1x64xf32> to vector<2x64xf32>
    %524 = arith.addf %521, %523 : vector<2x64xf32>
    %cst_222 = arith.constant 0.000000e+00 : f32
    %525 = vector.broadcast %cst_222 : f32 to vector<2x64xf32>
    %526 = arith.subf %525, %524 : vector<2x64xf32>
    %527 = math.exp %526 : vector<2x64xf32>
    %cst_223 = arith.constant 1.000000e+00 : f32
    %528 = vector.broadcast %cst_223 : f32 to vector<2x64xf32>
    %529 = arith.addf %528, %527 : vector<2x64xf32>
    %cst_224 = arith.constant 1.000000e+00 : f32
    %530 = vector.broadcast %cst_224 : f32 to vector<2x64xf32>
    %531 = arith.divf %530, %529 : vector<2x64xf32>
    %532 = math.tanh %524 : vector<2x64xf32>
    %533 = vector.extract_strided_slice %531 {offsets = [0, 16], sizes = [2, 16], strides = [1, 1]} : vector<2x64xf32> to vector<2x16xf32>
    %534 = arith.mulf %533, %490 : vector<2x16xf32>
    %535 = vector.extract_strided_slice %531 {offsets = [0, 0], sizes = [2, 16], strides = [1, 1]} : vector<2x64xf32> to vector<2x16xf32>
    %536 = vector.extract_strided_slice %532 {offsets = [0, 32], sizes = [2, 16], strides = [1, 1]} : vector<2x64xf32> to vector<2x16xf32>
    %537 = arith.mulf %535, %536 : vector<2x16xf32>
    %538 = arith.addf %534, %537 : vector<2x16xf32>
    %539 = vector.extract_strided_slice %531 {offsets = [0, 48], sizes = [2, 16], strides = [1, 1]} : vector<2x64xf32> to vector<2x16xf32>
    %540 = math.tanh %538 : vector<2x16xf32>
    %541 = arith.mulf %539, %540 : vector<2x16xf32>
    %c3 = arith.constant 3 : index
    %c0_225 = arith.constant 0 : index
    %c0_226 = arith.constant 0 : index
    %542 = vector.load %arg19[%c3, %c0_225, %c0_226] : memref<5x2x2xf32, #tpu.memory_space<vmem>>, vector<1x2x2xf32>
    %543 = vector.shape_cast %542 : vector<1x2x2xf32> to vector<2x2xf32>
    %544 = tpu.concatenate %543, %518 in 1 : vector<2x2xf32>, vector<2x16xf32> -> vector<2x18xf32>
    %c0_227 = arith.constant 0 : index
    %c0_228 = arith.constant 0 : index
    %545 = vector.load %arg20[%c0_227, %c0_228] : memref<18x64xf32, #tpu.memory_space<vmem>>, vector<18x64xf32>
    %cst_229 = arith.constant dense<0.000000e+00> : vector<2x64xf32>
    %546 = tpu.matmul %544, %545, %cst_229 {dimension_numbers = #tpu.dot_dimension_numbers<[1], [0], [0], [1], [0, 0, 1, 1], [], []>} : vector<2x18xf32>, vector<18x64xf32>, vector<2x64xf32> -> vector<2x64xf32>
    %c0_230 = arith.constant 0 : index
    %c0_231 = arith.constant 0 : index
    %547 = vector.load %arg21[%c0_230, %c0_231] : memref<1x64xf32, #tpu.memory_space<vmem>>, vector<1x64xf32>
    %548 = vector.broadcast %547 : vector<1x64xf32> to vector<2x64xf32>
    %549 = arith.addf %546, %548 : vector<2x64xf32>
    %cst_232 = arith.constant 0.000000e+00 : f32
    %550 = vector.broadcast %cst_232 : f32 to vector<2x64xf32>
    %551 = arith.subf %550, %549 : vector<2x64xf32>
    %552 = math.exp %551 : vector<2x64xf32>
    %cst_233 = arith.constant 1.000000e+00 : f32
    %553 = vector.broadcast %cst_233 : f32 to vector<2x64xf32>
    %554 = arith.addf %553, %552 : vector<2x64xf32>
    %cst_234 = arith.constant 1.000000e+00 : f32
    %555 = vector.broadcast %cst_234 : f32 to vector<2x64xf32>
    %556 = arith.divf %555, %554 : vector<2x64xf32>
    %557 = math.tanh %549 : vector<2x64xf32>
    %558 = vector.extract_strided_slice %556 {offsets = [0, 16], sizes = [2, 16], strides = [1, 1]} : vector<2x64xf32> to vector<2x16xf32>
    %559 = arith.mulf %558, %515 : vector<2x16xf32>
    %560 = vector.extract_strided_slice %556 {offsets = [0, 0], sizes = [2, 16], strides = [1, 1]} : vector<2x64xf32> to vector<2x16xf32>
    %561 = vector.extract_strided_slice %557 {offsets = [0, 32], sizes = [2, 16], strides = [1, 1]} : vector<2x64xf32> to vector<2x16xf32>
    %562 = arith.mulf %560, %561 : vector<2x16xf32>
    %563 = arith.addf %559, %562 : vector<2x16xf32>
    %564 = vector.extract_strided_slice %556 {offsets = [0, 48], sizes = [2, 16], strides = [1, 1]} : vector<2x64xf32> to vector<2x16xf32>
    %565 = math.tanh %563 : vector<2x16xf32>
    %566 = arith.mulf %564, %565 : vector<2x16xf32>
    %567 = tpu.concatenate %566, %541 in 1 : vector<2x16xf32>, vector<2x16xf32> -> vector<2x32xf32>
    %c0_235 = arith.constant 0 : index
    %c0_236 = arith.constant 0 : index
    %568 = vector.load %arg22[%c0_235, %c0_236] : memref<32x64xf32, #tpu.memory_space<vmem>>, vector<32x64xf32>
    %cst_237 = arith.constant dense<0.000000e+00> : vector<2x64xf32>
    %569 = tpu.matmul %567, %568, %cst_237 {dimension_numbers = #tpu.dot_dimension_numbers<[1], [0], [0], [1], [0, 0, 1, 1], [], []>} : vector<2x32xf32>, vector<32x64xf32>, vector<2x64xf32> -> vector<2x64xf32>
    %c0_238 = arith.constant 0 : index
    %c0_239 = arith.constant 0 : index
    %570 = vector.load %arg23[%c0_238, %c0_239] : memref<1x64xf32, #tpu.memory_space<vmem>>, vector<1x64xf32>
    %571 = vector.broadcast %570 : vector<1x64xf32> to vector<2x64xf32>
    %572 = arith.addf %569, %571 : vector<2x64xf32>
    %cst_240 = arith.constant 0.000000e+00 : f32
    %573 = vector.broadcast %cst_240 : f32 to vector<2x64xf32>
    %574 = arith.subf %573, %572 : vector<2x64xf32>
    %575 = math.exp %574 : vector<2x64xf32>
    %cst_241 = arith.constant 1.000000e+00 : f32
    %576 = vector.broadcast %cst_241 : f32 to vector<2x64xf32>
    %577 = arith.addf %576, %575 : vector<2x64xf32>
    %cst_242 = arith.constant 1.000000e+00 : f32
    %578 = vector.broadcast %cst_242 : f32 to vector<2x64xf32>
    %579 = arith.divf %578, %577 : vector<2x64xf32>
    %580 = math.tanh %572 : vector<2x64xf32>
    %581 = vector.extract_strided_slice %579 {offsets = [0, 16], sizes = [2, 16], strides = [1, 1]} : vector<2x64xf32> to vector<2x16xf32>
    %582 = arith.mulf %581, %538 : vector<2x16xf32>
    %583 = vector.extract_strided_slice %579 {offsets = [0, 0], sizes = [2, 16], strides = [1, 1]} : vector<2x64xf32> to vector<2x16xf32>
    %584 = vector.extract_strided_slice %580 {offsets = [0, 32], sizes = [2, 16], strides = [1, 1]} : vector<2x64xf32> to vector<2x16xf32>
    %585 = arith.mulf %583, %584 : vector<2x16xf32>
    %586 = arith.addf %582, %585 : vector<2x16xf32>
    %587 = vector.extract_strided_slice %579 {offsets = [0, 48], sizes = [2, 16], strides = [1, 1]} : vector<2x64xf32> to vector<2x16xf32>
    %588 = math.tanh %586 : vector<2x16xf32>
    %589 = arith.mulf %587, %588 : vector<2x16xf32>
    %c4 = arith.constant 4 : index
    %c0_243 = arith.constant 0 : index
    %c0_244 = arith.constant 0 : index
    %590 = vector.load %arg19[%c4, %c0_243, %c0_244] : memref<5x2x2xf32, #tpu.memory_space<vmem>>, vector<1x2x2xf32>
    %591 = vector.shape_cast %590 : vector<1x2x2xf32> to vector<2x2xf32>
    %592 = tpu.concatenate %591, %566 in 1 : vector<2x2xf32>, vector<2x16xf32> -> vector<2x18xf32>
    %c0_245 = arith.constant 0 : index
    %c0_246 = arith.constant 0 : index
    %593 = vector.load %arg20[%c0_245, %c0_246] : memref<18x64xf32, #tpu.memory_space<vmem>>, vector<18x64xf32>
    %cst_247 = arith.constant dense<0.000000e+00> : vector<2x64xf32>
    %594 = tpu.matmul %592, %593, %cst_247 {dimension_numbers = #tpu.dot_dimension_numbers<[1], [0], [0], [1], [0, 0, 1, 1], [], []>} : vector<2x18xf32>, vector<18x64xf32>, vector<2x64xf32> -> vector<2x64xf32>
    %c0_248 = arith.constant 0 : index
    %c0_249 = arith.constant 0 : index
    %595 = vector.load %arg21[%c0_248, %c0_249] : memref<1x64xf32, #tpu.memory_space<vmem>>, vector<1x64xf32>
    %596 = vector.broadcast %595 : vector<1x64xf32> to vector<2x64xf32>
    %597 = arith.addf %594, %596 : vector<2x64xf32>
    %cst_250 = arith.constant 0.000000e+00 : f32
    %598 = vector.broadcast %cst_250 : f32 to vector<2x64xf32>
    %599 = arith.subf %598, %597 : vector<2x64xf32>
    %600 = math.exp %599 : vector<2x64xf32>
    %cst_251 = arith.constant 1.000000e+00 : f32
    %601 = vector.broadcast %cst_251 : f32 to vector<2x64xf32>
    %602 = arith.addf %601, %600 : vector<2x64xf32>
    %cst_252 = arith.constant 1.000000e+00 : f32
    %603 = vector.broadcast %cst_252 : f32 to vector<2x64xf32>
    %604 = arith.divf %603, %602 : vector<2x64xf32>
    %605 = math.tanh %597 : vector<2x64xf32>
    %606 = vector.extract_strided_slice %604 {offsets = [0, 16], sizes = [2, 16], strides = [1, 1]} : vector<2x64xf32> to vector<2x16xf32>
    %607 = arith.mulf %606, %563 : vector<2x16xf32>
    %608 = vector.extract_strided_slice %604 {offsets = [0, 0], sizes = [2, 16], strides = [1, 1]} : vector<2x64xf32> to vector<2x16xf32>
    %609 = vector.extract_strided_slice %605 {offsets = [0, 32], sizes = [2, 16], strides = [1, 1]} : vector<2x64xf32> to vector<2x16xf32>
    %610 = arith.mulf %608, %609 : vector<2x16xf32>
    %611 = arith.addf %607, %610 : vector<2x16xf32>
    %612 = vector.extract_strided_slice %604 {offsets = [0, 48], sizes = [2, 16], strides = [1, 1]} : vector<2x64xf32> to vector<2x16xf32>
    %613 = math.tanh %611 : vector<2x16xf32>
    %614 = arith.mulf %612, %613 : vector<2x16xf32>
    %615 = tpu.concatenate %614, %589 in 1 : vector<2x16xf32>, vector<2x16xf32> -> vector<2x32xf32>
    %c0_253 = arith.constant 0 : index
    %c0_254 = arith.constant 0 : index
    %616 = vector.load %arg22[%c0_253, %c0_254] : memref<32x64xf32, #tpu.memory_space<vmem>>, vector<32x64xf32>
    %cst_255 = arith.constant dense<0.000000e+00> : vector<2x64xf32>
    %617 = tpu.matmul %615, %616, %cst_255 {dimension_numbers = #tpu.dot_dimension_numbers<[1], [0], [0], [1], [0, 0, 1, 1], [], []>} : vector<2x32xf32>, vector<32x64xf32>, vector<2x64xf32> -> vector<2x64xf32>
    %c0_256 = arith.constant 0 : index
    %c0_257 = arith.constant 0 : index
    %618 = vector.load %arg23[%c0_256, %c0_257] : memref<1x64xf32, #tpu.memory_space<vmem>>, vector<1x64xf32>
    %619 = vector.broadcast %618 : vector<1x64xf32> to vector<2x64xf32>
    %620 = arith.addf %617, %619 : vector<2x64xf32>
    %cst_258 = arith.constant 0.000000e+00 : f32
    %621 = vector.broadcast %cst_258 : f32 to vector<2x64xf32>
    %622 = arith.subf %621, %620 : vector<2x64xf32>
    %623 = math.exp %622 : vector<2x64xf32>
    %cst_259 = arith.constant 1.000000e+00 : f32
    %624 = vector.broadcast %cst_259 : f32 to vector<2x64xf32>
    %625 = arith.addf %624, %623 : vector<2x64xf32>
    %cst_260 = arith.constant 1.000000e+00 : f32
    %626 = vector.broadcast %cst_260 : f32 to vector<2x64xf32>
    %627 = arith.divf %626, %625 : vector<2x64xf32>
    %628 = math.tanh %620 : vector<2x64xf32>
    %629 = vector.extract_strided_slice %627 {offsets = [0, 16], sizes = [2, 16], strides = [1, 1]} : vector<2x64xf32> to vector<2x16xf32>
    %630 = arith.mulf %629, %586 : vector<2x16xf32>
    %631 = vector.extract_strided_slice %627 {offsets = [0, 0], sizes = [2, 16], strides = [1, 1]} : vector<2x64xf32> to vector<2x16xf32>
    %632 = vector.extract_strided_slice %628 {offsets = [0, 32], sizes = [2, 16], strides = [1, 1]} : vector<2x64xf32> to vector<2x16xf32>
    %633 = arith.mulf %631, %632 : vector<2x16xf32>
    %634 = arith.addf %630, %633 : vector<2x16xf32>
    %635 = vector.extract_strided_slice %627 {offsets = [0, 48], sizes = [2, 16], strides = [1, 1]} : vector<2x64xf32> to vector<2x16xf32>
    %636 = math.tanh %634 : vector<2x16xf32>
    %637 = arith.mulf %635, %636 : vector<2x16xf32>
    %638 = tpu.concatenate %393, %614, %637 in 1 : vector<2x32xf32>, vector<2x16xf32>, vector<2x16xf32> -> vector<2x64xf32>
    %c0_261 = arith.constant 0 : index
    %c0_262 = arith.constant 0 : index
    %639 = vector.load %arg24[%c0_261, %c0_262] : memref<64x3xf32, #tpu.memory_space<vmem>>, vector<64x3xf32>
    %cst_263 = arith.constant dense<0.000000e+00> : vector<2x3xf32>
    %640 = tpu.matmul %638, %639, %cst_263 {dimension_numbers = #tpu.dot_dimension_numbers<[1], [0], [0], [1], [0, 0, 1, 1], [], []>} : vector<2x64xf32>, vector<64x3xf32>, vector<2x3xf32> -> vector<2x3xf32>
    %c0_264 = arith.constant 0 : index
    %c0_265 = arith.constant 0 : index
    %641 = vector.load %arg25[%c0_264, %c0_265] : memref<1x3xf32, #tpu.memory_space<vmem>>, vector<1x3xf32>
    %642 = vector.broadcast %641 : vector<1x3xf32> to vector<2x3xf32>
    %643 = arith.addf %640, %642 : vector<2x3xf32>
    %644 = tpu.concatenate %643, %284 in 1 : vector<2x3xf32>, vector<2x32xf32> -> vector<2x35xf32>
    %c0_266 = arith.constant 0 : index
    %c0_267 = arith.constant 0 : index
    %645 = vector.load %arg26[%c0_266, %c0_267] : memref<2x35xf32, #tpu.memory_space<vmem>>, vector<2x35xf32>
    tpu.vector_store %arg26[%c0_266, %c0_267], %644 {strides = array<i32>} : memref<2x35xf32, #tpu.memory_space<vmem>>, vector<2x35xf32>,
    return
  }
  func.func @transform_0(%arg0: i32) -> (i32, i32) {
    %c0_i32 = arith.constant 0 : i32
    %c0_i32_0 = arith.constant 0 : i32
    %c0_i32_1 = arith.constant 0 : i32
    return %c0_i32, %c0_i32_0 : i32, i32
  }
  func.func @transform_1(%arg0: i32) -> (i32, i32) {
    %c0_i32 = arith.constant 0 : i32
    %c0_i32_0 = arith.constant 0 : i32
    %c0_i32_1 = arith.constant 0 : i32
    return %c0_i32, %c0_i32_0 : i32, i32
  }
  func.func @transform_2(%arg0: i32) -> (i32, i32) {
    %c0_i32 = arith.constant 0 : i32
    %c0_i32_0 = arith.constant 0 : i32
    %c0_i32_1 = arith.constant 0 : i32
    return %c0_i32, %c0_i32_0 : i32, i32
  }
  func.func @transform_3(%arg0: i32) -> (i32, i32) {
    %c0_i32 = arith.constant 0 : i32
    %c0_i32_0 = arith.constant 0 : i32
    %c0_i32_1 = arith.constant 0 : i32
    return %c0_i32, %c0_i32_0 : i32, i32
  }
  func.func @transform_4(%arg0: i32) -> (i32, i32, i32) {
    %c0_i32 = arith.constant 0 : i32
    %c0_i32_0 = arith.constant 0 : i32
    %c0_i32_1 = arith.constant 0 : i32
    %c0_i32_2 = arith.constant 0 : i32
    return %c0_i32, %c0_i32_0, %c0_i32_1 : i32, i32, i32
  }
  func.func @transform_5(%arg0: i32) -> (i32, i32, i32) {
    %c0_i32 = arith.constant 0 : i32
    %c0_i32_0 = arith.constant 0 : i32
    %c0_i32_1 = arith.constant 0 : i32
    %c0_i32_2 = arith.constant 0 : i32
    return %c0_i32, %c0_i32_0, %c0_i32_1 : i32, i32, i32
  }
  func.func @transform_6(%arg0: i32) -> (i32, i32, i32) {
    %c0_i32 = arith.constant 0 : i32
    %c0_i32_0 = arith.constant 0 : i32
    %c0_i32_1 = arith.constant 0 : i32
    %c0_i32_2 = arith.constant 0 : i32
    return %c0_i32, %c0_i32_0, %c0_i32_1 : i32, i32, i32
  }
  func.func @transform_7(%arg0: i32) -> (i32, i32, i32) {
    %c0_i32 = arith.constant 0 : i32
    %c0_i32_0 = arith.constant 0 : i32
    %c0_i32_1 = arith.constant 0 : i32
    %c0_i32_2 = arith.constant 0 : i32
    return %c0_i32, %c0_i32_0, %c0_i32_1 : i32, i32, i32
  }
  func.func @transform_8(%arg0: i32) -> (i32, i32, i32, i32) {
    %c0_i32 = arith.constant 0 : i32
    %c0_i32_0 = arith.constant 0 : i32
    %c0_i32_1 = arith.constant 0 : i32
    %c0_i32_2 = arith.constant 0 : i32
    %c0_i32_3 = arith.constant 0 : i32
    return %c0_i32, %c0_i32_0, %c0_i32_1, %c0_i32_2 : i32, i32, i32, i32
  }
  func.func @transform_9(%arg0: i32) -> (i32, i32, i32) {
    %c0_i32 = arith.constant 0 : i32
    %c0_i32_0 = arith.constant 0 : i32
    %c0_i32_1 = arith.constant 0 : i32
    %c0_i32_2 = arith.constant 0 : i32
    return %c0_i32, %c0_i32_0, %c0_i32_1 : i32, i32, i32
  }
  func.func @transform_10(%arg0: i32) -> (i32, i32, i32) {
    %c0_i32 = arith.constant 0 : i32
    %c0_i32_0 = arith.constant 0 : i32
    %c0_i32_1 = arith.constant 0 : i32
    %c0_i32_2 = arith.constant 0 : i32
    return %c0_i32, %c0_i32_0, %c0_i32_1 : i32, i32, i32
  }
  func.func @transform_11(%arg0: i32) -> (i32, i32, i32) {
    %c0_i32 = arith.constant 0 : i32
    %c0_i32_0 = arith.constant 0 : i32
    %c0_i32_1 = arith.constant 0 : i32
    %c0_i32_2 = arith.constant 0 : i32
    return %c0_i32, %c0_i32_0, %c0_i32_1 : i32, i32, i32
  }
  func.func @transform_12(%arg0: i32) -> (i32, i32, i32) {
    %c0_i32 = arith.constant 0 : i32
    %c0_i32_0 = arith.constant 0 : i32
    %c0_i32_1 = arith.constant 0 : i32
    %c0_i32_2 = arith.constant 0 : i32
    return %c0_i32, %c0_i32_0, %c0_i32_1 : i32, i32, i32
  }
  func.func @transform_13(%arg0: i32) -> (i32, i32, i32) {
    %c0_i32 = arith.constant 0 : i32
    %c0_i32_0 = arith.constant 0 : i32
    %c0_i32_1 = arith.constant 0 : i32
    %c0_i32_2 = arith.constant 0 : i32
    return %c0_i32, %c0_i32_0, %c0_i32_1 : i32, i32, i32
  }
  func.func @transform_14(%arg0: i32) -> (i32, i32, i32) {
    %c0_i32 = arith.constant 0 : i32
    %c0_i32_0 = arith.constant 0 : i32
    %c0_i32_1 = arith.constant 0 : i32
    %c0_i32_2 = arith.constant 0 : i32
    return %c0_i32, %c0_i32_0, %c0_i32_1 : i32, i32, i32
  }
  func.func @transform_15(%arg0: i32) -> (i32, i32, i32) {
    %c0_i32 = arith.constant 0 : i32
    %c0_i32_0 = arith.constant 0 : i32
    %c0_i32_1 = arith.constant 0 : i32
    %c0_i32_2 = arith.constant 0 : i32
    return %c0_i32, %c0_i32_0, %c0_i32_1 : i32, i32, i32
  }
  func.func @transform_16(%arg0: i32) -> (i32, i32) {
    %c0_i32 = arith.constant 0 : i32
    %c0_i32_0 = arith.constant 0 : i32
    %c0_i32_1 = arith.constant 0 : i32
    return %c0_i32, %c0_i32_0 : i32, i32
  }
  func.func @transform_17(%arg0: i32) -> (i32, i32) {
    %c0_i32 = arith.constant 0 : i32
    %c0_i32_0 = arith.constant 0 : i32
    %c0_i32_1 = arith.constant 0 : i32
    return %c0_i32, %c0_i32_0 : i32, i32
  }
  func.func @transform_18(%arg0: i32) -> (i32, i32, i32) {
    %c0_i32 = arith.constant 0 : i32
    %c0_i32_0 = arith.constant 0 : i32
    %c0_i32_1 = arith.constant 0 : i32
    %c0_i32_2 = arith.constant 0 : i32
    return %c0_i32, %c0_i32_0, %c0_i32_1 : i32, i32, i32
  }
  func.func @transform_19(%arg0: i32) -> (i32, i32) {
    %c0_i32 = arith.constant 0 : i32
    %c0_i32_0 = arith.constant 0 : i32
    %c0_i32_1 = arith.constant 0 : i32
    return %c0_i32, %c0_i32_0 : i32, i32
  }
  func.func @transform_20(%arg0: i32) -> (i32, i32) {
    %c0_i32 = arith.constant 0 : i32
    %c0_i32_0 = arith.constant 0 : i32
    %c0_i32_1 = arith.constant 0 : i32
    return %c0_i32, %c0_i32_0 : i32, i32
  }
  func.func @transform_21(%arg0: i32) -> (i32, i32) {
    %c0_i32 = arith.constant 0 : i32
    %c0_i32_0 = arith.constant 0 : i32
    %c0_i32_1 = arith.constant 0 : i32
    return %c0_i32, %c0_i32_0 : i32, i32
  }
  func.func @transform_22(%arg0: i32) -> (i32, i32) {
    %c0_i32 = arith.constant 0 : i32
    %c0_i32_0 = arith.constant 0 : i32
    %c0_i32_1 = arith.constant 0 : i32
    return %c0_i32, %c0_i32_0 : i32, i32
  }
  func.func @transform_23(%arg0: i32) -> (i32, i32) {
    %c0_i32 = arith.constant 0 : i32
    %c0_i32_0 = arith.constant 0 : i32
    %c0_i32_1 = arith.constant 0 : i32
    return %c0_i32, %c0_i32_0 : i32, i32
  }
  func.func @transform_24(%arg0: i32) -> (i32, i32) {
    %c0_i32 = arith.constant 0 : i32
    %c0_i32_0 = arith.constant 0 : i32
    %c0_i32_1 = arith.constant 0 : i32
    return %c0_i32, %c0_i32_0 : i32, i32
  }
  func.func @transform_25(%arg0: i32) -> (i32, i32) {
    %c0_i32 = arith.constant 0 : i32
    %c0_i32_0 = arith.constant 0 : i32
    %c0_i32_1 = arith.constant 0 : i32
    return %c0_i32, %c0_i32_0 : i32, i32
  }
}

</mosaic_0001>

<llo_original>
// kernel: tile.9
$region0: #{tile.9}
  %s0 = inlined_call_operand.vmem [shape: f32[2,9,32], index: 0, kind: input, shape index: {}]
  %s1 = inlined_call_operand.vmem [shape: f32[18,32], index: 1, kind: output, shape index: {}]
  %v2 = vld [vmem:[%s0] sm:$0xff]
  %vm3 = vcmask 261120
  %4 = vst.msk [vmem:[%s1] sm:$0xff] %vm3, %v2
  %s5 = scalar_lea.vmem %s0, 8
  %s6 = smov 3
  %v7 = vld [vmem:[%s5] ss:$8 sm:%s6]
  %vm8 = vcmask 261120
  %s9 = scalar_lea.vmem %s1, 8
  %10 = vst.msk [vmem:[%s9] sm:$0x3] %vm8, %v7
  %s11 = scalar_lea.vmem %s0, 17
  %v12 = vld [vmem:[%s11] sm:$0xff]
  %vm13 = vcmask 261120
  %s14 = scalar_lea.vmem %s1, 10
  %15 = vst.msk [vmem:[%s14] sm:$0xff] %vm13, %v12

// kernel: model_forward.1
$region0: #{model_forward.1}
  #allocation0 [shape = 'u32[]', space=smem, size = 0x4, offset = 0x4, fixed_abs, tag = 'smem constant byte address 0x4 - core index']
  #allocation1 [shape = 'u32[144,128]{1,0:T(1,128)}', space=vmem, size = 0x12000, scoped, tag = 'internal scratch']
  %s0 = inlined_call_operand.vmem [shape: f32[18,48], index: 0, kind: input, shape index: {}]
  %s1 = inlined_call_operand.vmem [shape: f32[18,18], index: 1, kind: input, shape index: {}]
  %s2 = inlined_call_operand.vmem [shape: f32[18,32], index: 2, kind: input, shape index: {}]
  %s3 = inlined_call_operand.vmem [shape: f32[48,32], index: 3, kind: input, shape index: {}]
  %s4 = inlined_call_operand.vmem [shape: f32[2,1,32], index: 4, kind: input, shape index: {}]
  %s5 = inlined_call_operand.vmem [shape: f32[2,1,32], index: 5, kind: input, shape index: {}]
  %s6 = inlined_call_operand.vmem [shape: f32[2,32,96], index: 6, kind: input, shape index: {}]
  %s7 = inlined_call_operand.vmem [shape: f32[2,1,96], index: 7, kind: input, shape index: {}]
  %s8 = inlined_call_operand.vmem [shape: f32[2,4,8,32], index: 8, kind: input, shape index: {}]
  %s9 = inlined_call_operand.vmem [shape: f32[2,1,32], index: 9, kind: input, shape index: {}]
  %s10 = inlined_call_operand.vmem [shape: f32[2,1,32], index: 10, kind: input, shape index: {}]
  %s11 = inlined_call_operand.vmem [shape: f32[2,1,32], index: 11, kind: input, shape index: {}]
  %s12 = inlined_call_operand.vmem [shape: f32[2,32,128], index: 12, kind: input, shape index: {}]
  %s13 = inlined_call_operand.vmem [shape: f32[2,1,128], index: 13, kind: input, shape index: {}]
  %s14 = inlined_call_operand.vmem [shape: f32[2,128,32], index: 14, kind: input, shape index: {}]
  %s15 = inlined_call_operand.vmem [shape: f32[2,1,32], index: 15, kind: input, shape index: {}]
  %s16 = inlined_call_operand.vmem [shape: f32[1,32], index: 16, kind: input, shape index: {}]
  %s17 = inlined_call_operand.vmem [shape: f32[1,32], index: 17, kind: input, shape index: {}]
  %s18 = inlined_call_operand.vmem [shape: f32[5,2,2], index: 18, kind: input, shape index: {}]
  %s19 = inlined_call_operand.vmem [shape: f32[18,64], index: 19, kind: input, shape index: {}]
  %s20 = inlined_call_operand.vmem [shape: f32[1,64], index: 20, kind: input, shape index: {}]
  %s21 = inlined_call_operand.vmem [shape: f32[32,64], index: 21, kind: input, shape index: {}]
  %s22 = inlined_call_operand.vmem [shape: f32[1,64], index: 22, kind: input, shape index: {}]
  %s23 = inlined_call_operand.vmem [shape: f32[64,3], index: 23, kind: input, shape index: {}]
  %s24 = inlined_call_operand.vmem [shape: f32[1,3], index: 24, kind: input, shape index: {}]
  %s25 = inlined_call_operand.vmem [shape: f32[2,35], index: 25, kind: output, shape index: {}]
  %s26 = sld [smem:[#allocation0]]
  $region110: #{model_forward.1} parent=0
    _
  %s28 = ssub.s32 1, %s26
  %s29 = scalar_select 0, %s28, %s26
  // Predicated region
  $region2: #{model_forward.1} parent=0 // pred_check
    _
  $region3: #{model_forward.1} parent=0 // pred_check_branch
    %31 = sbr.rel (0) target = $region5
  $region4: #{model_forward.1} parent=0 // pred_region
    _
  $region5: #{model_forward.1} parent=0 // pred_fallthru
    _
  // Predicated region
  $region6: #{model_forward.1} parent=0 // pred_check
    _
  $region7: #{model_forward.1} parent=0 // pred_check_branch
    %33 = sbr.rel (0) target = $region9
  $region8: #{model_forward.1} parent=0 // pred_region
    _
  $region9: #{model_forward.1} parent=0 // pred_fallthru
    _
  // Predicated region
  $region10: #{model_forward.1} parent=0 // pred_check
    _
  $region11: #{model_forward.1} parent=0 // pred_check_branch
    %35 = sbr.rel (0) target = $region13
  $region12: #{model_forward.1} parent=0 // pred_region
    _
  $region13: #{model_forward.1} parent=0 // pred_fallthru
    _
  // Predicated region
  $region14: #{model_forward.1} parent=0 // pred_check
    _
  $region15: #{model_forward.1} parent=0 // pred_check_branch
    %37 = sbr.rel (0) target = $region17
  $region16: #{model_forward.1} parent=0 // pred_region
    _
  $region17: #{model_forward.1} parent=0 // pred_fallthru
    _
  // Predicated region
  $region18: #{model_forward.1} parent=0 // pred_check
    _
  $region19: #{model_forward.1} parent=0 // pred_check_branch
    %39 = sbr.rel (0) target = $region21
  $region20: #{model_forward.1} parent=0 // pred_region
    _
  $region21: #{model_forward.1} parent=0 // pred_fallthru
    _
  // Predicated region
  $region22: #{model_forward.1} parent=0 // pred_check
    _
  $region23: #{model_forward.1} parent=0 // pred_check_branch
    %41 = sbr.rel (0) target = $region25
  $region24: #{model_forward.1} parent=0 // pred_region
    _
  $region25: #{model_forward.1} parent=0 // pred_fallthru
    _
  // Predicated region
  $region26: #{model_forward.1} parent=0 // pred_check
    _
  $region27: #{model_forward.1} parent=0 // pred_check_branch
    %43 = sbr.rel (0) target = $region29
  $region28: #{model_forward.1} parent=0 // pred_region
    _
  $region29: #{model_forward.1} parent=0 // pred_fallthru
    _
  // Predicated region
  $region30: #{model_forward.1} parent=0 // pred_check
    _
  $region31: #{model_forward.1} parent=0 // pred_check_branch
    %45 = sbr.rel (0) target = $region33
  $region32: #{model_forward.1} parent=0 // pred_region
    _
  $region33: #{model_forward.1} parent=0 // pred_fallthru
    _
  // Predicated region
  $region34: #{model_forward.1} parent=0 // pred_check
    _
  $region35: #{model_forward.1} parent=0 // pred_check_branch
    %47 = sbr.rel (0) target = $region37
  $region36: #{model_forward.1} parent=0 // pred_region
    _
  $region37: #{model_forward.1} parent=0 // pred_fallthru
    _
  // Predicated region
  $region38: #{model_forward.1} parent=0 // pred_check
    _
  $region39: #{model_forward.1} parent=0 // pred_check_branch
    %49 = sbr.rel (0) target = $region41
  $region40: #{model_forward.1} parent=0 // pred_region
    _
  $region41: #{model_forward.1} parent=0 // pred_fallthru
    _
  // Predicated region
  $region42: #{model_forward.1} parent=0 // pred_check
    _
  $region43: #{model_forward.1} parent=0 // pred_check_branch
    %51 = sbr.rel (0) target = $region45
  $region44: #{model_forward.1} parent=0 // pred_region
    _
  $region45: #{model_forward.1} parent=0 // pred_fallthru
    _
  // Predicated region
  $region46: #{model_forward.1} parent=0 // pred_check
    _
  $region47: #{model_forward.1} parent=0 // pred_check_branch
    %53 = sbr.rel (0) target = $region49
  $region48: #{model_forward.1} parent=0 // pred_region
    _
  $region49: #{model_forward.1} parent=0 // pred_fallthru
    _
  // Predicated region
  $region50: #{model_forward.1} parent=0 // pred_check
    _
  $region51: #{model_forward.1} parent=0 // pred_check_branch
    %55 = sbr.rel (0) target = $region53
  $region52: #{model_forward.1} parent=0 // pred_region
    _
  $region53: #{model_forward.1} parent=0 // pred_fallthru
    _
  // Predicated region
  $region54: #{model_forward.1} parent=0 // pred_check
    _
  $region55: #{model_forward.1} parent=0 // pred_check_branch
    %57 = sbr.rel (0) target = $region57
  $region56: #{model_forward.1} parent=0 // pred_region
    _
  $region57: #{model_forward.1} parent=0 // pred_fallthru
    _
  // Predicated region
  $region58: #{model_forward.1} parent=0 // pred_check
    _
  $region59: #{model_forward.1} parent=0 // pred_check_branch
    %59 = sbr.rel (0) target = $region61
  $region60: #{model_forward.1} parent=0 // pred_region
    _
  $region61: #{model_forward.1} parent=0 // pred_fallthru
    _
  // Predicated region
  $region62: #{model_forward.1} parent=0 // pred_check
    _
  $region63: #{model_forward.1} parent=0 // pred_check_branch
    %61 = sbr.rel (0) target = $region65
  $region64: #{model_forward.1} parent=0 // pred_region
    _
  $region65: #{model_forward.1} parent=0 // pred_fallthru
    _
  // Predicated region
  $region66: #{model_forward.1} parent=0 // pred_check
    _
  $region67: #{model_forward.1} parent=0 // pred_check_branch
    %63 = sbr.rel (0) target = $region69
  $region68: #{model_forward.1} parent=0 // pred_region
    _
  $region69: #{model_forward.1} parent=0 // pred_fallthru
    _
  // Predicated region
  $region70: #{model_forward.1} parent=0 // pred_check
    _
  $region71: #{model_forward.1} parent=0 // pred_check_branch
    %65 = sbr.rel (0) target = $region73
  $region72: #{model_forward.1} parent=0 // pred_region
    _
  $region73: #{model_forward.1} parent=0 // pred_fallthru
    _
  // Predicated region
  $region74: #{model_forward.1} parent=0 // pred_check
    _
  $region75: #{model_forward.1} parent=0 // pred_check_branch
    %67 = sbr.rel (0) target = $region77
  $region76: #{model_forward.1} parent=0 // pred_region
    _
  $region77: #{model_forward.1} parent=0 // pred_fallthru
    _
  // Predicated region
  $region78: #{model_forward.1} parent=0 // pred_check
    _
  $region79: #{model_forward.1} parent=0 // pred_check_branch
    %69 = sbr.rel (0) target = $region81
  $region80: #{model_forward.1} parent=0 // pred_region
    _
  $region81: #{model_forward.1} parent=0 // pred_fallthru
    _
  // Predicated region
  $region82: #{model_forward.1} parent=0 // pred_check
    _
  $region83: #{model_forward.1} parent=0 // pred_check_branch
    %71 = sbr.rel (0) target = $region85
  $region84: #{model_forward.1} parent=0 // pred_region
    _
  $region85: #{model_forward.1} parent=0 // pred_fallthru
    _
  // Predicated region
  $region86: #{model_forward.1} parent=0 // pred_check
    _
  $region87: #{model_forward.1} parent=0 // pred_check_branch
    %73 = sbr.rel (0) target = $region89
  $region88: #{model_forward.1} parent=0 // pred_region
    _
  $region89: #{model_forward.1} parent=0 // pred_fallthru
    _
  // Predicated region
  $region90: #{model_forward.1} parent=0 // pred_check
    _
  $region91: #{model_forward.1} parent=0 // pred_check_branch
    %75 = sbr.rel (0) target = $region93
  $region92: #{model_forward.1} parent=0 // pred_region
    _
  $region93: #{model_forward.1} parent=0 // pred_fallthru
    _
  // Predicated region
  $region94: #{model_forward.1} parent=0 // pred_check
    _
  $region95: #{model_forward.1} parent=0 // pred_check_branch
    %77 = sbr.rel (0) target = $region97
  $region96: #{model_forward.1} parent=0 // pred_region
    _
  $region97: #{model_forward.1} parent=0 // pred_fallthru
    _
  // Predicated region
  $region98: #{model_forward.1} parent=0 // pred_check
    _
  $region99: #{model_forward.1} parent=0 // pred_check_branch
    %79 = sbr.rel (0) target = $region101
  $region100: #{model_forward.1} parent=0 // pred_region
    _
  $region101: #{model_forward.1} parent=0 // pred_fallthru
    _
  %v80 = vld [vmem:[%s0] sm:$0xff]
  %v81 = vld [vmem:[%s0 + $0x8] sm:$0xff]
  %v82 = vld [vmem:[%s0 + $0x10] sm:$0x3]
  %v83 = vld [vmem:[%s3] sm:$0xff]
  %v84 = vld [vmem:[%s3 + $0x8] sm:$0xff]
  %v85 = vld [vmem:[%s3 + $0x10] sm:$0xff]
  %v86 = vld [vmem:[%s3 + $0x18] sm:$0xff]
  %v87 = vld [vmem:[%s3 + $0x20] sm:$0xff]
  %v88 = vld [vmem:[%s3 + $0x28] sm:$0xff]
  %v89 = vld [vmem:[%s2] sm:$0xff]
  %v90 = vld [vmem:[%s2 + $0x8] sm:$0xff]
  %v91 = vld [vmem:[%s2 + $0x10] sm:$0x3]
  %vm92 = vcmask 392192
  %v94 = vsel %vm92, %v80, 0
  %v97 = vsel %vm92, %v81, 0
  %v100 = vsel %vm92, %v82, 0
  %102 = vmatprep.subr.mxu0 0.0
  %103 = vmatpush1.msra.mxu0 0.0
  %104 = vmatprep.subr.mxu0 0.0
  %105 = vmatpush1.msra.mxu0 0.0
  %106 = vmatprep.subr.mxu0 0.0
  %107 = vmatpush1.msra.mxu0 0.0
  %108 = vmatprep.subr.mxu0 0.0
  %109 = vmatpush1.msra.mxu0 0.0
  %110 = vmatprep.subr.mxu0 0.0
  %111 = vmatpush1.msra.mxu0 0.0
  %112 = vmatprep.subr.mxu0 0.0
  %113 = vmatpush1.msra.mxu0 0.0
  %114 = vmatprep.subr.mxu0 0.0
  %115 = vmatpush1.msra.mxu0 0.0
  %116 = vmatprep.subr.mxu0 0.0
  %117 = vmatpush1.msra.mxu0 0.0
  %118 = vmatprep.subr.mxu0 0.0
  %119 = vmatpush1.msra.mxu0 0.0
  %120 = vmatprep.subr.mxu0 0.0
  %121 = vmatpush1.msra.mxu0 0.0
  %122 = vmatprep.subr.mxu0 0.0
  %123 = vmatpush1.msra.mxu0 %v88
  %124 = vmatprep.subr.mxu0 0.0
  %125 = vmatpush1.msra.mxu0 %v87
  %126 = vmatprep.subr.mxu0 0.0
  %127 = vmatpush1.msra.mxu0 %v86
  %128 = vmatprep.subr.mxu0 0.0
  %129 = vmatpush1.msra.mxu0 %v85
  %130 = vmatprep.subr.mxu0 0.0
  %131 = vmatpush1.msra.mxu0 %v84
  %132 = vmatprep.subr.mxu0 0.0
  %133 = vmatpush1.msra.mxu0 %v83
  %134 = vmatprep.subr.mxu0 0.0
  %135 = vmatpush2.msra.mxu0 0.0
  %136 = vmatprep.subr.mxu0 0.0
  %137 = vmatpush2.msra.mxu0 0.0
  %138 = vmatprep.subr.mxu0 0.0
  %139 = vmatpush2.msra.mxu0 0.0
  %140 = vmatprep.subr.mxu0 0.0
  %141 = vmatpush2.msra.mxu0 0.0
  %142 = vmatprep.subr.mxu0 0.0
  %143 = vmatpush2.msra.mxu0 0.0
  %144 = vmatprep.subr.mxu0 0.0
  %145 = vmatpush2.msra.mxu0 0.0
  %146 = vmatprep.subr.mxu0 0.0
  %147 = vmatpush2.msra.mxu0 0.0
  %148 = vmatprep.subr.mxu0 0.0
  %149 = vmatpush2.msra.mxu0 0.0
  %150 = vmatprep.subr.mxu0 0.0
  %151 = vmatpush2.msra.mxu0 0.0
  %152 = vmatprep.subr.mxu0 0.0
  %153 = vmatpush2.msra.mxu0 0.0
  %154 = vmatprep.subr.mxu0 0.0
  %155 = vmatpush2.msra.mxu0 0.0
  %156 = vmatprep.subr.mxu0 0.0
  %157 = vmatpush2.msra.mxu0 0.0
  %158 = vmatprep.subr.mxu0 0.0
  %159 = vmatpush2.msra.mxu0 0.0
  %160 = vmatprep.subr.mxu0 0.0
  %161 = vmatpush2.msra.mxu0 0.0
  %162 = vmatprep.subr.mxu0 0.0
  %163 = vmatpush2.msra.mxu0 0.0
  %164 = vmatprep.subr.mxu0 0.0
  %165 = vmatpush2.msra.mxu0 0.0
  %166 = vmatprep.mubr.f32.mxu0 0.0
  %167 = vmatmul.mubr.f32.gmra.mxu0 %v94
  %v168 = vpop.f32.mrf.mxu0
  %v169 = vadd.f32 %v89, %v168
  %v170 = vpop.f32.mrf.mxu0
  %171 = vmatprep.mubr.f32.mxu0 0.0
  %172 = vmatmul.mubr.f32.gmra.mxu0 %v97
  %v173 = vpop.f32.mrf.mxu0
  %v174 = vadd.f32 %v90, %v173
  %v175 = vpop.f32.mrf.mxu0
  %176 = vmatprep.mubr.f32.mxu0 0.0
  %177 = vmatmul.mubr.f32.gmra.mxu0 %v100
  %v178 = vpop.f32.mrf.mxu0
  %v179 = vadd.f32 %v91, %v178
  %v180 = vpop.f32.mrf.mxu0
  %181 = vdwg.mxu0
  %v182 = vld [vmem:[%s1] sm:$0xff]
  %v183 = vld [vmem:[%s1 + $0x8] sm:$0xff]
  %v184 = vld [vmem:[%s1 + $0x10] sm:$0x3]
  %v185 = vld [vmem:[%s4] sm:$0x1]
  %v186 = vld [vmem:[%s5] sm:$0x1]
  %vm187 = vcmask 261120
  %v188 = vsel %vm187, %v169, 0.0
  %189 = vadd.xlane.f32.xlu0 %v188
  %v190 = vpop.xlane.xlu0 %189
  %v191 = vsel %vm187, %v174, 0.0
  %192 = vadd.xlane.f32.xlu0 %v191
  %v193 = vpop.xlane.xlu0 %192
  %vm194 = vcmask 254976
  %v195 = vsel %vm194, %v179, 0.0
  %196 = vadd.xlane.f32.xlu0 %v195
  %v197 = vpop.xlane.xlu0 %196
  %v198 = vrcp.pop 32.0
  %v199 = vmul.f32 %v190, %v198
  %v200 = vmul.f32 %v193, %v198
  %v201 = vmul.f32 %v197, %v198
  %v202 = vsub.f32 %v169, %v199
  %v203 = vsub.f32 %v174, %v200
  %v204 = vsub.f32 %v179, %v201
  %v205 = vmul.f32 %v202, %v202
  %v206 = vmul.f32 %v203, %v203
  %v207 = vmul.f32 %v204, %v204
  %v208 = vsel %vm187, %v205, 0.0
  %209 = vadd.xlane.f32.xlu0 %v208
  %v210 = vpop.xlane.xlu0 %209
  %v211 = vsel %vm187, %v206, 0.0
  %212 = vadd.xlane.f32.xlu0 %v211
  %v213 = vpop.xlane.xlu0 %212
  %v214 = vsel %vm194, %v207, 0.0
  %215 = vadd.xlane.f32.xlu0 %v214
  %v216 = vpop.xlane.xlu0 %215
  %v217 = vmul.f32 %v210, %v198
  %v218 = vmul.f32 %v213, %v198
  %v219 = vmul.f32 %v216, %v198
  %v220 = vadd.f32 %v217, 1e-06
  %v221 = vadd.f32 %v218, 1e-06
  %v222 = vadd.f32 %v219, 1e-06
  %v223 = vrsqrt.pop %v220
  %v224 = vrsqrt.pop %v221
  %v225 = vrsqrt.pop %v222
  %v226 = vmul.f32 %v202, %v223
  %v227 = vmul.f32 %v203, %v224
  %v228 = vmul.f32 %v204, %v225
  %v230 = vlaneseq
  %v231 = vshrl.u32 %v230, 7
  %v232 = vsub.s32 0, %v231
  %v233 = vrot.slane %v185, %v232
  %v235 = vmul.f32 %v226, %v233
  %v236 = vmul.f32 %v227, %v233
  %v237 = vmul.f32 %v228, %v233
  %v239 = vlaneseq
  %v240 = vshrl.u32 %v239, 7
  %v241 = vsub.s32 0, %v240
  %v242 = vrot.slane %v186, %v241
  %v244 = vadd.f32 %v235, %v242
  %v245 = vadd.f32 %v236, %v242
  %v246 = vadd.f32 %v237, %v242
  %v247 = vld [vmem:[%s6] sm:$0xff]
  %v248 = vld [vmem:[%s6 + $0x8] sm:$0xff]
  %v249 = vld [vmem:[%s6 + $0x10] sm:$0xff]
  %v250 = vld [vmem:[%s6 + $0x18] sm:$0xff]
  %v251 = vld [vmem:[%s7] sm:$0x1]
  %v253 = vlaneseq
  %v254 = vshrl.u32 %v253, 7
  %v255 = vsub.s32 0, %v254
  %v256 = vrot.slane %v251, %v255
  %v259 = vsel %vm187, %v244, 0
  %v262 = vsel %vm187, %v245, 0
  %v265 = vsel %vm187, %v246, 0
  %267 = vmatprep.subr.mxu0 0.0
  %268 = vmatpush1.msra.mxu0 0.0
  %269 = vmatprep.subr.mxu0 0.0
  %270 = vmatpush1.msra.mxu0 0.0
  %271 = vmatprep.subr.mxu0 0.0
  %272 = vmatpush1.msra.mxu0 0.0
  %273 = vmatprep.subr.mxu0 0.0
  %274 = vmatpush1.msra.mxu0 0.0
  %275 = vmatprep.subr.mxu0 0.0
  %276 = vmatpush1.msra.mxu0 0.0
  %277 = vmatprep.subr.mxu0 0.0
  %278 = vmatpush1.msra.mxu0 0.0
  %279 = vmatprep.subr.mxu0 0.0
  %280 = vmatpush1.msra.mxu0 0.0
  %281 = vmatprep.subr.mxu0 0.0
  %282 = vmatpush1.msra.mxu0 0.0
  %283 = vmatprep.subr.mxu0 0.0
  %284 = vmatpush1.msra.mxu0 0.0
  %285 = vmatprep.subr.mxu0 0.0
  %286 = vmatpush1.msra.mxu0 0.0
  %287 = vmatprep.subr.mxu0 0.0
  %288 = vmatpush1.msra.mxu0 0.0
  %289 = vmatprep.subr.mxu0 0.0
  %290 = vmatpush1.msra.mxu0 0.0
  %291 = vmatprep.subr.mxu0 0.0
  %292 = vmatpush1.msra.mxu0 %v250
  %293 = vmatprep.subr.mxu0 0.0
  %294 = vmatpush1.msra.mxu0 %v249
  %295 = vmatprep.subr.mxu0 0.0
  %296 = vmatpush1.msra.mxu0 %v248
  %297 = vmatprep.subr.mxu0 0.0
  %298 = vmatpush1.msra.mxu0 %v247
  %299 = vmatprep.subr.mxu0 0.0
  %300 = vmatpush2.msra.mxu0 0.0
  %301 = vmatprep.subr.mxu0 0.0
  %302 = vmatpush2.msra.mxu0 0.0
  %303 = vmatprep.subr.mxu0 0.0
  %304 = vmatpush2.msra.mxu0 0.0
  %305 = vmatprep.subr.mxu0 0.0
  %306 = vmatpush2.msra.mxu0 0.0
  %307 = vmatprep.subr.mxu0 0.0
  %308 = vmatpush2.msra.mxu0 0.0
  %309 = vmatprep.subr.mxu0 0.0
  %310 = vmatpush2.msra.mxu0 0.0
  %311 = vmatprep.subr.mxu0 0.0
  %312 = vmatpush2.msra.mxu0 0.0
  %313 = vmatprep.subr.mxu0 0.0
  %314 = vmatpush2.msra.mxu0 0.0
  %315 = vmatprep.subr.mxu0 0.0
  %316 = vmatpush2.msra.mxu0 0.0
  %317 = vmatprep.subr.mxu0 0.0
  %318 = vmatpush2.msra.mxu0 0.0
  %319 = vmatprep.subr.mxu0 0.0
  %320 = vmatpush2.msra.mxu0 0.0
  %321 = vmatprep.subr.mxu0 0.0
  %322 = vmatpush2.msra.mxu0 0.0
  %323 = vmatprep.subr.mxu0 0.0
  %324 = vmatpush2.msra.mxu0 0.0
  %325 = vmatprep.subr.mxu0 0.0
  %326 = vmatpush2.msra.mxu0 0.0
  %327 = vmatprep.subr.mxu0 0.0
  %328 = vmatpush2.msra.mxu0 0.0
  %329 = vmatprep.subr.mxu0 0.0
  %330 = vmatpush2.msra.mxu0 0.0
  %331 = vmatprep.mubr.f32.mxu0 0.0
  %332 = vmatmul.mubr.f32.gmra.mxu0 %v259
  %v333 = vpop.f32.mrf.mxu0
  %v334 = vadd.f32 %v256, %v333
  %v335 = vpop.f32.mrf.mxu0
  %336 = vmatprep.mubr.f32.mxu0 0.0
  %337 = vmatmul.mubr.f32.gmra.mxu0 %v262
  %v338 = vpop.f32.mrf.mxu0
  %v339 = vadd.f32 %v256, %v338
  %v340 = vpop.f32.mrf.mxu0
  %341 = vmatprep.mubr.f32.mxu0 0.0
  %342 = vmatmul.mubr.f32.gmra.mxu0 %v265
  %v343 = vpop.f32.mrf.mxu0
  %v344 = vadd.f32 %v256, %v343
  %v345 = vpop.f32.mrf.mxu0
  %346 = vdwg.mxu0
  %350 = vrot.lane.b32.xlu0 %v334, 120
  %v351 = vpop.permute.xlu0 %350
  %352 = vrot.lane.b32.xlu0 %v339, 120
  %v353 = vpop.permute.xlu0 %352
  %354 = vrot.lane.b32.xlu0 %v344, 120
  %v355 = vpop.permute.xlu0 %354
  %356 = vrot.lane.b32.xlu0 %v334, 112
  %v357 = vpop.permute.xlu0 %356
  %358 = vrot.lane.b32.xlu0 %v339, 112
  %v359 = vpop.permute.xlu0 %358
  %360 = vrot.lane.b32.xlu0 %v344, 112
  %v361 = vpop.permute.xlu0 %360
  %362 = vrot.lane.b32.xlu0 %v334, 104
  %v363 = vpop.permute.xlu0 %362
  %364 = vrot.lane.b32.xlu0 %v339, 104
  %v365 = vpop.permute.xlu0 %364
  %366 = vrot.lane.b32.xlu0 %v344, 104
  %v367 = vpop.permute.xlu0 %366
  %368 = vrot.lane.b32.xlu0 %v334, 96
  %v369 = vpop.permute.xlu0 %368
  %370 = vrot.lane.b32.xlu0 %v339, 96
  %v371 = vpop.permute.xlu0 %370
  %372 = vrot.lane.b32.xlu0 %v344, 96
  %v373 = vpop.permute.xlu0 %372
  %vm374 = vcmask 64512
  %v375 = vsel %vm374, %v334, 0
  %v377 = vsel %vm374, %v339, 0
  %v379 = vsel %vm374, %v344, 0
  %v381 = vsel %vm374, %v369, 0
  %v383 = vsel %vm374, %v371, 0
  %v385 = vsel %vm374, %v373, 0
  %387 = vmatprep.subr.mxu0 0.0
  %388 = vmatpush1.xpose.msra.mxu0 0.0
  %389 = vmatprep.subr.mxu0 0.0
  %390 = vmatpush1.xpose.msra.mxu0 0.0
  %391 = vmatprep.subr.mxu0 0.0
  %392 = vmatpush1.xpose.msra.mxu0 0.0
  %393 = vmatprep.subr.mxu0 0.0
  %394 = vmatpush1.xpose.msra.mxu0 0.0
  %395 = vmatprep.subr.mxu0 0.0
  %396 = vmatpush1.xpose.msra.mxu0 0.0
  %397 = vmatprep.subr.mxu0 0.0
  %398 = vmatpush1.xpose.msra.mxu0 0.0
  %399 = vmatprep.subr.mxu0 0.0
  %400 = vmatpush1.xpose.msra.mxu0 0.0
  %401 = vmatprep.subr.mxu0 0.0
  %402 = vmatpush1.xpose.msra.mxu0 0.0
  %403 = vmatprep.subr.mxu0 0.0
  %404 = vmatpush1.xpose.msra.mxu0 0.0
  %405 = vmatprep.subr.mxu0 0.0
  %406 = vmatpush1.xpose.msra.mxu0 0.0
  %407 = vmatprep.subr.mxu0 0.0
  %408 = vmatpush1.xpose.msra.mxu0 0.0
  %409 = vmatprep.subr.mxu0 0.0
  %410 = vmatpush1.xpose.msra.mxu0 0.0
  %411 = vmatprep.subr.mxu0 0.0
  %412 = vmatpush1.xpose.msra.mxu0 0.0
  %413 = vmatprep.subr.mxu0 0.0
  %414 = vmatpush1.xpose.msra.mxu0 %v385
  %415 = vmatprep.subr.mxu0 0.0
  %416 = vmatpush1.xpose.msra.mxu0 %v383
  %417 = vmatprep.subr.mxu0 0.0
  %418 = vmatpush1.xpose.msra.mxu0 %v381
  %419 = vmatprep.subr.mxu0 0.0
  %420 = vmatpush2.xpose.msra.mxu0 0.0
  %421 = vmatprep.subr.mxu0 0.0
  %422 = vmatpush2.xpose.msra.mxu0 0.0
  %423 = vmatprep.subr.mxu0 0.0
  %424 = vmatpush2.xpose.msra.mxu0 0.0
  %425 = vmatprep.subr.mxu0 0.0
  %426 = vmatpush2.xpose.msra.mxu0 0.0
  %427 = vmatprep.subr.mxu0 0.0
  %428 = vmatpush2.xpose.msra.mxu0 0.0
  %429 = vmatprep.subr.mxu0 0.0
  %430 = vmatpush2.xpose.msra.mxu0 0.0
  %431 = vmatprep.subr.mxu0 0.0
  %432 = vmatpush2.xpose.msra.mxu0 0.0
  %433 = vmatprep.subr.mxu0 0.0
  %434 = vmatpush2.xpose.msra.mxu0 0.0
  %435 = vmatprep.subr.mxu0 0.0
  %436 = vmatpush2.xpose.msra.mxu0 0.0
  %437 = vmatprep.subr.mxu0 0.0
  %438 = vmatpush2.xpose.msra.mxu0 0.0
  %439 = vmatprep.subr.mxu0 0.0
  %440 = vmatpush2.xpose.msra.mxu0 0.0
  %441 = vmatprep.subr.mxu0 0.0
  %442 = vmatpush2.xpose.msra.mxu0 0.0
  %443 = vmatprep.subr.mxu0 0.0
  %444 = vmatpush2.xpose.msra.mxu0 0.0
  %445 = vmatprep.subr.mxu0 0.0
  %446 = vmatpush2.xpose.msra.mxu0 0.0
  %447 = vmatprep.subr.mxu0 0.0
  %448 = vmatpush2.xpose.msra.mxu0 0.0
  %449 = vmatprep.subr.mxu0 0.0
  %450 = vmatpush2.xpose.msra.mxu0 0.0
  %451 = vmatprep.mubr.f32.mxu0 0.0
  %452 = vmatmul.mubr.f32.gmra.mxu0 %v375
  %v453 = vpop.f32.mrf.mxu0
  %v454 = vadd.f32 0.0, %v453
  %v455 = vpop.f32.mrf.mxu0
  %456 = vmatprep.mubr.f32.mxu0 0.0
  %457 = vmatmul.mubr.f32.gmra.mxu0 %v377
  %v458 = vpop.f32.mrf.mxu0
  %v459 = vadd.f32 0.0, %v458
  %v460 = vpop.f32.mrf.mxu0
  %461 = vmatprep.mubr.f32.mxu0 0.0
  %462 = vmatmul.mubr.f32.gmra.mxu0 %v379
  %v463 = vpop.f32.mrf.mxu0
  %v464 = vadd.f32 0.0, %v463
  %v465 = vpop.f32.mrf.mxu0
  %466 = vdwg.mxu0
  %467 = vrot.lane.b32.xlu0 %v351, 96
  %v468 = vpop.permute.xlu0 %467
  %469 = vrot.lane.b32.xlu0 %v353, 96
  %v470 = vpop.permute.xlu0 %469
  %471 = vrot.lane.b32.xlu0 %v355, 96
  %v472 = vpop.permute.xlu0 %471
  %v473 = vsel %vm374, %v351, 0
  %v475 = vsel %vm374, %v353, 0
  %v477 = vsel %vm374, %v355, 0
  %v479 = vsel %vm374, %v468, 0
  %v481 = vsel %vm374, %v470, 0
  %v483 = vsel %vm374, %v472, 0
  %485 = vmatprep.subr.mxu0 0.0
  %486 = vmatpush1.xpose.msra.mxu0 0.0
  %487 = vmatprep.subr.mxu0 0.0
  %488 = vmatpush1.xpose.msra.mxu0 0.0
  %489 = vmatprep.subr.mxu0 0.0
  %490 = vmatpush1.xpose.msra.mxu0 0.0
  %491 = vmatprep.subr.mxu0 0.0
  %492 = vmatpush1.xpose.msra.mxu0 0.0
  %493 = vmatprep.subr.mxu0 0.0
  %494 = vmatpush1.xpose.msra.mxu0 0.0
  %495 = vmatprep.subr.mxu0 0.0
  %496 = vmatpush1.xpose.msra.mxu0 0.0
  %497 = vmatprep.subr.mxu0 0.0
  %498 = vmatpush1.xpose.msra.mxu0 0.0
  %499 = vmatprep.subr.mxu0 0.0
  %500 = vmatpush1.xpose.msra.mxu0 0.0
  %501 = vmatprep.subr.mxu0 0.0
  %502 = vmatpush1.xpose.msra.mxu0 0.0
  %503 = vmatprep.subr.mxu0 0.0
  %504 = vmatpush1.xpose.msra.mxu0 0.0
  %505 = vmatprep.subr.mxu0 0.0
  %506 = vmatpush1.xpose.msra.mxu0 0.0
  %507 = vmatprep.subr.mxu0 0.0
  %508 = vmatpush1.xpose.msra.mxu0 0.0
  %509 = vmatprep.subr.mxu0 0.0
  %510 = vmatpush1.xpose.msra.mxu0 0.0
  %511 = vmatprep.subr.mxu0 0.0
  %512 = vmatpush1.xpose.msra.mxu0 %v483
  %513 = vmatprep.subr.mxu0 0.0
  %514 = vmatpush1.xpose.msra.mxu0 %v481
  %515 = vmatprep.subr.mxu0 0.0
  %516 = vmatpush1.xpose.msra.mxu0 %v479
  %517 = vmatprep.subr.mxu0 0.0
  %518 = vmatpush2.xpose.msra.mxu0 0.0
  %519 = vmatprep.subr.mxu0 0.0
  %520 = vmatpush2.xpose.msra.mxu0 0.0
  %521 = vmatprep.subr.mxu0 0.0
  %522 = vmatpush2.xpose.msra.mxu0 0.0
  %523 = vmatprep.subr.mxu0 0.0
  %524 = vmatpush2.xpose.msra.mxu0 0.0
  %525 = vmatprep.subr.mxu0 0.0
  %526 = vmatpush2.xpose.msra.mxu0 0.0
  %527 = vmatprep.subr.mxu0 0.0
  %528 = vmatpush2.xpose.msra.mxu0 0.0
  %529 = vmatprep.subr.mxu0 0.0
  %530 = vmatpush2.xpose.msra.mxu0 0.0
  %531 = vmatprep.subr.mxu0 0.0
  %532 = vmatpush2.xpose.msra.mxu0 0.0
  %533 = vmatprep.subr.mxu0 0.0
  %534 = vmatpush2.xpose.msra.mxu0 0.0
  %535 = vmatprep.subr.mxu0 0.0
  %536 = vmatpush2.xpose.msra.mxu0 0.0
  %537 = vmatprep.subr.mxu0 0.0
  %538 = vmatpush2.xpose.msra.mxu0 0.0
  %539 = vmatprep.subr.mxu0 0.0
  %540 = vmatpush2.xpose.msra.mxu0 0.0
  %541 = vmatprep.subr.mxu0 0.0
  %542 = vmatpush2.xpose.msra.mxu0 0.0
  %543 = vmatprep.subr.mxu0 0.0
  %544 = vmatpush2.xpose.msra.mxu0 0.0
  %545 = vmatprep.subr.mxu0 0.0
  %546 = vmatpush2.xpose.msra.mxu0 0.0
  %547 = vmatprep.subr.mxu0 0.0
  %548 = vmatpush2.xpose.msra.mxu0 0.0
  %549 = vmatprep.mubr.f32.mxu0 0.0
  %550 = vmatmul.mubr.f32.gmra.mxu0 %v473
  %v551 = vpop.f32.mrf.mxu0
  %v552 = vadd.f32 0.0, %v551
  %v553 = vpop.f32.mrf.mxu0
  %554 = vmatprep.mubr.f32.mxu0 0.0
  %555 = vmatmul.mubr.f32.gmra.mxu0 %v475
  %v556 = vpop.f32.mrf.mxu0
  %v557 = vadd.f32 0.0, %v556
  %v558 = vpop.f32.mrf.mxu0
  %559 = vmatprep.mubr.f32.mxu0 0.0
  %560 = vmatmul.mubr.f32.gmra.mxu0 %v477
  %v561 = vpop.f32.mrf.mxu0
  %v562 = vadd.f32 0.0, %v561
  %v563 = vpop.f32.mrf.mxu0
  %564 = vdwg.mxu0
  %565 = vrot.lane.b32.xlu0 %v357, 96
  %v566 = vpop.permute.xlu0 %565
  %567 = vrot.lane.b32.xlu0 %v359, 96
  %v568 = vpop.permute.xlu0 %567
  %569 = vrot.lane.b32.xlu0 %v361, 96
  %v570 = vpop.permute.xlu0 %569
  %v571 = vsel %vm374, %v357, 0
  %v573 = vsel %vm374, %v359, 0
  %v575 = vsel %vm374, %v361, 0
  %v577 = vsel %vm374, %v566, 0
  %v579 = vsel %vm374, %v568, 0
  %v581 = vsel %vm374, %v570, 0
  %583 = vmatprep.subr.mxu0 0.0
  %584 = vmatpush1.xpose.msra.mxu0 0.0
  %585 = vmatprep.subr.mxu0 0.0
  %586 = vmatpush1.xpose.msra.mxu0 0.0
  %587 = vmatprep.subr.mxu0 0.0
  %588 = vmatpush1.xpose.msra.mxu0 0.0
  %589 = vmatprep.subr.mxu0 0.0
  %590 = vmatpush1.xpose.msra.mxu0 0.0
  %591 = vmatprep.subr.mxu0 0.0
  %592 = vmatpush1.xpose.msra.mxu0 0.0
  %593 = vmatprep.subr.mxu0 0.0
  %594 = vmatpush1.xpose.msra.mxu0 0.0
  %595 = vmatprep.subr.mxu0 0.0
  %596 = vmatpush1.xpose.msra.mxu0 0.0
  %597 = vmatprep.subr.mxu0 0.0
  %598 = vmatpush1.xpose.msra.mxu0 0.0
  %599 = vmatprep.subr.mxu0 0.0
  %600 = vmatpush1.xpose.msra.mxu0 0.0
  %601 = vmatprep.subr.mxu0 0.0
  %602 = vmatpush1.xpose.msra.mxu0 0.0
  %603 = vmatprep.subr.mxu0 0.0
  %604 = vmatpush1.xpose.msra.mxu0 0.0
  %605 = vmatprep.subr.mxu0 0.0
  %606 = vmatpush1.xpose.msra.mxu0 0.0
  %607 = vmatprep.subr.mxu0 0.0
  %608 = vmatpush1.xpose.msra.mxu0 0.0
  %609 = vmatprep.subr.mxu0 0.0
  %610 = vmatpush1.xpose.msra.mxu0 %v581
  %611 = vmatprep.subr.mxu0 0.0
  %612 = vmatpush1.xpose.msra.mxu0 %v579
  %613 = vmatprep.subr.mxu0 0.0
  %614 = vmatpush1.xpose.msra.mxu0 %v577
  %615 = vmatprep.subr.mxu0 0.0
  %616 = vmatpush2.xpose.msra.mxu0 0.0
  %617 = vmatprep.subr.mxu0 0.0
  %618 = vmatpush2.xpose.msra.mxu0 0.0
  %619 = vmatprep.subr.mxu0 0.0
  %620 = vmatpush2.xpose.msra.mxu0 0.0
  %621 = vmatprep.subr.mxu0 0.0
  %622 = vmatpush2.xpose.msra.mxu0 0.0
  %623 = vmatprep.subr.mxu0 0.0
  %624 = vmatpush2.xpose.msra.mxu0 0.0
  %625 = vmatprep.subr.mxu0 0.0
  %626 = vmatpush2.xpose.msra.mxu0 0.0
  %627 = vmatprep.subr.mxu0 0.0
  %628 = vmatpush2.xpose.msra.mxu0 0.0
  %629 = vmatprep.subr.mxu0 0.0
  %630 = vmatpush2.xpose.msra.mxu0 0.0
  %631 = vmatprep.subr.mxu0 0.0
  %632 = vmatpush2.xpose.msra.mxu0 0.0
  %633 = vmatprep.subr.mxu0 0.0
  %634 = vmatpush2.xpose.msra.mxu0 0.0
  %635 = vmatprep.subr.mxu0 0.0
  %636 = vmatpush2.xpose.msra.mxu0 0.0
  %637 = vmatprep.subr.mxu0 0.0
  %638 = vmatpush2.xpose.msra.mxu0 0.0
  %639 = vmatprep.subr.mxu0 0.0
  %640 = vmatpush2.xpose.msra.mxu0 0.0
  %641 = vmatprep.subr.mxu0 0.0
  %642 = vmatpush2.xpose.msra.mxu0 0.0
  %643 = vmatprep.subr.mxu0 0.0
  %644 = vmatpush2.xpose.msra.mxu0 0.0
  %645 = vmatprep.subr.mxu0 0.0
  %646 = vmatpush2.xpose.msra.mxu0 0.0
  %647 = vmatprep.mubr.f32.mxu0 0.0
  %648 = vmatmul.mubr.f32.gmra.mxu0 %v571
  %v649 = vpop.f32.mrf.mxu0
  %v650 = vadd.f32 0.0, %v649
  %v651 = vpop.f32.mrf.mxu0
  %652 = vmatprep.mubr.f32.mxu0 0.0
  %653 = vmatmul.mubr.f32.gmra.mxu0 %v573
  %v654 = vpop.f32.mrf.mxu0
  %v655 = vadd.f32 0.0, %v654
  %v656 = vpop.f32.mrf.mxu0
  %657 = vmatprep.mubr.f32.mxu0 0.0
  %658 = vmatmul.mubr.f32.gmra.mxu0 %v575
  %v659 = vpop.f32.mrf.mxu0
  %v660 = vadd.f32 0.0, %v659
  %v661 = vpop.f32.mrf.mxu0
  %662 = vdwg.mxu0
  %663 = vrot.lane.b32.xlu0 %v363, 96
  %v664 = vpop.permute.xlu0 %663
  %665 = vrot.lane.b32.xlu0 %v365, 96
  %v666 = vpop.permute.xlu0 %665
  %667 = vrot.lane.b32.xlu0 %v367, 96
  %v668 = vpop.permute.xlu0 %667
  %v669 = vsel %vm374, %v363, 0
  %v671 = vsel %vm374, %v365, 0
  %v673 = vsel %vm374, %v367, 0
  %v675 = vsel %vm374, %v664, 0
  %v677 = vsel %vm374, %v666, 0
  %v679 = vsel %vm374, %v668, 0
  %681 = vmatprep.subr.mxu0 0.0
  %682 = vmatpush1.xpose.msra.mxu0 0.0
  %683 = vmatprep.subr.mxu0 0.0
  %684 = vmatpush1.xpose.msra.mxu0 0.0
  %685 = vmatprep.subr.mxu0 0.0
  %686 = vmatpush1.xpose.msra.mxu0 0.0
  %687 = vmatprep.subr.mxu0 0.0
  %688 = vmatpush1.xpose.msra.mxu0 0.0
  %689 = vmatprep.subr.mxu0 0.0
  %690 = vmatpush1.xpose.msra.mxu0 0.0
  %691 = vmatprep.subr.mxu0 0.0
  %692 = vmatpush1.xpose.msra.mxu0 0.0
  %693 = vmatprep.subr.mxu0 0.0
  %694 = vmatpush1.xpose.msra.mxu0 0.0
  %695 = vmatprep.subr.mxu0 0.0
  %696 = vmatpush1.xpose.msra.mxu0 0.0
  %697 = vmatprep.subr.mxu0 0.0
  %698 = vmatpush1.xpose.msra.mxu0 0.0
  %699 = vmatprep.subr.mxu0 0.0
  %700 = vmatpush1.xpose.msra.mxu0 0.0
  %701 = vmatprep.subr.mxu0 0.0
  %702 = vmatpush1.xpose.msra.mxu0 0.0
  %703 = vmatprep.subr.mxu0 0.0
  %704 = vmatpush1.xpose.msra.mxu0 0.0
  %705 = vmatprep.subr.mxu0 0.0
  %706 = vmatpush1.xpose.msra.mxu0 0.0
  %707 = vmatprep.subr.mxu0 0.0
  %708 = vmatpush1.xpose.msra.mxu0 %v679
  %709 = vmatprep.subr.mxu0 0.0
  %710 = vmatpush1.xpose.msra.mxu0 %v677
  %711 = vmatprep.subr.mxu0 0.0
  %712 = vmatpush1.xpose.msra.mxu0 %v675
  %713 = vmatprep.subr.mxu0 0.0
  %714 = vmatpush2.xpose.msra.mxu0 0.0
  %715 = vmatprep.subr.mxu0 0.0
  %716 = vmatpush2.xpose.msra.mxu0 0.0
  %717 = vmatprep.subr.mxu0 0.0
  %718 = vmatpush2.xpose.msra.mxu0 0.0
  %719 = vmatprep.subr.mxu0 0.0
  %720 = vmatpush2.xpose.msra.mxu0 0.0
  %721 = vmatprep.subr.mxu0 0.0
  %722 = vmatpush2.xpose.msra.mxu0 0.0
  %723 = vmatprep.subr.mxu0 0.0
  %724 = vmatpush2.xpose.msra.mxu0 0.0
  %725 = vmatprep.subr.mxu0 0.0
  %726 = vmatpush2.xpose.msra.mxu0 0.0
  %727 = vmatprep.subr.mxu0 0.0
  %728 = vmatpush2.xpose.msra.mxu0 0.0
  %729 = vmatprep.subr.mxu0 0.0
  %730 = vmatpush2.xpose.msra.mxu0 0.0
  %731 = vmatprep.subr.mxu0 0.0
  %732 = vmatpush2.xpose.msra.mxu0 0.0
  %733 = vmatprep.subr.mxu0 0.0
  %734 = vmatpush2.xpose.msra.mxu0 0.0
  %735 = vmatprep.subr.mxu0 0.0
  %736 = vmatpush2.xpose.msra.mxu0 0.0
  %737 = vmatprep.subr.mxu0 0.0
  %738 = vmatpush2.xpose.msra.mxu0 0.0
  %739 = vmatprep.subr.mxu0 0.0
  %740 = vmatpush2.xpose.msra.mxu0 0.0
  %741 = vmatprep.subr.mxu0 0.0
  %742 = vmatpush2.xpose.msra.mxu0 0.0
  %743 = vmatprep.subr.mxu0 0.0
  %744 = vmatpush2.xpose.msra.mxu0 0.0
  %745 = vmatprep.mubr.f32.mxu0 0.0
  %746 = vmatmul.mubr.f32.gmra.mxu0 %v669
  %v747 = vpop.f32.mrf.mxu0
  %v748 = vadd.f32 0.0, %v747
  %v749 = vpop.f32.mrf.mxu0
  %750 = vmatprep.mubr.f32.mxu0 0.0
  %751 = vmatmul.mubr.f32.gmra.mxu0 %v671
  %v752 = vpop.f32.mrf.mxu0
  %v753 = vadd.f32 0.0, %v752
  %v754 = vpop.f32.mrf.mxu0
  %755 = vmatprep.mubr.f32.mxu0 0.0
  %756 = vmatmul.mubr.f32.gmra.mxu0 %v673
  %v757 = vpop.f32.mrf.mxu0
  %v758 = vadd.f32 0.0, %v757
  %v759 = vpop.f32.mrf.mxu0
  %760 = vdwg.mxu0
  %v761 = vmul.f32 %v454, 0.35355338
  %v762 = vmul.f32 %v459, 0.35355338
  %v763 = vmul.f32 %v464, 0.35355338
  %v764 = vmul.f32 %v552, 0.35355338
  %v765 = vmul.f32 %v557, 0.35355338
  %v766 = vmul.f32 %v562, 0.35355338
  %v767 = vmul.f32 %v650, 0.35355338
  %v768 = vmul.f32 %v655, 0.35355338
  %v769 = vmul.f32 %v660, 0.35355338
  %v770 = vmul.f32 %v748, 0.35355338
  %v771 = vmul.f32 %v753, 0.35355338
  %v772 = vmul.f32 %v758, 0.35355338
  %v773 = vadd.f32 %v761, %v182
  %v774 = vadd.f32 %v762, %v183
  %v775 = vadd.f32 %v763, %v184
  %v776 = vadd.f32 %v764, %v182
  %v777 = vadd.f32 %v765, %v183
  %v778 = vadd.f32 %v766, %v184
  %v779 = vadd.f32 %v767, %v182
  %v780 = vadd.f32 %v768, %v183
  %v781 = vadd.f32 %v769, %v184
  %v782 = vadd.f32 %v770, %v182
  %v783 = vadd.f32 %v771, %v183
  %v784 = vadd.f32 %v772, %v184
  %vm785 = vcmask 146432
  %v786 = vsel %vm785, %v773, -inf
  %787 = vmax.xlane.f32.xlu0 %v786
  %v788 = vpop.xlane.xlu0 %787
  %v789 = vsel %vm785, %v774, -inf
  %790 = vmax.xlane.f32.xlu0 %v789
  %v791 = vpop.xlane.xlu0 %790
  %vm792 = vcmask 140288
  %v793 = vsel %vm792, %v775, -inf
  %794 = vmax.xlane.f32.xlu0 %v793
  %v795 = vpop.xlane.xlu0 %794
  %v796 = vsel %vm785, %v776, -inf
  %797 = vmax.xlane.f32.xlu0 %v796
  %v798 = vpop.xlane.xlu0 %797
  %v799 = vsel %vm785, %v777, -inf
  %800 = vmax.xlane.f32.xlu0 %v799
  %v801 = vpop.xlane.xlu0 %800
  %v802 = vsel %vm792, %v778, -inf
  %803 = vmax.xlane.f32.xlu0 %v802
  %v804 = vpop.xlane.xlu0 %803
  %v805 = vsel %vm785, %v779, -inf
  %806 = vmax.xlane.f32.xlu0 %v805
  %v807 = vpop.xlane.xlu0 %806
  %v808 = vsel %vm785, %v780, -inf
  %809 = vmax.xlane.f32.xlu0 %v808
  %v810 = vpop.xlane.xlu0 %809
  %v811 = vsel %vm792, %v781, -inf
  %812 = vmax.xlane.f32.xlu0 %v811
  %v813 = vpop.xlane.xlu0 %812
  %v814 = vsel %vm785, %v782, -inf
  %815 = vmax.xlane.f32.xlu0 %v814
  %v816 = vpop.xlane.xlu0 %815
  %v817 = vsel %vm785, %v783, -inf
  %818 = vmax.xlane.f32.xlu0 %v817
  %v819 = vpop.xlane.xlu0 %818
  %v820 = vsel %vm792, %v784, -inf
  %821 = vmax.xlane.f32.xlu0 %v820
  %v822 = vpop.xlane.xlu0 %821
  %v823 = vsub.f32 %v773, %v788
  %v824 = vsub.f32 %v774, %v791
  %v825 = vsub.f32 %v775, %v795
  %v826 = vsub.f32 %v776, %v798
  %v827 = vsub.f32 %v777, %v801
  %v828 = vsub.f32 %v778, %v804
  %v829 = vsub.f32 %v779, %v807
  %v830 = vsub.f32 %v780, %v810
  %v831 = vsub.f32 %v781, %v813
  %v832 = vsub.f32 %v782, %v816
  %v833 = vsub.f32 %v783, %v819
  %v834 = vsub.f32 %v784, %v822
  %v835 = vmul.f32 %v823, 1.442695
  %v836 = vpow.pop %v835
  %v837 = vmul.f32 %v824, 1.442695
  %v838 = vpow.pop %v837
  %v839 = vmul.f32 %v825, 1.442695
  %v840 = vpow.pop %v839
  %v841 = vmul.f32 %v826, 1.442695
  %v842 = vpow.pop %v841
  %v843 = vmul.f32 %v827, 1.442695
  %v844 = vpow.pop %v843
  %v845 = vmul.f32 %v828, 1.442695
  %v846 = vpow.pop %v845
  %v847 = vmul.f32 %v829, 1.442695
  %v848 = vpow.pop %v847
  %v849 = vmul.f32 %v830, 1.442695
  %v850 = vpow.pop %v849
  %v851 = vmul.f32 %v831, 1.442695
  %v852 = vpow.pop %v851
  %v853 = vmul.f32 %v832, 1.442695
  %v854 = vpow.pop %v853
  %v855 = vmul.f32 %v833, 1.442695
  %v856 = vpow.pop %v855
  %v857 = vmul.f32 %v834, 1.442695
  %v858 = vpow.pop %v857
  %v859 = vsel %vm785, %v836, 0.0
  %860 = vadd.xlane.f32.xlu0 %v859
  %v861 = vpop.xlane.xlu0 %860
  %v862 = vsel %vm785, %v838, 0.0
  %863 = vadd.xlane.f32.xlu0 %v862
  %v864 = vpop.xlane.xlu0 %863
  %v865 = vsel %vm792, %v840, 0.0
  %866 = vadd.xlane.f32.xlu0 %v865
  %v867 = vpop.xlane.xlu0 %866
  %v868 = vsel %vm785, %v842, 0.0
  %869 = vadd.xlane.f32.xlu0 %v868
  %v870 = vpop.xlane.xlu0 %869
  %v871 = vsel %vm785, %v844, 0.0
  %872 = vadd.xlane.f32.xlu0 %v871
  %v873 = vpop.xlane.xlu0 %872
  %v874 = vsel %vm792, %v846, 0.0
  %875 = vadd.xlane.f32.xlu0 %v874
  %v876 = vpop.xlane.xlu0 %875
  %v877 = vsel %vm785, %v848, 0.0
  %878 = vadd.xlane.f32.xlu0 %v877
  %v879 = vpop.xlane.xlu0 %878
  %v880 = vsel %vm785, %v850, 0.0
  %881 = vadd.xlane.f32.xlu0 %v880
  %v882 = vpop.xlane.xlu0 %881
  %v883 = vsel %vm792, %v852, 0.0
  %884 = vadd.xlane.f32.xlu0 %v883
  %v885 = vpop.xlane.xlu0 %884
  %v886 = vsel %vm785, %v854, 0.0
  %887 = vadd.xlane.f32.xlu0 %v886
  %v888 = vpop.xlane.xlu0 %887
  %v889 = vsel %vm785, %v856, 0.0
  %890 = vadd.xlane.f32.xlu0 %v889
  %v891 = vpop.xlane.xlu0 %890
  %v892 = vsel %vm792, %v858, 0.0
  %893 = vadd.xlane.f32.xlu0 %v892
  %v894 = vpop.xlane.xlu0 %893
  %v895 = vrcp.pop %v861
  %v896 = vrcp.pop %v864
  %v897 = vrcp.pop %v867
  %v898 = vrcp.pop %v870
  %v899 = vrcp.pop %v873
  %v900 = vrcp.pop %v876
  %v901 = vrcp.pop %v879
  %v902 = vrcp.pop %v882
  %v903 = vrcp.pop %v885
  %v904 = vrcp.pop %v888
  %v905 = vrcp.pop %v891
  %v906 = vrcp.pop %v894
  %v907 = vmul.f32 %v836, %v895
  %v908 = vmul.f32 %v838, %v896
  %v909 = vmul.f32 %v840, %v897
  %v910 = vmul.f32 %v842, %v898
  %v911 = vmul.f32 %v844, %v899
  %v912 = vmul.f32 %v846, %v900
  %v913 = vmul.f32 %v848, %v901
  %v914 = vmul.f32 %v850, %v902
  %v915 = vmul.f32 %v852, %v903
  %v916 = vmul.f32 %v854, %v904
  %v917 = vmul.f32 %v856, %v905
  %v918 = vmul.f32 %v858, %v906
  %919 = vrot.lane.b32.xlu0 %v334, 64
  %v920 = vpop.permute.xlu0 %919
  %921 = vrot.lane.b32.xlu0 %v339, 64
  %v922 = vpop.permute.xlu0 %921
  %923 = vrot.lane.b32.xlu0 %v344, 64
  %v924 = vpop.permute.xlu0 %923
  %v928 = vsel %vm785, %v907, 0
  %v931 = vsel %vm785, %v908, 0
  %v934 = vsel %vm785, %v909, 0
  %vm936 = vcmask 1041408
  %v937 = vsel %vm936, %v924, 0
  %939 = vmatprep.subr.mxu0 0.0
  %940 = vmatpush1.msra.mxu0 0.0
  %941 = vmatprep.subr.mxu0 0.0
  %942 = vmatpush1.msra.mxu0 0.0
  %943 = vmatprep.subr.mxu0 0.0
  %944 = vmatpush1.msra.mxu0 0.0
  %945 = vmatprep.subr.mxu0 0.0
  %946 = vmatpush1.msra.mxu0 0.0
  %947 = vmatprep.subr.mxu0 0.0
  %948 = vmatpush1.msra.mxu0 0.0
  %949 = vmatprep.subr.mxu0 0.0
  %950 = vmatpush1.msra.mxu0 0.0
  %951 = vmatprep.subr.mxu0 0.0
  %952 = vmatpush1.msra.mxu0 0.0
  %953 = vmatprep.subr.mxu0 0.0
  %954 = vmatpush1.msra.mxu0 0.0
  %955 = vmatprep.subr.mxu0 0.0
  %956 = vmatpush1.msra.mxu0 0.0
  %957 = vmatprep.subr.mxu0 0.0
  %958 = vmatpush1.msra.mxu0 0.0
  %959 = vmatprep.subr.mxu0 0.0
  %960 = vmatpush1.msra.mxu0 0.0
  %961 = vmatprep.subr.mxu0 0.0
  %962 = vmatpush1.msra.mxu0 0.0
  %963 = vmatprep.subr.mxu0 0.0
  %964 = vmatpush1.msra.mxu0 0.0
  %965 = vmatprep.subr.mxu0 0.0
  %966 = vmatpush1.msra.mxu0 %v937
  %967 = vmatprep.subr.mxu0 0.0
  %968 = vmatpush1.msra.mxu0 %v922
  %969 = vmatprep.subr.mxu0 0.0
  %970 = vmatpush1.msra.mxu0 %v920
  %971 = vmatprep.subr.mxu0 0.0
  %972 = vmatpush2.msra.mxu0 0.0
  %973 = vmatprep.subr.mxu0 0.0
  %974 = vmatpush2.msra.mxu0 0.0
  %975 = vmatprep.subr.mxu0 0.0
  %976 = vmatpush2.msra.mxu0 0.0
  %977 = vmatprep.subr.mxu0 0.0
  %978 = vmatpush2.msra.mxu0 0.0
  %979 = vmatprep.subr.mxu0 0.0
  %980 = vmatpush2.msra.mxu0 0.0
  %981 = vmatprep.subr.mxu0 0.0
  %982 = vmatpush2.msra.mxu0 0.0
  %983 = vmatprep.subr.mxu0 0.0
  %984 = vmatpush2.msra.mxu0 0.0
  %985 = vmatprep.subr.mxu0 0.0
  %986 = vmatpush2.msra.mxu0 0.0
  %987 = vmatprep.subr.mxu0 0.0
  %988 = vmatpush2.msra.mxu0 0.0
  %989 = vmatprep.subr.mxu0 0.0
  %990 = vmatpush2.msra.mxu0 0.0
  %991 = vmatprep.subr.mxu0 0.0
  %992 = vmatpush2.msra.mxu0 0.0
  %993 = vmatprep.subr.mxu0 0.0
  %994 = vmatpush2.msra.mxu0 0.0
  %995 = vmatprep.subr.mxu0 0.0
  %996 = vmatpush2.msra.mxu0 0.0
  %997 = vmatprep.subr.mxu0 0.0
  %998 = vmatpush2.msra.mxu0 0.0
  %999 = vmatprep.subr.mxu0 0.0
  %1000 = vmatpush2.msra.mxu0 0.0
  %1001 = vmatprep.subr.mxu0 0.0
  %1002 = vmatpush2.msra.mxu0 0.0
  %1003 = vmatprep.mubr.f32.mxu0 0.0
  %1004 = vmatmul.mubr.f32.gmra.mxu0 %v928
  %v1005 = vpop.f32.mrf.mxu0
  %v1006 = vadd.f32 0.0, %v1005
  %v1007 = vpop.f32.mrf.mxu0
  %1008 = vmatprep.mubr.f32.mxu0 0.0
  %1009 = vmatmul.mubr.f32.gmra.mxu0 %v931
  %v1010 = vpop.f32.mrf.mxu0
  %v1011 = vadd.f32 0.0, %v1010
  %v1012 = vpop.f32.mrf.mxu0
  %1013 = vmatprep.mubr.f32.mxu0 0.0
  %1014 = vmatmul.mubr.f32.gmra.mxu0 %v934
  %v1015 = vpop.f32.mrf.mxu0
  %v1016 = vadd.f32 0.0, %v1015
  %v1017 = vpop.f32.mrf.mxu0
  %1018 = vdwg.mxu0
  %1019 = vrot.lane.b32.xlu0 %v351, 64
  %v1020 = vpop.permute.xlu0 %1019
  %1021 = vrot.lane.b32.xlu0 %v353, 64
  %v1022 = vpop.permute.xlu0 %1021
  %1023 = vrot.lane.b32.xlu0 %v355, 64
  %v1024 = vpop.permute.xlu0 %1023
  %v1028 = vsel %vm785, %v910, 0
  %v1031 = vsel %vm785, %v911, 0
  %v1034 = vsel %vm785, %v912, 0
  %v1036 = vsel %vm936, %v1024, 0
  %1038 = vmatprep.subr.mxu0 0.0
  %1039 = vmatpush1.msra.mxu0 0.0
  %1040 = vmatprep.subr.mxu0 0.0
  %1041 = vmatpush1.msra.mxu0 0.0
  %1042 = vmatprep.subr.mxu0 0.0
  %1043 = vmatpush1.msra.mxu0 0.0
  %1044 = vmatprep.subr.mxu0 0.0
  %1045 = vmatpush1.msra.mxu0 0.0
  %1046 = vmatprep.subr.mxu0 0.0
  %1047 = vmatpush1.msra.mxu0 0.0
  %1048 = vmatprep.subr.mxu0 0.0
  %1049 = vmatpush1.msra.mxu0 0.0
  %1050 = vmatprep.subr.mxu0 0.0
  %1051 = vmatpush1.msra.mxu0 0.0
  %1052 = vmatprep.subr.mxu0 0.0
  %1053 = vmatpush1.msra.mxu0 0.0
  %1054 = vmatprep.subr.mxu0 0.0
  %1055 = vmatpush1.msra.mxu0 0.0
  %1056 = vmatprep.subr.mxu0 0.0
  %1057 = vmatpush1.msra.mxu0 0.0
  %1058 = vmatprep.subr.mxu0 0.0
  %1059 = vmatpush1.msra.mxu0 0.0
  %1060 = vmatprep.subr.mxu0 0.0
  %1061 = vmatpush1.msra.mxu0 0.0
  %1062 = vmatprep.subr.mxu0 0.0
  %1063 = vmatpush1.msra.mxu0 0.0
  %1064 = vmatprep.subr.mxu0 0.0
  %1065 = vmatpush1.msra.mxu0 %v1036
  %1066 = vmatprep.subr.mxu0 0.0
  %1067 = vmatpush1.msra.mxu0 %v1022
  %1068 = vmatprep.subr.mxu0 0.0
  %1069 = vmatpush1.msra.mxu0 %v1020
  %1070 = vmatprep.subr.mxu0 0.0
  %1071 = vmatpush2.msra.mxu0 0.0
  %1072 = vmatprep.subr.mxu0 0.0
  %1073 = vmatpush2.msra.mxu0 0.0
  %1074 = vmatprep.subr.mxu0 0.0
  %1075 = vmatpush2.msra.mxu0 0.0
  %1076 = vmatprep.subr.mxu0 0.0
  %1077 = vmatpush2.msra.mxu0 0.0
  %1078 = vmatprep.subr.mxu0 0.0
  %1079 = vmatpush2.msra.mxu0 0.0
  %1080 = vmatprep.subr.mxu0 0.0
  %1081 = vmatpush2.msra.mxu0 0.0
  %1082 = vmatprep.subr.mxu0 0.0
  %1083 = vmatpush2.msra.mxu0 0.0
  %1084 = vmatprep.subr.mxu0 0.0
  %1085 = vmatpush2.msra.mxu0 0.0
  %1086 = vmatprep.subr.mxu0 0.0
  %1087 = vmatpush2.msra.mxu0 0.0
  %1088 = vmatprep.subr.mxu0 0.0
  %1089 = vmatpush2.msra.mxu0 0.0
  %1090 = vmatprep.subr.mxu0 0.0
  %1091 = vmatpush2.msra.mxu0 0.0
  %1092 = vmatprep.subr.mxu0 0.0
  %1093 = vmatpush2.msra.mxu0 0.0
  %1094 = vmatprep.subr.mxu0 0.0
  %1095 = vmatpush2.msra.mxu0 0.0
  %1096 = vmatprep.subr.mxu0 0.0
  %1097 = vmatpush2.msra.mxu0 0.0
  %1098 = vmatprep.subr.mxu0 0.0
  %1099 = vmatpush2.msra.mxu0 0.0
  %1100 = vmatprep.subr.mxu0 0.0
  %1101 = vmatpush2.msra.mxu0 0.0
  %1102 = vmatprep.mubr.f32.mxu0 0.0
  %1103 = vmatmul.mubr.f32.gmra.mxu0 %v1028
  %v1104 = vpop.f32.mrf.mxu0
  %v1105 = vadd.f32 0.0, %v1104
  %v1106 = vpop.f32.mrf.mxu0
  %1107 = vmatprep.mubr.f32.mxu0 0.0
  %1108 = vmatmul.mubr.f32.gmra.mxu0 %v1031
  %v1109 = vpop.f32.mrf.mxu0
  %v1110 = vadd.f32 0.0, %v1109
  %v1111 = vpop.f32.mrf.mxu0
  %1112 = vmatprep.mubr.f32.mxu0 0.0
  %1113 = vmatmul.mubr.f32.gmra.mxu0 %v1034
  %v1114 = vpop.f32.mrf.mxu0
  %v1115 = vadd.f32 0.0, %v1114
  %v1116 = vpop.f32.mrf.mxu0
  %1117 = vdwg.mxu0
  %1118 = vrot.lane.b32.xlu0 %v357, 64
  %v1119 = vpop.permute.xlu0 %1118
  %1120 = vrot.lane.b32.xlu0 %v359, 64
  %v1121 = vpop.permute.xlu0 %1120
  %1122 = vrot.lane.b32.xlu0 %v361, 64
  %v1123 = vpop.permute.xlu0 %1122
  %v1127 = vsel %vm785, %v913, 0
  %v1130 = vsel %vm785, %v914, 0
  %v1133 = vsel %vm785, %v915, 0
  %v1135 = vsel %vm936, %v1123, 0
  %1137 = vmatprep.subr.mxu0 0.0
  %1138 = vmatpush1.msra.mxu0 0.0
  %1139 = vmatprep.subr.mxu0 0.0
  %1140 = vmatpush1.msra.mxu0 0.0
  %1141 = vmatprep.subr.mxu0 0.0
  %1142 = vmatpush1.msra.mxu0 0.0
  %1143 = vmatprep.subr.mxu0 0.0
  %1144 = vmatpush1.msra.mxu0 0.0
  %1145 = vmatprep.subr.mxu0 0.0
  %1146 = vmatpush1.msra.mxu0 0.0
  %1147 = vmatprep.subr.mxu0 0.0
  %1148 = vmatpush1.msra.mxu0 0.0
  %1149 = vmatprep.subr.mxu0 0.0
  %1150 = vmatpush1.msra.mxu0 0.0
  %1151 = vmatprep.subr.mxu0 0.0
  %1152 = vmatpush1.msra.mxu0 0.0
  %1153 = vmatprep.subr.mxu0 0.0
  %1154 = vmatpush1.msra.mxu0 0.0
  %1155 = vmatprep.subr.mxu0 0.0
  %1156 = vmatpush1.msra.mxu0 0.0
  %1157 = vmatprep.subr.mxu0 0.0
  %1158 = vmatpush1.msra.mxu0 0.0
  %1159 = vmatprep.subr.mxu0 0.0
  %1160 = vmatpush1.msra.mxu0 0.0
  %1161 = vmatprep.subr.mxu0 0.0
  %1162 = vmatpush1.msra.mxu0 0.0
  %1163 = vmatprep.subr.mxu0 0.0
  %1164 = vmatpush1.msra.mxu0 %v1135
  %1165 = vmatprep.subr.mxu0 0.0
  %1166 = vmatpush1.msra.mxu0 %v1121
  %1167 = vmatprep.subr.mxu0 0.0
  %1168 = vmatpush1.msra.mxu0 %v1119
  %1169 = vmatprep.subr.mxu0 0.0
  %1170 = vmatpush2.msra.mxu0 0.0
  %1171 = vmatprep.subr.mxu0 0.0
  %1172 = vmatpush2.msra.mxu0 0.0
  %1173 = vmatprep.subr.mxu0 0.0
  %1174 = vmatpush2.msra.mxu0 0.0
  %1175 = vmatprep.subr.mxu0 0.0
  %1176 = vmatpush2.msra.mxu0 0.0
  %1177 = vmatprep.subr.mxu0 0.0
  %1178 = vmatpush2.msra.mxu0 0.0
  %1179 = vmatprep.subr.mxu0 0.0
  %1180 = vmatpush2.msra.mxu0 0.0
  %1181 = vmatprep.subr.mxu0 0.0
  %1182 = vmatpush2.msra.mxu0 0.0
  %1183 = vmatprep.subr.mxu0 0.0
  %1184 = vmatpush2.msra.mxu0 0.0
  %1185 = vmatprep.subr.mxu0 0.0
  %1186 = vmatpush2.msra.mxu0 0.0
  %1187 = vmatprep.subr.mxu0 0.0
  %1188 = vmatpush2.msra.mxu0 0.0
  %1189 = vmatprep.subr.mxu0 0.0
  %1190 = vmatpush2.msra.mxu0 0.0
  %1191 = vmatprep.subr.mxu0 0.0
  %1192 = vmatpush2.msra.mxu0 0.0
  %1193 = vmatprep.subr.mxu0 0.0
  %1194 = vmatpush2.msra.mxu0 0.0
  %1195 = vmatprep.subr.mxu0 0.0
  %1196 = vmatpush2.msra.mxu0 0.0
  %1197 = vmatprep.subr.mxu0 0.0
  %1198 = vmatpush2.msra.mxu0 0.0
  %1199 = vmatprep.subr.mxu0 0.0
  %1200 = vmatpush2.msra.mxu0 0.0
  %1201 = vmatprep.mubr.f32.mxu0 0.0
  %1202 = vmatmul.mubr.f32.gmra.mxu0 %v1127
  %v1203 = vpop.f32.mrf.mxu0
  %v1204 = vadd.f32 0.0, %v1203
  %v1205 = vpop.f32.mrf.mxu0
  %1206 = vmatprep.mubr.f32.mxu0 0.0
  %1207 = vmatmul.mubr.f32.gmra.mxu0 %v1130
  %v1208 = vpop.f32.mrf.mxu0
  %v1209 = vadd.f32 0.0, %v1208
  %v1210 = vpop.f32.mrf.mxu0
  %1211 = vmatprep.mubr.f32.mxu0 0.0
  %1212 = vmatmul.mubr.f32.gmra.mxu0 %v1133
  %v1213 = vpop.f32.mrf.mxu0
  %v1214 = vadd.f32 0.0, %v1213
  %v1215 = vpop.f32.mrf.mxu0
  %1216 = vdwg.mxu0
  %1217 = vrot.lane.b32.xlu0 %v363, 64
  %v1218 = vpop.permute.xlu0 %1217
  %1219 = vrot.lane.b32.xlu0 %v365, 64
  %v1220 = vpop.permute.xlu0 %1219
  %1221 = vrot.lane.b32.xlu0 %v367, 64
  %v1222 = vpop.permute.xlu0 %1221
  %v1226 = vsel %vm785, %v916, 0
  %v1229 = vsel %vm785, %v917, 0
  %v1232 = vsel %vm785, %v918, 0
  %v1234 = vsel %vm936, %v1222, 0
  %1236 = vmatprep.subr.mxu0 0.0
  %1237 = vmatpush1.msra.mxu0 0.0
  %1238 = vmatprep.subr.mxu0 0.0
  %1239 = vmatpush1.msra.mxu0 0.0
  %1240 = vmatprep.subr.mxu0 0.0
  %1241 = vmatpush1.msra.mxu0 0.0
  %1242 = vmatprep.subr.mxu0 0.0
  %1243 = vmatpush1.msra.mxu0 0.0
  %1244 = vmatprep.subr.mxu0 0.0
  %1245 = vmatpush1.msra.mxu0 0.0
  %1246 = vmatprep.subr.mxu0 0.0
  %1247 = vmatpush1.msra.mxu0 0.0
  %1248 = vmatprep.subr.mxu0 0.0
  %1249 = vmatpush1.msra.mxu0 0.0
  %1250 = vmatprep.subr.mxu0 0.0
  %1251 = vmatpush1.msra.mxu0 0.0
  %1252 = vmatprep.subr.mxu0 0.0
  %1253 = vmatpush1.msra.mxu0 0.0
  %1254 = vmatprep.subr.mxu0 0.0
  %1255 = vmatpush1.msra.mxu0 0.0
  %1256 = vmatprep.subr.mxu0 0.0
  %1257 = vmatpush1.msra.mxu0 0.0
  %1258 = vmatprep.subr.mxu0 0.0
  %1259 = vmatpush1.msra.mxu0 0.0
  %1260 = vmatprep.subr.mxu0 0.0
  %1261 = vmatpush1.msra.mxu0 0.0
  %1262 = vmatprep.subr.mxu0 0.0
  %1263 = vmatpush1.msra.mxu0 %v1234
  %1264 = vmatprep.subr.mxu0 0.0
  %1265 = vmatpush1.msra.mxu0 %v1220
  %1266 = vmatprep.subr.mxu0 0.0
  %1267 = vmatpush1.msra.mxu0 %v1218
  %1268 = vmatprep.subr.mxu0 0.0
  %1269 = vmatpush2.msra.mxu0 0.0
  %1270 = vmatprep.subr.mxu0 0.0
  %1271 = vmatpush2.msra.mxu0 0.0
  %1272 = vmatprep.subr.mxu0 0.0
  %1273 = vmatpush2.msra.mxu0 0.0
  %1274 = vmatprep.subr.mxu0 0.0
  %1275 = vmatpush2.msra.mxu0 0.0
  %1276 = vmatprep.subr.mxu0 0.0
  %1277 = vmatpush2.msra.mxu0 0.0
  %1278 = vmatprep.subr.mxu0 0.0
  %1279 = vmatpush2.msra.mxu0 0.0
  %1280 = vmatprep.subr.mxu0 0.0
  %1281 = vmatpush2.msra.mxu0 0.0
  %1282 = vmatprep.subr.mxu0 0.0
  %1283 = vmatpush2.msra.mxu0 0.0
  %1284 = vmatprep.subr.mxu0 0.0
  %1285 = vmatpush2.msra.mxu0 0.0
  %1286 = vmatprep.subr.mxu0 0.0
  %1287 = vmatpush2.msra.mxu0 0.0
  %1288 = vmatprep.subr.mxu0 0.0
  %1289 = vmatpush2.msra.mxu0 0.0
  %1290 = vmatprep.subr.mxu0 0.0
  %1291 = vmatpush2.msra.mxu0 0.0
  %1292 = vmatprep.subr.mxu0 0.0
  %1293 = vmatpush2.msra.mxu0 0.0
  %1294 = vmatprep.subr.mxu0 0.0
  %1295 = vmatpush2.msra.mxu0 0.0
  %1296 = vmatprep.subr.mxu0 0.0
  %1297 = vmatpush2.msra.mxu0 0.0
  %1298 = vmatprep.subr.mxu0 0.0
  %1299 = vmatpush2.msra.mxu0 0.0
  %1300 = vmatprep.mubr.f32.mxu0 0.0
  %1301 = vmatmul.mubr.f32.gmra.mxu0 %v1226
  %v1302 = vpop.f32.mrf.mxu0
  %v1303 = vadd.f32 0.0, %v1302
  %v1304 = vpop.f32.mrf.mxu0
  %1305 = vmatprep.mubr.f32.mxu0 0.0
  %1306 = vmatmul.mubr.f32.gmra.mxu0 %v1229
  %v1307 = vpop.f32.mrf.mxu0
  %v1308 = vadd.f32 0.0, %v1307
  %v1309 = vpop.f32.mrf.mxu0
  %1310 = vmatprep.mubr.f32.mxu0 0.0
  %1311 = vmatmul.mubr.f32.gmra.mxu0 %v1232
  %v1312 = vpop.f32.mrf.mxu0
  %v1313 = vadd.f32 0.0, %v1312
  %v1314 = vpop.f32.mrf.mxu0
  %1315 = vdwg.mxu0
  %v1316 = vld [vmem:[%s8] sm:$0xff]
  %v1317 = vld [vmem:[%s8 + $0x8] sm:$0xff]
  %v1318 = vld [vmem:[%s8 + $0x10] sm:$0xff]
  %v1319 = vld [vmem:[%s8 + $0x18] sm:$0xff]
  %v1321 = vsel %vm374, %v1006, 0
  %v1324 = vsel %vm374, %v1011, 0
  %v1327 = vsel %vm374, %v1016, 0
  %1329 = vmatprep.subr.mxu0 0.0
  %1330 = vmatpush1.msra.mxu0 0.0
  %1331 = vmatprep.subr.mxu0 0.0
  %1332 = vmatpush1.msra.mxu0 0.0
  %1333 = vmatprep.subr.mxu0 0.0
  %1334 = vmatpush1.msra.mxu0 0.0
  %1335 = vmatprep.subr.mxu0 0.0
  %1336 = vmatpush1.msra.mxu0 0.0
  %1337 = vmatprep.subr.mxu0 0.0
  %1338 = vmatpush1.msra.mxu0 0.0
  %1339 = vmatprep.subr.mxu0 0.0
  %1340 = vmatpush1.msra.mxu0 0.0
  %1341 = vmatprep.subr.mxu0 0.0
  %1342 = vmatpush1.msra.mxu0 0.0
  %1343 = vmatprep.subr.mxu0 0.0
  %1344 = vmatpush1.msra.mxu0 0.0
  %1345 = vmatprep.subr.mxu0 0.0
  %1346 = vmatpush1.msra.mxu0 0.0
  %1347 = vmatprep.subr.mxu0 0.0
  %1348 = vmatpush1.msra.mxu0 0.0
  %1349 = vmatprep.subr.mxu0 0.0
  %1350 = vmatpush1.msra.mxu0 0.0
  %1351 = vmatprep.subr.mxu0 0.0
  %1352 = vmatpush1.msra.mxu0 0.0
  %1353 = vmatprep.subr.mxu0 0.0
  %1354 = vmatpush1.msra.mxu0 0.0
  %1355 = vmatprep.subr.mxu0 0.0
  %1356 = vmatpush1.msra.mxu0 0.0
  %1357 = vmatprep.subr.mxu0 0.0
  %1358 = vmatpush1.msra.mxu0 0.0
  %1359 = vmatprep.subr.mxu0 0.0
  %1360 = vmatpush1.msra.mxu0 %v1316
  %1361 = vmatprep.subr.mxu0 0.0
  %1362 = vmatpush2.msra.mxu0 0.0
  %1363 = vmatprep.subr.mxu0 0.0
  %1364 = vmatpush2.msra.mxu0 0.0
  %1365 = vmatprep.subr.mxu0 0.0
  %1366 = vmatpush2.msra.mxu0 0.0
  %1367 = vmatprep.subr.mxu0 0.0
  %1368 = vmatpush2.msra.mxu0 0.0
  %1369 = vmatprep.subr.mxu0 0.0
  %1370 = vmatpush2.msra.mxu0 0.0
  %1371 = vmatprep.subr.mxu0 0.0
  %1372 = vmatpush2.msra.mxu0 0.0
  %1373 = vmatprep.subr.mxu0 0.0
  %1374 = vmatpush2.msra.mxu0 0.0
  %1375 = vmatprep.subr.mxu0 0.0
  %1376 = vmatpush2.msra.mxu0 0.0
  %1377 = vmatprep.subr.mxu0 0.0
  %1378 = vmatpush2.msra.mxu0 0.0
  %1379 = vmatprep.subr.mxu0 0.0
  %1380 = vmatpush2.msra.mxu0 0.0
  %1381 = vmatprep.subr.mxu0 0.0
  %1382 = vmatpush2.msra.mxu0 0.0
  %1383 = vmatprep.subr.mxu0 0.0
  %1384 = vmatpush2.msra.mxu0 0.0
  %1385 = vmatprep.subr.mxu0 0.0
  %1386 = vmatpush2.msra.mxu0 0.0
  %1387 = vmatprep.subr.mxu0 0.0
  %1388 = vmatpush2.msra.mxu0 0.0
  %1389 = vmatprep.subr.mxu0 0.0
  %1390 = vmatpush2.msra.mxu0 0.0
  %1391 = vmatprep.subr.mxu0 0.0
  %1392 = vmatpush2.msra.mxu0 0.0
  %1393 = vmatprep.mubr.f32.mxu0 0.0
  %1394 = vmatmul.mubr.f32.gmra.mxu0 %v1321
  %v1395 = vpop.f32.mrf.mxu0
  %v1396 = vadd.f32 0.0, %v1395
  %v1397 = vpop.f32.mrf.mxu0
  %1398 = vmatprep.mubr.f32.mxu0 0.0
  %1399 = vmatmul.mubr.f32.gmra.mxu0 %v1324
  %v1400 = vpop.f32.mrf.mxu0
  %v1401 = vadd.f32 0.0, %v1400
  %v1402 = vpop.f32.mrf.mxu0
  %1403 = vmatprep.mubr.f32.mxu0 0.0
  %1404 = vmatmul.mubr.f32.gmra.mxu0 %v1327
  %v1405 = vpop.f32.mrf.mxu0
  %v1406 = vadd.f32 0.0, %v1405
  %v1407 = vpop.f32.mrf.mxu0
  %1408 = vdwg.mxu0
  %v1410 = vsel %vm374, %v1105, 0
  %v1413 = vsel %vm374, %v1110, 0
  %v1416 = vsel %vm374, %v1115, 0
  %1418 = vmatprep.subr.mxu0 0.0
  %1419 = vmatpush1.msra.mxu0 0.0
  %1420 = vmatprep.subr.mxu0 0.0
  %1421 = vmatpush1.msra.mxu0 0.0
  %1422 = vmatprep.subr.mxu0 0.0
  %1423 = vmatpush1.msra.mxu0 0.0
  %1424 = vmatprep.subr.mxu0 0.0
  %1425 = vmatpush1.msra.mxu0 0.0
  %1426 = vmatprep.subr.mxu0 0.0
  %1427 = vmatpush1.msra.mxu0 0.0
  %1428 = vmatprep.subr.mxu0 0.0
  %1429 = vmatpush1.msra.mxu0 0.0
  %1430 = vmatprep.subr.mxu0 0.0
  %1431 = vmatpush1.msra.mxu0 0.0
  %1432 = vmatprep.subr.mxu0 0.0
  %1433 = vmatpush1.msra.mxu0 0.0
  %1434 = vmatprep.subr.mxu0 0.0
  %1435 = vmatpush1.msra.mxu0 0.0
  %1436 = vmatprep.subr.mxu0 0.0
  %1437 = vmatpush1.msra.mxu0 0.0
  %1438 = vmatprep.subr.mxu0 0.0
  %1439 = vmatpush1.msra.mxu0 0.0
  %1440 = vmatprep.subr.mxu0 0.0
  %1441 = vmatpush1.msra.mxu0 0.0
  %1442 = vmatprep.subr.mxu0 0.0
  %1443 = vmatpush1.msra.mxu0 0.0
  %1444 = vmatprep.subr.mxu0 0.0
  %1445 = vmatpush1.msra.mxu0 0.0
  %1446 = vmatprep.subr.mxu0 0.0
  %1447 = vmatpush1.msra.mxu0 0.0
  %1448 = vmatprep.subr.mxu0 0.0
  %1449 = vmatpush1.msra.mxu0 %v1317
  %1450 = vmatprep.subr.mxu0 0.0
  %1451 = vmatpush2.msra.mxu0 0.0
  %1452 = vmatprep.subr.mxu0 0.0
  %1453 = vmatpush2.msra.mxu0 0.0
  %1454 = vmatprep.subr.mxu0 0.0
  %1455 = vmatpush2.msra.mxu0 0.0
  %1456 = vmatprep.subr.mxu0 0.0
  %1457 = vmatpush2.msra.mxu0 0.0
  %1458 = vmatprep.subr.mxu0 0.0
  %1459 = vmatpush2.msra.mxu0 0.0
  %1460 = vmatprep.subr.mxu0 0.0
  %1461 = vmatpush2.msra.mxu0 0.0
  %1462 = vmatprep.subr.mxu0 0.0
  %1463 = vmatpush2.msra.mxu0 0.0
  %1464 = vmatprep.subr.mxu0 0.0
  %1465 = vmatpush2.msra.mxu0 0.0
  %1466 = vmatprep.subr.mxu0 0.0
  %1467 = vmatpush2.msra.mxu0 0.0
  %1468 = vmatprep.subr.mxu0 0.0
  %1469 = vmatpush2.msra.mxu0 0.0
  %1470 = vmatprep.subr.mxu0 0.0
  %1471 = vmatpush2.msra.mxu0 0.0
  %1472 = vmatprep.subr.mxu0 0.0
  %1473 = vmatpush2.msra.mxu0 0.0
  %1474 = vmatprep.subr.mxu0 0.0
  %1475 = vmatpush2.msra.mxu0 0.0
  %1476 = vmatprep.subr.mxu0 0.0
  %1477 = vmatpush2.msra.mxu0 0.0
  %1478 = vmatprep.subr.mxu0 0.0
  %1479 = vmatpush2.msra.mxu0 0.0
  %1480 = vmatprep.subr.mxu0 0.0
  %1481 = vmatpush2.msra.mxu0 0.0
  %1482 = vmatprep.mubr.f32.mxu0 0.0
  %1483 = vmatmul.mubr.f32.gmra.mxu0 %v1410
  %v1484 = vpop.f32.mrf.mxu0
  %v1485 = vadd.f32 0.0, %v1484
  %v1486 = vpop.f32.mrf.mxu0
  %1487 = vmatprep.mubr.f32.mxu0 0.0
  %1488 = vmatmul.mubr.f32.gmra.mxu0 %v1413
  %v1489 = vpop.f32.mrf.mxu0
  %v1490 = vadd.f32 0.0, %v1489
  %v1491 = vpop.f32.mrf.mxu0
  %1492 = vmatprep.mubr.f32.mxu0 0.0
  %1493 = vmatmul.mubr.f32.gmra.mxu0 %v1416
  %v1494 = vpop.f32.mrf.mxu0
  %v1495 = vadd.f32 0.0, %v1494
  %v1496 = vpop.f32.mrf.mxu0
  %1497 = vdwg.mxu0
  %v1499 = vsel %vm374, %v1204, 0
  %v1502 = vsel %vm374, %v1209, 0
  %v1505 = vsel %vm374, %v1214, 0
  %1507 = vmatprep.subr.mxu0 0.0
  %1508 = vmatpush1.msra.mxu0 0.0
  %1509 = vmatprep.subr.mxu0 0.0
  %1510 = vmatpush1.msra.mxu0 0.0
  %1511 = vmatprep.subr.mxu0 0.0
  %1512 = vmatpush1.msra.mxu0 0.0
  %1513 = vmatprep.subr.mxu0 0.0
  %1514 = vmatpush1.msra.mxu0 0.0
  %1515 = vmatprep.subr.mxu0 0.0
  %1516 = vmatpush1.msra.mxu0 0.0
  %1517 = vmatprep.subr.mxu0 0.0
  %1518 = vmatpush1.msra.mxu0 0.0
  %1519 = vmatprep.subr.mxu0 0.0
  %1520 = vmatpush1.msra.mxu0 0.0
  %1521 = vmatprep.subr.mxu0 0.0
  %1522 = vmatpush1.msra.mxu0 0.0
  %1523 = vmatprep.subr.mxu0 0.0
  %1524 = vmatpush1.msra.mxu0 0.0
  %1525 = vmatprep.subr.mxu0 0.0
  %1526 = vmatpush1.msra.mxu0 0.0
  %1527 = vmatprep.subr.mxu0 0.0
  %1528 = vmatpush1.msra.mxu0 0.0
  %1529 = vmatprep.subr.mxu0 0.0
  %1530 = vmatpush1.msra.mxu0 0.0
  %1531 = vmatprep.subr.mxu0 0.0
  %1532 = vmatpush1.msra.mxu0 0.0
  %1533 = vmatprep.subr.mxu0 0.0
  %1534 = vmatpush1.msra.mxu0 0.0
  %1535 = vmatprep.subr.mxu0 0.0
  %1536 = vmatpush1.msra.mxu0 0.0
  %1537 = vmatprep.subr.mxu0 0.0
  %1538 = vmatpush1.msra.mxu0 %v1318
  %1539 = vmatprep.subr.mxu0 0.0
  %1540 = vmatpush2.msra.mxu0 0.0
  %1541 = vmatprep.subr.mxu0 0.0
  %1542 = vmatpush2.msra.mxu0 0.0
  %1543 = vmatprep.subr.mxu0 0.0
  %1544 = vmatpush2.msra.mxu0 0.0
  %1545 = vmatprep.subr.mxu0 0.0
  %1546 = vmatpush2.msra.mxu0 0.0
  %1547 = vmatprep.subr.mxu0 0.0
  %1548 = vmatpush2.msra.mxu0 0.0
  %1549 = vmatprep.subr.mxu0 0.0
  %1550 = vmatpush2.msra.mxu0 0.0
  %1551 = vmatprep.subr.mxu0 0.0
  %1552 = vmatpush2.msra.mxu0 0.0
  %1553 = vmatprep.subr.mxu0 0.0
  %1554 = vmatpush2.msra.mxu0 0.0
  %1555 = vmatprep.subr.mxu0 0.0
  %1556 = vmatpush2.msra.mxu0 0.0
  %1557 = vmatprep.subr.mxu0 0.0
  %1558 = vmatpush2.msra.mxu0 0.0
  %1559 = vmatprep.subr.mxu0 0.0
  %1560 = vmatpush2.msra.mxu0 0.0
  %1561 = vmatprep.subr.mxu0 0.0
  %1562 = vmatpush2.msra.mxu0 0.0
  %1563 = vmatprep.subr.mxu0 0.0
  %1564 = vmatpush2.msra.mxu0 0.0
  %1565 = vmatprep.subr.mxu0 0.0
  %1566 = vmatpush2.msra.mxu0 0.0
  %1567 = vmatprep.subr.mxu0 0.0
  %1568 = vmatpush2.msra.mxu0 0.0
  %1569 = vmatprep.subr.mxu0 0.0
  %1570 = vmatpush2.msra.mxu0 0.0
  %1571 = vmatprep.mubr.f32.mxu0 0.0
  %1572 = vmatmul.mubr.f32.gmra.mxu0 %v1499
  %v1573 = vpop.f32.mrf.mxu0
  %v1574 = vadd.f32 0.0, %v1573
  %v1575 = vpop.f32.mrf.mxu0
  %1576 = vmatprep.mubr.f32.mxu0 0.0
  %1577 = vmatmul.mubr.f32.gmra.mxu0 %v1502
  %v1578 = vpop.f32.mrf.mxu0
  %v1579 = vadd.f32 0.0, %v1578
  %v1580 = vpop.f32.mrf.mxu0
  %1581 = vmatprep.mubr.f32.mxu0 0.0
  %1582 = vmatmul.mubr.f32.gmra.mxu0 %v1505
  %v1583 = vpop.f32.mrf.mxu0
  %v1584 = vadd.f32 0.0, %v1583
  %v1585 = vpop.f32.mrf.mxu0
  %1586 = vdwg.mxu0
  %v1588 = vsel %vm374, %v1303, 0
  %v1591 = vsel %vm374, %v1308, 0
  %v1594 = vsel %vm374, %v1313, 0
  %1596 = vmatprep.subr.mxu0 0.0
  %1597 = vmatpush1.msra.mxu0 0.0
  %1598 = vmatprep.subr.mxu0 0.0
  %1599 = vmatpush1.msra.mxu0 0.0
  %1600 = vmatprep.subr.mxu0 0.0
  %1601 = vmatpush1.msra.mxu0 0.0
  %1602 = vmatprep.subr.mxu0 0.0
  %1603 = vmatpush1.msra.mxu0 0.0
  %1604 = vmatprep.subr.mxu0 0.0
  %1605 = vmatpush1.msra.mxu0 0.0
  %1606 = vmatprep.subr.mxu0 0.0
  %1607 = vmatpush1.msra.mxu0 0.0
  %1608 = vmatprep.subr.mxu0 0.0
  %1609 = vmatpush1.msra.mxu0 0.0
  %1610 = vmatprep.subr.mxu0 0.0
  %1611 = vmatpush1.msra.mxu0 0.0
  %1612 = vmatprep.subr.mxu0 0.0
  %1613 = vmatpush1.msra.mxu0 0.0
  %1614 = vmatprep.subr.mxu0 0.0
  %1615 = vmatpush1.msra.mxu0 0.0
  %1616 = vmatprep.subr.mxu0 0.0
  %1617 = vmatpush1.msra.mxu0 0.0
  %1618 = vmatprep.subr.mxu0 0.0
  %1619 = vmatpush1.msra.mxu0 0.0
  %1620 = vmatprep.subr.mxu0 0.0
  %1621 = vmatpush1.msra.mxu0 0.0
  %1622 = vmatprep.subr.mxu0 0.0
  %1623 = vmatpush1.msra.mxu0 0.0
  %1624 = vmatprep.subr.mxu0 0.0
  %1625 = vmatpush1.msra.mxu0 0.0
  %1626 = vmatprep.subr.mxu0 0.0
  %1627 = vmatpush1.msra.mxu0 %v1319
  %1628 = vmatprep.subr.mxu0 0.0
  %1629 = vmatpush2.msra.mxu0 0.0
  %1630 = vmatprep.subr.mxu0 0.0
  %1631 = vmatpush2.msra.mxu0 0.0
  %1632 = vmatprep.subr.mxu0 0.0
  %1633 = vmatpush2.msra.mxu0 0.0
  %1634 = vmatprep.subr.mxu0 0.0
  %1635 = vmatpush2.msra.mxu0 0.0
  %1636 = vmatprep.subr.mxu0 0.0
  %1637 = vmatpush2.msra.mxu0 0.0
  %1638 = vmatprep.subr.mxu0 0.0
  %1639 = vmatpush2.msra.mxu0 0.0
  %1640 = vmatprep.subr.mxu0 0.0
  %1641 = vmatpush2.msra.mxu0 0.0
  %1642 = vmatprep.subr.mxu0 0.0
  %1643 = vmatpush2.msra.mxu0 0.0
  %1644 = vmatprep.subr.mxu0 0.0
  %1645 = vmatpush2.msra.mxu0 0.0
  %1646 = vmatprep.subr.mxu0 0.0
  %1647 = vmatpush2.msra.mxu0 0.0
  %1648 = vmatprep.subr.mxu0 0.0
  %1649 = vmatpush2.msra.mxu0 0.0
  %1650 = vmatprep.subr.mxu0 0.0
  %1651 = vmatpush2.msra.mxu0 0.0
  %1652 = vmatprep.subr.mxu0 0.0
  %1653 = vmatpush2.msra.mxu0 0.0
  %1654 = vmatprep.subr.mxu0 0.0
  %1655 = vmatpush2.msra.mxu0 0.0
  %1656 = vmatprep.subr.mxu0 0.0
  %1657 = vmatpush2.msra.mxu0 0.0
  %1658 = vmatprep.subr.mxu0 0.0
  %1659 = vmatpush2.msra.mxu0 0.0
  %1660 = vmatprep.mubr.f32.mxu0 0.0
  %1661 = vmatmul.mubr.f32.gmra.mxu0 %v1588
  %v1662 = vpop.f32.mrf.mxu0
  %v1663 = vadd.f32 0.0, %v1662
  %v1664 = vpop.f32.mrf.mxu0
  %1665 = vmatprep.mubr.f32.mxu0 0.0
  %1666 = vmatmul.mubr.f32.gmra.mxu0 %v1591
  %v1667 = vpop.f32.mrf.mxu0
  %v1668 = vadd.f32 0.0, %v1667
  %v1669 = vpop.f32.mrf.mxu0
  %1670 = vmatprep.mubr.f32.mxu0 0.0
  %1671 = vmatmul.mubr.f32.gmra.mxu0 %v1594
  %v1672 = vpop.f32.mrf.mxu0
  %v1673 = vadd.f32 0.0, %v1672
  %v1674 = vpop.f32.mrf.mxu0
  %1675 = vdwg.mxu0
  %v1676 = vsel %vm187, %v1396, 0.0
  %v1677 = vsel %vm187, %v1485, 0.0
  %v1678 = vadd.f32 %v1676, %v1677
  %v1679 = vsel %vm187, %v1574, 0.0
  %v1680 = vadd.f32 %v1678, %v1679
  %v1681 = vsel %vm187, %v1663, 0.0
  %v1682 = vadd.f32 %v1680, %v1681
  %v1683 = vsel %vm187, %v1401, 0.0
  %v1684 = vsel %vm187, %v1490, 0.0
  %v1685 = vadd.f32 %v1683, %v1684
  %v1686 = vsel %vm187, %v1579, 0.0
  %v1687 = vadd.f32 %v1685, %v1686
  %v1688 = vsel %vm187, %v1668, 0.0
  %v1689 = vadd.f32 %v1687, %v1688
  %v1690 = vsel %vm194, %v1406, 0.0
  %v1691 = vsel %vm194, %v1495, 0.0
  %v1692 = vadd.f32 %v1690, %v1691
  %v1693 = vsel %vm194, %v1584, 0.0
  %v1694 = vadd.f32 %v1692, %v1693
  %v1695 = vsel %vm194, %v1673, 0.0
  %v1696 = vadd.f32 %v1694, %v1695
  %v1697 = vadd.f32 %v169, %v1682
  %v1698 = vadd.f32 %v174, %v1689
  %v1699 = vadd.f32 %v179, %v1696
  %v1700 = vld [vmem:[%s9] sm:$0x1]
  %v1702 = vlaneseq
  %v1703 = vshrl.u32 %v1702, 7
  %v1704 = vsub.s32 0, %v1703
  %v1705 = vrot.slane %v1700, %v1704
  %v1707 = vadd.f32 %v1697, %v1705
  %v1708 = vadd.f32 %v1698, %v1705
  %v1709 = vadd.f32 %v1699, %v1705
  %v1710 = vld [vmem:[%s10] sm:$0x1]
  %v1711 = vld [vmem:[%s11] sm:$0x1]
  %v1712 = vsel %vm187, %v1707, 0.0
  %1713 = vadd.xlane.f32.xlu0 %v1712
  %v1714 = vpop.xlane.xlu0 %1713
  %v1715 = vsel %vm187, %v1708, 0.0
  %1716 = vadd.xlane.f32.xlu0 %v1715
  %v1717 = vpop.xlane.xlu0 %1716
  %v1718 = vsel %vm194, %v1709, 0.0
  %1719 = vadd.xlane.f32.xlu0 %v1718
  %v1720 = vpop.xlane.xlu0 %1719
  %v1721 = vmul.f32 %v1714, %v198
  %v1722 = vmul.f32 %v1717, %v198
  %v1723 = vmul.f32 %v1720, %v198
  %v1724 = vsub.f32 %v1707, %v1721
  %v1725 = vsub.f32 %v1708, %v1722
  %v1726 = vsub.f32 %v1709, %v1723
  %v1727 = vmul.f32 %v1724, %v1724
  %v1728 = vmul.f32 %v1725, %v1725
  %v1729 = vmul.f32 %v1726, %v1726
  %v1730 = vsel %vm187, %v1727, 0.0
  %1731 = vadd.xlane.f32.xlu0 %v1730
  %v1732 = vpop.xlane.xlu0 %1731
  %v1733 = vsel %vm187, %v1728, 0.0
  %1734 = vadd.xlane.f32.xlu0 %v1733
  %v1735 = vpop.xlane.xlu0 %1734
  %v1736 = vsel %vm194, %v1729, 0.0
  %1737 = vadd.xlane.f32.xlu0 %v1736
  %v1738 = vpop.xlane.xlu0 %1737
  %v1739 = vmul.f32 %v1732, %v198
  %v1740 = vmul.f32 %v1735, %v198
  %v1741 = vmul.f32 %v1738, %v198
  %v1742 = vadd.f32 %v1739, 1e-06
  %v1743 = vadd.f32 %v1740, 1e-06
  %v1744 = vadd.f32 %v1741, 1e-06
  %v1745 = vrsqrt.pop %v1742
  %v1746 = vrsqrt.pop %v1743
  %v1747 = vrsqrt.pop %v1744
  %v1748 = vmul.f32 %v1724, %v1745
  %v1749 = vmul.f32 %v1725, %v1746
  %v1750 = vmul.f32 %v1726, %v1747
  %v1752 = vlaneseq
  %v1753 = vshrl.u32 %v1752, 7
  %v1754 = vsub.s32 0, %v1753
  %v1755 = vrot.slane %v1710, %v1754
  %v1757 = vmul.f32 %v1748, %v1755
  %v1758 = vmul.f32 %v1749, %v1755
  %v1759 = vmul.f32 %v1750, %v1755
  %v1761 = vlaneseq
  %v1762 = vshrl.u32 %v1761, 7
  %v1763 = vsub.s32 0, %v1762
  %v1764 = vrot.slane %v1711, %v1763
  %v1766 = vadd.f32 %v1757, %v1764
  %v1767 = vadd.f32 %v1758, %v1764
  %v1768 = vadd.f32 %v1759, %v1764
  %v1769 = vld [vmem:[%s12] sm:$0xff]
  %v1770 = vld [vmem:[%s12 + $0x8] sm:$0xff]
  %v1771 = vld [vmem:[%s12 + $0x10] sm:$0xff]
  %v1772 = vld [vmem:[%s12 + $0x18] sm:$0xff]
  %v1773 = vld [vmem:[%s13] sm:$0x1]
  %v1775 = vlaneseq
  %v1776 = vshrl.u32 %v1775, 7
  %v1777 = vsub.s32 0, %v1776
  %v1778 = vrot.slane %v1773, %v1777
  %v1781 = vsel %vm187, %v1766, 0
  %v1784 = vsel %vm187, %v1767, 0
  %v1787 = vsel %vm187, %v1768, 0
  %1789 = vmatprep.subr.mxu0 0.0
  %1790 = vmatpush1.msra.mxu0 0.0
  %1791 = vmatprep.subr.mxu0 0.0
  %1792 = vmatpush1.msra.mxu0 0.0
  %1793 = vmatprep.subr.mxu0 0.0
  %1794 = vmatpush1.msra.mxu0 0.0
  %1795 = vmatprep.subr.mxu0 0.0
  %1796 = vmatpush1.msra.mxu0 0.0
  %1797 = vmatprep.subr.mxu0 0.0
  %1798 = vmatpush1.msra.mxu0 0.0
  %1799 = vmatprep.subr.mxu0 0.0
  %1800 = vmatpush1.msra.mxu0 0.0
  %1801 = vmatprep.subr.mxu0 0.0
  %1802 = vmatpush1.msra.mxu0 0.0
  %1803 = vmatprep.subr.mxu0 0.0
  %1804 = vmatpush1.msra.mxu0 0.0
  %1805 = vmatprep.subr.mxu0 0.0
  %1806 = vmatpush1.msra.mxu0 0.0
  %1807 = vmatprep.subr.mxu0 0.0
  %1808 = vmatpush1.msra.mxu0 0.0
  %1809 = vmatprep.subr.mxu0 0.0
  %1810 = vmatpush1.msra.mxu0 0.0
  %1811 = vmatprep.subr.mxu0 0.0
  %1812 = vmatpush1.msra.mxu0 0.0
  %1813 = vmatprep.subr.mxu0 0.0
  %1814 = vmatpush1.msra.mxu0 %v1772
  %1815 = vmatprep.subr.mxu0 0.0
  %1816 = vmatpush1.msra.mxu0 %v1771
  %1817 = vmatprep.subr.mxu0 0.0
  %1818 = vmatpush1.msra.mxu0 %v1770
  %1819 = vmatprep.subr.mxu0 0.0
  %1820 = vmatpush1.msra.mxu0 %v1769
  %1821 = vmatprep.subr.mxu0 0.0
  %1822 = vmatpush2.msra.mxu0 0.0
  %1823 = vmatprep.subr.mxu0 0.0
  %1824 = vmatpush2.msra.mxu0 0.0
  %1825 = vmatprep.subr.mxu0 0.0
  %1826 = vmatpush2.msra.mxu0 0.0
  %1827 = vmatprep.subr.mxu0 0.0
  %1828 = vmatpush2.msra.mxu0 0.0
  %1829 = vmatprep.subr.mxu0 0.0
  %1830 = vmatpush2.msra.mxu0 0.0
  %1831 = vmatprep.subr.mxu0 0.0
  %1832 = vmatpush2.msra.mxu0 0.0
  %1833 = vmatprep.subr.mxu0 0.0
  %1834 = vmatpush2.msra.mxu0 0.0
  %1835 = vmatprep.subr.mxu0 0.0
  %1836 = vmatpush2.msra.mxu0 0.0
  %1837 = vmatprep.subr.mxu0 0.0
  %1838 = vmatpush2.msra.mxu0 0.0
  %1839 = vmatprep.subr.mxu0 0.0
  %1840 = vmatpush2.msra.mxu0 0.0
  %1841 = vmatprep.subr.mxu0 0.0
  %1842 = vmatpush2.msra.mxu0 0.0
  %1843 = vmatprep.subr.mxu0 0.0
  %1844 = vmatpush2.msra.mxu0 0.0
  %1845 = vmatprep.subr.mxu0 0.0
  %1846 = vmatpush2.msra.mxu0 0.0
  %1847 = vmatprep.subr.mxu0 0.0
  %1848 = vmatpush2.msra.mxu0 0.0
  %1849 = vmatprep.subr.mxu0 0.0
  %1850 = vmatpush2.msra.mxu0 0.0
  %1851 = vmatprep.subr.mxu0 0.0
  %1852 = vmatpush2.msra.mxu0 0.0
  %1853 = vmatprep.mubr.f32.mxu0 0.0
  %1854 = vmatmul.mubr.f32.gmra.mxu0 %v1781
  %v1855 = vpop.f32.mrf.mxu0
  %v1856 = vadd.f32 %v1778, %v1855
  %v1857 = vpop.f32.mrf.mxu0
  %1858 = vmatprep.mubr.f32.mxu0 0.0
  %1859 = vmatmul.mubr.f32.gmra.mxu0 %v1784
  %v1860 = vpop.f32.mrf.mxu0
  %v1861 = vadd.f32 %v1778, %v1860
  %v1862 = vpop.f32.mrf.mxu0
  %1863 = vmatprep.mubr.f32.mxu0 0.0
  %1864 = vmatmul.mubr.f32.gmra.mxu0 %v1787
  %v1865 = vpop.f32.mrf.mxu0
  %v1866 = vadd.f32 %v1778, %v1865
  %v1867 = vpop.f32.mrf.mxu0
  %1868 = vdwg.mxu0
  %v1869 = vmul.f32 %v1856, 0.5
  %v1870 = vmul.f32 %v1861, 0.5
  %v1871 = vmul.f32 %v1866, 0.5
  %v1872 = vmul.f32 %v1856, 0.70710677
  %v1873 = vmul.f32 %v1861, 0.70710677
  %v1874 = vmul.f32 %v1866, 0.70710677
  %vm1875 = vcmp.ge.f32.partialorder %v1872, 0.0
  %vm1876 = vcmp.ge.f32.partialorder %v1873, 0.0
  %vm1877 = vcmp.ge.f32.partialorder %v1874, 0.0
  %v1878 = vsel %vm1875, 1.0, -1.0
  %v1879 = vsel %vm1876, 1.0, -1.0
  %v1880 = vsel %vm1877, 1.0, -1.0
  %v1881 = vand.u32 2147483647, %v1872
  %v1882 = vand.u32 2147483647, %v1873
  %v1883 = vand.u32 2147483647, %v1874
  %v1884 = vmul.f32 %v1881, 0.3275911
  %v1885 = vmul.f32 %v1882, 0.3275911
  %v1886 = vmul.f32 %v1883, 0.3275911
  %v1887 = vadd.f32 %v1884, 1.0
  %v1888 = vadd.f32 %v1885, 1.0
  %v1889 = vadd.f32 %v1886, 1.0
  %v1890 = vrcp.pop %v1887
  %v1891 = vmul.f32 1.0, %v1890
  %v1892 = vrcp.pop %v1888
  %v1893 = vmul.f32 1.0, %v1892
  %v1894 = vrcp.pop %v1889
  %v1895 = vmul.f32 1.0, %v1894
  %v1896 = vmul.f32 %v1891, 1.0614054
  %v1897 = vmul.f32 %v1893, 1.0614054
  %v1898 = vmul.f32 %v1895, 1.0614054
  %v1899 = vadd.f32 %v1896, -1.4531521
  %v1900 = vadd.f32 %v1897, -1.4531521
  %v1901 = vadd.f32 %v1898, -1.4531521
  %v1902 = vmul.f32 %v1899, %v1891
  %v1903 = vmul.f32 %v1900, %v1893
  %v1904 = vmul.f32 %v1901, %v1895
  %v1905 = vadd.f32 %v1902, 1.4214138
  %v1906 = vadd.f32 %v1903, 1.4214138
  %v1907 = vadd.f32 %v1904, 1.4214138
  %v1908 = vmul.f32 %v1905, %v1891
  %v1909 = vmul.f32 %v1906, %v1893
  %v1910 = vmul.f32 %v1907, %v1895
  %v1911 = vadd.f32 %v1908, -0.28449672
  %v1912 = vadd.f32 %v1909, -0.28449672
  %v1913 = vadd.f32 %v1910, -0.28449672
  %v1914 = vmul.f32 %v1911, %v1891
  %v1915 = vmul.f32 %v1912, %v1893
  %v1916 = vmul.f32 %v1913, %v1895
  %v1917 = vadd.f32 %v1914, 0.2548296
  %v1918 = vadd.f32 %v1915, 0.2548296
  %v1919 = vadd.f32 %v1916, 0.2548296
  %v1920 = vmul.f32 %v1917, %v1891
  %v1921 = vmul.f32 %v1918, %v1893
  %v1922 = vmul.f32 %v1919, %v1895
  %v1923 = vsub.f32 0.0, %v1881
  %v1924 = vsub.f32 0.0, %v1882
  %v1925 = vsub.f32 0.0, %v1883
  %v1926 = vmul.f32 %v1923, %v1881
  %v1927 = vmul.f32 %v1924, %v1882
  %v1928 = vmul.f32 %v1925, %v1883
  %v1929 = vmul.f32 %v1926, 1.442695
  %v1930 = vpow.pop %v1929
  %v1931 = vmul.f32 %v1927, 1.442695
  %v1932 = vpow.pop %v1931
  %v1933 = vmul.f32 %v1928, 1.442695
  %v1934 = vpow.pop %v1933
  %v1935 = vmul.f32 %v1920, %v1930
  %v1936 = vmul.f32 %v1921, %v1932
  %v1937 = vmul.f32 %v1922, %v1934
  %v1938 = vsub.f32 1.0, %v1935
  %v1939 = vsub.f32 1.0, %v1936
  %v1940 = vsub.f32 1.0, %v1937
  %v1941 = vmul.f32 %v1878, %v1938
  %v1942 = vmul.f32 %v1879, %v1939
  %v1943 = vmul.f32 %v1880, %v1940
  %v1944 = vadd.f32 %v1941, 1.0
  %v1945 = vadd.f32 %v1942, 1.0
  %v1946 = vadd.f32 %v1943, 1.0
  %v1947 = vmul.f32 %v1869, %v1944
  %v1948 = vmul.f32 %v1870, %v1945
  %v1949 = vmul.f32 %v1871, %v1946
  %v1950 = vld [vmem:[%s14] sm:$0xff]
  %v1951 = vld [vmem:[%s14 + $0x8] sm:$0xff]
  %v1952 = vld [vmem:[%s14 + $0x10] sm:$0xff]
  %v1953 = vld [vmem:[%s14 + $0x18] sm:$0xff]
  %v1954 = vld [vmem:[%s14 + $0x20] sm:$0xff]
  %v1955 = vld [vmem:[%s14 + $0x28] sm:$0xff]
  %v1956 = vld [vmem:[%s14 + $0x30] sm:$0xff]
  %v1957 = vld [vmem:[%s14 + $0x38] sm:$0xff]
  %v1958 = vld [vmem:[%s14 + $0x40] sm:$0xff]
  %v1959 = vld [vmem:[%s14 + $0x48] sm:$0xff]
  %v1960 = vld [vmem:[%s14 + $0x50] sm:$0xff]
  %v1961 = vld [vmem:[%s14 + $0x58] sm:$0xff]
  %v1962 = vld [vmem:[%s14 + $0x60] sm:$0xff]
  %v1963 = vld [vmem:[%s14 + $0x68] sm:$0xff]
  %v1964 = vld [vmem:[%s14 + $0x70] sm:$0xff]
  %v1965 = vld [vmem:[%s14 + $0x78] sm:$0xff]
  %v1966 = vld [vmem:[%s15] sm:$0x1]
  %v1968 = vlaneseq
  %v1969 = vshrl.u32 %v1968, 7
  %v1970 = vsub.s32 0, %v1969
  %v1971 = vrot.slane %v1966, %v1970
  %1973 = vmatprep.subr.mxu0 0.0
  %1974 = vmatpush1.msra.mxu0 %v1965
  %1975 = vmatprep.subr.mxu0 0.0
  %1976 = vmatpush1.msra.mxu0 %v1964
  %1977 = vmatprep.subr.mxu0 0.0
  %1978 = vmatpush1.msra.mxu0 %v1963
  %1979 = vmatprep.subr.mxu0 0.0
  %1980 = vmatpush1.msra.mxu0 %v1962
  %1981 = vmatprep.subr.mxu0 0.0
  %1982 = vmatpush1.msra.mxu0 %v1961
  %1983 = vmatprep.subr.mxu0 0.0
  %1984 = vmatpush1.msra.mxu0 %v1960
  %1985 = vmatprep.subr.mxu0 0.0
  %1986 = vmatpush1.msra.mxu0 %v1959
  %1987 = vmatprep.subr.mxu0 0.0
  %1988 = vmatpush1.msra.mxu0 %v1958
  %1989 = vmatprep.subr.mxu0 0.0
  %1990 = vmatpush1.msra.mxu0 %v1957
  %1991 = vmatprep.subr.mxu0 0.0
  %1992 = vmatpush1.msra.mxu0 %v1956
  %1993 = vmatprep.subr.mxu0 0.0
  %1994 = vmatpush1.msra.mxu0 %v1955
  %1995 = vmatprep.subr.mxu0 0.0
  %1996 = vmatpush1.msra.mxu0 %v1954
  %1997 = vmatprep.subr.mxu0 0.0
  %1998 = vmatpush1.msra.mxu0 %v1953
  %1999 = vmatprep.subr.mxu0 0.0
  %2000 = vmatpush1.msra.mxu0 %v1952
  %2001 = vmatprep.subr.mxu0 0.0
  %2002 = vmatpush1.msra.mxu0 %v1951
  %2003 = vmatprep.subr.mxu0 0.0
  %2004 = vmatpush1.msra.mxu0 %v1950
  %2005 = vmatprep.subr.mxu0 0.0
  %2006 = vmatpush2.msra.mxu0 0.0
  %2007 = vmatprep.subr.mxu0 0.0
  %2008 = vmatpush2.msra.mxu0 0.0
  %2009 = vmatprep.subr.mxu0 0.0
  %2010 = vmatpush2.msra.mxu0 0.0
  %2011 = vmatprep.subr.mxu0 0.0
  %2012 = vmatpush2.msra.mxu0 0.0
  %2013 = vmatprep.subr.mxu0 0.0
  %2014 = vmatpush2.msra.mxu0 0.0
  %2015 = vmatprep.subr.mxu0 0.0
  %2016 = vmatpush2.msra.mxu0 0.0
  %2017 = vmatprep.subr.mxu0 0.0
  %2018 = vmatpush2.msra.mxu0 0.0
  %2019 = vmatprep.subr.mxu0 0.0
  %2020 = vmatpush2.msra.mxu0 0.0
  %2021 = vmatprep.subr.mxu0 0.0
  %2022 = vmatpush2.msra.mxu0 0.0
  %2023 = vmatprep.subr.mxu0 0.0
  %2024 = vmatpush2.msra.mxu0 0.0
  %2025 = vmatprep.subr.mxu0 0.0
  %2026 = vmatpush2.msra.mxu0 0.0
  %2027 = vmatprep.subr.mxu0 0.0
  %2028 = vmatpush2.msra.mxu0 0.0
  %2029 = vmatprep.subr.mxu0 0.0
  %2030 = vmatpush2.msra.mxu0 0.0
  %2031 = vmatprep.subr.mxu0 0.0
  %2032 = vmatpush2.msra.mxu0 0.0
  %2033 = vmatprep.subr.mxu0 0.0
  %2034 = vmatpush2.msra.mxu0 0.0
  %2035 = vmatprep.subr.mxu0 0.0
  %2036 = vmatpush2.msra.mxu0 0.0
  %2037 = vmatprep.mubr.f32.mxu0 0.0
  %2038 = vmatmul.mubr.f32.gmra.mxu0 %v1947
  %v2039 = vpop.f32.mrf.mxu0
  %v2040 = vadd.f32 %v1971, %v2039
  %v2041 = vpop.f32.mrf.mxu0
  %2042 = vmatprep.mubr.f32.mxu0 0.0
  %2043 = vmatmul.mubr.f32.gmra.mxu0 %v1948
  %v2044 = vpop.f32.mrf.mxu0
  %v2045 = vadd.f32 %v1971, %v2044
  %v2046 = vpop.f32.mrf.mxu0
  %2047 = vmatprep.mubr.f32.mxu0 0.0
  %2048 = vmatmul.mubr.f32.gmra.mxu0 %v1949
  %v2049 = vpop.f32.mrf.mxu0
  %v2050 = vadd.f32 %v1971, %v2049
  %v2051 = vpop.f32.mrf.mxu0
  %2052 = vdwg.mxu0
  %v2053 = vadd.f32 %v1707, %v2040
  %v2054 = vadd.f32 %v1708, %v2045
  %v2055 = vadd.f32 %v1709, %v2050
  %s2056 = scalar_lea.vmem %s4, 1
  %v2057 = vld [vmem:[%s2056] sm:$0x1]
  %s2058 = scalar_lea.vmem %s5, 1
  %v2059 = vld [vmem:[%s2058] sm:$0x1]
  %v2060 = vsel %vm187, %v2053, 0.0
  %2061 = vadd.xlane.f32.xlu0 %v2060
  %v2062 = vpop.xlane.xlu0 %2061
  %v2063 = vsel %vm187, %v2054, 0.0
  %2064 = vadd.xlane.f32.xlu0 %v2063
  %v2065 = vpop.xlane.xlu0 %2064
  %v2066 = vsel %vm194, %v2055, 0.0
  %2067 = vadd.xlane.f32.xlu0 %v2066
  %v2068 = vpop.xlane.xlu0 %2067
  %v2069 = vmul.f32 %v2062, %v198
  %v2070 = vmul.f32 %v2065, %v198
  %v2071 = vmul.f32 %v2068, %v198
  %v2072 = vsub.f32 %v2053, %v2069
  %v2073 = vsub.f32 %v2054, %v2070
  %v2074 = vsub.f32 %v2055, %v2071
  %v2075 = vmul.f32 %v2072, %v2072
  %v2076 = vmul.f32 %v2073, %v2073
  %v2077 = vmul.f32 %v2074, %v2074
  %v2078 = vsel %vm187, %v2075, 0.0
  %2079 = vadd.xlane.f32.xlu0 %v2078
  %v2080 = vpop.xlane.xlu0 %2079
  %v2081 = vsel %vm187, %v2076, 0.0
  %2082 = vadd.xlane.f32.xlu0 %v2081
  %v2083 = vpop.xlane.xlu0 %2082
  %v2084 = vsel %vm194, %v2077, 0.0
  %2085 = vadd.xlane.f32.xlu0 %v2084
  %v2086 = vpop.xlane.xlu0 %2085
  %v2087 = vmul.f32 %v2080, %v198
  %v2088 = vmul.f32 %v2083, %v198
  %v2089 = vmul.f32 %v2086, %v198
  %v2090 = vadd.f32 %v2087, 1e-06
  %v2091 = vadd.f32 %v2088, 1e-06
  %v2092 = vadd.f32 %v2089, 1e-06
  %v2093 = vrsqrt.pop %v2090
  %v2094 = vrsqrt.pop %v2091
  %v2095 = vrsqrt.pop %v2092
  %v2096 = vmul.f32 %v2072, %v2093
  %v2097 = vmul.f32 %v2073, %v2094
  %v2098 = vmul.f32 %v2074, %v2095
  %v2100 = vlaneseq
  %v2101 = vshrl.u32 %v2100, 7
  %v2102 = vsub.s32 0, %v2101
  %v2103 = vrot.slane %v2057, %v2102
  %v2105 = vmul.f32 %v2096, %v2103
  %v2106 = vmul.f32 %v2097, %v2103
  %v2107 = vmul.f32 %v2098, %v2103
  %v2109 = vlaneseq
  %v2110 = vshrl.u32 %v2109, 7
  %v2111 = vsub.s32 0, %v2110
  %v2112 = vrot.slane %v2059, %v2111
  %v2114 = vadd.f32 %v2105, %v2112
  %v2115 = vadd.f32 %v2106, %v2112
  %v2116 = vadd.f32 %v2107, %v2112
  %s2117 = scalar_lea.vmem %s6, 32
  %v2118 = vld [vmem:[%s2117] sm:$0xff]
  %v2119 = vld [vmem:[%s2117 + $0x8] sm:$0xff]
  %v2120 = vld [vmem:[%s2117 + $0x10] sm:$0xff]
  %v2121 = vld [vmem:[%s2117 + $0x18] sm:$0xff]
  %s2122 = scalar_lea.vmem %s7, 1
  %v2123 = vld [vmem:[%s2122] sm:$0x1]
  %v2125 = vlaneseq
  %v2126 = vshrl.u32 %v2125, 7
  %v2127 = vsub.s32 0, %v2126
  %v2128 = vrot.slane %v2123, %v2127
  %v2131 = vsel %vm187, %v2114, 0
  %v2134 = vsel %vm187, %v2115, 0
  %v2137 = vsel %vm187, %v2116, 0
  %2139 = vmatprep.subr.mxu0 0.0
  %2140 = vmatpush1.msra.mxu0 0.0
  %2141 = vmatprep.subr.mxu0 0.0
  %2142 = vmatpush1.msra.mxu0 0.0
  %2143 = vmatprep.subr.mxu0 0.0
  %2144 = vmatpush1.msra.mxu0 0.0
  %2145 = vmatprep.subr.mxu0 0.0
  %2146 = vmatpush1.msra.mxu0 0.0
  %2147 = vmatprep.subr.mxu0 0.0
  %2148 = vmatpush1.msra.mxu0 0.0
  %2149 = vmatprep.subr.mxu0 0.0
  %2150 = vmatpush1.msra.mxu0 0.0
  %2151 = vmatprep.subr.mxu0 0.0
  %2152 = vmatpush1.msra.mxu0 0.0
  %2153 = vmatprep.subr.mxu0 0.0
  %2154 = vmatpush1.msra.mxu0 0.0
  %2155 = vmatprep.subr.mxu0 0.0
  %2156 = vmatpush1.msra.mxu0 0.0
  %2157 = vmatprep.subr.mxu0 0.0
  %2158 = vmatpush1.msra.mxu0 0.0
  %2159 = vmatprep.subr.mxu0 0.0
  %2160 = vmatpush1.msra.mxu0 0.0
  %2161 = vmatprep.subr.mxu0 0.0
  %2162 = vmatpush1.msra.mxu0 0.0
  %2163 = vmatprep.subr.mxu0 0.0
  %2164 = vmatpush1.msra.mxu0 %v2121
  %2165 = vmatprep.subr.mxu0 0.0
  %2166 = vmatpush1.msra.mxu0 %v2120
  %2167 = vmatprep.subr.mxu0 0.0
  %2168 = vmatpush1.msra.mxu0 %v2119
  %2169 = vmatprep.subr.mxu0 0.0
  %2170 = vmatpush1.msra.mxu0 %v2118
  %2171 = vmatprep.subr.mxu0 0.0
  %2172 = vmatpush2.msra.mxu0 0.0
  %2173 = vmatprep.subr.mxu0 0.0
  %2174 = vmatpush2.msra.mxu0 0.0
  %2175 = vmatprep.subr.mxu0 0.0
  %2176 = vmatpush2.msra.mxu0 0.0
  %2177 = vmatprep.subr.mxu0 0.0
  %2178 = vmatpush2.msra.mxu0 0.0
  %2179 = vmatprep.subr.mxu0 0.0
  %2180 = vmatpush2.msra.mxu0 0.0
  %2181 = vmatprep.subr.mxu0 0.0
  %2182 = vmatpush2.msra.mxu0 0.0
  %2183 = vmatprep.subr.mxu0 0.0
  %2184 = vmatpush2.msra.mxu0 0.0
  %2185 = vmatprep.subr.mxu0 0.0
  %2186 = vmatpush2.msra.mxu0 0.0
  %2187 = vmatprep.subr.mxu0 0.0
  %2188 = vmatpush2.msra.mxu0 0.0
  %2189 = vmatprep.subr.mxu0 0.0
  %2190 = vmatpush2.msra.mxu0 0.0
  %2191 = vmatprep.subr.mxu0 0.0
  %2192 = vmatpush2.msra.mxu0 0.0
  %2193 = vmatprep.subr.mxu0 0.0
  %2194 = vmatpush2.msra.mxu0 0.0
  %2195 = vmatprep.subr.mxu0 0.0
  %2196 = vmatpush2.msra.mxu0 0.0
  %2197 = vmatprep.subr.mxu0 0.0
  %2198 = vmatpush2.msra.mxu0 0.0
  %2199 = vmatprep.subr.mxu0 0.0
  %2200 = vmatpush2.msra.mxu0 0.0
  %2201 = vmatprep.subr.mxu0 0.0
  %2202 = vmatpush2.msra.mxu0 0.0
  %2203 = vmatprep.mubr.f32.mxu0 0.0
  %2204 = vmatmul.mubr.f32.gmra.mxu0 %v2131
  %v2205 = vpop.f32.mrf.mxu0
  %v2206 = vadd.f32 %v2128, %v2205
  %v2207 = vpop.f32.mrf.mxu0
  %2208 = vmatprep.mubr.f32.mxu0 0.0
  %2209 = vmatmul.mubr.f32.gmra.mxu0 %v2134
  %v2210 = vpop.f32.mrf.mxu0
  %v2211 = vadd.f32 %v2128, %v2210
  %v2212 = vpop.f32.mrf.mxu0
  %2213 = vmatprep.mubr.f32.mxu0 0.0
  %2214 = vmatmul.mubr.f32.gmra.mxu0 %v2137
  %v2215 = vpop.f32.mrf.mxu0
  %v2216 = vadd.f32 %v2128, %v2215
  %v2217 = vpop.f32.mrf.mxu0
  %2218 = vdwg.mxu0
  %2222 = vrot.lane.b32.xlu0 %v2206, 120
  %v2223 = vpop.permute.xlu0 %2222
  %2224 = vrot.lane.b32.xlu0 %v2211, 120
  %v2225 = vpop.permute.xlu0 %2224
  %2226 = vrot.lane.b32.xlu0 %v2216, 120
  %v2227 = vpop.permute.xlu0 %2226
  %2228 = vrot.lane.b32.xlu0 %v2206, 112
  %v2229 = vpop.permute.xlu0 %2228
  %2230 = vrot.lane.b32.xlu0 %v2211, 112
  %v2231 = vpop.permute.xlu0 %2230
  %2232 = vrot.lane.b32.xlu0 %v2216, 112
  %v2233 = vpop.permute.xlu0 %2232
  %2234 = vrot.lane.b32.xlu0 %v2206, 104
  %v2235 = vpop.permute.xlu0 %2234
  %2236 = vrot.lane.b32.xlu0 %v2211, 104
  %v2237 = vpop.permute.xlu0 %2236
  %2238 = vrot.lane.b32.xlu0 %v2216, 104
  %v2239 = vpop.permute.xlu0 %2238
  %2240 = vrot.lane.b32.xlu0 %v2206, 96
  %v2241 = vpop.permute.xlu0 %2240
  %2242 = vrot.lane.b32.xlu0 %v2211, 96
  %v2243 = vpop.permute.xlu0 %2242
  %2244 = vrot.lane.b32.xlu0 %v2216, 96
  %v2245 = vpop.permute.xlu0 %2244
  %v2246 = vsel %vm374, %v2206, 0
  %v2248 = vsel %vm374, %v2211, 0
  %v2250 = vsel %vm374, %v2216, 0
  %v2252 = vsel %vm374, %v2241, 0
  %v2254 = vsel %vm374, %v2243, 0
  %v2256 = vsel %vm374, %v2245, 0
  %2258 = vmatprep.subr.mxu0 0.0
  %2259 = vmatpush1.xpose.msra.mxu0 0.0
  %2260 = vmatprep.subr.mxu0 0.0
  %2261 = vmatpush1.xpose.msra.mxu0 0.0
  %2262 = vmatprep.subr.mxu0 0.0
  %2263 = vmatpush1.xpose.msra.mxu0 0.0
  %2264 = vmatprep.subr.mxu0 0.0
  %2265 = vmatpush1.xpose.msra.mxu0 0.0
  %2266 = vmatprep.subr.mxu0 0.0
  %2267 = vmatpush1.xpose.msra.mxu0 0.0
  %2268 = vmatprep.subr.mxu0 0.0
  %2269 = vmatpush1.xpose.msra.mxu0 0.0
  %2270 = vmatprep.subr.mxu0 0.0
  %2271 = vmatpush1.xpose.msra.mxu0 0.0
  %2272 = vmatprep.subr.mxu0 0.0
  %2273 = vmatpush1.xpose.msra.mxu0 0.0
  %2274 = vmatprep.subr.mxu0 0.0
  %2275 = vmatpush1.xpose.msra.mxu0 0.0
  %2276 = vmatprep.subr.mxu0 0.0
  %2277 = vmatpush1.xpose.msra.mxu0 0.0
  %2278 = vmatprep.subr.mxu0 0.0
  %2279 = vmatpush1.xpose.msra.mxu0 0.0
  %2280 = vmatprep.subr.mxu0 0.0
  %2281 = vmatpush1.xpose.msra.mxu0 0.0
  %2282 = vmatprep.subr.mxu0 0.0
  %2283 = vmatpush1.xpose.msra.mxu0 0.0
  %2284 = vmatprep.subr.mxu0 0.0
  %2285 = vmatpush1.xpose.msra.mxu0 %v2256
  %2286 = vmatprep.subr.mxu0 0.0
  %2287 = vmatpush1.xpose.msra.mxu0 %v2254
  %2288 = vmatprep.subr.mxu0 0.0
  %2289 = vmatpush1.xpose.msra.mxu0 %v2252
  %2290 = vmatprep.subr.mxu0 0.0
  %2291 = vmatpush2.xpose.msra.mxu0 0.0
  %2292 = vmatprep.subr.mxu0 0.0
  %2293 = vmatpush2.xpose.msra.mxu0 0.0
  %2294 = vmatprep.subr.mxu0 0.0
  %2295 = vmatpush2.xpose.msra.mxu0 0.0
  %2296 = vmatprep.subr.mxu0 0.0
  %2297 = vmatpush2.xpose.msra.mxu0 0.0
  %2298 = vmatprep.subr.mxu0 0.0
  %2299 = vmatpush2.xpose.msra.mxu0 0.0
  %2300 = vmatprep.subr.mxu0 0.0
  %2301 = vmatpush2.xpose.msra.mxu0 0.0
  %2302 = vmatprep.subr.mxu0 0.0
  %2303 = vmatpush2.xpose.msra.mxu0 0.0
  %2304 = vmatprep.subr.mxu0 0.0
  %2305 = vmatpush2.xpose.msra.mxu0 0.0
  %2306 = vmatprep.subr.mxu0 0.0
  %2307 = vmatpush2.xpose.msra.mxu0 0.0
  %2308 = vmatprep.subr.mxu0 0.0
  %2309 = vmatpush2.xpose.msra.mxu0 0.0
  %2310 = vmatprep.subr.mxu0 0.0
  %2311 = vmatpush2.xpose.msra.mxu0 0.0
  %2312 = vmatprep.subr.mxu0 0.0
  %2313 = vmatpush2.xpose.msra.mxu0 0.0
  %2314 = vmatprep.subr.mxu0 0.0
  %2315 = vmatpush2.xpose.msra.mxu0 0.0
  %2316 = vmatprep.subr.mxu0 0.0
  %2317 = vmatpush2.xpose.msra.mxu0 0.0
  %2318 = vmatprep.subr.mxu0 0.0
  %2319 = vmatpush2.xpose.msra.mxu0 0.0
  %2320 = vmatprep.subr.mxu0 0.0
  %2321 = vmatpush2.xpose.msra.mxu0 0.0
  %2322 = vmatprep.mubr.f32.mxu0 0.0
  %2323 = vmatmul.mubr.f32.gmra.mxu0 %v2246
  %v2324 = vpop.f32.mrf.mxu0
  %v2325 = vadd.f32 0.0, %v2324
  %v2326 = vpop.f32.mrf.mxu0
  %2327 = vmatprep.mubr.f32.mxu0 0.0
  %2328 = vmatmul.mubr.f32.gmra.mxu0 %v2248
  %v2329 = vpop.f32.mrf.mxu0
  %v2330 = vadd.f32 0.0, %v2329
  %v2331 = vpop.f32.mrf.mxu0
  %2332 = vmatprep.mubr.f32.mxu0 0.0
  %2333 = vmatmul.mubr.f32.gmra.mxu0 %v2250
  %v2334 = vpop.f32.mrf.mxu0
  %v2335 = vadd.f32 0.0, %v2334
  %v2336 = vpop.f32.mrf.mxu0
  %2337 = vdwg.mxu0
  %2338 = vrot.lane.b32.xlu0 %v2223, 96
  %v2339 = vpop.permute.xlu0 %2338
  %2340 = vrot.lane.b32.xlu0 %v2225, 96
  %v2341 = vpop.permute.xlu0 %2340
  %2342 = vrot.lane.b32.xlu0 %v2227, 96
  %v2343 = vpop.permute.xlu0 %2342
  %v2344 = vsel %vm374, %v2223, 0
  %v2346 = vsel %vm374, %v2225, 0
  %v2348 = vsel %vm374, %v2227, 0
  %v2350 = vsel %vm374, %v2339, 0
  %v2352 = vsel %vm374, %v2341, 0
  %v2354 = vsel %vm374, %v2343, 0
  %2356 = vmatprep.subr.mxu0 0.0
  %2357 = vmatpush1.xpose.msra.mxu0 0.0
  %2358 = vmatprep.subr.mxu0 0.0
  %2359 = vmatpush1.xpose.msra.mxu0 0.0
  %2360 = vmatprep.subr.mxu0 0.0
  %2361 = vmatpush1.xpose.msra.mxu0 0.0
  %2362 = vmatprep.subr.mxu0 0.0
  %2363 = vmatpush1.xpose.msra.mxu0 0.0
  %2364 = vmatprep.subr.mxu0 0.0
  %2365 = vmatpush1.xpose.msra.mxu0 0.0
  %2366 = vmatprep.subr.mxu0 0.0
  %2367 = vmatpush1.xpose.msra.mxu0 0.0
  %2368 = vmatprep.subr.mxu0 0.0
  %2369 = vmatpush1.xpose.msra.mxu0 0.0
  %2370 = vmatprep.subr.mxu0 0.0
  %2371 = vmatpush1.xpose.msra.mxu0 0.0
  %2372 = vmatprep.subr.mxu0 0.0
  %2373 = vmatpush1.xpose.msra.mxu0 0.0
  %2374 = vmatprep.subr.mxu0 0.0
  %2375 = vmatpush1.xpose.msra.mxu0 0.0
  %2376 = vmatprep.subr.mxu0 0.0
  %2377 = vmatpush1.xpose.msra.mxu0 0.0
  %2378 = vmatprep.subr.mxu0 0.0
  %2379 = vmatpush1.xpose.msra.mxu0 0.0
  %2380 = vmatprep.subr.mxu0 0.0
  %2381 = vmatpush1.xpose.msra.mxu0 0.0
  %2382 = vmatprep.subr.mxu0 0.0
  %2383 = vmatpush1.xpose.msra.mxu0 %v2354
  %2384 = vmatprep.subr.mxu0 0.0
  %2385 = vmatpush1.xpose.msra.mxu0 %v2352
  %2386 = vmatprep.subr.mxu0 0.0
  %2387 = vmatpush1.xpose.msra.mxu0 %v2350
  %2388 = vmatprep.subr.mxu0 0.0
  %2389 = vmatpush2.xpose.msra.mxu0 0.0
  %2390 = vmatprep.subr.mxu0 0.0
  %2391 = vmatpush2.xpose.msra.mxu0 0.0
  %2392 = vmatprep.subr.mxu0 0.0
  %2393 = vmatpush2.xpose.msra.mxu0 0.0
  %2394 = vmatprep.subr.mxu0 0.0
  %2395 = vmatpush2.xpose.msra.mxu0 0.0
  %2396 = vmatprep.subr.mxu0 0.0
  %2397 = vmatpush2.xpose.msra.mxu0 0.0
  %2398 = vmatprep.subr.mxu0 0.0
  %2399 = vmatpush2.xpose.msra.mxu0 0.0
  %2400 = vmatprep.subr.mxu0 0.0
  %2401 = vmatpush2.xpose.msra.mxu0 0.0
  %2402 = vmatprep.subr.mxu0 0.0
  %2403 = vmatpush2.xpose.msra.mxu0 0.0
  %2404 = vmatprep.subr.mxu0 0.0
  %2405 = vmatpush2.xpose.msra.mxu0 0.0
  %2406 = vmatprep.subr.mxu0 0.0
  %2407 = vmatpush2.xpose.msra.mxu0 0.0
  %2408 = vmatprep.subr.mxu0 0.0
  %2409 = vmatpush2.xpose.msra.mxu0 0.0
  %2410 = vmatprep.subr.mxu0 0.0
  %2411 = vmatpush2.xpose.msra.mxu0 0.0
  %2412 = vmatprep.subr.mxu0 0.0
  %2413 = vmatpush2.xpose.msra.mxu0 0.0
  %2414 = vmatprep.subr.mxu0 0.0
  %2415 = vmatpush2.xpose.msra.mxu0 0.0
  %2416 = vmatprep.subr.mxu0 0.0
  %2417 = vmatpush2.xpose.msra.mxu0 0.0
  %2418 = vmatprep.subr.mxu0 0.0
  %2419 = vmatpush2.xpose.msra.mxu0 0.0
  %2420 = vmatprep.mubr.f32.mxu0 0.0
  %2421 = vmatmul.mubr.f32.gmra.mxu0 %v2344
  %v2422 = vpop.f32.mrf.mxu0
  %v2423 = vadd.f32 0.0, %v2422
  %v2424 = vpop.f32.mrf.mxu0
  %2425 = vmatprep.mubr.f32.mxu0 0.0
  %2426 = vmatmul.mubr.f32.gmra.mxu0 %v2346
  %v2427 = vpop.f32.mrf.mxu0
  %v2428 = vadd.f32 0.0, %v2427
  %v2429 = vpop.f32.mrf.mxu0
  %2430 = vmatprep.mubr.f32.mxu0 0.0
  %2431 = vmatmul.mubr.f32.gmra.mxu0 %v2348
  %v2432 = vpop.f32.mrf.mxu0
  %v2433 = vadd.f32 0.0, %v2432
  %v2434 = vpop.f32.mrf.mxu0
  %2435 = vdwg.mxu0
  %2436 = vrot.lane.b32.xlu0 %v2229, 96
  %v2437 = vpop.permute.xlu0 %2436
  %2438 = vrot.lane.b32.xlu0 %v2231, 96
  %v2439 = vpop.permute.xlu0 %2438
  %2440 = vrot.lane.b32.xlu0 %v2233, 96
  %v2441 = vpop.permute.xlu0 %2440
  %v2442 = vsel %vm374, %v2229, 0
  %v2444 = vsel %vm374, %v2231, 0
  %v2446 = vsel %vm374, %v2233, 0
  %v2448 = vsel %vm374, %v2437, 0
  %v2450 = vsel %vm374, %v2439, 0
  %v2452 = vsel %vm374, %v2441, 0
  %2454 = vmatprep.subr.mxu0 0.0
  %2455 = vmatpush1.xpose.msra.mxu0 0.0
  %2456 = vmatprep.subr.mxu0 0.0
  %2457 = vmatpush1.xpose.msra.mxu0 0.0
  %2458 = vmatprep.subr.mxu0 0.0
  %2459 = vmatpush1.xpose.msra.mxu0 0.0
  %2460 = vmatprep.subr.mxu0 0.0
  %2461 = vmatpush1.xpose.msra.mxu0 0.0
  %2462 = vmatprep.subr.mxu0 0.0
  %2463 = vmatpush1.xpose.msra.mxu0 0.0
  %2464 = vmatprep.subr.mxu0 0.0
  %2465 = vmatpush1.xpose.msra.mxu0 0.0
  %2466 = vmatprep.subr.mxu0 0.0
  %2467 = vmatpush1.xpose.msra.mxu0 0.0
  %2468 = vmatprep.subr.mxu0 0.0
  %2469 = vmatpush1.xpose.msra.mxu0 0.0
  %2470 = vmatprep.subr.mxu0 0.0
  %2471 = vmatpush1.xpose.msra.mxu0 0.0
  %2472 = vmatprep.subr.mxu0 0.0
  %2473 = vmatpush1.xpose.msra.mxu0 0.0
  %2474 = vmatprep.subr.mxu0 0.0
  %2475 = vmatpush1.xpose.msra.mxu0 0.0
  %2476 = vmatprep.subr.mxu0 0.0
  %2477 = vmatpush1.xpose.msra.mxu0 0.0
  %2478 = vmatprep.subr.mxu0 0.0
  %2479 = vmatpush1.xpose.msra.mxu0 0.0
  %2480 = vmatprep.subr.mxu0 0.0
  %2481 = vmatpush1.xpose.msra.mxu0 %v2452
  %2482 = vmatprep.subr.mxu0 0.0
  %2483 = vmatpush1.xpose.msra.mxu0 %v2450
  %2484 = vmatprep.subr.mxu0 0.0
  %2485 = vmatpush1.xpose.msra.mxu0 %v2448
  %2486 = vmatprep.subr.mxu0 0.0
  %2487 = vmatpush2.xpose.msra.mxu0 0.0
  %2488 = vmatprep.subr.mxu0 0.0
  %2489 = vmatpush2.xpose.msra.mxu0 0.0
  %2490 = vmatprep.subr.mxu0 0.0
  %2491 = vmatpush2.xpose.msra.mxu0 0.0
  %2492 = vmatprep.subr.mxu0 0.0
  %2493 = vmatpush2.xpose.msra.mxu0 0.0
  %2494 = vmatprep.subr.mxu0 0.0
  %2495 = vmatpush2.xpose.msra.mxu0 0.0
  %2496 = vmatprep.subr.mxu0 0.0
  %2497 = vmatpush2.xpose.msra.mxu0 0.0
  %2498 = vmatprep.subr.mxu0 0.0
  %2499 = vmatpush2.xpose.msra.mxu0 0.0
  %2500 = vmatprep.subr.mxu0 0.0
  %2501 = vmatpush2.xpose.msra.mxu0 0.0
  %2502 = vmatprep.subr.mxu0 0.0
  %2503 = vmatpush2.xpose.msra.mxu0 0.0
  %2504 = vmatprep.subr.mxu0 0.0
  %2505 = vmatpush2.xpose.msra.mxu0 0.0
  %2506 = vmatprep.subr.mxu0 0.0
  %2507 = vmatpush2.xpose.msra.mxu0 0.0
  %2508 = vmatprep.subr.mxu0 0.0
  %2509 = vmatpush2.xpose.msra.mxu0 0.0
  %2510 = vmatprep.subr.mxu0 0.0
  %2511 = vmatpush2.xpose.msra.mxu0 0.0
  %2512 = vmatprep.subr.mxu0 0.0
  %2513 = vmatpush2.xpose.msra.mxu0 0.0
  %2514 = vmatprep.subr.mxu0 0.0
  %2515 = vmatpush2.xpose.msra.mxu0 0.0
  %2516 = vmatprep.subr.mxu0 0.0
  %2517 = vmatpush2.xpose.msra.mxu0 0.0
  %2518 = vmatprep.mubr.f32.mxu0 0.0
  %2519 = vmatmul.mubr.f32.gmra.mxu0 %v2442
  %v2520 = vpop.f32.mrf.mxu0
  %v2521 = vadd.f32 0.0, %v2520
  %v2522 = vpop.f32.mrf.mxu0
  %2523 = vmatprep.mubr.f32.mxu0 0.0
  %2524 = vmatmul.mubr.f32.gmra.mxu0 %v2444
  %v2525 = vpop.f32.mrf.mxu0
  %v2526 = vadd.f32 0.0, %v2525
  %v2527 = vpop.f32.mrf.mxu0
  %2528 = vmatprep.mubr.f32.mxu0 0.0
  %2529 = vmatmul.mubr.f32.gmra.mxu0 %v2446
  %v2530 = vpop.f32.mrf.mxu0
  %v2531 = vadd.f32 0.0, %v2530
  %v2532 = vpop.f32.mrf.mxu0
  %2533 = vdwg.mxu0
  %2534 = vrot.lane.b32.xlu0 %v2235, 96
  %v2535 = vpop.permute.xlu0 %2534
  %2536 = vrot.lane.b32.xlu0 %v2237, 96
  %v2537 = vpop.permute.xlu0 %2536
  %2538 = vrot.lane.b32.xlu0 %v2239, 96
  %v2539 = vpop.permute.xlu0 %2538
  %v2540 = vsel %vm374, %v2235, 0
  %v2542 = vsel %vm374, %v2237, 0
  %v2544 = vsel %vm374, %v2239, 0
  %v2546 = vsel %vm374, %v2535, 0
  %v2548 = vsel %vm374, %v2537, 0
  %v2550 = vsel %vm374, %v2539, 0
  %2552 = vmatprep.subr.mxu0 0.0
  %2553 = vmatpush1.xpose.msra.mxu0 0.0
  %2554 = vmatprep.subr.mxu0 0.0
  %2555 = vmatpush1.xpose.msra.mxu0 0.0
  %2556 = vmatprep.subr.mxu0 0.0
  %2557 = vmatpush1.xpose.msra.mxu0 0.0
  %2558 = vmatprep.subr.mxu0 0.0
  %2559 = vmatpush1.xpose.msra.mxu0 0.0
  %2560 = vmatprep.subr.mxu0 0.0
  %2561 = vmatpush1.xpose.msra.mxu0 0.0
  %2562 = vmatprep.subr.mxu0 0.0
  %2563 = vmatpush1.xpose.msra.mxu0 0.0
  %2564 = vmatprep.subr.mxu0 0.0
  %2565 = vmatpush1.xpose.msra.mxu0 0.0
  %2566 = vmatprep.subr.mxu0 0.0
  %2567 = vmatpush1.xpose.msra.mxu0 0.0
  %2568 = vmatprep.subr.mxu0 0.0
  %2569 = vmatpush1.xpose.msra.mxu0 0.0
  %2570 = vmatprep.subr.mxu0 0.0
  %2571 = vmatpush1.xpose.msra.mxu0 0.0
  %2572 = vmatprep.subr.mxu0 0.0
  %2573 = vmatpush1.xpose.msra.mxu0 0.0
  %2574 = vmatprep.subr.mxu0 0.0
  %2575 = vmatpush1.xpose.msra.mxu0 0.0
  %2576 = vmatprep.subr.mxu0 0.0
  %2577 = vmatpush1.xpose.msra.mxu0 0.0
  %2578 = vmatprep.subr.mxu0 0.0
  %2579 = vmatpush1.xpose.msra.mxu0 %v2550
  %2580 = vmatprep.subr.mxu0 0.0
  %2581 = vmatpush1.xpose.msra.mxu0 %v2548
  %2582 = vmatprep.subr.mxu0 0.0
  %2583 = vmatpush1.xpose.msra.mxu0 %v2546
  %2584 = vmatprep.subr.mxu0 0.0
  %2585 = vmatpush2.xpose.msra.mxu0 0.0
  %2586 = vmatprep.subr.mxu0 0.0
  %2587 = vmatpush2.xpose.msra.mxu0 0.0
  %2588 = vmatprep.subr.mxu0 0.0
  %2589 = vmatpush2.xpose.msra.mxu0 0.0
  %2590 = vmatprep.subr.mxu0 0.0
  %2591 = vmatpush2.xpose.msra.mxu0 0.0
  %2592 = vmatprep.subr.mxu0 0.0
  %2593 = vmatpush2.xpose.msra.mxu0 0.0
  %2594 = vmatprep.subr.mxu0 0.0
  %2595 = vmatpush2.xpose.msra.mxu0 0.0
  %2596 = vmatprep.subr.mxu0 0.0
  %2597 = vmatpush2.xpose.msra.mxu0 0.0
  %2598 = vmatprep.subr.mxu0 0.0
  %2599 = vmatpush2.xpose.msra.mxu0 0.0
  %2600 = vmatprep.subr.mxu0 0.0
  %2601 = vmatpush2.xpose.msra.mxu0 0.0
  %2602 = vmatprep.subr.mxu0 0.0
  %2603 = vmatpush2.xpose.msra.mxu0 0.0
  %2604 = vmatprep.subr.mxu0 0.0
  %2605 = vmatpush2.xpose.msra.mxu0 0.0
  %2606 = vmatprep.subr.mxu0 0.0
  %2607 = vmatpush2.xpose.msra.mxu0 0.0
  %2608 = vmatprep.subr.mxu0 0.0
  %2609 = vmatpush2.xpose.msra.mxu0 0.0
  %2610 = vmatprep.subr.mxu0 0.0
  %2611 = vmatpush2.xpose.msra.mxu0 0.0
  %2612 = vmatprep.subr.mxu0 0.0
  %2613 = vmatpush2.xpose.msra.mxu0 0.0
  %2614 = vmatprep.subr.mxu0 0.0
  %2615 = vmatpush2.xpose.msra.mxu0 0.0
  %2616 = vmatprep.mubr.f32.mxu0 0.0
  %2617 = vmatmul.mubr.f32.gmra.mxu0 %v2540
  %v2618 = vpop.f32.mrf.mxu0
  %v2619 = vadd.f32 0.0, %v2618
  %v2620 = vpop.f32.mrf.mxu0
  %2621 = vmatprep.mubr.f32.mxu0 0.0
  %2622 = vmatmul.mubr.f32.gmra.mxu0 %v2542
  %v2623 = vpop.f32.mrf.mxu0
  %v2624 = vadd.f32 0.0, %v2623
  %v2625 = vpop.f32.mrf.mxu0
  %2626 = vmatprep.mubr.f32.mxu0 0.0
  %2627 = vmatmul.mubr.f32.gmra.mxu0 %v2544
  %v2628 = vpop.f32.mrf.mxu0
  %v2629 = vadd.f32 0.0, %v2628
  %v2630 = vpop.f32.mrf.mxu0
  %2631 = vdwg.mxu0
  %v2632 = vmul.f32 %v2325, 0.35355338
  %v2633 = vmul.f32 %v2330, 0.35355338
  %v2634 = vmul.f32 %v2335, 0.35355338
  %v2635 = vmul.f32 %v2423, 0.35355338
  %v2636 = vmul.f32 %v2428, 0.35355338
  %v2637 = vmul.f32 %v2433, 0.35355338
  %v2638 = vmul.f32 %v2521, 0.35355338
  %v2639 = vmul.f32 %v2526, 0.35355338
  %v2640 = vmul.f32 %v2531, 0.35355338
  %v2641 = vmul.f32 %v2619, 0.35355338
  %v2642 = vmul.f32 %v2624, 0.35355338
  %v2643 = vmul.f32 %v2629, 0.35355338
  %v2644 = vadd.f32 %v2632, %v182
  %v2645 = vadd.f32 %v2633, %v183
  %v2646 = vadd.f32 %v2634, %v184
  %v2647 = vadd.f32 %v2635, %v182
  %v2648 = vadd.f32 %v2636, %v183
  %v2649 = vadd.f32 %v2637, %v184
  %v2650 = vadd.f32 %v2638, %v182
  %v2651 = vadd.f32 %v2639, %v183
  %v2652 = vadd.f32 %v2640, %v184
  %v2653 = vadd.f32 %v2641, %v182
  %v2654 = vadd.f32 %v2642, %v183
  %v2655 = vadd.f32 %v2643, %v184
  %v2656 = vsel %vm785, %v2644, -inf
  %2657 = vmax.xlane.f32.xlu0 %v2656
  %v2658 = vpop.xlane.xlu0 %2657
  %v2659 = vsel %vm785, %v2645, -inf
  %2660 = vmax.xlane.f32.xlu0 %v2659
  %v2661 = vpop.xlane.xlu0 %2660
  %v2662 = vsel %vm792, %v2646, -inf
  %2663 = vmax.xlane.f32.xlu0 %v2662
  %v2664 = vpop.xlane.xlu0 %2663
  %v2665 = vsel %vm785, %v2647, -inf
  %2666 = vmax.xlane.f32.xlu0 %v2665
  %v2667 = vpop.xlane.xlu0 %2666
  %v2668 = vsel %vm785, %v2648, -inf
  %2669 = vmax.xlane.f32.xlu0 %v2668
  %v2670 = vpop.xlane.xlu0 %2669
  %v2671 = vsel %vm792, %v2649, -inf
  %2672 = vmax.xlane.f32.xlu0 %v2671
  %v2673 = vpop.xlane.xlu0 %2672
  %v2674 = vsel %vm785, %v2650, -inf
  %2675 = vmax.xlane.f32.xlu0 %v2674
  %v2676 = vpop.xlane.xlu0 %2675
  %v2677 = vsel %vm785, %v2651, -inf
  %2678 = vmax.xlane.f32.xlu0 %v2677
  %v2679 = vpop.xlane.xlu0 %2678
  %v2680 = vsel %vm792, %v2652, -inf
  %2681 = vmax.xlane.f32.xlu0 %v2680
  %v2682 = vpop.xlane.xlu0 %2681
  %v2683 = vsel %vm785, %v2653, -inf
  %2684 = vmax.xlane.f32.xlu0 %v2683
  %v2685 = vpop.xlane.xlu0 %2684
  %v2686 = vsel %vm785, %v2654, -inf
  %2687 = vmax.xlane.f32.xlu0 %v2686
  %v2688 = vpop.xlane.xlu0 %2687
  %v2689 = vsel %vm792, %v2655, -inf
  %2690 = vmax.xlane.f32.xlu0 %v2689
  %v2691 = vpop.xlane.xlu0 %2690
  %v2692 = vsub.f32 %v2644, %v2658
  %v2693 = vsub.f32 %v2645, %v2661
  %v2694 = vsub.f32 %v2646, %v2664
  %v2695 = vsub.f32 %v2647, %v2667
  %v2696 = vsub.f32 %v2648, %v2670
  %v2697 = vsub.f32 %v2649, %v2673
  %v2698 = vsub.f32 %v2650, %v2676
  %v2699 = vsub.f32 %v2651, %v2679
  %v2700 = vsub.f32 %v2652, %v2682
  %v2701 = vsub.f32 %v2653, %v2685
  %v2702 = vsub.f32 %v2654, %v2688
  %v2703 = vsub.f32 %v2655, %v2691
  %v2704 = vmul.f32 %v2692, 1.442695
  %v2705 = vpow.pop %v2704
  %v2706 = vmul.f32 %v2693, 1.442695
  %v2707 = vpow.pop %v2706
  %v2708 = vmul.f32 %v2694, 1.442695
  %v2709 = vpow.pop %v2708
  %v2710 = vmul.f32 %v2695, 1.442695
  %v2711 = vpow.pop %v2710
  %v2712 = vmul.f32 %v2696, 1.442695
  %v2713 = vpow.pop %v2712
  %v2714 = vmul.f32 %v2697, 1.442695
  %v2715 = vpow.pop %v2714
  %v2716 = vmul.f32 %v2698, 1.442695
  %v2717 = vpow.pop %v2716
  %v2718 = vmul.f32 %v2699, 1.442695
  %v2719 = vpow.pop %v2718
  %v2720 = vmul.f32 %v2700, 1.442695
  %v2721 = vpow.pop %v2720
  %v2722 = vmul.f32 %v2701, 1.442695
  %v2723 = vpow.pop %v2722
  %v2724 = vmul.f32 %v2702, 1.442695
  %v2725 = vpow.pop %v2724
  %v2726 = vmul.f32 %v2703, 1.442695
  %v2727 = vpow.pop %v2726
  %v2728 = vsel %vm785, %v2705, 0.0
  %2729 = vadd.xlane.f32.xlu0 %v2728
  %v2730 = vpop.xlane.xlu0 %2729
  %v2731 = vsel %vm785, %v2707, 0.0
  %2732 = vadd.xlane.f32.xlu0 %v2731
  %v2733 = vpop.xlane.xlu0 %2732
  %v2734 = vsel %vm792, %v2709, 0.0
  %2735 = vadd.xlane.f32.xlu0 %v2734
  %v2736 = vpop.xlane.xlu0 %2735
  %v2737 = vsel %vm785, %v2711, 0.0
  %2738 = vadd.xlane.f32.xlu0 %v2737
  %v2739 = vpop.xlane.xlu0 %2738
  %v2740 = vsel %vm785, %v2713, 0.0
  %2741 = vadd.xlane.f32.xlu0 %v2740
  %v2742 = vpop.xlane.xlu0 %2741
  %v2743 = vsel %vm792, %v2715, 0.0
  %2744 = vadd.xlane.f32.xlu0 %v2743
  %v2745 = vpop.xlane.xlu0 %2744
  %v2746 = vsel %vm785, %v2717, 0.0
  %2747 = vadd.xlane.f32.xlu0 %v2746
  %v2748 = vpop.xlane.xlu0 %2747
  %v2749 = vsel %vm785, %v2719, 0.0
  %2750 = vadd.xlane.f32.xlu0 %v2749
  %v2751 = vpop.xlane.xlu0 %2750
  %v2752 = vsel %vm792, %v2721, 0.0
  %2753 = vadd.xlane.f32.xlu0 %v2752
  %v2754 = vpop.xlane.xlu0 %2753
  %v2755 = vsel %vm785, %v2723, 0.0
  %2756 = vadd.xlane.f32.xlu0 %v2755
  %v2757 = vpop.xlane.xlu0 %2756
  %v2758 = vsel %vm785, %v2725, 0.0
  %2759 = vadd.xlane.f32.xlu0 %v2758
  %v2760 = vpop.xlane.xlu0 %2759
  %v2761 = vsel %vm792, %v2727, 0.0
  %2762 = vadd.xlane.f32.xlu0 %v2761
  %v2763 = vpop.xlane.xlu0 %2762
  %v2764 = vrcp.pop %v2730
  %v2765 = vrcp.pop %v2733
  %v2766 = vrcp.pop %v2736
  %v2767 = vrcp.pop %v2739
  %v2768 = vrcp.pop %v2742
  %v2769 = vrcp.pop %v2745
  %v2770 = vrcp.pop %v2748
  %v2771 = vrcp.pop %v2751
  %v2772 = vrcp.pop %v2754
  %v2773 = vrcp.pop %v2757
  %v2774 = vrcp.pop %v2760
  %v2775 = vrcp.pop %v2763
  %v2776 = vmul.f32 %v2705, %v2764
  %v2777 = vmul.f32 %v2707, %v2765
  %v2778 = vmul.f32 %v2709, %v2766
  %v2779 = vmul.f32 %v2711, %v2767
  %v2780 = vmul.f32 %v2713, %v2768
  %v2781 = vmul.f32 %v2715, %v2769
  %v2782 = vmul.f32 %v2717, %v2770
  %v2783 = vmul.f32 %v2719, %v2771
  %v2784 = vmul.f32 %v2721, %v2772
  %v2785 = vmul.f32 %v2723, %v2773
  %v2786 = vmul.f32 %v2725, %v2774
  %v2787 = vmul.f32 %v2727, %v2775
  %2788 = vrot.lane.b32.xlu0 %v2206, 64
  %v2789 = vpop.permute.xlu0 %2788
  %2790 = vrot.lane.b32.xlu0 %v2211, 64
  %v2791 = vpop.permute.xlu0 %2790
  %2792 = vrot.lane.b32.xlu0 %v2216, 64
  %v2793 = vpop.permute.xlu0 %2792
  %v2797 = vsel %vm785, %v2776, 0
  %v2800 = vsel %vm785, %v2777, 0
  %v2803 = vsel %vm785, %v2778, 0
  %v2805 = vsel %vm936, %v2793, 0
  %2807 = vmatprep.subr.mxu0 0.0
  %2808 = vmatpush1.msra.mxu0 0.0
  %2809 = vmatprep.subr.mxu0 0.0
  %2810 = vmatpush1.msra.mxu0 0.0
  %2811 = vmatprep.subr.mxu0 0.0
  %2812 = vmatpush1.msra.mxu0 0.0
  %2813 = vmatprep.subr.mxu0 0.0
  %2814 = vmatpush1.msra.mxu0 0.0
  %2815 = vmatprep.subr.mxu0 0.0
  %2816 = vmatpush1.msra.mxu0 0.0
  %2817 = vmatprep.subr.mxu0 0.0
  %2818 = vmatpush1.msra.mxu0 0.0
  %2819 = vmatprep.subr.mxu0 0.0
  %2820 = vmatpush1.msra.mxu0 0.0
  %2821 = vmatprep.subr.mxu0 0.0
  %2822 = vmatpush1.msra.mxu0 0.0
  %2823 = vmatprep.subr.mxu0 0.0
  %2824 = vmatpush1.msra.mxu0 0.0
  %2825 = vmatprep.subr.mxu0 0.0
  %2826 = vmatpush1.msra.mxu0 0.0
  %2827 = vmatprep.subr.mxu0 0.0
  %2828 = vmatpush1.msra.mxu0 0.0
  %2829 = vmatprep.subr.mxu0 0.0
  %2830 = vmatpush1.msra.mxu0 0.0
  %2831 = vmatprep.subr.mxu0 0.0
  %2832 = vmatpush1.msra.mxu0 0.0
  %2833 = vmatprep.subr.mxu0 0.0
  %2834 = vmatpush1.msra.mxu0 %v2805
  %2835 = vmatprep.subr.mxu0 0.0
  %2836 = vmatpush1.msra.mxu0 %v2791
  %2837 = vmatprep.subr.mxu0 0.0
  %2838 = vmatpush1.msra.mxu0 %v2789
  %2839 = vmatprep.subr.mxu0 0.0
  %2840 = vmatpush2.msra.mxu0 0.0
  %2841 = vmatprep.subr.mxu0 0.0
  %2842 = vmatpush2.msra.mxu0 0.0
  %2843 = vmatprep.subr.mxu0 0.0
  %2844 = vmatpush2.msra.mxu0 0.0
  %2845 = vmatprep.subr.mxu0 0.0
  %2846 = vmatpush2.msra.mxu0 0.0
  %2847 = vmatprep.subr.mxu0 0.0
  %2848 = vmatpush2.msra.mxu0 0.0
  %2849 = vmatprep.subr.mxu0 0.0
  %2850 = vmatpush2.msra.mxu0 0.0
  %2851 = vmatprep.subr.mxu0 0.0
  %2852 = vmatpush2.msra.mxu0 0.0
  %2853 = vmatprep.subr.mxu0 0.0
  %2854 = vmatpush2.msra.mxu0 0.0
  %2855 = vmatprep.subr.mxu0 0.0
  %2856 = vmatpush2.msra.mxu0 0.0
  %2857 = vmatprep.subr.mxu0 0.0
  %2858 = vmatpush2.msra.mxu0 0.0
  %2859 = vmatprep.subr.mxu0 0.0
  %2860 = vmatpush2.msra.mxu0 0.0
  %2861 = vmatprep.subr.mxu0 0.0
  %2862 = vmatpush2.msra.mxu0 0.0
  %2863 = vmatprep.subr.mxu0 0.0
  %2864 = vmatpush2.msra.mxu0 0.0
  %2865 = vmatprep.subr.mxu0 0.0
  %2866 = vmatpush2.msra.mxu0 0.0
  %2867 = vmatprep.subr.mxu0 0.0
  %2868 = vmatpush2.msra.mxu0 0.0
  %2869 = vmatprep.subr.mxu0 0.0
  %2870 = vmatpush2.msra.mxu0 0.0
  %2871 = vmatprep.mubr.f32.mxu0 0.0
  %2872 = vmatmul.mubr.f32.gmra.mxu0 %v2797
  %v2873 = vpop.f32.mrf.mxu0
  %v2874 = vadd.f32 0.0, %v2873
  %v2875 = vpop.f32.mrf.mxu0
  %2876 = vmatprep.mubr.f32.mxu0 0.0
  %2877 = vmatmul.mubr.f32.gmra.mxu0 %v2800
  %v2878 = vpop.f32.mrf.mxu0
  %v2879 = vadd.f32 0.0, %v2878
  %v2880 = vpop.f32.mrf.mxu0
  %2881 = vmatprep.mubr.f32.mxu0 0.0
  %2882 = vmatmul.mubr.f32.gmra.mxu0 %v2803
  %v2883 = vpop.f32.mrf.mxu0
  %v2884 = vadd.f32 0.0, %v2883
  %v2885 = vpop.f32.mrf.mxu0
  %2886 = vdwg.mxu0
  %2887 = vrot.lane.b32.xlu0 %v2223, 64
  %v2888 = vpop.permute.xlu0 %2887
  %2889 = vrot.lane.b32.xlu0 %v2225, 64
  %v2890 = vpop.permute.xlu0 %2889
  %2891 = vrot.lane.b32.xlu0 %v2227, 64
  %v2892 = vpop.permute.xlu0 %2891
  %v2896 = vsel %vm785, %v2779, 0
  %v2899 = vsel %vm785, %v2780, 0
  %v2902 = vsel %vm785, %v2781, 0
  %v2904 = vsel %vm936, %v2892, 0
  %2906 = vmatprep.subr.mxu0 0.0
  %2907 = vmatpush1.msra.mxu0 0.0
  %2908 = vmatprep.subr.mxu0 0.0
  %2909 = vmatpush1.msra.mxu0 0.0
  %2910 = vmatprep.subr.mxu0 0.0
  %2911 = vmatpush1.msra.mxu0 0.0
  %2912 = vmatprep.subr.mxu0 0.0
  %2913 = vmatpush1.msra.mxu0 0.0
  %2914 = vmatprep.subr.mxu0 0.0
  %2915 = vmatpush1.msra.mxu0 0.0
  %2916 = vmatprep.subr.mxu0 0.0
  %2917 = vmatpush1.msra.mxu0 0.0
  %2918 = vmatprep.subr.mxu0 0.0
  %2919 = vmatpush1.msra.mxu0 0.0
  %2920 = vmatprep.subr.mxu0 0.0
  %2921 = vmatpush1.msra.mxu0 0.0
  %2922 = vmatprep.subr.mxu0 0.0
  %2923 = vmatpush1.msra.mxu0 0.0
  %2924 = vmatprep.subr.mxu0 0.0
  %2925 = vmatpush1.msra.mxu0 0.0
  %2926 = vmatprep.subr.mxu0 0.0
  %2927 = vmatpush1.msra.mxu0 0.0
  %2928 = vmatprep.subr.mxu0 0.0
  %2929 = vmatpush1.msra.mxu0 0.0
  %2930 = vmatprep.subr.mxu0 0.0
  %2931 = vmatpush1.msra.mxu0 0.0
  %2932 = vmatprep.subr.mxu0 0.0
  %2933 = vmatpush1.msra.mxu0 %v2904
  %2934 = vmatprep.subr.mxu0 0.0
  %2935 = vmatpush1.msra.mxu0 %v2890
  %2936 = vmatprep.subr.mxu0 0.0
  %2937 = vmatpush1.msra.mxu0 %v2888
  %2938 = vmatprep.subr.mxu0 0.0
  %2939 = vmatpush2.msra.mxu0 0.0
  %2940 = vmatprep.subr.mxu0 0.0
  %2941 = vmatpush2.msra.mxu0 0.0
  %2942 = vmatprep.subr.mxu0 0.0
  %2943 = vmatpush2.msra.mxu0 0.0
  %2944 = vmatprep.subr.mxu0 0.0
  %2945 = vmatpush2.msra.mxu0 0.0
  %2946 = vmatprep.subr.mxu0 0.0
  %2947 = vmatpush2.msra.mxu0 0.0
  %2948 = vmatprep.subr.mxu0 0.0
  %2949 = vmatpush2.msra.mxu0 0.0
  %2950 = vmatprep.subr.mxu0 0.0
  %2951 = vmatpush2.msra.mxu0 0.0
  %2952 = vmatprep.subr.mxu0 0.0
  %2953 = vmatpush2.msra.mxu0 0.0
  %2954 = vmatprep.subr.mxu0 0.0
  %2955 = vmatpush2.msra.mxu0 0.0
  %2956 = vmatprep.subr.mxu0 0.0
  %2957 = vmatpush2.msra.mxu0 0.0
  %2958 = vmatprep.subr.mxu0 0.0
  %2959 = vmatpush2.msra.mxu0 0.0
  %2960 = vmatprep.subr.mxu0 0.0
  %2961 = vmatpush2.msra.mxu0 0.0
  %2962 = vmatprep.subr.mxu0 0.0
  %2963 = vmatpush2.msra.mxu0 0.0
  %2964 = vmatprep.subr.mxu0 0.0
  %2965 = vmatpush2.msra.mxu0 0.0
  %2966 = vmatprep.subr.mxu0 0.0
  %2967 = vmatpush2.msra.mxu0 0.0
  %2968 = vmatprep.subr.mxu0 0.0
  %2969 = vmatpush2.msra.mxu0 0.0
  %2970 = vmatprep.mubr.f32.mxu0 0.0
  %2971 = vmatmul.mubr.f32.gmra.mxu0 %v2896
  %v2972 = vpop.f32.mrf.mxu0
  %v2973 = vadd.f32 0.0, %v2972
  %v2974 = vpop.f32.mrf.mxu0
  %2975 = vmatprep.mubr.f32.mxu0 0.0
  %2976 = vmatmul.mubr.f32.gmra.mxu0 %v2899
  %v2977 = vpop.f32.mrf.mxu0
  %v2978 = vadd.f32 0.0, %v2977
  %v2979 = vpop.f32.mrf.mxu0
  %2980 = vmatprep.mubr.f32.mxu0 0.0
  %2981 = vmatmul.mubr.f32.gmra.mxu0 %v2902
  %v2982 = vpop.f32.mrf.mxu0
  %v2983 = vadd.f32 0.0, %v2982
  %v2984 = vpop.f32.mrf.mxu0
  %2985 = vdwg.mxu0
  %2986 = vrot.lane.b32.xlu0 %v2229, 64
  %v2987 = vpop.permute.xlu0 %2986
  %2988 = vrot.lane.b32.xlu0 %v2231, 64
  %v2989 = vpop.permute.xlu0 %2988
  %2990 = vrot.lane.b32.xlu0 %v2233, 64
  %v2991 = vpop.permute.xlu0 %2990
  %v2995 = vsel %vm785, %v2782, 0
  %v2998 = vsel %vm785, %v2783, 0
  %v3001 = vsel %vm785, %v2784, 0
  %v3003 = vsel %vm936, %v2991, 0
  %3005 = vmatprep.subr.mxu0 0.0
  %3006 = vmatpush1.msra.mxu0 0.0
  %3007 = vmatprep.subr.mxu0 0.0
  %3008 = vmatpush1.msra.mxu0 0.0
  %3009 = vmatprep.subr.mxu0 0.0
  %3010 = vmatpush1.msra.mxu0 0.0
  %3011 = vmatprep.subr.mxu0 0.0
  %3012 = vmatpush1.msra.mxu0 0.0
  %3013 = vmatprep.subr.mxu0 0.0
  %3014 = vmatpush1.msra.mxu0 0.0
  %3015 = vmatprep.subr.mxu0 0.0
  %3016 = vmatpush1.msra.mxu0 0.0
  %3017 = vmatprep.subr.mxu0 0.0
  %3018 = vmatpush1.msra.mxu0 0.0
  %3019 = vmatprep.subr.mxu0 0.0
  %3020 = vmatpush1.msra.mxu0 0.0
  %3021 = vmatprep.subr.mxu0 0.0
  %3022 = vmatpush1.msra.mxu0 0.0
  %3023 = vmatprep.subr.mxu0 0.0
  %3024 = vmatpush1.msra.mxu0 0.0
  %3025 = vmatprep.subr.mxu0 0.0
  %3026 = vmatpush1.msra.mxu0 0.0
  %3027 = vmatprep.subr.mxu0 0.0
  %3028 = vmatpush1.msra.mxu0 0.0
  %3029 = vmatprep.subr.mxu0 0.0
  %3030 = vmatpush1.msra.mxu0 0.0
  %3031 = vmatprep.subr.mxu0 0.0
  %3032 = vmatpush1.msra.mxu0 %v3003
  %3033 = vmatprep.subr.mxu0 0.0
  %3034 = vmatpush1.msra.mxu0 %v2989
  %3035 = vmatprep.subr.mxu0 0.0
  %3036 = vmatpush1.msra.mxu0 %v2987
  %3037 = vmatprep.subr.mxu0 0.0
  %3038 = vmatpush2.msra.mxu0 0.0
  %3039 = vmatprep.subr.mxu0 0.0
  %3040 = vmatpush2.msra.mxu0 0.0
  %3041 = vmatprep.subr.mxu0 0.0
  %3042 = vmatpush2.msra.mxu0 0.0
  %3043 = vmatprep.subr.mxu0 0.0
  %3044 = vmatpush2.msra.mxu0 0.0
  %3045 = vmatprep.subr.mxu0 0.0
  %3046 = vmatpush2.msra.mxu0 0.0
  %3047 = vmatprep.subr.mxu0 0.0
  %3048 = vmatpush2.msra.mxu0 0.0
  %3049 = vmatprep.subr.mxu0 0.0
  %3050 = vmatpush2.msra.mxu0 0.0
  %3051 = vmatprep.subr.mxu0 0.0
  %3052 = vmatpush2.msra.mxu0 0.0
  %3053 = vmatprep.subr.mxu0 0.0
  %3054 = vmatpush2.msra.mxu0 0.0
  %3055 = vmatprep.subr.mxu0 0.0
  %3056 = vmatpush2.msra.mxu0 0.0
  %3057 = vmatprep.subr.mxu0 0.0
  %3058 = vmatpush2.msra.mxu0 0.0
  %3059 = vmatprep.subr.mxu0 0.0
  %3060 = vmatpush2.msra.mxu0 0.0
  %3061 = vmatprep.subr.mxu0 0.0
  %3062 = vmatpush2.msra.mxu0 0.0
  %3063 = vmatprep.subr.mxu0 0.0
  %3064 = vmatpush2.msra.mxu0 0.0
  %3065 = vmatprep.subr.mxu0 0.0
  %3066 = vmatpush2.msra.mxu0 0.0
  %3067 = vmatprep.subr.mxu0 0.0
  %3068 = vmatpush2.msra.mxu0 0.0
  %3069 = vmatprep.mubr.f32.mxu0 0.0
  %3070 = vmatmul.mubr.f32.gmra.mxu0 %v2995
  %v3071 = vpop.f32.mrf.mxu0
  %v3072 = vadd.f32 0.0, %v3071
  %v3073 = vpop.f32.mrf.mxu0
  %3074 = vmatprep.mubr.f32.mxu0 0.0
  %3075 = vmatmul.mubr.f32.gmra.mxu0 %v2998
  %v3076 = vpop.f32.mrf.mxu0
  %v3077 = vadd.f32 0.0, %v3076
  %v3078 = vpop.f32.mrf.mxu0
  %3079 = vmatprep.mubr.f32.mxu0 0.0
  %3080 = vmatmul.mubr.f32.gmra.mxu0 %v3001
  %v3081 = vpop.f32.mrf.mxu0
  %v3082 = vadd.f32 0.0, %v3081
  %v3083 = vpop.f32.mrf.mxu0
  %3084 = vdwg.mxu0
  %3085 = vrot.lane.b32.xlu0 %v2235, 64
  %v3086 = vpop.permute.xlu0 %3085
  %3087 = vrot.lane.b32.xlu0 %v2237, 64
  %v3088 = vpop.permute.xlu0 %3087
  %3089 = vrot.lane.b32.xlu0 %v2239, 64
  %v3090 = vpop.permute.xlu0 %3089
  %v3094 = vsel %vm785, %v2785, 0
  %v3097 = vsel %vm785, %v2786, 0
  %v3100 = vsel %vm785, %v2787, 0
  %v3102 = vsel %vm936, %v3090, 0
  %3104 = vmatprep.subr.mxu0 0.0
  %3105 = vmatpush1.msra.mxu0 0.0
  %3106 = vmatprep.subr.mxu0 0.0
  %3107 = vmatpush1.msra.mxu0 0.0
  %3108 = vmatprep.subr.mxu0 0.0
  %3109 = vmatpush1.msra.mxu0 0.0
  %3110 = vmatprep.subr.mxu0 0.0
  %3111 = vmatpush1.msra.mxu0 0.0
  %3112 = vmatprep.subr.mxu0 0.0
  %3113 = vmatpush1.msra.mxu0 0.0
  %3114 = vmatprep.subr.mxu0 0.0
  %3115 = vmatpush1.msra.mxu0 0.0
  %3116 = vmatprep.subr.mxu0 0.0
  %3117 = vmatpush1.msra.mxu0 0.0
  %3118 = vmatprep.subr.mxu0 0.0
  %3119 = vmatpush1.msra.mxu0 0.0
  %3120 = vmatprep.subr.mxu0 0.0
  %3121 = vmatpush1.msra.mxu0 0.0
  %3122 = vmatprep.subr.mxu0 0.0
  %3123 = vmatpush1.msra.mxu0 0.0
  %3124 = vmatprep.subr.mxu0 0.0
  %3125 = vmatpush1.msra.mxu0 0.0
  %3126 = vmatprep.subr.mxu0 0.0
  %3127 = vmatpush1.msra.mxu0 0.0
  %3128 = vmatprep.subr.mxu0 0.0
  %3129 = vmatpush1.msra.mxu0 0.0
  %3130 = vmatprep.subr.mxu0 0.0
  %3131 = vmatpush1.msra.mxu0 %v3102
  %3132 = vmatprep.subr.mxu0 0.0
  %3133 = vmatpush1.msra.mxu0 %v3088
  %3134 = vmatprep.subr.mxu0 0.0
  %3135 = vmatpush1.msra.mxu0 %v3086
  %3136 = vmatprep.subr.mxu0 0.0
  %3137 = vmatpush2.msra.mxu0 0.0
  %3138 = vmatprep.subr.mxu0 0.0
  %3139 = vmatpush2.msra.mxu0 0.0
  %3140 = vmatprep.subr.mxu0 0.0
  %3141 = vmatpush2.msra.mxu0 0.0
  %3142 = vmatprep.subr.mxu0 0.0
  %3143 = vmatpush2.msra.mxu0 0.0
  %3144 = vmatprep.subr.mxu0 0.0
  %3145 = vmatpush2.msra.mxu0 0.0
  %3146 = vmatprep.subr.mxu0 0.0
  %3147 = vmatpush2.msra.mxu0 0.0
  %3148 = vmatprep.subr.mxu0 0.0
  %3149 = vmatpush2.msra.mxu0 0.0
  %3150 = vmatprep.subr.mxu0 0.0
  %3151 = vmatpush2.msra.mxu0 0.0
  %3152 = vmatprep.subr.mxu0 0.0
  %3153 = vmatpush2.msra.mxu0 0.0
  %3154 = vmatprep.subr.mxu0 0.0
  %3155 = vmatpush2.msra.mxu0 0.0
  %3156 = vmatprep.subr.mxu0 0.0
  %3157 = vmatpush2.msra.mxu0 0.0
  %3158 = vmatprep.subr.mxu0 0.0
  %3159 = vmatpush2.msra.mxu0 0.0
  %3160 = vmatprep.subr.mxu0 0.0
  %3161 = vmatpush2.msra.mxu0 0.0
  %3162 = vmatprep.subr.mxu0 0.0
  %3163 = vmatpush2.msra.mxu0 0.0
  %3164 = vmatprep.subr.mxu0 0.0
  %3165 = vmatpush2.msra.mxu0 0.0
  %3166 = vmatprep.subr.mxu0 0.0
  %3167 = vmatpush2.msra.mxu0 0.0
  %3168 = vmatprep.mubr.f32.mxu0 0.0
  %3169 = vmatmul.mubr.f32.gmra.mxu0 %v3094
  %v3170 = vpop.f32.mrf.mxu0
  %v3171 = vadd.f32 0.0, %v3170
  %v3172 = vpop.f32.mrf.mxu0
  %3173 = vmatprep.mubr.f32.mxu0 0.0
  %3174 = vmatmul.mubr.f32.gmra.mxu0 %v3097
  %v3175 = vpop.f32.mrf.mxu0
  %v3176 = vadd.f32 0.0, %v3175
  %v3177 = vpop.f32.mrf.mxu0
  %3178 = vmatprep.mubr.f32.mxu0 0.0
  %3179 = vmatmul.mubr.f32.gmra.mxu0 %v3100
  %v3180 = vpop.f32.mrf.mxu0
  %v3181 = vadd.f32 0.0, %v3180
  %v3182 = vpop.f32.mrf.mxu0
  %3183 = vdwg.mxu0
  %s3184 = scalar_lea.vmem %s8, 32
  %v3185 = vld [vmem:[%s3184] sm:$0xff]
  %v3186 = vld [vmem:[%s3184 + $0x8] sm:$0xff]
  %v3187 = vld [vmem:[%s3184 + $0x10] sm:$0xff]
  %v3188 = vld [vmem:[%s3184 + $0x18] sm:$0xff]
  %v3190 = vsel %vm374, %v2874, 0
  %v3193 = vsel %vm374, %v2879, 0
  %v3196 = vsel %vm374, %v2884, 0
  %3198 = vmatprep.subr.mxu0 0.0
  %3199 = vmatpush1.msra.mxu0 0.0
  %3200 = vmatprep.subr.mxu0 0.0
  %3201 = vmatpush1.msra.mxu0 0.0
  %3202 = vmatprep.subr.mxu0 0.0
  %3203 = vmatpush1.msra.mxu0 0.0
  %3204 = vmatprep.subr.mxu0 0.0
  %3205 = vmatpush1.msra.mxu0 0.0
  %3206 = vmatprep.subr.mxu0 0.0
  %3207 = vmatpush1.msra.mxu0 0.0
  %3208 = vmatprep.subr.mxu0 0.0
  %3209 = vmatpush1.msra.mxu0 0.0
  %3210 = vmatprep.subr.mxu0 0.0
  %3211 = vmatpush1.msra.mxu0 0.0
  %3212 = vmatprep.subr.mxu0 0.0
  %3213 = vmatpush1.msra.mxu0 0.0
  %3214 = vmatprep.subr.mxu0 0.0
  %3215 = vmatpush1.msra.mxu0 0.0
  %3216 = vmatprep.subr.mxu0 0.0
  %3217 = vmatpush1.msra.mxu0 0.0
  %3218 = vmatprep.subr.mxu0 0.0
  %3219 = vmatpush1.msra.mxu0 0.0
  %3220 = vmatprep.subr.mxu0 0.0
  %3221 = vmatpush1.msra.mxu0 0.0
  %3222 = vmatprep.subr.mxu0 0.0
  %3223 = vmatpush1.msra.mxu0 0.0
  %3224 = vmatprep.subr.mxu0 0.0
  %3225 = vmatpush1.msra.mxu0 0.0
  %3226 = vmatprep.subr.mxu0 0.0
  %3227 = vmatpush1.msra.mxu0 0.0
  %3228 = vmatprep.subr.mxu0 0.0
  %3229 = vmatpush1.msra.mxu0 %v3185
  %3230 = vmatprep.subr.mxu0 0.0
  %3231 = vmatpush2.msra.mxu0 0.0
  %3232 = vmatprep.subr.mxu0 0.0
  %3233 = vmatpush2.msra.mxu0 0.0
  %3234 = vmatprep.subr.mxu0 0.0
  %3235 = vmatpush2.msra.mxu0 0.0
  %3236 = vmatprep.subr.mxu0 0.0
  %3237 = vmatpush2.msra.mxu0 0.0
  %3238 = vmatprep.subr.mxu0 0.0
  %3239 = vmatpush2.msra.mxu0 0.0
  %3240 = vmatprep.subr.mxu0 0.0
  %3241 = vmatpush2.msra.mxu0 0.0
  %3242 = vmatprep.subr.mxu0 0.0
  %3243 = vmatpush2.msra.mxu0 0.0
  %3244 = vmatprep.subr.mxu0 0.0
  %3245 = vmatpush2.msra.mxu0 0.0
  %3246 = vmatprep.subr.mxu0 0.0
  %3247 = vmatpush2.msra.mxu0 0.0
  %3248 = vmatprep.subr.mxu0 0.0
  %3249 = vmatpush2.msra.mxu0 0.0
  %3250 = vmatprep.subr.mxu0 0.0
  %3251 = vmatpush2.msra.mxu0 0.0
  %3252 = vmatprep.subr.mxu0 0.0
  %3253 = vmatpush2.msra.mxu0 0.0
  %3254 = vmatprep.subr.mxu0 0.0
  %3255 = vmatpush2.msra.mxu0 0.0
  %3256 = vmatprep.subr.mxu0 0.0
  %3257 = vmatpush2.msra.mxu0 0.0
  %3258 = vmatprep.subr.mxu0 0.0
  %3259 = vmatpush2.msra.mxu0 0.0
  %3260 = vmatprep.subr.mxu0 0.0
  %3261 = vmatpush2.msra.mxu0 0.0
  %3262 = vmatprep.mubr.f32.mxu0 0.0
  %3263 = vmatmul.mubr.f32.gmra.mxu0 %v3190
  %v3264 = vpop.f32.mrf.mxu0
  %v3265 = vadd.f32 0.0, %v3264
  %v3266 = vpop.f32.mrf.mxu0
  %3267 = vmatprep.mubr.f32.mxu0 0.0
  %3268 = vmatmul.mubr.f32.gmra.mxu0 %v3193
  %v3269 = vpop.f32.mrf.mxu0
  %v3270 = vadd.f32 0.0, %v3269
  %v3271 = vpop.f32.mrf.mxu0
  %3272 = vmatprep.mubr.f32.mxu0 0.0
  %3273 = vmatmul.mubr.f32.gmra.mxu0 %v3196
  %v3274 = vpop.f32.mrf.mxu0
  %v3275 = vadd.f32 0.0, %v3274
  %v3276 = vpop.f32.mrf.mxu0
  %3277 = vdwg.mxu0
  %v3279 = vsel %vm374, %v2973, 0
  %v3282 = vsel %vm374, %v2978, 0
  %v3285 = vsel %vm374, %v2983, 0
  %3287 = vmatprep.subr.mxu0 0.0
  %3288 = vmatpush1.msra.mxu0 0.0
  %3289 = vmatprep.subr.mxu0 0.0
  %3290 = vmatpush1.msra.mxu0 0.0
  %3291 = vmatprep.subr.mxu0 0.0
  %3292 = vmatpush1.msra.mxu0 0.0
  %3293 = vmatprep.subr.mxu0 0.0
  %3294 = vmatpush1.msra.mxu0 0.0
  %3295 = vmatprep.subr.mxu0 0.0
  %3296 = vmatpush1.msra.mxu0 0.0
  %3297 = vmatprep.subr.mxu0 0.0
  %3298 = vmatpush1.msra.mxu0 0.0
  %3299 = vmatprep.subr.mxu0 0.0
  %3300 = vmatpush1.msra.mxu0 0.0
  %3301 = vmatprep.subr.mxu0 0.0
  %3302 = vmatpush1.msra.mxu0 0.0
  %3303 = vmatprep.subr.mxu0 0.0
  %3304 = vmatpush1.msra.mxu0 0.0
  %3305 = vmatprep.subr.mxu0 0.0
  %3306 = vmatpush1.msra.mxu0 0.0
  %3307 = vmatprep.subr.mxu0 0.0
  %3308 = vmatpush1.msra.mxu0 0.0
  %3309 = vmatprep.subr.mxu0 0.0
  %3310 = vmatpush1.msra.mxu0 0.0
  %3311 = vmatprep.subr.mxu0 0.0
  %3312 = vmatpush1.msra.mxu0 0.0
  %3313 = vmatprep.subr.mxu0 0.0
  %3314 = vmatpush1.msra.mxu0 0.0
  %3315 = vmatprep.subr.mxu0 0.0
  %3316 = vmatpush1.msra.mxu0 0.0
  %3317 = vmatprep.subr.mxu0 0.0
  %3318 = vmatpush1.msra.mxu0 %v3186
  %3319 = vmatprep.subr.mxu0 0.0
  %3320 = vmatpush2.msra.mxu0 0.0
  %3321 = vmatprep.subr.mxu0 0.0
  %3322 = vmatpush2.msra.mxu0 0.0
  %3323 = vmatprep.subr.mxu0 0.0
  %3324 = vmatpush2.msra.mxu0 0.0
  %3325 = vmatprep.subr.mxu0 0.0
  %3326 = vmatpush2.msra.mxu0 0.0
  %3327 = vmatprep.subr.mxu0 0.0
  %3328 = vmatpush2.msra.mxu0 0.0
  %3329 = vmatprep.subr.mxu0 0.0
  %3330 = vmatpush2.msra.mxu0 0.0
  %3331 = vmatprep.subr.mxu0 0.0
  %3332 = vmatpush2.msra.mxu0 0.0
  %3333 = vmatprep.subr.mxu0 0.0
  %3334 = vmatpush2.msra.mxu0 0.0
  %3335 = vmatprep.subr.mxu0 0.0
  %3336 = vmatpush2.msra.mxu0 0.0
  %3337 = vmatprep.subr.mxu0 0.0
  %3338 = vmatpush2.msra.mxu0 0.0
  %3339 = vmatprep.subr.mxu0 0.0
  %3340 = vmatpush2.msra.mxu0 0.0
  %3341 = vmatprep.subr.mxu0 0.0
  %3342 = vmatpush2.msra.mxu0 0.0
  %3343 = vmatprep.subr.mxu0 0.0
  %3344 = vmatpush2.msra.mxu0 0.0
  %3345 = vmatprep.subr.mxu0 0.0
  %3346 = vmatpush2.msra.mxu0 0.0
  %3347 = vmatprep.subr.mxu0 0.0
  %3348 = vmatpush2.msra.mxu0 0.0
  %3349 = vmatprep.subr.mxu0 0.0
  %3350 = vmatpush2.msra.mxu0 0.0
  %3351 = vmatprep.mubr.f32.mxu0 0.0
  %3352 = vmatmul.mubr.f32.gmra.mxu0 %v3279
  %v3353 = vpop.f32.mrf.mxu0
  %v3354 = vadd.f32 0.0, %v3353
  %v3355 = vpop.f32.mrf.mxu0
  %3356 = vmatprep.mubr.f32.mxu0 0.0
  %3357 = vmatmul.mubr.f32.gmra.mxu0 %v3282
  %v3358 = vpop.f32.mrf.mxu0
  %v3359 = vadd.f32 0.0, %v3358
  %v3360 = vpop.f32.mrf.mxu0
  %3361 = vmatprep.mubr.f32.mxu0 0.0
  %3362 = vmatmul.mubr.f32.gmra.mxu0 %v3285
  %v3363 = vpop.f32.mrf.mxu0
  %v3364 = vadd.f32 0.0, %v3363
  %v3365 = vpop.f32.mrf.mxu0
  %3366 = vdwg.mxu0
  %v3368 = vsel %vm374, %v3072, 0
  %v3371 = vsel %vm374, %v3077, 0
  %v3374 = vsel %vm374, %v3082, 0
  %3376 = vmatprep.subr.mxu0 0.0
  %3377 = vmatpush1.msra.mxu0 0.0
  %3378 = vmatprep.subr.mxu0 0.0
  %3379 = vmatpush1.msra.mxu0 0.0
  %3380 = vmatprep.subr.mxu0 0.0
  %3381 = vmatpush1.msra.mxu0 0.0
  %3382 = vmatprep.subr.mxu0 0.0
  %3383 = vmatpush1.msra.mxu0 0.0
  %3384 = vmatprep.subr.mxu0 0.0
  %3385 = vmatpush1.msra.mxu0 0.0
  %3386 = vmatprep.subr.mxu0 0.0
  %3387 = vmatpush1.msra.mxu0 0.0
  %3388 = vmatprep.subr.mxu0 0.0
  %3389 = vmatpush1.msra.mxu0 0.0
  %3390 = vmatprep.subr.mxu0 0.0
  %3391 = vmatpush1.msra.mxu0 0.0
  %3392 = vmatprep.subr.mxu0 0.0
  %3393 = vmatpush1.msra.mxu0 0.0
  %3394 = vmatprep.subr.mxu0 0.0
  %3395 = vmatpush1.msra.mxu0 0.0
  %3396 = vmatprep.subr.mxu0 0.0
  %3397 = vmatpush1.msra.mxu0 0.0
  %3398 = vmatprep.subr.mxu0 0.0
  %3399 = vmatpush1.msra.mxu0 0.0
  %3400 = vmatprep.subr.mxu0 0.0
  %3401 = vmatpush1.msra.mxu0 0.0
  %3402 = vmatprep.subr.mxu0 0.0
  %3403 = vmatpush1.msra.mxu0 0.0
  %3404 = vmatprep.subr.mxu0 0.0
  %3405 = vmatpush1.msra.mxu0 0.0
  %3406 = vmatprep.subr.mxu0 0.0
  %3407 = vmatpush1.msra.mxu0 %v3187
  %3408 = vmatprep.subr.mxu0 0.0
  %3409 = vmatpush2.msra.mxu0 0.0
  %3410 = vmatprep.subr.mxu0 0.0
  %3411 = vmatpush2.msra.mxu0 0.0
  %3412 = vmatprep.subr.mxu0 0.0
  %3413 = vmatpush2.msra.mxu0 0.0
  %3414 = vmatprep.subr.mxu0 0.0
  %3415 = vmatpush2.msra.mxu0 0.0
  %3416 = vmatprep.subr.mxu0 0.0
  %3417 = vmatpush2.msra.mxu0 0.0
  %3418 = vmatprep.subr.mxu0 0.0
  %3419 = vmatpush2.msra.mxu0 0.0
  %3420 = vmatprep.subr.mxu0 0.0
  %3421 = vmatpush2.msra.mxu0 0.0
  %3422 = vmatprep.subr.mxu0 0.0
  %3423 = vmatpush2.msra.mxu0 0.0
  %3424 = vmatprep.subr.mxu0 0.0
  %3425 = vmatpush2.msra.mxu0 0.0
  %3426 = vmatprep.subr.mxu0 0.0
  %3427 = vmatpush2.msra.mxu0 0.0
  %3428 = vmatprep.subr.mxu0 0.0
  %3429 = vmatpush2.msra.mxu0 0.0
  %3430 = vmatprep.subr.mxu0 0.0
  %3431 = vmatpush2.msra.mxu0 0.0
  %3432 = vmatprep.subr.mxu0 0.0
  %3433 = vmatpush2.msra.mxu0 0.0
  %3434 = vmatprep.subr.mxu0 0.0
  %3435 = vmatpush2.msra.mxu0 0.0
  %3436 = vmatprep.subr.mxu0 0.0
  %3437 = vmatpush2.msra.mxu0 0.0
  %3438 = vmatprep.subr.mxu0 0.0
  %3439 = vmatpush2.msra.mxu0 0.0
  %3440 = vmatprep.mubr.f32.mxu0 0.0
  %3441 = vmatmul.mubr.f32.gmra.mxu0 %v3368
  %v3442 = vpop.f32.mrf.mxu0
  %v3443 = vadd.f32 0.0, %v3442
  %v3444 = vpop.f32.mrf.mxu0
  %3445 = vmatprep.mubr.f32.mxu0 0.0
  %3446 = vmatmul.mubr.f32.gmra.mxu0 %v3371
  %v3447 = vpop.f32.mrf.mxu0
  %v3448 = vadd.f32 0.0, %v3447
  %v3449 = vpop.f32.mrf.mxu0
  %3450 = vmatprep.mubr.f32.mxu0 0.0
  %3451 = vmatmul.mubr.f32.gmra.mxu0 %v3374
  %v3452 = vpop.f32.mrf.mxu0
  %v3453 = vadd.f32 0.0, %v3452
  %v3454 = vpop.f32.mrf.mxu0
  %3455 = vdwg.mxu0
  %v3457 = vsel %vm374, %v3171, 0
  %v3460 = vsel %vm374, %v3176, 0
  %v3463 = vsel %vm374, %v3181, 0
  %3465 = vmatprep.subr.mxu0 0.0
  %3466 = vmatpush1.msra.mxu0 0.0
  %3467 = vmatprep.subr.mxu0 0.0
  %3468 = vmatpush1.msra.mxu0 0.0
  %3469 = vmatprep.subr.mxu0 0.0
  %3470 = vmatpush1.msra.mxu0 0.0
  %3471 = vmatprep.subr.mxu0 0.0
  %3472 = vmatpush1.msra.mxu0 0.0
  %3473 = vmatprep.subr.mxu0 0.0
  %3474 = vmatpush1.msra.mxu0 0.0
  %3475 = vmatprep.subr.mxu0 0.0
  %3476 = vmatpush1.msra.mxu0 0.0
  %3477 = vmatprep.subr.mxu0 0.0
  %3478 = vmatpush1.msra.mxu0 0.0
  %3479 = vmatprep.subr.mxu0 0.0
  %3480 = vmatpush1.msra.mxu0 0.0
  %3481 = vmatprep.subr.mxu0 0.0
  %3482 = vmatpush1.msra.mxu0 0.0
  %3483 = vmatprep.subr.mxu0 0.0
  %3484 = vmatpush1.msra.mxu0 0.0
  %3485 = vmatprep.subr.mxu0 0.0
  %3486 = vmatpush1.msra.mxu0 0.0
  %3487 = vmatprep.subr.mxu0 0.0
  %3488 = vmatpush1.msra.mxu0 0.0
  %3489 = vmatprep.subr.mxu0 0.0
  %3490 = vmatpush1.msra.mxu0 0.0
  %3491 = vmatprep.subr.mxu0 0.0
  %3492 = vmatpush1.msra.mxu0 0.0
  %3493 = vmatprep.subr.mxu0 0.0
  %3494 = vmatpush1.msra.mxu0 0.0
  %3495 = vmatprep.subr.mxu0 0.0
  %3496 = vmatpush1.msra.mxu0 %v3188
  %3497 = vmatprep.subr.mxu0 0.0
  %3498 = vmatpush2.msra.mxu0 0.0
  %3499 = vmatprep.subr.mxu0 0.0
  %3500 = vmatpush2.msra.mxu0 0.0
  %3501 = vmatprep.subr.mxu0 0.0
  %3502 = vmatpush2.msra.mxu0 0.0
  %3503 = vmatprep.subr.mxu0 0.0
  %3504 = vmatpush2.msra.mxu0 0.0
  %3505 = vmatprep.subr.mxu0 0.0
  %3506 = vmatpush2.msra.mxu0 0.0
  %3507 = vmatprep.subr.mxu0 0.0
  %3508 = vmatpush2.msra.mxu0 0.0
  %3509 = vmatprep.subr.mxu0 0.0
  %3510 = vmatpush2.msra.mxu0 0.0
  %3511 = vmatprep.subr.mxu0 0.0
  %3512 = vmatpush2.msra.mxu0 0.0
  %3513 = vmatprep.subr.mxu0 0.0
  %3514 = vmatpush2.msra.mxu0 0.0
  %3515 = vmatprep.subr.mxu0 0.0
  %3516 = vmatpush2.msra.mxu0 0.0
  %3517 = vmatprep.subr.mxu0 0.0
  %3518 = vmatpush2.msra.mxu0 0.0
  %3519 = vmatprep.subr.mxu0 0.0
  %3520 = vmatpush2.msra.mxu0 0.0
  %3521 = vmatprep.subr.mxu0 0.0
  %3522 = vmatpush2.msra.mxu0 0.0
  %3523 = vmatprep.subr.mxu0 0.0
  %3524 = vmatpush2.msra.mxu0 0.0
  %3525 = vmatprep.subr.mxu0 0.0
  %3526 = vmatpush2.msra.mxu0 0.0
  %3527 = vmatprep.subr.mxu0 0.0
  %3528 = vmatpush2.msra.mxu0 0.0
  %3529 = vmatprep.mubr.f32.mxu0 0.0
  %3530 = vmatmul.mubr.f32.gmra.mxu0 %v3457
  %v3531 = vpop.f32.mrf.mxu0
  %v3532 = vadd.f32 0.0, %v3531
  %v3533 = vpop.f32.mrf.mxu0
  %3534 = vmatprep.mubr.f32.mxu0 0.0
  %3535 = vmatmul.mubr.f32.gmra.mxu0 %v3460
  %v3536 = vpop.f32.mrf.mxu0
  %v3537 = vadd.f32 0.0, %v3536
  %v3538 = vpop.f32.mrf.mxu0
  %3539 = vmatprep.mubr.f32.mxu0 0.0
  %3540 = vmatmul.mubr.f32.gmra.mxu0 %v3463
  %v3541 = vpop.f32.mrf.mxu0
  %v3542 = vadd.f32 0.0, %v3541
  %v3543 = vpop.f32.mrf.mxu0
  %3544 = vdwg.mxu0
  %v3545 = vsel %vm187, %v3265, 0.0
  %v3546 = vsel %vm187, %v3354, 0.0
  %v3547 = vadd.f32 %v3545, %v3546
  %v3548 = vsel %vm187, %v3443, 0.0
  %v3549 = vadd.f32 %v3547, %v3548
  %v3550 = vsel %vm187, %v3532, 0.0
  %v3551 = vadd.f32 %v3549, %v3550
  %v3552 = vsel %vm187, %v3270, 0.0
  %v3553 = vsel %vm187, %v3359, 0.0
  %v3554 = vadd.f32 %v3552, %v3553
  %v3555 = vsel %vm187, %v3448, 0.0
  %v3556 = vadd.f32 %v3554, %v3555
  %v3557 = vsel %vm187, %v3537, 0.0
  %v3558 = vadd.f32 %v3556, %v3557
  %v3559 = vsel %vm194, %v3275, 0.0
  %v3560 = vsel %vm194, %v3364, 0.0
  %v3561 = vadd.f32 %v3559, %v3560
  %v3562 = vsel %vm194, %v3453, 0.0
  %v3563 = vadd.f32 %v3561, %v3562
  %v3564 = vsel %vm194, %v3542, 0.0
  %v3565 = vadd.f32 %v3563, %v3564
  %v3566 = vadd.f32 %v2053, %v3551
  %v3567 = vadd.f32 %v2054, %v3558
  %v3568 = vadd.f32 %v2055, %v3565
  %s3569 = scalar_lea.vmem %s9, 1
  %v3570 = vld [vmem:[%s3569] sm:$0x1]
  %v3572 = vlaneseq
  %v3573 = vshrl.u32 %v3572, 7
  %v3574 = vsub.s32 0, %v3573
  %v3575 = vrot.slane %v3570, %v3574
  %v3577 = vadd.f32 %v3566, %v3575
  %v3578 = vadd.f32 %v3567, %v3575
  %v3579 = vadd.f32 %v3568, %v3575
  %3580 = vrot.lane.b32.xlu0 %v2776, 127
  %v3581 = vpop.permute.xlu0 %3580
  %3582 = vrot.lane.b32.xlu0 %v2777, 127
  %v3583 = vpop.permute.xlu0 %3582
  %3584 = vrot.lane.b32.xlu0 %v2779, 127
  %v3585 = vpop.permute.xlu0 %3584
  %3586 = vrot.lane.b32.xlu0 %v2780, 127
  %v3587 = vpop.permute.xlu0 %3586
  %3588 = vrot.lane.b32.xlu0 %v2782, 127
  %v3589 = vpop.permute.xlu0 %3588
  %3590 = vrot.lane.b32.xlu0 %v2783, 127
  %v3591 = vpop.permute.xlu0 %3590
  %3592 = vrot.lane.b32.xlu0 %v2785, 127
  %v3593 = vpop.permute.xlu0 %3592
  %3594 = vrot.lane.b32.xlu0 %v2786, 127
  %v3595 = vpop.permute.xlu0 %3594
  %vm3604 = vcmask 64513
  %v3605 = vsel %vm3604, %v3581, 0.0
  %3606 = vadd.xlane.f32.xlu0 %v3605
  %v3607 = vpop.xlane.xlu0 %3606
  %vm3608 = vcmask 57344
  %v3609 = vsel %vm3608, %v3583, 0.0
  %3610 = vadd.xlane.f32.xlu0 %v3609
  %v3611 = vpop.xlane.xlu0 %3610
  %v3612 = vsel %vm3604, %v3585, 0.0
  %3613 = vadd.xlane.f32.xlu0 %v3612
  %v3614 = vpop.xlane.xlu0 %3613
  %v3615 = vsel %vm3608, %v3587, 0.0
  %3616 = vadd.xlane.f32.xlu0 %v3615
  %v3617 = vpop.xlane.xlu0 %3616
  %v3618 = vsel %vm3604, %v3589, 0.0
  %3619 = vadd.xlane.f32.xlu0 %v3618
  %v3620 = vpop.xlane.xlu0 %3619
  %v3621 = vsel %vm3608, %v3591, 0.0
  %3622 = vadd.xlane.f32.xlu0 %v3621
  %v3623 = vpop.xlane.xlu0 %3622
  %v3624 = vsel %vm3604, %v3593, 0.0
  %3625 = vadd.xlane.f32.xlu0 %v3624
  %v3626 = vpop.xlane.xlu0 %3625
  %v3627 = vsel %vm3608, %v3595, 0.0
  %3628 = vadd.xlane.f32.xlu0 %v3627
  %v3629 = vpop.xlane.xlu0 %3628
  %v3630 = vrcp.pop %v3607
  %v3631 = vrcp.pop %v3611
  %v3632 = vrcp.pop %v3614
  %v3633 = vrcp.pop %v3617
  %v3634 = vrcp.pop %v3620
  %v3635 = vrcp.pop %v3623
  %v3636 = vrcp.pop %v3626
  %v3637 = vrcp.pop %v3629
  %v3638 = vmul.f32 %v2776, %v3630
  %v3639 = vmul.f32 %v2777, %v3631
  %v3640 = vmul.f32 %v2779, %v3632
  %v3641 = vmul.f32 %v2780, %v3633
  %v3642 = vmul.f32 %v2782, %v3634
  %v3643 = vmul.f32 %v2783, %v3635
  %v3644 = vmul.f32 %v2785, %v3636
  %v3645 = vmul.f32 %v2786, %v3637
  %vm3654 = vcmask 1046528
  %v3655 = vrot.slane %v3638, 1
  %v3656 = vrot.slane %v3639, 1
  %v3657 = vsel %vm3654, %v3655, %v3656
  %v3658 = vrot.slane %v3640, 1
  %v3659 = vrot.slane %v3641, 1
  %v3660 = vsel %vm3654, %v3658, %v3659
  %v3661 = vrot.slane %v3642, 1
  %v3662 = vrot.slane %v3643, 1
  %v3663 = vsel %vm3654, %v3661, %v3662
  %v3664 = vrot.slane %v3644, 1
  %v3665 = vrot.slane %v3645, 1
  %v3666 = vsel %vm3654, %v3664, %v3665
  %vm3671 = vcmask 72712
  %v3672 = vsel %vm3671, %v3657, 0.0
  %v3673 = vrot.slane %v3672, 4
  %v3674 = vadd.f32 %v3672, %v3673
  %v3675 = vrot.slane %v3674, 2
  %v3676 = vadd.f32 %v3674, %v3675
  %v3677 = vrot.slane %v3676, 1
  %v3678 = vadd.f32 %v3676, %v3677
  %v3679 = vsel %vm3671, %v3660, 0.0
  %v3680 = vrot.slane %v3679, 4
  %v3681 = vadd.f32 %v3679, %v3680
  %v3682 = vrot.slane %v3681, 2
  %v3683 = vadd.f32 %v3681, %v3682
  %v3684 = vrot.slane %v3683, 1
  %v3685 = vadd.f32 %v3683, %v3684
  %v3686 = vsel %vm3671, %v3663, 0.0
  %v3687 = vrot.slane %v3686, 4
  %v3688 = vadd.f32 %v3686, %v3687
  %v3689 = vrot.slane %v3688, 2
  %v3690 = vadd.f32 %v3688, %v3689
  %v3691 = vrot.slane %v3690, 1
  %v3692 = vadd.f32 %v3690, %v3691
  %v3693 = vsel %vm3671, %v3666, 0.0
  %v3694 = vrot.slane %v3693, 4
  %v3695 = vadd.f32 %v3693, %v3694
  %v3696 = vrot.slane %v3695, 2
  %v3697 = vadd.f32 %v3695, %v3696
  %v3698 = vrot.slane %v3697, 1
  %v3699 = vadd.f32 %v3697, %v3698
  %3701 = vrot.lane.b32.xlu0 %v3678, 127
  %v3702 = vpop.permute.xlu0 %3701
  %3705 = vrot.lane.b32.xlu0 %v3685, 7
  %v3706 = vpop.permute.xlu0 %3705
  %3709 = vrot.lane.b32.xlu0 %v3692, 15
  %v3710 = vpop.permute.xlu0 %3709
  %3713 = vrot.lane.b32.xlu0 %v3699, 23
  %v3714 = vpop.permute.xlu0 %3713
  %v3716 = vsel %vm374, %v3702, %v3706
  %vm3717 = vcmask 130048
  %v3718 = vsel %vm3717, %v3716, %v3710
  %vm3719 = vcmask 195584
  %v3720 = vsel %vm3719, %v3718, %v3714
  %3721 = vrot.lane.b32.xlu0 %v2777, 118
  %v3722 = vpop.permute.xlu0 %3721
  %3723 = vrot.lane.b32.xlu0 %v2778, 118
  %v3724 = vpop.permute.xlu0 %3723
  %3725 = vrot.lane.b32.xlu0 %v2780, 118
  %v3726 = vpop.permute.xlu0 %3725
  %3727 = vrot.lane.b32.xlu0 %v2781, 118
  %v3728 = vpop.permute.xlu0 %3727
  %3729 = vrot.lane.b32.xlu0 %v2783, 118
  %v3730 = vpop.permute.xlu0 %3729
  %3731 = vrot.lane.b32.xlu0 %v2784, 118
  %v3732 = vpop.permute.xlu0 %3731
  %3733 = vrot.lane.b32.xlu0 %v2786, 118
  %v3734 = vpop.permute.xlu0 %3733
  %3735 = vrot.lane.b32.xlu0 %v2787, 118
  %v3736 = vpop.permute.xlu0 %3735
  %vm3745 = vcmask 64514
  %v3746 = vsel %vm3745, %v3722, 0.0
  %3747 = vadd.xlane.f32.xlu0 %v3746
  %v3748 = vpop.xlane.xlu0 %3747
  %vm3749 = vcmask 58368
  %v3750 = vsel %vm3749, %v3724, 0.0
  %3751 = vadd.xlane.f32.xlu0 %v3750
  %v3752 = vpop.xlane.xlu0 %3751
  %v3753 = vsel %vm3745, %v3726, 0.0
  %3754 = vadd.xlane.f32.xlu0 %v3753
  %v3755 = vpop.xlane.xlu0 %3754
  %v3756 = vsel %vm3749, %v3728, 0.0
  %3757 = vadd.xlane.f32.xlu0 %v3756
  %v3758 = vpop.xlane.xlu0 %3757
  %v3759 = vsel %vm3745, %v3730, 0.0
  %3760 = vadd.xlane.f32.xlu0 %v3759
  %v3761 = vpop.xlane.xlu0 %3760
  %v3762 = vsel %vm3749, %v3732, 0.0
  %3763 = vadd.xlane.f32.xlu0 %v3762
  %v3764 = vpop.xlane.xlu0 %3763
  %v3765 = vsel %vm3745, %v3734, 0.0
  %3766 = vadd.xlane.f32.xlu0 %v3765
  %v3767 = vpop.xlane.xlu0 %3766
  %v3768 = vsel %vm3749, %v3736, 0.0
  %3769 = vadd.xlane.f32.xlu0 %v3768
  %v3770 = vpop.xlane.xlu0 %3769
  %v3771 = vrcp.pop %v3748
  %v3772 = vrcp.pop %v3752
  %v3773 = vrcp.pop %v3755
  %v3774 = vrcp.pop %v3758
  %v3775 = vrcp.pop %v3761
  %v3776 = vrcp.pop %v3764
  %v3777 = vrcp.pop %v3767
  %v3778 = vrcp.pop %v3770
  %v3779 = vmul.f32 %v2777, %v3771
  %v3780 = vmul.f32 %v2778, %v3772
  %v3781 = vmul.f32 %v2780, %v3773
  %v3782 = vmul.f32 %v2781, %v3774
  %v3783 = vmul.f32 %v2783, %v3775
  %v3784 = vmul.f32 %v2784, %v3776
  %v3785 = vmul.f32 %v2786, %v3777
  %v3786 = vmul.f32 %v2787, %v3778
  %vm3795 = vcmask 1045504
  %v3796 = vrot.slane %v3779, 2
  %v3797 = vrot.slane %v3780, 2
  %v3798 = vsel %vm3795, %v3796, %v3797
  %v3799 = vrot.slane %v3781, 2
  %v3800 = vrot.slane %v3782, 2
  %v3801 = vsel %vm3795, %v3799, %v3800
  %v3802 = vrot.slane %v3783, 2
  %v3803 = vrot.slane %v3784, 2
  %v3804 = vsel %vm3795, %v3802, %v3803
  %v3805 = vrot.slane %v3785, 2
  %v3806 = vrot.slane %v3786, 2
  %v3807 = vsel %vm3795, %v3805, %v3806
  %vm3812 = vcmask 146512
  %v3813 = vsel %vm3812, %v3798, 0.0
  %v3814 = vrot.slane %v3813, 4
  %v3815 = vadd.f32 %v3813, %v3814
  %v3816 = vrot.slane %v3815, 2
  %v3817 = vadd.f32 %v3815, %v3816
  %v3818 = vrot.slane %v3817, 1
  %v3819 = vadd.f32 %v3817, %v3818
  %v3820 = vsel %vm3812, %v3801, 0.0
  %v3821 = vrot.slane %v3820, 4
  %v3822 = vadd.f32 %v3820, %v3821
  %v3823 = vrot.slane %v3822, 2
  %v3824 = vadd.f32 %v3822, %v3823
  %v3825 = vrot.slane %v3824, 1
  %v3826 = vadd.f32 %v3824, %v3825
  %v3827 = vsel %vm3812, %v3804, 0.0
  %v3828 = vrot.slane %v3827, 4
  %v3829 = vadd.f32 %v3827, %v3828
  %v3830 = vrot.slane %v3829, 2
  %v3831 = vadd.f32 %v3829, %v3830
  %v3832 = vrot.slane %v3831, 1
  %v3833 = vadd.f32 %v3831, %v3832
  %v3834 = vsel %vm3812, %v3807, 0.0
  %v3835 = vrot.slane %v3834, 4
  %v3836 = vadd.f32 %v3834, %v3835
  %v3837 = vrot.slane %v3836, 2
  %v3838 = vadd.f32 %v3836, %v3837
  %v3839 = vrot.slane %v3838, 1
  %v3840 = vadd.f32 %v3838, %v3839
  %3842 = vrot.lane.b32.xlu0 %v3819, 118
  %v3843 = vpop.permute.xlu0 %3842
  %3846 = vrot.lane.b32.xlu0 %v3826, 126
  %v3847 = vpop.permute.xlu0 %3846
  %3850 = vrot.lane.b32.xlu0 %v3833, 6
  %v3851 = vpop.permute.xlu0 %3850
  %3854 = vrot.lane.b32.xlu0 %v3840, 14
  %v3855 = vpop.permute.xlu0 %3854
  %v3857 = vsel %vm374, %v3843, %v3847
  %v3858 = vsel %vm3717, %v3857, %v3851
  %v3859 = vsel %vm3719, %v3858, %v3855
  %v3861 = vrot.slane %v3859, 7
  %vm3863 = vcmask 1040384
  %v3864 = vsel %vm3863, %v3720, %v3861
  %s3865 = scalar_lea.vmem %s10, 1
  %v3866 = vld [vmem:[%s3865] sm:$0x1]
  %s3867 = scalar_lea.vmem %s11, 1
  %v3868 = vld [vmem:[%s3867] sm:$0x1]
  %v3869 = vsel %vm187, %v3577, 0.0
  %3870 = vadd.xlane.f32.xlu0 %v3869
  %v3871 = vpop.xlane.xlu0 %3870
  %v3872 = vsel %vm187, %v3578, 0.0
  %3873 = vadd.xlane.f32.xlu0 %v3872
  %v3874 = vpop.xlane.xlu0 %3873
  %v3875 = vsel %vm194, %v3579, 0.0
  %3876 = vadd.xlane.f32.xlu0 %v3875
  %v3877 = vpop.xlane.xlu0 %3876
  %v3878 = vmul.f32 %v3871, %v198
  %v3879 = vmul.f32 %v3874, %v198
  %v3880 = vmul.f32 %v3877, %v198
  %v3881 = vsub.f32 %v3577, %v3878
  %v3882 = vsub.f32 %v3578, %v3879
  %v3883 = vsub.f32 %v3579, %v3880
  %v3884 = vmul.f32 %v3881, %v3881
  %v3885 = vmul.f32 %v3882, %v3882
  %v3886 = vmul.f32 %v3883, %v3883
  %v3887 = vsel %vm187, %v3884, 0.0
  %3888 = vadd.xlane.f32.xlu0 %v3887
  %v3889 = vpop.xlane.xlu0 %3888
  %v3890 = vsel %vm187, %v3885, 0.0
  %3891 = vadd.xlane.f32.xlu0 %v3890
  %v3892 = vpop.xlane.xlu0 %3891
  %v3893 = vsel %vm194, %v3886, 0.0
  %3894 = vadd.xlane.f32.xlu0 %v3893
  %v3895 = vpop.xlane.xlu0 %3894
  %v3896 = vmul.f32 %v3889, %v198
  %v3897 = vmul.f32 %v3892, %v198
  %v3898 = vmul.f32 %v3895, %v198
  %v3899 = vadd.f32 %v3896, 1e-06
  %v3900 = vadd.f32 %v3897, 1e-06
  %v3901 = vadd.f32 %v3898, 1e-06
  %v3902 = vrsqrt.pop %v3899
  %v3903 = vrsqrt.pop %v3900
  %v3904 = vrsqrt.pop %v3901
  %v3905 = vmul.f32 %v3881, %v3902
  %v3906 = vmul.f32 %v3882, %v3903
  %v3907 = vmul.f32 %v3883, %v3904
  %v3909 = vlaneseq
  %v3910 = vshrl.u32 %v3909, 7
  %v3911 = vsub.s32 0, %v3910
  %v3912 = vrot.slane %v3866, %v3911
  %v3914 = vmul.f32 %v3905, %v3912
  %v3915 = vmul.f32 %v3906, %v3912
  %v3916 = vmul.f32 %v3907, %v3912
  %v3918 = vlaneseq
  %v3919 = vshrl.u32 %v3918, 7
  %v3920 = vsub.s32 0, %v3919
  %v3921 = vrot.slane %v3868, %v3920
  %v3923 = vadd.f32 %v3914, %v3921
  %v3924 = vadd.f32 %v3915, %v3921
  %v3925 = vadd.f32 %v3916, %v3921
  %s3926 = scalar_lea.vmem %s12, 32
  %v3927 = vld [vmem:[%s3926] sm:$0xff]
  %v3928 = vld [vmem:[%s3926 + $0x8] sm:$0xff]
  %v3929 = vld [vmem:[%s3926 + $0x10] sm:$0xff]
  %v3930 = vld [vmem:[%s3926 + $0x18] sm:$0xff]
  %s3931 = scalar_lea.vmem %s13, 1
  %v3932 = vld [vmem:[%s3931] sm:$0x1]
  %v3934 = vlaneseq
  %v3935 = vshrl.u32 %v3934, 7
  %v3936 = vsub.s32 0, %v3935
  %v3937 = vrot.slane %v3932, %v3936
  %v3940 = vsel %vm187, %v3923, 0
  %v3943 = vsel %vm187, %v3924, 0
  %v3946 = vsel %vm187, %v3925, 0
  %3948 = vmatprep.subr.mxu0 0.0
  %3949 = vmatpush1.msra.mxu0 0.0
  %3950 = vmatprep.subr.mxu0 0.0
  %3951 = vmatpush1.msra.mxu0 0.0
  %3952 = vmatprep.subr.mxu0 0.0
  %3953 = vmatpush1.msra.mxu0 0.0
  %3954 = vmatprep.subr.mxu0 0.0
  %3955 = vmatpush1.msra.mxu0 0.0
  %3956 = vmatprep.subr.mxu0 0.0
  %3957 = vmatpush1.msra.mxu0 0.0
  %3958 = vmatprep.subr.mxu0 0.0
  %3959 = vmatpush1.msra.mxu0 0.0
  %3960 = vmatprep.subr.mxu0 0.0
  %3961 = vmatpush1.msra.mxu0 0.0
  %3962 = vmatprep.subr.mxu0 0.0
  %3963 = vmatpush1.msra.mxu0 0.0
  %3964 = vmatprep.subr.mxu0 0.0
  %3965 = vmatpush1.msra.mxu0 0.0
  %3966 = vmatprep.subr.mxu0 0.0
  %3967 = vmatpush1.msra.mxu0 0.0
  %3968 = vmatprep.subr.mxu0 0.0
  %3969 = vmatpush1.msra.mxu0 0.0
  %3970 = vmatprep.subr.mxu0 0.0
  %3971 = vmatpush1.msra.mxu0 0.0
  %3972 = vmatprep.subr.mxu0 0.0
  %3973 = vmatpush1.msra.mxu0 %v3930
  %3974 = vmatprep.subr.mxu0 0.0
  %3975 = vmatpush1.msra.mxu0 %v3929
  %3976 = vmatprep.subr.mxu0 0.0
  %3977 = vmatpush1.msra.mxu0 %v3928
  %3978 = vmatprep.subr.mxu0 0.0
  %3979 = vmatpush1.msra.mxu0 %v3927
  %3980 = vmatprep.subr.mxu0 0.0
  %3981 = vmatpush2.msra.mxu0 0.0
  %3982 = vmatprep.subr.mxu0 0.0
  %3983 = vmatpush2.msra.mxu0 0.0
  %3984 = vmatprep.subr.mxu0 0.0
  %3985 = vmatpush2.msra.mxu0 0.0
  %3986 = vmatprep.subr.mxu0 0.0
  %3987 = vmatpush2.msra.mxu0 0.0
  %3988 = vmatprep.subr.mxu0 0.0
  %3989 = vmatpush2.msra.mxu0 0.0
  %3990 = vmatprep.subr.mxu0 0.0
  %3991 = vmatpush2.msra.mxu0 0.0
  %3992 = vmatprep.subr.mxu0 0.0
  %3993 = vmatpush2.msra.mxu0 0.0
  %3994 = vmatprep.subr.mxu0 0.0
  %3995 = vmatpush2.msra.mxu0 0.0
  %3996 = vmatprep.subr.mxu0 0.0
  %3997 = vmatpush2.msra.mxu0 0.0
  %3998 = vmatprep.subr.mxu0 0.0
  %3999 = vmatpush2.msra.mxu0 0.0
  %4000 = vmatprep.subr.mxu0 0.0
  %4001 = vmatpush2.msra.mxu0 0.0
  %4002 = vmatprep.subr.mxu0 0.0
  %4003 = vmatpush2.msra.mxu0 0.0
  %4004 = vmatprep.subr.mxu0 0.0
  %4005 = vmatpush2.msra.mxu0 0.0
  %4006 = vmatprep.subr.mxu0 0.0
  %4007 = vmatpush2.msra.mxu0 0.0
  %4008 = vmatprep.subr.mxu0 0.0
  %4009 = vmatpush2.msra.mxu0 0.0
  %4010 = vmatprep.subr.mxu0 0.0
  %4011 = vmatpush2.msra.mxu0 0.0
  %4012 = vmatprep.mubr.f32.mxu0 0.0
  %4013 = vmatmul.mubr.f32.gmra.mxu0 %v3940
  %v4014 = vpop.f32.mrf.mxu0
  %v4015 = vadd.f32 %v3937, %v4014
  %v4016 = vpop.f32.mrf.mxu0
  %4017 = vmatprep.mubr.f32.mxu0 0.0
  %4018 = vmatmul.mubr.f32.gmra.mxu0 %v3943
  %v4019 = vpop.f32.mrf.mxu0
  %v4020 = vadd.f32 %v3937, %v4019
  %v4021 = vpop.f32.mrf.mxu0
  %4022 = vmatprep.mubr.f32.mxu0 0.0
  %4023 = vmatmul.mubr.f32.gmra.mxu0 %v3946
  %v4024 = vpop.f32.mrf.mxu0
  %v4025 = vadd.f32 %v3937, %v4024
  %v4026 = vpop.f32.mrf.mxu0
  %4027 = vdwg.mxu0
  %v4028 = vmul.f32 %v4015, 0.5
  %v4029 = vmul.f32 %v4020, 0.5
  %v4030 = vmul.f32 %v4025, 0.5
  %v4031 = vmul.f32 %v4015, 0.70710677
  %v4032 = vmul.f32 %v4020, 0.70710677
  %v4033 = vmul.f32 %v4025, 0.70710677
  %vm4034 = vcmp.ge.f32.partialorder %v4031, 0.0
  %vm4035 = vcmp.ge.f32.partialorder %v4032, 0.0
  %vm4036 = vcmp.ge.f32.partialorder %v4033, 0.0
  %v4037 = vsel %vm4034, 1.0, -1.0
  %v4038 = vsel %vm4035, 1.0, -1.0
  %v4039 = vsel %vm4036, 1.0, -1.0
  %v4040 = vand.u32 2147483647, %v4031
  %v4041 = vand.u32 2147483647, %v4032
  %v4042 = vand.u32 2147483647, %v4033
  %v4043 = vmul.f32 %v4040, 0.3275911
  %v4044 = vmul.f32 %v4041, 0.3275911
  %v4045 = vmul.f32 %v4042, 0.3275911
  %v4046 = vadd.f32 %v4043, 1.0
  %v4047 = vadd.f32 %v4044, 1.0
  %v4048 = vadd.f32 %v4045, 1.0
  %v4049 = vrcp.pop %v4046
  %v4050 = vmul.f32 1.0, %v4049
  %v4051 = vrcp.pop %v4047
  %v4052 = vmul.f32 1.0, %v4051
  %v4053 = vrcp.pop %v4048
  %v4054 = vmul.f32 1.0, %v4053
  %v4055 = vmul.f32 %v4050, 1.0614054
  %v4056 = vmul.f32 %v4052, 1.0614054
  %v4057 = vmul.f32 %v4054, 1.0614054
  %v4058 = vadd.f32 %v4055, -1.4531521
  %v4059 = vadd.f32 %v4056, -1.4531521
  %v4060 = vadd.f32 %v4057, -1.4531521
  %v4061 = vmul.f32 %v4058, %v4050
  %v4062 = vmul.f32 %v4059, %v4052
  %v4063 = vmul.f32 %v4060, %v4054
  %v4064 = vadd.f32 %v4061, 1.4214138
  %v4065 = vadd.f32 %v4062, 1.4214138
  %v4066 = vadd.f32 %v4063, 1.4214138
  %v4067 = vmul.f32 %v4064, %v4050
  %v4068 = vmul.f32 %v4065, %v4052
  %v4069 = vmul.f32 %v4066, %v4054
  %v4070 = vadd.f32 %v4067, -0.28449672
  %v4071 = vadd.f32 %v4068, -0.28449672
  %v4072 = vadd.f32 %v4069, -0.28449672
  %v4073 = vmul.f32 %v4070, %v4050
  %v4074 = vmul.f32 %v4071, %v4052
  %v4075 = vmul.f32 %v4072, %v4054
  %v4076 = vadd.f32 %v4073, 0.2548296
  %v4077 = vadd.f32 %v4074, 0.2548296
  %v4078 = vadd.f32 %v4075, 0.2548296
  %v4079 = vmul.f32 %v4076, %v4050
  %v4080 = vmul.f32 %v4077, %v4052
  %v4081 = vmul.f32 %v4078, %v4054
  %v4082 = vsub.f32 0.0, %v4040
  %v4083 = vsub.f32 0.0, %v4041
  %v4084 = vsub.f32 0.0, %v4042
  %v4085 = vmul.f32 %v4082, %v4040
  %v4086 = vmul.f32 %v4083, %v4041
  %v4087 = vmul.f32 %v4084, %v4042
  %v4088 = vmul.f32 %v4085, 1.442695
  %v4089 = vpow.pop %v4088
  %v4090 = vmul.f32 %v4086, 1.442695
  %v4091 = vpow.pop %v4090
  %v4092 = vmul.f32 %v4087, 1.442695
  %v4093 = vpow.pop %v4092
  %v4094 = vmul.f32 %v4079, %v4089
  %v4095 = vmul.f32 %v4080, %v4091
  %v4096 = vmul.f32 %v4081, %v4093
  %v4097 = vsub.f32 1.0, %v4094
  %v4098 = vsub.f32 1.0, %v4095
  %v4099 = vsub.f32 1.0, %v4096
  %v4100 = vmul.f32 %v4037, %v4097
  %v4101 = vmul.f32 %v4038, %v4098
  %v4102 = vmul.f32 %v4039, %v4099
  %v4103 = vadd.f32 %v4100, 1.0
  %v4104 = vadd.f32 %v4101, 1.0
  %v4105 = vadd.f32 %v4102, 1.0
  %v4106 = vmul.f32 %v4028, %v4103
  %v4107 = vmul.f32 %v4029, %v4104
  %v4108 = vmul.f32 %v4030, %v4105
  %s4109 = scalar_lea.vmem %s14, 128
  %v4110 = vld [vmem:[%s4109] sm:$0xff]
  %v4111 = vld [vmem:[%s4109 + $0x8] sm:$0xff]
  %v4112 = vld [vmem:[%s4109 + $0x10] sm:$0xff]
  %v4113 = vld [vmem:[%s4109 + $0x18] sm:$0xff]
  %v4114 = vld [vmem:[%s4109 + $0x20] sm:$0xff]
  %v4115 = vld [vmem:[%s4109 + $0x28] sm:$0xff]
  %v4116 = vld [vmem:[%s4109 + $0x30] sm:$0xff]
  %v4117 = vld [vmem:[%s4109 + $0x38] sm:$0xff]
  %v4118 = vld [vmem:[%s4109 + $0x40] sm:$0xff]
  %v4119 = vld [vmem:[%s4109 + $0x48] sm:$0xff]
  %v4120 = vld [vmem:[%s4109 + $0x50] sm:$0xff]
  %v4121 = vld [vmem:[%s4109 + $0x58] sm:$0xff]
  %v4122 = vld [vmem:[%s4109 + $0x60] sm:$0xff]
  %v4123 = vld [vmem:[%s4109 + $0x68] sm:$0xff]
  %v4124 = vld [vmem:[%s4109 + $0x70] sm:$0xff]
  %v4125 = vld [vmem:[%s4109 + $0x78] sm:$0xff]
  %s4126 = scalar_lea.vmem %s15, 1
  %v4127 = vld [vmem:[%s4126] sm:$0x1]
  %v4129 = vlaneseq
  %v4130 = vshrl.u32 %v4129, 7
  %v4131 = vsub.s32 0, %v4130
  %v4132 = vrot.slane %v4127, %v4131
  %4134 = vmatprep.subr.mxu0 0.0
  %4135 = vmatpush1.msra.mxu0 %v4125
  %4136 = vmatprep.subr.mxu0 0.0
  %4137 = vmatpush1.msra.mxu0 %v4124
  %4138 = vmatprep.subr.mxu0 0.0
  %4139 = vmatpush1.msra.mxu0 %v4123
  %4140 = vmatprep.subr.mxu0 0.0
  %4141 = vmatpush1.msra.mxu0 %v4122
  %4142 = vmatprep.subr.mxu0 0.0
  %4143 = vmatpush1.msra.mxu0 %v4121
  %4144 = vmatprep.subr.mxu0 0.0
  %4145 = vmatpush1.msra.mxu0 %v4120
  %4146 = vmatprep.subr.mxu0 0.0
  %4147 = vmatpush1.msra.mxu0 %v4119
  %4148 = vmatprep.subr.mxu0 0.0
  %4149 = vmatpush1.msra.mxu0 %v4118
  %4150 = vmatprep.subr.mxu0 0.0
  %4151 = vmatpush1.msra.mxu0 %v4117
  %4152 = vmatprep.subr.mxu0 0.0
  %4153 = vmatpush1.msra.mxu0 %v4116
  %4154 = vmatprep.subr.mxu0 0.0
  %4155 = vmatpush1.msra.mxu0 %v4115
  %4156 = vmatprep.subr.mxu0 0.0
  %4157 = vmatpush1.msra.mxu0 %v4114
  %4158 = vmatprep.subr.mxu0 0.0
  %4159 = vmatpush1.msra.mxu0 %v4113
  %4160 = vmatprep.subr.mxu0 0.0
  %4161 = vmatpush1.msra.mxu0 %v4112
  %4162 = vmatprep.subr.mxu0 0.0
  %4163 = vmatpush1.msra.mxu0 %v4111
  %4164 = vmatprep.subr.mxu0 0.0
  %4165 = vmatpush1.msra.mxu0 %v4110
  %4166 = vmatprep.subr.mxu0 0.0
  %4167 = vmatpush2.msra.mxu0 0.0
  %4168 = vmatprep.subr.mxu0 0.0
  %4169 = vmatpush2.msra.mxu0 0.0
  %4170 = vmatprep.subr.mxu0 0.0
  %4171 = vmatpush2.msra.mxu0 0.0
  %4172 = vmatprep.subr.mxu0 0.0
  %4173 = vmatpush2.msra.mxu0 0.0
  %4174 = vmatprep.subr.mxu0 0.0
  %4175 = vmatpush2.msra.mxu0 0.0
  %4176 = vmatprep.subr.mxu0 0.0
  %4177 = vmatpush2.msra.mxu0 0.0
  %4178 = vmatprep.subr.mxu0 0.0
  %4179 = vmatpush2.msra.mxu0 0.0
  %4180 = vmatprep.subr.mxu0 0.0
  %4181 = vmatpush2.msra.mxu0 0.0
  %4182 = vmatprep.subr.mxu0 0.0
  %4183 = vmatpush2.msra.mxu0 0.0
  %4184 = vmatprep.subr.mxu0 0.0
  %4185 = vmatpush2.msra.mxu0 0.0
  %4186 = vmatprep.subr.mxu0 0.0
  %4187 = vmatpush2.msra.mxu0 0.0
  %4188 = vmatprep.subr.mxu0 0.0
  %4189 = vmatpush2.msra.mxu0 0.0
  %4190 = vmatprep.subr.mxu0 0.0
  %4191 = vmatpush2.msra.mxu0 0.0
  %4192 = vmatprep.subr.mxu0 0.0
  %4193 = vmatpush2.msra.mxu0 0.0
  %4194 = vmatprep.subr.mxu0 0.0
  %4195 = vmatpush2.msra.mxu0 0.0
  %4196 = vmatprep.subr.mxu0 0.0
  %4197 = vmatpush2.msra.mxu0 0.0
  %4198 = vmatprep.mubr.f32.mxu0 0.0
  %4199 = vmatmul.mubr.f32.gmra.mxu0 %v4106
  %v4200 = vpop.f32.mrf.mxu0
  %v4201 = vadd.f32 %v4132, %v4200
  %v4202 = vpop.f32.mrf.mxu0
  %4203 = vmatprep.mubr.f32.mxu0 0.0
  %4204 = vmatmul.mubr.f32.gmra.mxu0 %v4107
  %v4205 = vpop.f32.mrf.mxu0
  %v4206 = vadd.f32 %v4132, %v4205
  %v4207 = vpop.f32.mrf.mxu0
  %4208 = vmatprep.mubr.f32.mxu0 0.0
  %4209 = vmatmul.mubr.f32.gmra.mxu0 %v4108
  %v4210 = vpop.f32.mrf.mxu0
  %v4211 = vpop.f32.mrf.mxu0
  %4212 = vdwg.mxu0
  %v4213 = vadd.f32 %v3577, %v4201
  %v4214 = vadd.f32 %v3578, %v4206
  %v4215 = vld [vmem:[%s16] sm:$0x1]
  %v4216 = vld [vmem:[%s17] sm:$0x1]
  %v4217 = vsel %vm187, %v4213, 0.0
  %4218 = vadd.xlane.f32.xlu0 %v4217
  %v4219 = vpop.xlane.xlu0 %4218
  %v4220 = vsel %vm187, %v4214, 0.0
  %4221 = vadd.xlane.f32.xlu0 %v4220
  %v4222 = vpop.xlane.xlu0 %4221
  %v4223 = vmul.f32 %v4219, %v198
  %v4224 = vmul.f32 %v4222, %v198
  %v4225 = vsub.f32 %v4213, %v4223
  %v4226 = vsub.f32 %v4214, %v4224
  %v4227 = vmul.f32 %v4225, %v4225
  %v4228 = vmul.f32 %v4226, %v4226
  %v4229 = vsel %vm187, %v4227, 0.0
  %4230 = vadd.xlane.f32.xlu0 %v4229
  %v4231 = vpop.xlane.xlu0 %4230
  %v4232 = vsel %vm187, %v4228, 0.0
  %4233 = vadd.xlane.f32.xlu0 %v4232
  %v4234 = vpop.xlane.xlu0 %4233
  %v4235 = vmul.f32 %v4231, %v198
  %v4236 = vmul.f32 %v4234, %v198
  %v4237 = vadd.f32 %v4235, 1e-06
  %v4238 = vadd.f32 %v4236, 1e-06
  %v4239 = vrsqrt.pop %v4237
  %v4240 = vrsqrt.pop %v4238
  %v4241 = vmul.f32 %v4225, %v4239
  %v4242 = vmul.f32 %v4226, %v4240
  %v4244 = vlaneseq
  %v4245 = vshrl.u32 %v4244, 7
  %v4246 = vsub.s32 0, %v4245
  %v4247 = vrot.slane %v4215, %v4246
  %v4249 = vmul.f32 %v4241, %v4247
  %v4250 = vmul.f32 %v4242, %v4247
  %v4252 = vlaneseq
  %v4253 = vshrl.u32 %v4252, 7
  %v4254 = vsub.s32 0, %v4253
  %v4255 = vrot.slane %v4216, %v4254
  %v4257 = vadd.f32 %v4249, %v4255
  %v4258 = vadd.f32 %v4250, %v4255
  %v4259 = vsel %vm3863, %v4257, %v4258
  %v4260 = vld [vmem:[%s18] sm:$0x3]
  %vm4261 = vcmask 15360
  %v4262 = vsel %vm4261, %v4260, 0.0
  %v4263 = vld [vmem:[%s19] sm:$0xff]
  %v4264 = vld [vmem:[%s19 + $0x8] sm:$0xff]
  %v4265 = vld [vmem:[%s19 + $0x10] sm:$0x3]
  %v4266 = vld [vmem:[%s20] sm:$0x1]
  %v4268 = vlaneseq
  %v4269 = vshrl.u32 %v4268, 7
  %v4270 = vsub.s32 0, %v4269
  %v4271 = vrot.slane %v4266, %v4270
  %v4274 = vsel %vm785, %v4262, 0
  %v4277 = vsel %vm936, %v4265, 0
  %4279 = vmatprep.subr.mxu0 0.0
  %4280 = vmatpush1.msra.mxu0 0.0
  %4281 = vmatprep.subr.mxu0 0.0
  %4282 = vmatpush1.msra.mxu0 0.0
  %4283 = vmatprep.subr.mxu0 0.0
  %4284 = vmatpush1.msra.mxu0 0.0
  %4285 = vmatprep.subr.mxu0 0.0
  %4286 = vmatpush1.msra.mxu0 0.0
  %4287 = vmatprep.subr.mxu0 0.0
  %4288 = vmatpush1.msra.mxu0 0.0
  %4289 = vmatprep.subr.mxu0 0.0
  %4290 = vmatpush1.msra.mxu0 0.0
  %4291 = vmatprep.subr.mxu0 0.0
  %4292 = vmatpush1.msra.mxu0 0.0
  %4293 = vmatprep.subr.mxu0 0.0
  %4294 = vmatpush1.msra.mxu0 0.0
  %4295 = vmatprep.subr.mxu0 0.0
  %4296 = vmatpush1.msra.mxu0 0.0
  %4297 = vmatprep.subr.mxu0 0.0
  %4298 = vmatpush1.msra.mxu0 0.0
  %4299 = vmatprep.subr.mxu0 0.0
  %4300 = vmatpush1.msra.mxu0 0.0
  %4301 = vmatprep.subr.mxu0 0.0
  %4302 = vmatpush1.msra.mxu0 0.0
  %4303 = vmatprep.subr.mxu0 0.0
  %4304 = vmatpush1.msra.mxu0 0.0
  %4305 = vmatprep.subr.mxu0 0.0
  %4306 = vmatpush1.msra.mxu0 %v4277
  %4307 = vmatprep.subr.mxu0 0.0
  %4308 = vmatpush1.msra.mxu0 %v4264
  %4309 = vmatprep.subr.mxu0 0.0
  %4310 = vmatpush1.msra.mxu0 %v4263
  %4311 = vmatprep.subr.mxu0 0.0
  %4312 = vmatpush2.msra.mxu0 0.0
  %4313 = vmatprep.subr.mxu0 0.0
  %4314 = vmatpush2.msra.mxu0 0.0
  %4315 = vmatprep.subr.mxu0 0.0
  %4316 = vmatpush2.msra.mxu0 0.0
  %4317 = vmatprep.subr.mxu0 0.0
  %4318 = vmatpush2.msra.mxu0 0.0
  %4319 = vmatprep.subr.mxu0 0.0
  %4320 = vmatpush2.msra.mxu0 0.0
  %4321 = vmatprep.subr.mxu0 0.0
  %4322 = vmatpush2.msra.mxu0 0.0
  %4323 = vmatprep.subr.mxu0 0.0
  %4324 = vmatpush2.msra.mxu0 0.0
  %4325 = vmatprep.subr.mxu0 0.0
  %4326 = vmatpush2.msra.mxu0 0.0
  %4327 = vmatprep.subr.mxu0 0.0
  %4328 = vmatpush2.msra.mxu0 0.0
  %4329 = vmatprep.subr.mxu0 0.0
  %4330 = vmatpush2.msra.mxu0 0.0
  %4331 = vmatprep.subr.mxu0 0.0
  %4332 = vmatpush2.msra.mxu0 0.0
  %4333 = vmatprep.subr.mxu0 0.0
  %4334 = vmatpush2.msra.mxu0 0.0
  %4335 = vmatprep.subr.mxu0 0.0
  %4336 = vmatpush2.msra.mxu0 0.0
  %4337 = vmatprep.subr.mxu0 0.0
  %4338 = vmatpush2.msra.mxu0 0.0
  %4339 = vmatprep.subr.mxu0 0.0
  %4340 = vmatpush2.msra.mxu0 0.0
  %4341 = vmatprep.subr.mxu0 0.0
  %4342 = vmatpush2.msra.mxu0 0.0
  %4343 = vmatprep.mubr.f32.mxu0 0.0
  %4344 = vmatmul.mubr.f32.gmra.mxu0 %v4274
  %v4345 = vpop.f32.mrf.mxu0
  %v4346 = vadd.f32 %v4271, %v4345
  %v4347 = vpop.f32.mrf.mxu0
  %4348 = vdwg.mxu0
  %v4349 = vsub.f32 0.0, %v4346
  %v4350 = vmul.f32 %v4349, 1.442695
  %v4351 = vpow.pop %v4350
  %v4352 = vadd.f32 %v4351, 1.0
  %v4353 = vrcp.pop %v4352
  %v4354 = vmul.f32 1.0, %v4353
  %v4355 = vtanh.pop %v4346
  %v4356 = vmul.f32 %v4354, 0.0
  %4358 = vrot.lane.b32.xlu0 %v4355, 96
  %v4359 = vpop.permute.xlu0 %4358
  %v4361 = vmul.f32 %v4354, %v4359
  %4363 = vrot.lane.b32.xlu0 %v4361, 16
  %v4364 = vpop.permute.xlu0 %4363
  %v4366 = vadd.f32 %v4356, %v4364
  %v4367 = vtanh.pop %v4366
  %4369 = vrot.lane.b32.xlu0 %v4367, 32
  %v4370 = vpop.permute.xlu0 %4369
  %v4372 = vmul.f32 %v4354, %v4370
  %4374 = vrot.lane.b32.xlu0 %v4372, 80
  %v4375 = vpop.permute.xlu0 %4374
  %v4377 = vsel %vm3717, %v4375, 0.0
  %v4378 = vld [vmem:[%s21] sm:$0xff]
  %v4379 = vld [vmem:[%s21 + $0x8] sm:$0xff]
  %v4380 = vld [vmem:[%s21 + $0x10] sm:$0xff]
  %v4381 = vld [vmem:[%s21 + $0x18] sm:$0xff]
  %v4382 = vld [vmem:[%s22] sm:$0x1]
  %v4384 = vlaneseq
  %v4385 = vshrl.u32 %v4384, 7
  %v4386 = vsub.s32 0, %v4385
  %v4387 = vrot.slane %v4382, %v4386
  %v4390 = vsel %vm187, %v4377, 0
  %4392 = vmatprep.subr.mxu0 0.0
  %4393 = vmatpush1.msra.mxu0 0.0
  %4394 = vmatprep.subr.mxu0 0.0
  %4395 = vmatpush1.msra.mxu0 0.0
  %4396 = vmatprep.subr.mxu0 0.0
  %4397 = vmatpush1.msra.mxu0 0.0
  %4398 = vmatprep.subr.mxu0 0.0
  %4399 = vmatpush1.msra.mxu0 0.0
  %4400 = vmatprep.subr.mxu0 0.0
  %4401 = vmatpush1.msra.mxu0 0.0
  %4402 = vmatprep.subr.mxu0 0.0
  %4403 = vmatpush1.msra.mxu0 0.0
  %4404 = vmatprep.subr.mxu0 0.0
  %4405 = vmatpush1.msra.mxu0 0.0
  %4406 = vmatprep.subr.mxu0 0.0
  %4407 = vmatpush1.msra.mxu0 0.0
  %4408 = vmatprep.subr.mxu0 0.0
  %4409 = vmatpush1.msra.mxu0 0.0
  %4410 = vmatprep.subr.mxu0 0.0
  %4411 = vmatpush1.msra.mxu0 0.0
  %4412 = vmatprep.subr.mxu0 0.0
  %4413 = vmatpush1.msra.mxu0 0.0
  %4414 = vmatprep.subr.mxu0 0.0
  %4415 = vmatpush1.msra.mxu0 0.0
  %4416 = vmatprep.subr.mxu0 0.0
  %4417 = vmatpush1.msra.mxu0 %v4381
  %4418 = vmatprep.subr.mxu0 0.0
  %4419 = vmatpush1.msra.mxu0 %v4380
  %4420 = vmatprep.subr.mxu0 0.0
  %4421 = vmatpush1.msra.mxu0 %v4379
  %4422 = vmatprep.subr.mxu0 0.0
  %4423 = vmatpush1.msra.mxu0 %v4378
  %4424 = vmatprep.subr.mxu0 0.0
  %4425 = vmatpush2.msra.mxu0 0.0
  %4426 = vmatprep.subr.mxu0 0.0
  %4427 = vmatpush2.msra.mxu0 0.0
  %4428 = vmatprep.subr.mxu0 0.0
  %4429 = vmatpush2.msra.mxu0 0.0
  %4430 = vmatprep.subr.mxu0 0.0
  %4431 = vmatpush2.msra.mxu0 0.0
  %4432 = vmatprep.subr.mxu0 0.0
  %4433 = vmatpush2.msra.mxu0 0.0
  %4434 = vmatprep.subr.mxu0 0.0
  %4435 = vmatpush2.msra.mxu0 0.0
  %4436 = vmatprep.subr.mxu0 0.0
  %4437 = vmatpush2.msra.mxu0 0.0
  %4438 = vmatprep.subr.mxu0 0.0
  %4439 = vmatpush2.msra.mxu0 0.0
  %4440 = vmatprep.subr.mxu0 0.0
  %4441 = vmatpush2.msra.mxu0 0.0
  %4442 = vmatprep.subr.mxu0 0.0
  %4443 = vmatpush2.msra.mxu0 0.0
  %4444 = vmatprep.subr.mxu0 0.0
  %4445 = vmatpush2.msra.mxu0 0.0
  %4446 = vmatprep.subr.mxu0 0.0
  %4447 = vmatpush2.msra.mxu0 0.0
  %4448 = vmatprep.subr.mxu0 0.0
  %4449 = vmatpush2.msra.mxu0 0.0
  %4450 = vmatprep.subr.mxu0 0.0
  %4451 = vmatpush2.msra.mxu0 0.0
  %4452 = vmatprep.subr.mxu0 0.0
  %4453 = vmatpush2.msra.mxu0 0.0
  %4454 = vmatprep.subr.mxu0 0.0
  %4455 = vmatpush2.msra.mxu0 0.0
  %4456 = vmatprep.mubr.f32.mxu0 0.0
  %4457 = vmatmul.mubr.f32.gmra.mxu0 %v4390
  %v4458 = vpop.f32.mrf.mxu0
  %v4459 = vadd.f32 %v4387, %v4458
  %v4460 = vpop.f32.mrf.mxu0
  %4461 = vdwg.mxu0
  %v4462 = vsub.f32 0.0, %v4459
  %v4463 = vmul.f32 %v4462, 1.442695
  %v4464 = vpow.pop %v4463
  %v4465 = vadd.f32 %v4464, 1.0
  %v4466 = vrcp.pop %v4465
  %v4467 = vmul.f32 1.0, %v4466
  %v4468 = vtanh.pop %v4459
  %v4469 = vmul.f32 %v4467, 0.0
  %4471 = vrot.lane.b32.xlu0 %v4468, 96
  %v4472 = vpop.permute.xlu0 %4471
  %v4474 = vmul.f32 %v4467, %v4472
  %4476 = vrot.lane.b32.xlu0 %v4474, 16
  %v4477 = vpop.permute.xlu0 %4476
  %v4479 = vadd.f32 %v4469, %v4477
  %v4480 = vtanh.pop %v4479
  %4482 = vrot.lane.b32.xlu0 %v4480, 32
  %v4483 = vpop.permute.xlu0 %4482
  %v4485 = vmul.f32 %v4467, %v4483
  %s4486 = scalar_lea.vmem %s18, 2
  %v4487 = vld [vmem:[%s4486] sm:$0x3]
  %4488 = vrot.lane.b32.xlu0 %v4372, 82
  %v4489 = vpop.permute.xlu0 %4488
  %v4491 = vsel %vm4261, %v4487, %v4489
  %v4493 = vsel %vm785, %v4491, 0
  %4495 = vmatprep.subr.mxu0 0.0
  %4496 = vmatpush1.msra.mxu0 0.0
  %4497 = vmatprep.subr.mxu0 0.0
  %4498 = vmatpush1.msra.mxu0 0.0
  %4499 = vmatprep.subr.mxu0 0.0
  %4500 = vmatpush1.msra.mxu0 0.0
  %4501 = vmatprep.subr.mxu0 0.0
  %4502 = vmatpush1.msra.mxu0 0.0
  %4503 = vmatprep.subr.mxu0 0.0
  %4504 = vmatpush1.msra.mxu0 0.0
  %4505 = vmatprep.subr.mxu0 0.0
  %4506 = vmatpush1.msra.mxu0 0.0
  %4507 = vmatprep.subr.mxu0 0.0
  %4508 = vmatpush1.msra.mxu0 0.0
  %4509 = vmatprep.subr.mxu0 0.0
  %4510 = vmatpush1.msra.mxu0 0.0
  %4511 = vmatprep.subr.mxu0 0.0
  %4512 = vmatpush1.msra.mxu0 0.0
  %4513 = vmatprep.subr.mxu0 0.0
  %4514 = vmatpush1.msra.mxu0 0.0
  %4515 = vmatprep.subr.mxu0 0.0
  %4516 = vmatpush1.msra.mxu0 0.0
  %4517 = vmatprep.subr.mxu0 0.0
  %4518 = vmatpush1.msra.mxu0 0.0
  %4519 = vmatprep.subr.mxu0 0.0
  %4520 = vmatpush1.msra.mxu0 0.0
  %4521 = vmatprep.subr.mxu0 0.0
  %4522 = vmatpush1.msra.mxu0 %v4277
  %4523 = vmatprep.subr.mxu0 0.0
  %4524 = vmatpush1.msra.mxu0 %v4264
  %4525 = vmatprep.subr.mxu0 0.0
  %4526 = vmatpush1.msra.mxu0 %v4263
  %4527 = vmatprep.subr.mxu0 0.0
  %4528 = vmatpush2.msra.mxu0 0.0
  %4529 = vmatprep.subr.mxu0 0.0
  %4530 = vmatpush2.msra.mxu0 0.0
  %4531 = vmatprep.subr.mxu0 0.0
  %4532 = vmatpush2.msra.mxu0 0.0
  %4533 = vmatprep.subr.mxu0 0.0
  %4534 = vmatpush2.msra.mxu0 0.0
  %4535 = vmatprep.subr.mxu0 0.0
  %4536 = vmatpush2.msra.mxu0 0.0
  %4537 = vmatprep.subr.mxu0 0.0
  %4538 = vmatpush2.msra.mxu0 0.0
  %4539 = vmatprep.subr.mxu0 0.0
  %4540 = vmatpush2.msra.mxu0 0.0
  %4541 = vmatprep.subr.mxu0 0.0
  %4542 = vmatpush2.msra.mxu0 0.0
  %4543 = vmatprep.subr.mxu0 0.0
  %4544 = vmatpush2.msra.mxu0 0.0
  %4545 = vmatprep.subr.mxu0 0.0
  %4546 = vmatpush2.msra.mxu0 0.0
  %4547 = vmatprep.subr.mxu0 0.0
  %4548 = vmatpush2.msra.mxu0 0.0
  %4549 = vmatprep.subr.mxu0 0.0
  %4550 = vmatpush2.msra.mxu0 0.0
  %4551 = vmatprep.subr.mxu0 0.0
  %4552 = vmatpush2.msra.mxu0 0.0
  %4553 = vmatprep.subr.mxu0 0.0
  %4554 = vmatpush2.msra.mxu0 0.0
  %4555 = vmatprep.subr.mxu0 0.0
  %4556 = vmatpush2.msra.mxu0 0.0
  %4557 = vmatprep.subr.mxu0 0.0
  %4558 = vmatpush2.msra.mxu0 0.0
  %4559 = vmatprep.mubr.f32.mxu0 0.0
  %4560 = vmatmul.mubr.f32.gmra.mxu0 %v4493
  %v4561 = vpop.f32.mrf.mxu0
  %v4562 = vadd.f32 %v4271, %v4561
  %v4563 = vpop.f32.mrf.mxu0
  %4564 = vdwg.mxu0
  %v4565 = vsub.f32 0.0, %v4562
  %v4566 = vmul.f32 %v4565, 1.442695
  %v4567 = vpow.pop %v4566
  %v4568 = vadd.f32 %v4567, 1.0
  %v4569 = vrcp.pop %v4568
  %v4570 = vmul.f32 1.0, %v4569
  %v4571 = vtanh.pop %v4562
  %v4572 = vmul.f32 %v4570, %v4366
  %4574 = vrot.lane.b32.xlu0 %v4571, 96
  %v4575 = vpop.permute.xlu0 %4574
  %v4577 = vmul.f32 %v4570, %v4575
  %4579 = vrot.lane.b32.xlu0 %v4577, 16
  %v4580 = vpop.permute.xlu0 %4579
  %v4582 = vadd.f32 %v4572, %v4580
  %v4583 = vtanh.pop %v4582
  %4585 = vrot.lane.b32.xlu0 %v4583, 32
  %v4586 = vpop.permute.xlu0 %4585
  %v4588 = vmul.f32 %v4570, %v4586
  %4590 = vrot.lane.b32.xlu0 %v4588, 80
  %v4591 = vpop.permute.xlu0 %4590
  %4594 = vrot.lane.b32.xlu0 %v4485, 96
  %v4595 = vpop.permute.xlu0 %4594
  %v4597 = vsel %vm3717, %v4591, %v4595
  %v4599 = vsel %vm187, %v4597, 0
  %4601 = vmatprep.subr.mxu0 0.0
  %4602 = vmatpush1.msra.mxu0 0.0
  %4603 = vmatprep.subr.mxu0 0.0
  %4604 = vmatpush1.msra.mxu0 0.0
  %4605 = vmatprep.subr.mxu0 0.0
  %4606 = vmatpush1.msra.mxu0 0.0
  %4607 = vmatprep.subr.mxu0 0.0
  %4608 = vmatpush1.msra.mxu0 0.0
  %4609 = vmatprep.subr.mxu0 0.0
  %4610 = vmatpush1.msra.mxu0 0.0
  %4611 = vmatprep.subr.mxu0 0.0
  %4612 = vmatpush1.msra.mxu0 0.0
  %4613 = vmatprep.subr.mxu0 0.0
  %4614 = vmatpush1.msra.mxu0 0.0
  %4615 = vmatprep.subr.mxu0 0.0
  %4616 = vmatpush1.msra.mxu0 0.0
  %4617 = vmatprep.subr.mxu0 0.0
  %4618 = vmatpush1.msra.mxu0 0.0
  %4619 = vmatprep.subr.mxu0 0.0
  %4620 = vmatpush1.msra.mxu0 0.0
  %4621 = vmatprep.subr.mxu0 0.0
  %4622 = vmatpush1.msra.mxu0 0.0
  %4623 = vmatprep.subr.mxu0 0.0
  %4624 = vmatpush1.msra.mxu0 0.0
  %4625 = vmatprep.subr.mxu0 0.0
  %4626 = vmatpush1.msra.mxu0 %v4381
  %4627 = vmatprep.subr.mxu0 0.0
  %4628 = vmatpush1.msra.mxu0 %v4380
  %4629 = vmatprep.subr.mxu0 0.0
  %4630 = vmatpush1.msra.mxu0 %v4379
  %4631 = vmatprep.subr.mxu0 0.0
  %4632 = vmatpush1.msra.mxu0 %v4378
  %4633 = vmatprep.subr.mxu0 0.0
  %4634 = vmatpush2.msra.mxu0 0.0
  %4635 = vmatprep.subr.mxu0 0.0
  %4636 = vmatpush2.msra.mxu0 0.0
  %4637 = vmatprep.subr.mxu0 0.0
  %4638 = vmatpush2.msra.mxu0 0.0
  %4639 = vmatprep.subr.mxu0 0.0
  %4640 = vmatpush2.msra.mxu0 0.0
  %4641 = vmatprep.subr.mxu0 0.0
  %4642 = vmatpush2.msra.mxu0 0.0
  %4643 = vmatprep.subr.mxu0 0.0
  %4644 = vmatpush2.msra.mxu0 0.0
  %4645 = vmatprep.subr.mxu0 0.0
  %4646 = vmatpush2.msra.mxu0 0.0
  %4647 = vmatprep.subr.mxu0 0.0
  %4648 = vmatpush2.msra.mxu0 0.0
  %4649 = vmatprep.subr.mxu0 0.0
  %4650 = vmatpush2.msra.mxu0 0.0
  %4651 = vmatprep.subr.mxu0 0.0
  %4652 = vmatpush2.msra.mxu0 0.0
  %4653 = vmatprep.subr.mxu0 0.0
  %4654 = vmatpush2.msra.mxu0 0.0
  %4655 = vmatprep.subr.mxu0 0.0
  %4656 = vmatpush2.msra.mxu0 0.0
  %4657 = vmatprep.subr.mxu0 0.0
  %4658 = vmatpush2.msra.mxu0 0.0
  %4659 = vmatprep.subr.mxu0 0.0
  %4660 = vmatpush2.msra.mxu0 0.0
  %4661 = vmatprep.subr.mxu0 0.0
  %4662 = vmatpush2.msra.mxu0 0.0
  %4663 = vmatprep.subr.mxu0 0.0
  %4664 = vmatpush2.msra.mxu0 0.0
  %4665 = vmatprep.mubr.f32.mxu0 0.0
  %4666 = vmatmul.mubr.f32.gmra.mxu0 %v4599
  %v4667 = vpop.f32.mrf.mxu0
  %v4668 = vadd.f32 %v4387, %v4667
  %v4669 = vpop.f32.mrf.mxu0
  %4670 = vdwg.mxu0
  %v4671 = vsub.f32 0.0, %v4668
  %v4672 = vmul.f32 %v4671, 1.442695
  %v4673 = vpow.pop %v4672
  %v4674 = vadd.f32 %v4673, 1.0
  %v4675 = vrcp.pop %v4674
  %v4676 = vmul.f32 1.0, %v4675
  %v4677 = vtanh.pop %v4668
  %v4678 = vmul.f32 %v4676, %v4479
  %4680 = vrot.lane.b32.xlu0 %v4677, 96
  %v4681 = vpop.permute.xlu0 %4680
  %v4683 = vmul.f32 %v4676, %v4681
  %4685 = vrot.lane.b32.xlu0 %v4683, 16
  %v4686 = vpop.permute.xlu0 %4685
  %v4688 = vadd.f32 %v4678, %v4686
  %v4689 = vtanh.pop %v4688
  %4691 = vrot.lane.b32.xlu0 %v4689, 32
  %v4692 = vpop.permute.xlu0 %4691
  %v4694 = vmul.f32 %v4676, %v4692
  %s4695 = scalar_lea.vmem %s18, 4
  %v4696 = vld [vmem:[%s4695] sm:$0x3]
  %4697 = vrot.lane.b32.xlu0 %v4588, 82
  %v4698 = vpop.permute.xlu0 %4697
  %v4700 = vsel %vm4261, %v4696, %v4698
  %v4702 = vsel %vm785, %v4700, 0
  %4704 = vmatprep.subr.mxu0 0.0
  %4705 = vmatpush1.msra.mxu0 0.0
  %4706 = vmatprep.subr.mxu0 0.0
  %4707 = vmatpush1.msra.mxu0 0.0
  %4708 = vmatprep.subr.mxu0 0.0
  %4709 = vmatpush1.msra.mxu0 0.0
  %4710 = vmatprep.subr.mxu0 0.0
  %4711 = vmatpush1.msra.mxu0 0.0
  %4712 = vmatprep.subr.mxu0 0.0
  %4713 = vmatpush1.msra.mxu0 0.0
  %4714 = vmatprep.subr.mxu0 0.0
  %4715 = vmatpush1.msra.mxu0 0.0
  %4716 = vmatprep.subr.mxu0 0.0
  %4717 = vmatpush1.msra.mxu0 0.0
  %4718 = vmatprep.subr.mxu0 0.0
  %4719 = vmatpush1.msra.mxu0 0.0
  %4720 = vmatprep.subr.mxu0 0.0
  %4721 = vmatpush1.msra.mxu0 0.0
  %4722 = vmatprep.subr.mxu0 0.0
  %4723 = vmatpush1.msra.mxu0 0.0
  %4724 = vmatprep.subr.mxu0 0.0
  %4725 = vmatpush1.msra.mxu0 0.0
  %4726 = vmatprep.subr.mxu0 0.0
  %4727 = vmatpush1.msra.mxu0 0.0
  %4728 = vmatprep.subr.mxu0 0.0
  %4729 = vmatpush1.msra.mxu0 0.0
  %4730 = vmatprep.subr.mxu0 0.0
  %4731 = vmatpush1.msra.mxu0 %v4277
  %4732 = vmatprep.subr.mxu0 0.0
  %4733 = vmatpush1.msra.mxu0 %v4264
  %4734 = vmatprep.subr.mxu0 0.0
  %4735 = vmatpush1.msra.mxu0 %v4263
  %4736 = vmatprep.subr.mxu0 0.0
  %4737 = vmatpush2.msra.mxu0 0.0
  %4738 = vmatprep.subr.mxu0 0.0
  %4739 = vmatpush2.msra.mxu0 0.0
  %4740 = vmatprep.subr.mxu0 0.0
  %4741 = vmatpush2.msra.mxu0 0.0
  %4742 = vmatprep.subr.mxu0 0.0
  %4743 = vmatpush2.msra.mxu0 0.0
  %4744 = vmatprep.subr.mxu0 0.0
  %4745 = vmatpush2.msra.mxu0 0.0
  %4746 = vmatprep.subr.mxu0 0.0
  %4747 = vmatpush2.msra.mxu0 0.0
  %4748 = vmatprep.subr.mxu0 0.0
  %4749 = vmatpush2.msra.mxu0 0.0
  %4750 = vmatprep.subr.mxu0 0.0
  %4751 = vmatpush2.msra.mxu0 0.0
  %4752 = vmatprep.subr.mxu0 0.0
  %4753 = vmatpush2.msra.mxu0 0.0
  %4754 = vmatprep.subr.mxu0 0.0
  %4755 = vmatpush2.msra.mxu0 0.0
  %4756 = vmatprep.subr.mxu0 0.0
  %4757 = vmatpush2.msra.mxu0 0.0
  %4758 = vmatprep.subr.mxu0 0.0
  %4759 = vmatpush2.msra.mxu0 0.0
  %4760 = vmatprep.subr.mxu0 0.0
  %4761 = vmatpush2.msra.mxu0 0.0
  %4762 = vmatprep.subr.mxu0 0.0
  %4763 = vmatpush2.msra.mxu0 0.0
  %4764 = vmatprep.subr.mxu0 0.0
  %4765 = vmatpush2.msra.mxu0 0.0
  %4766 = vmatprep.subr.mxu0 0.0
  %4767 = vmatpush2.msra.mxu0 0.0
  %4768 = vmatprep.mubr.f32.mxu0 0.0
  %4769 = vmatmul.mubr.f32.gmra.mxu0 %v4702
  %v4770 = vpop.f32.mrf.mxu0
  %v4771 = vadd.f32 %v4271, %v4770
  %v4772 = vpop.f32.mrf.mxu0
  %4773 = vdwg.mxu0
  %v4774 = vsub.f32 0.0, %v4771
  %v4775 = vmul.f32 %v4774, 1.442695
  %v4776 = vpow.pop %v4775
  %v4777 = vadd.f32 %v4776, 1.0
  %v4778 = vrcp.pop %v4777
  %v4779 = vmul.f32 1.0, %v4778
  %v4780 = vtanh.pop %v4771
  %v4781 = vmul.f32 %v4779, %v4582
  %4783 = vrot.lane.b32.xlu0 %v4780, 96
  %v4784 = vpop.permute.xlu0 %4783
  %v4786 = vmul.f32 %v4779, %v4784
  %4788 = vrot.lane.b32.xlu0 %v4786, 16
  %v4789 = vpop.permute.xlu0 %4788
  %v4791 = vadd.f32 %v4781, %v4789
  %v4792 = vtanh.pop %v4791
  %4794 = vrot.lane.b32.xlu0 %v4792, 32
  %v4795 = vpop.permute.xlu0 %4794
  %v4797 = vmul.f32 %v4779, %v4795
  %4799 = vrot.lane.b32.xlu0 %v4797, 80
  %v4800 = vpop.permute.xlu0 %4799
  %4803 = vrot.lane.b32.xlu0 %v4694, 96
  %v4804 = vpop.permute.xlu0 %4803
  %v4806 = vsel %vm3717, %v4800, %v4804
  %v4808 = vsel %vm187, %v4806, 0
  %4810 = vmatprep.subr.mxu0 0.0
  %4811 = vmatpush1.msra.mxu0 0.0
  %4812 = vmatprep.subr.mxu0 0.0
  %4813 = vmatpush1.msra.mxu0 0.0
  %4814 = vmatprep.subr.mxu0 0.0
  %4815 = vmatpush1.msra.mxu0 0.0
  %4816 = vmatprep.subr.mxu0 0.0
  %4817 = vmatpush1.msra.mxu0 0.0
  %4818 = vmatprep.subr.mxu0 0.0
  %4819 = vmatpush1.msra.mxu0 0.0
  %4820 = vmatprep.subr.mxu0 0.0
  %4821 = vmatpush1.msra.mxu0 0.0
  %4822 = vmatprep.subr.mxu0 0.0
  %4823 = vmatpush1.msra.mxu0 0.0
  %4824 = vmatprep.subr.mxu0 0.0
  %4825 = vmatpush1.msra.mxu0 0.0
  %4826 = vmatprep.subr.mxu0 0.0
  %4827 = vmatpush1.msra.mxu0 0.0
  %4828 = vmatprep.subr.mxu0 0.0
  %4829 = vmatpush1.msra.mxu0 0.0
  %4830 = vmatprep.subr.mxu0 0.0
  %4831 = vmatpush1.msra.mxu0 0.0
  %4832 = vmatprep.subr.mxu0 0.0
  %4833 = vmatpush1.msra.mxu0 0.0
  %4834 = vmatprep.subr.mxu0 0.0
  %4835 = vmatpush1.msra.mxu0 %v4381
  %4836 = vmatprep.subr.mxu0 0.0
  %4837 = vmatpush1.msra.mxu0 %v4380
  %4838 = vmatprep.subr.mxu0 0.0
  %4839 = vmatpush1.msra.mxu0 %v4379
  %4840 = vmatprep.subr.mxu0 0.0
  %4841 = vmatpush1.msra.mxu0 %v4378
  %4842 = vmatprep.subr.mxu0 0.0
  %4843 = vmatpush2.msra.mxu0 0.0
  %4844 = vmatprep.subr.mxu0 0.0
  %4845 = vmatpush2.msra.mxu0 0.0
  %4846 = vmatprep.subr.mxu0 0.0
  %4847 = vmatpush2.msra.mxu0 0.0
  %4848 = vmatprep.subr.mxu0 0.0
  %4849 = vmatpush2.msra.mxu0 0.0
  %4850 = vmatprep.subr.mxu0 0.0
  %4851 = vmatpush2.msra.mxu0 0.0
  %4852 = vmatprep.subr.mxu0 0.0
  %4853 = vmatpush2.msra.mxu0 0.0
  %4854 = vmatprep.subr.mxu0 0.0
  %4855 = vmatpush2.msra.mxu0 0.0
  %4856 = vmatprep.subr.mxu0 0.0
  %4857 = vmatpush2.msra.mxu0 0.0
  %4858 = vmatprep.subr.mxu0 0.0
  %4859 = vmatpush2.msra.mxu0 0.0
  %4860 = vmatprep.subr.mxu0 0.0
  %4861 = vmatpush2.msra.mxu0 0.0
  %4862 = vmatprep.subr.mxu0 0.0
  %4863 = vmatpush2.msra.mxu0 0.0
  %4864 = vmatprep.subr.mxu0 0.0
  %4865 = vmatpush2.msra.mxu0 0.0
  %4866 = vmatprep.subr.mxu0 0.0
  %4867 = vmatpush2.msra.mxu0 0.0
  %4868 = vmatprep.subr.mxu0 0.0
  %4869 = vmatpush2.msra.mxu0 0.0
  %4870 = vmatprep.subr.mxu0 0.0
  %4871 = vmatpush2.msra.mxu0 0.0
  %4872 = vmatprep.subr.mxu0 0.0
  %4873 = vmatpush2.msra.mxu0 0.0
  %4874 = vmatprep.mubr.f32.mxu0 0.0
  %4875 = vmatmul.mubr.f32.gmra.mxu0 %v4808
  %v4876 = vpop.f32.mrf.mxu0
  %v4877 = vadd.f32 %v4387, %v4876
  %v4878 = vpop.f32.mrf.mxu0
  %4879 = vdwg.mxu0
  %v4880 = vsub.f32 0.0, %v4877
  %v4881 = vmul.f32 %v4880, 1.442695
  %v4882 = vpow.pop %v4881
  %v4883 = vadd.f32 %v4882, 1.0
  %v4884 = vrcp.pop %v4883
  %v4885 = vmul.f32 1.0, %v4884
  %v4886 = vtanh.pop %v4877
  %v4887 = vmul.f32 %v4885, %v4688
  %4889 = vrot.lane.b32.xlu0 %v4886, 96
  %v4890 = vpop.permute.xlu0 %4889
  %v4892 = vmul.f32 %v4885, %v4890
  %4894 = vrot.lane.b32.xlu0 %v4892, 16
  %v4895 = vpop.permute.xlu0 %4894
  %v4897 = vadd.f32 %v4887, %v4895
  %v4898 = vtanh.pop %v4897
  %4900 = vrot.lane.b32.xlu0 %v4898, 32
  %v4901 = vpop.permute.xlu0 %4900
  %v4903 = vmul.f32 %v4885, %v4901
  %s4904 = scalar_lea.vmem %s18, 6
  %v4905 = vld [vmem:[%s4904] sm:$0x3]
  %4906 = vrot.lane.b32.xlu0 %v4797, 82
  %v4907 = vpop.permute.xlu0 %4906
  %v4909 = vsel %vm4261, %v4905, %v4907
  %v4911 = vsel %vm785, %v4909, 0
  %4913 = vmatprep.subr.mxu0 0.0
  %4914 = vmatpush1.msra.mxu0 0.0
  %4915 = vmatprep.subr.mxu0 0.0
  %4916 = vmatpush1.msra.mxu0 0.0
  %4917 = vmatprep.subr.mxu0 0.0
  %4918 = vmatpush1.msra.mxu0 0.0
  %4919 = vmatprep.subr.mxu0 0.0
  %4920 = vmatpush1.msra.mxu0 0.0
  %4921 = vmatprep.subr.mxu0 0.0
  %4922 = vmatpush1.msra.mxu0 0.0
  %4923 = vmatprep.subr.mxu0 0.0
  %4924 = vmatpush1.msra.mxu0 0.0
  %4925 = vmatprep.subr.mxu0 0.0
  %4926 = vmatpush1.msra.mxu0 0.0
  %4927 = vmatprep.subr.mxu0 0.0
  %4928 = vmatpush1.msra.mxu0 0.0
  %4929 = vmatprep.subr.mxu0 0.0
  %4930 = vmatpush1.msra.mxu0 0.0
  %4931 = vmatprep.subr.mxu0 0.0
  %4932 = vmatpush1.msra.mxu0 0.0
  %4933 = vmatprep.subr.mxu0 0.0
  %4934 = vmatpush1.msra.mxu0 0.0
  %4935 = vmatprep.subr.mxu0 0.0
  %4936 = vmatpush1.msra.mxu0 0.0
  %4937 = vmatprep.subr.mxu0 0.0
  %4938 = vmatpush1.msra.mxu0 0.0
  %4939 = vmatprep.subr.mxu0 0.0
  %4940 = vmatpush1.msra.mxu0 %v4277
  %4941 = vmatprep.subr.mxu0 0.0
  %4942 = vmatpush1.msra.mxu0 %v4264
  %4943 = vmatprep.subr.mxu0 0.0
  %4944 = vmatpush1.msra.mxu0 %v4263
  %4945 = vmatprep.subr.mxu0 0.0
  %4946 = vmatpush2.msra.mxu0 0.0
  %4947 = vmatprep.subr.mxu0 0.0
  %4948 = vmatpush2.msra.mxu0 0.0
  %4949 = vmatprep.subr.mxu0 0.0
  %4950 = vmatpush2.msra.mxu0 0.0
  %4951 = vmatprep.subr.mxu0 0.0
  %4952 = vmatpush2.msra.mxu0 0.0
  %4953 = vmatprep.subr.mxu0 0.0
  %4954 = vmatpush2.msra.mxu0 0.0
  %4955 = vmatprep.subr.mxu0 0.0
  %4956 = vmatpush2.msra.mxu0 0.0
  %4957 = vmatprep.subr.mxu0 0.0
  %4958 = vmatpush2.msra.mxu0 0.0
  %4959 = vmatprep.subr.mxu0 0.0
  %4960 = vmatpush2.msra.mxu0 0.0
  %4961 = vmatprep.subr.mxu0 0.0
  %4962 = vmatpush2.msra.mxu0 0.0
  %4963 = vmatprep.subr.mxu0 0.0
  %4964 = vmatpush2.msra.mxu0 0.0
  %4965 = vmatprep.subr.mxu0 0.0
  %4966 = vmatpush2.msra.mxu0 0.0
  %4967 = vmatprep.subr.mxu0 0.0
  %4968 = vmatpush2.msra.mxu0 0.0
  %4969 = vmatprep.subr.mxu0 0.0
  %4970 = vmatpush2.msra.mxu0 0.0
  %4971 = vmatprep.subr.mxu0 0.0
  %4972 = vmatpush2.msra.mxu0 0.0
  %4973 = vmatprep.subr.mxu0 0.0
  %4974 = vmatpush2.msra.mxu0 0.0
  %4975 = vmatprep.subr.mxu0 0.0
  %4976 = vmatpush2.msra.mxu0 0.0
  %4977 = vmatprep.mubr.f32.mxu0 0.0
  %4978 = vmatmul.mubr.f32.gmra.mxu0 %v4911
  %v4979 = vpop.f32.mrf.mxu0
  %v4980 = vadd.f32 %v4271, %v4979
  %v4981 = vpop.f32.mrf.mxu0
  %4982 = vdwg.mxu0
  %v4983 = vsub.f32 0.0, %v4980
  %v4984 = vmul.f32 %v4983, 1.442695
  %v4985 = vpow.pop %v4984
  %v4986 = vadd.f32 %v4985, 1.0
  %v4987 = vrcp.pop %v4986
  %v4988 = vmul.f32 1.0, %v4987
  %v4989 = vtanh.pop %v4980
  %v4990 = vmul.f32 %v4988, %v4791
  %4992 = vrot.lane.b32.xlu0 %v4989, 96
  %v4993 = vpop.permute.xlu0 %4992
  %v4995 = vmul.f32 %v4988, %v4993
  %4997 = vrot.lane.b32.xlu0 %v4995, 16
  %v4998 = vpop.permute.xlu0 %4997
  %v5000 = vadd.f32 %v4990, %v4998
  %v5001 = vtanh.pop %v5000
  %5003 = vrot.lane.b32.xlu0 %v5001, 32
  %v5004 = vpop.permute.xlu0 %5003
  %v5006 = vmul.f32 %v4988, %v5004
  %5008 = vrot.lane.b32.xlu0 %v5006, 80
  %v5009 = vpop.permute.xlu0 %5008
  %5012 = vrot.lane.b32.xlu0 %v4903, 96
  %v5013 = vpop.permute.xlu0 %5012
  %v5015 = vsel %vm3717, %v5009, %v5013
  %v5017 = vsel %vm187, %v5015, 0
  %5019 = vmatprep.subr.mxu0 0.0
  %5020 = vmatpush1.msra.mxu0 0.0
  %5021 = vmatprep.subr.mxu0 0.0
  %5022 = vmatpush1.msra.mxu0 0.0
  %5023 = vmatprep.subr.mxu0 0.0
  %5024 = vmatpush1.msra.mxu0 0.0
  %5025 = vmatprep.subr.mxu0 0.0
  %5026 = vmatpush1.msra.mxu0 0.0
  %5027 = vmatprep.subr.mxu0 0.0
  %5028 = vmatpush1.msra.mxu0 0.0
  %5029 = vmatprep.subr.mxu0 0.0
  %5030 = vmatpush1.msra.mxu0 0.0
  %5031 = vmatprep.subr.mxu0 0.0
  %5032 = vmatpush1.msra.mxu0 0.0
  %5033 = vmatprep.subr.mxu0 0.0
  %5034 = vmatpush1.msra.mxu0 0.0
  %5035 = vmatprep.subr.mxu0 0.0
  %5036 = vmatpush1.msra.mxu0 0.0
  %5037 = vmatprep.subr.mxu0 0.0
  %5038 = vmatpush1.msra.mxu0 0.0
  %5039 = vmatprep.subr.mxu0 0.0
  %5040 = vmatpush1.msra.mxu0 0.0
  %5041 = vmatprep.subr.mxu0 0.0
  %5042 = vmatpush1.msra.mxu0 0.0
  %5043 = vmatprep.subr.mxu0 0.0
  %5044 = vmatpush1.msra.mxu0 %v4381
  %5045 = vmatprep.subr.mxu0 0.0
  %5046 = vmatpush1.msra.mxu0 %v4380
  %5047 = vmatprep.subr.mxu0 0.0
  %5048 = vmatpush1.msra.mxu0 %v4379
  %5049 = vmatprep.subr.mxu0 0.0
  %5050 = vmatpush1.msra.mxu0 %v4378
  %5051 = vmatprep.subr.mxu0 0.0
  %5052 = vmatpush2.msra.mxu0 0.0
  %5053 = vmatprep.subr.mxu0 0.0
  %5054 = vmatpush2.msra.mxu0 0.0
  %5055 = vmatprep.subr.mxu0 0.0
  %5056 = vmatpush2.msra.mxu0 0.0
  %5057 = vmatprep.subr.mxu0 0.0
  %5058 = vmatpush2.msra.mxu0 0.0
  %5059 = vmatprep.subr.mxu0 0.0
  %5060 = vmatpush2.msra.mxu0 0.0
  %5061 = vmatprep.subr.mxu0 0.0
  %5062 = vmatpush2.msra.mxu0 0.0
  %5063 = vmatprep.subr.mxu0 0.0
  %5064 = vmatpush2.msra.mxu0 0.0
  %5065 = vmatprep.subr.mxu0 0.0
  %5066 = vmatpush2.msra.mxu0 0.0
  %5067 = vmatprep.subr.mxu0 0.0
  %5068 = vmatpush2.msra.mxu0 0.0
  %5069 = vmatprep.subr.mxu0 0.0
  %5070 = vmatpush2.msra.mxu0 0.0
  %5071 = vmatprep.subr.mxu0 0.0
  %5072 = vmatpush2.msra.mxu0 0.0
  %5073 = vmatprep.subr.mxu0 0.0
  %5074 = vmatpush2.msra.mxu0 0.0
  %5075 = vmatprep.subr.mxu0 0.0
  %5076 = vmatpush2.msra.mxu0 0.0
  %5077 = vmatprep.subr.mxu0 0.0
  %5078 = vmatpush2.msra.mxu0 0.0
  %5079 = vmatprep.subr.mxu0 0.0
  %5080 = vmatpush2.msra.mxu0 0.0
  %5081 = vmatprep.subr.mxu0 0.0
  %5082 = vmatpush2.msra.mxu0 0.0
  %5083 = vmatprep.mubr.f32.mxu0 0.0
  %5084 = vmatmul.mubr.f32.gmra.mxu0 %v5017
  %v5085 = vpop.f32.mrf.mxu0
  %v5086 = vadd.f32 %v4387, %v5085
  %v5087 = vpop.f32.mrf.mxu0
  %5088 = vdwg.mxu0
  %v5089 = vsub.f32 0.0, %v5086
  %v5090 = vmul.f32 %v5089, 1.442695
  %v5091 = vpow.pop %v5090
  %v5092 = vadd.f32 %v5091, 1.0
  %v5093 = vrcp.pop %v5092
  %v5094 = vmul.f32 1.0, %v5093
  %v5095 = vtanh.pop %v5086
  %v5096 = vmul.f32 %v5094, %v4897
  %5098 = vrot.lane.b32.xlu0 %v5095, 96
  %v5099 = vpop.permute.xlu0 %5098
  %v5101 = vmul.f32 %v5094, %v5099
  %5103 = vrot.lane.b32.xlu0 %v5101, 16
  %v5104 = vpop.permute.xlu0 %5103
  %v5106 = vadd.f32 %v5096, %v5104
  %v5107 = vtanh.pop %v5106
  %5109 = vrot.lane.b32.xlu0 %v5107, 32
  %v5110 = vpop.permute.xlu0 %5109
  %v5112 = vmul.f32 %v5094, %v5110
  %s5113 = scalar_lea.vmem %s18, 8
  %v5114 = vld [vmem:[%s5113] sm:$0x3]
  %5115 = vrot.lane.b32.xlu0 %v5006, 82
  %v5116 = vpop.permute.xlu0 %5115
  %v5118 = vsel %vm4261, %v5114, %v5116
  %v5120 = vsel %vm785, %v5118, 0
  %5122 = vmatprep.subr.mxu0 0.0
  %5123 = vmatpush1.msra.mxu0 0.0
  %5124 = vmatprep.subr.mxu0 0.0
  %5125 = vmatpush1.msra.mxu0 0.0
  %5126 = vmatprep.subr.mxu0 0.0
  %5127 = vmatpush1.msra.mxu0 0.0
  %5128 = vmatprep.subr.mxu0 0.0
  %5129 = vmatpush1.msra.mxu0 0.0
  %5130 = vmatprep.subr.mxu0 0.0
  %5131 = vmatpush1.msra.mxu0 0.0
  %5132 = vmatprep.subr.mxu0 0.0
  %5133 = vmatpush1.msra.mxu0 0.0
  %5134 = vmatprep.subr.mxu0 0.0
  %5135 = vmatpush1.msra.mxu0 0.0
  %5136 = vmatprep.subr.mxu0 0.0
  %5137 = vmatpush1.msra.mxu0 0.0
  %5138 = vmatprep.subr.mxu0 0.0
  %5139 = vmatpush1.msra.mxu0 0.0
  %5140 = vmatprep.subr.mxu0 0.0
  %5141 = vmatpush1.msra.mxu0 0.0
  %5142 = vmatprep.subr.mxu0 0.0
  %5143 = vmatpush1.msra.mxu0 0.0
  %5144 = vmatprep.subr.mxu0 0.0
  %5145 = vmatpush1.msra.mxu0 0.0
  %5146 = vmatprep.subr.mxu0 0.0
  %5147 = vmatpush1.msra.mxu0 0.0
  %5148 = vmatprep.subr.mxu0 0.0
  %5149 = vmatpush1.msra.mxu0 %v4277
  %5150 = vmatprep.subr.mxu0 0.0
  %5151 = vmatpush1.msra.mxu0 %v4264
  %5152 = vmatprep.subr.mxu0 0.0
  %5153 = vmatpush1.msra.mxu0 %v4263
  %5154 = vmatprep.subr.mxu0 0.0
  %5155 = vmatpush2.msra.mxu0 0.0
  %5156 = vmatprep.subr.mxu0 0.0
  %5157 = vmatpush2.msra.mxu0 0.0
  %5158 = vmatprep.subr.mxu0 0.0
  %5159 = vmatpush2.msra.mxu0 0.0
  %5160 = vmatprep.subr.mxu0 0.0
  %5161 = vmatpush2.msra.mxu0 0.0
  %5162 = vmatprep.subr.mxu0 0.0
  %5163 = vmatpush2.msra.mxu0 0.0
  %5164 = vmatprep.subr.mxu0 0.0
  %5165 = vmatpush2.msra.mxu0 0.0
  %5166 = vmatprep.subr.mxu0 0.0
  %5167 = vmatpush2.msra.mxu0 0.0
  %5168 = vmatprep.subr.mxu0 0.0
  %5169 = vmatpush2.msra.mxu0 0.0
  %5170 = vmatprep.subr.mxu0 0.0
  %5171 = vmatpush2.msra.mxu0 0.0
  %5172 = vmatprep.subr.mxu0 0.0
  %5173 = vmatpush2.msra.mxu0 0.0
  %5174 = vmatprep.subr.mxu0 0.0
  %5175 = vmatpush2.msra.mxu0 0.0
  %5176 = vmatprep.subr.mxu0 0.0
  %5177 = vmatpush2.msra.mxu0 0.0
  %5178 = vmatprep.subr.mxu0 0.0
  %5179 = vmatpush2.msra.mxu0 0.0
  %5180 = vmatprep.subr.mxu0 0.0
  %5181 = vmatpush2.msra.mxu0 0.0
  %5182 = vmatprep.subr.mxu0 0.0
  %5183 = vmatpush2.msra.mxu0 0.0
  %5184 = vmatprep.subr.mxu0 0.0
  %5185 = vmatpush2.msra.mxu0 0.0
  %5186 = vmatprep.mubr.f32.mxu0 0.0
  %5187 = vmatmul.mubr.f32.gmra.mxu0 %v5120
  %v5188 = vpop.f32.mrf.mxu0
  %v5189 = vadd.f32 %v4271, %v5188
  %v5190 = vpop.f32.mrf.mxu0
  %5191 = vdwg.mxu0
  %v5192 = vsub.f32 0.0, %v5189
  %v5193 = vmul.f32 %v5192, 1.442695
  %v5194 = vpow.pop %v5193
  %v5195 = vadd.f32 %v5194, 1.0
  %v5196 = vrcp.pop %v5195
  %v5197 = vmul.f32 1.0, %v5196
  %v5198 = vtanh.pop %v5189
  %v5199 = vmul.f32 %v5197, %v5000
  %5201 = vrot.lane.b32.xlu0 %v5198, 96
  %v5202 = vpop.permute.xlu0 %5201
  %v5204 = vmul.f32 %v5197, %v5202
  %5206 = vrot.lane.b32.xlu0 %v5204, 16
  %v5207 = vpop.permute.xlu0 %5206
  %v5209 = vadd.f32 %v5199, %v5207
  %v5210 = vtanh.pop %v5209
  %5212 = vrot.lane.b32.xlu0 %v5210, 32
  %v5213 = vpop.permute.xlu0 %5212
  %v5215 = vmul.f32 %v5197, %v5213
  %5217 = vrot.lane.b32.xlu0 %v5215, 80
  %v5218 = vpop.permute.xlu0 %5217
  %5221 = vrot.lane.b32.xlu0 %v5112, 96
  %v5222 = vpop.permute.xlu0 %5221
  %v5224 = vsel %vm3717, %v5218, %v5222
  %v5226 = vsel %vm187, %v5224, 0
  %5228 = vmatprep.subr.mxu0 0.0
  %5229 = vmatpush1.msra.mxu0 0.0
  %5230 = vmatprep.subr.mxu0 0.0
  %5231 = vmatpush1.msra.mxu0 0.0
  %5232 = vmatprep.subr.mxu0 0.0
  %5233 = vmatpush1.msra.mxu0 0.0
  %5234 = vmatprep.subr.mxu0 0.0
  %5235 = vmatpush1.msra.mxu0 0.0
  %5236 = vmatprep.subr.mxu0 0.0
  %5237 = vmatpush1.msra.mxu0 0.0
  %5238 = vmatprep.subr.mxu0 0.0
  %5239 = vmatpush1.msra.mxu0 0.0
  %5240 = vmatprep.subr.mxu0 0.0
  %5241 = vmatpush1.msra.mxu0 0.0
  %5242 = vmatprep.subr.mxu0 0.0
  %5243 = vmatpush1.msra.mxu0 0.0
  %5244 = vmatprep.subr.mxu0 0.0
  %5245 = vmatpush1.msra.mxu0 0.0
  %5246 = vmatprep.subr.mxu0 0.0
  %5247 = vmatpush1.msra.mxu0 0.0
  %5248 = vmatprep.subr.mxu0 0.0
  %5249 = vmatpush1.msra.mxu0 0.0
  %5250 = vmatprep.subr.mxu0 0.0
  %5251 = vmatpush1.msra.mxu0 0.0
  %5252 = vmatprep.subr.mxu0 0.0
  %5253 = vmatpush1.msra.mxu0 %v4381
  %5254 = vmatprep.subr.mxu0 0.0
  %5255 = vmatpush1.msra.mxu0 %v4380
  %5256 = vmatprep.subr.mxu0 0.0
  %5257 = vmatpush1.msra.mxu0 %v4379
  %5258 = vmatprep.subr.mxu0 0.0
  %5259 = vmatpush1.msra.mxu0 %v4378
  %5260 = vmatprep.subr.mxu0 0.0
  %5261 = vmatpush2.msra.mxu0 0.0
  %5262 = vmatprep.subr.mxu0 0.0
  %5263 = vmatpush2.msra.mxu0 0.0
  %5264 = vmatprep.subr.mxu0 0.0
  %5265 = vmatpush2.msra.mxu0 0.0
  %5266 = vmatprep.subr.mxu0 0.0
  %5267 = vmatpush2.msra.mxu0 0.0
  %5268 = vmatprep.subr.mxu0 0.0
  %5269 = vmatpush2.msra.mxu0 0.0
  %5270 = vmatprep.subr.mxu0 0.0
  %5271 = vmatpush2.msra.mxu0 0.0
  %5272 = vmatprep.subr.mxu0 0.0
  %5273 = vmatpush2.msra.mxu0 0.0
  %5274 = vmatprep.subr.mxu0 0.0
  %5275 = vmatpush2.msra.mxu0 0.0
  %5276 = vmatprep.subr.mxu0 0.0
  %5277 = vmatpush2.msra.mxu0 0.0
  %5278 = vmatprep.subr.mxu0 0.0
  %5279 = vmatpush2.msra.mxu0 0.0
  %5280 = vmatprep.subr.mxu0 0.0
  %5281 = vmatpush2.msra.mxu0 0.0
  %5282 = vmatprep.subr.mxu0 0.0
  %5283 = vmatpush2.msra.mxu0 0.0
  %5284 = vmatprep.subr.mxu0 0.0
  %5285 = vmatpush2.msra.mxu0 0.0
  %5286 = vmatprep.subr.mxu0 0.0
  %5287 = vmatpush2.msra.mxu0 0.0
  %5288 = vmatprep.subr.mxu0 0.0
  %5289 = vmatpush2.msra.mxu0 0.0
  %5290 = vmatprep.subr.mxu0 0.0
  %5291 = vmatpush2.msra.mxu0 0.0
  %5292 = vmatprep.mubr.f32.mxu0 0.0
  %5293 = vmatmul.mubr.f32.gmra.mxu0 %v5226
  %v5294 = vpop.f32.mrf.mxu0
  %v5295 = vadd.f32 %v4387, %v5294
  %v5296 = vpop.f32.mrf.mxu0
  %5297 = vdwg.mxu0
  %v5298 = vsub.f32 0.0, %v5295
  %v5299 = vmul.f32 %v5298, 1.442695
  %v5300 = vpow.pop %v5299
  %v5301 = vadd.f32 %v5300, 1.0
  %v5302 = vrcp.pop %v5301
  %v5303 = vmul.f32 1.0, %v5302
  %v5304 = vtanh.pop %v5295
  %v5305 = vmul.f32 %v5303, %v5106
  %5307 = vrot.lane.b32.xlu0 %v5304, 96
  %v5308 = vpop.permute.xlu0 %5307
  %v5310 = vmul.f32 %v5303, %v5308
  %5312 = vrot.lane.b32.xlu0 %v5310, 16
  %v5313 = vpop.permute.xlu0 %5312
  %v5315 = vadd.f32 %v5305, %v5313
  %v5316 = vtanh.pop %v5315
  %5318 = vrot.lane.b32.xlu0 %v5316, 32
  %v5319 = vpop.permute.xlu0 %5318
  %v5321 = vmul.f32 %v5303, %v5319
  %5322 = vrot.lane.b32.xlu0 %v5215, 112
  %v5323 = vpop.permute.xlu0 %5322
  %v5325 = vsel %vm187, %v4259, %v5323
  %v5326 = vsel %vm92, %v5325, %v5321
  %v5327 = vld [vmem:[%s23] sm:$0xff]
  %v5328 = vld [vmem:[%s23 + $0x8] sm:$0xff]
  %v5329 = vld [vmem:[%s23 + $0x10] sm:$0xff]
  %v5330 = vld [vmem:[%s23 + $0x18] sm:$0xff]
  %v5331 = vld [vmem:[%s23 + $0x20] sm:$0xff]
  %v5332 = vld [vmem:[%s23 + $0x28] sm:$0xff]
  %v5333 = vld [vmem:[%s23 + $0x30] sm:$0xff]
  %v5334 = vld [vmem:[%s23 + $0x38] sm:$0xff]
  %v5335 = vld [vmem:[%s24] sm:$0x1]
  %v5337 = vlaneseq
  %v5338 = vshrl.u32 %v5337, 7
  %v5339 = vsub.s32 0, %v5338
  %v5340 = vrot.slane %v5335, %v5339
  %vm5342 = vcmask 523264
  %v5344 = vsel %vm5342, %v5326, 0
  %5346 = vmatprep.subr.mxu0 0.0
  %5347 = vmatpush1.msra.mxu0 0.0
  %5348 = vmatprep.subr.mxu0 0.0
  %5349 = vmatpush1.msra.mxu0 0.0
  %5350 = vmatprep.subr.mxu0 0.0
  %5351 = vmatpush1.msra.mxu0 0.0
  %5352 = vmatprep.subr.mxu0 0.0
  %5353 = vmatpush1.msra.mxu0 0.0
  %5354 = vmatprep.subr.mxu0 0.0
  %5355 = vmatpush1.msra.mxu0 0.0
  %5356 = vmatprep.subr.mxu0 0.0
  %5357 = vmatpush1.msra.mxu0 0.0
  %5358 = vmatprep.subr.mxu0 0.0
  %5359 = vmatpush1.msra.mxu0 0.0
  %5360 = vmatprep.subr.mxu0 0.0
  %5361 = vmatpush1.msra.mxu0 0.0
  %5362 = vmatprep.subr.mxu0 0.0
  %5363 = vmatpush1.msra.mxu0 %v5334
  %5364 = vmatprep.subr.mxu0 0.0
  %5365 = vmatpush1.msra.mxu0 %v5333
  %5366 = vmatprep.subr.mxu0 0.0
  %5367 = vmatpush1.msra.mxu0 %v5332
  %5368 = vmatprep.subr.mxu0 0.0
  %5369 = vmatpush1.msra.mxu0 %v5331
  %5370 = vmatprep.subr.mxu0 0.0
  %5371 = vmatpush1.msra.mxu0 %v5330
  %5372 = vmatprep.subr.mxu0 0.0
  %5373 = vmatpush1.msra.mxu0 %v5329
  %5374 = vmatprep.subr.mxu0 0.0
  %5375 = vmatpush1.msra.mxu0 %v5328
  %5376 = vmatprep.subr.mxu0 0.0
  %5377 = vmatpush1.msra.mxu0 %v5327
  %5378 = vmatprep.subr.mxu0 0.0
  %5379 = vmatpush2.msra.mxu0 0.0
  %5380 = vmatprep.subr.mxu0 0.0
  %5381 = vmatpush2.msra.mxu0 0.0
  %5382 = vmatprep.subr.mxu0 0.0
  %5383 = vmatpush2.msra.mxu0 0.0
  %5384 = vmatprep.subr.mxu0 0.0
  %5385 = vmatpush2.msra.mxu0 0.0
  %5386 = vmatprep.subr.mxu0 0.0
  %5387 = vmatpush2.msra.mxu0 0.0
  %5388 = vmatprep.subr.mxu0 0.0
  %5389 = vmatpush2.msra.mxu0 0.0
  %5390 = vmatprep.subr.mxu0 0.0
  %5391 = vmatpush2.msra.mxu0 0.0
  %5392 = vmatprep.subr.mxu0 0.0
  %5393 = vmatpush2.msra.mxu0 0.0
  %5394 = vmatprep.subr.mxu0 0.0
  %5395 = vmatpush2.msra.mxu0 0.0
  %5396 = vmatprep.subr.mxu0 0.0
  %5397 = vmatpush2.msra.mxu0 0.0
  %5398 = vmatprep.subr.mxu0 0.0
  %5399 = vmatpush2.msra.mxu0 0.0
  %5400 = vmatprep.subr.mxu0 0.0
  %5401 = vmatpush2.msra.mxu0 0.0
  %5402 = vmatprep.subr.mxu0 0.0
  %5403 = vmatpush2.msra.mxu0 0.0
  %5404 = vmatprep.subr.mxu0 0.0
  %5405 = vmatpush2.msra.mxu0 0.0
  %5406 = vmatprep.subr.mxu0 0.0
  %5407 = vmatpush2.msra.mxu0 0.0
  %5408 = vmatprep.subr.mxu0 0.0
  %5409 = vmatpush2.msra.mxu0 0.0
  %5410 = vmatprep.mubr.f32.mxu0 0.0
  %5411 = vmatmul.mubr.f32.gmra.mxu0 %v5344
  %v5412 = vpop.f32.mrf.mxu0
  %v5413 = vadd.f32 %v5340, %v5412
  %v5414 = vpop.f32.mrf.mxu0
  %5415 = vdwg.mxu0
  %5417 = vrot.lane.b32.xlu0 %v3864, 3
  %v5418 = vpop.permute.xlu0 %5417
  %vm5420 = vcmask 23552
  %v5421 = vsel %vm5420, %v5413, %v5418
  %vm5422 = vcmask 279552
  %5423 = vst.msk [vmem:[%s25] sm:$0x3] %vm5422, %v5421
  // Predicated region
  $region102: #{model_forward.1} parent=0 // pred_check
    _
  $region103: #{model_forward.1} parent=0 // pred_check_branch
    %5425 = sbr.rel (0) target = $region105
  $region104: #{model_forward.1} parent=0 // pred_region
    _
  $region105: #{model_forward.1} parent=0 // pred_fallthru
    _
  // Predicated region
  $region106: #{model_forward.1} parent=0 // pred_check
    _
  $region107: #{model_forward.1} parent=0 // pred_check_branch
    %5427 = sbr.rel (0) target = $region109
  $region108: #{model_forward.1} parent=0 // pred_region
    _
  $region109: #{model_forward.1} parent=0 // pred_fallthru
    _

</llo_original>
